<compile_context>
chip_gen: v7x
topology: tpu7x:2x2x1
jax: 0.10.0
libtpu: 0.0.40
codegen_flags: <defaults>
</compile_context>

<pallas_src>
import jax
import jax.numpy as jnp
from jax.experimental import pallas as pl
from jax.experimental.pallas import tpu as pltpu


def _round_up(x, m):
    return ((x + m - 1) // m) * m


def mf_kernel(uidx_ref, iidx_ref, utab_ref, itab_ref, o_ref):
    """One batch tile.

    uidx_ref / iidx_ref : (1, TB) int32       per-sample user / item indices
    utab_ref            : (D2, Upad) f32/bf16 VMEM-resident augmented user tab
    itab_ref            : (D2, Ipad) f32/bf16 VMEM-resident augmented item tab
    o_ref               : (1, TB) f32         scores for this tile
    """
    tb = o_ref.shape[-1]
    u_cols = utab_ref.shape[1]
    i_cols = itab_ref.shape[1]
    tab_dtype = utab_ref.dtype

    # Never let an f32 table be rounded to bf16 inside the MXU.
    precision = (jax.lax.Precision.HIGHEST
                 if tab_dtype == jnp.float32 else None)

    # One-hot gather on the MXU (MXU is otherwise idle in this mem-bound op).
    onehot_u = (jax.lax.broadcasted_iota(jnp.int32, (u_cols, tb), 0)
                == uidx_ref[...]).astype(tab_dtype)
    onehot_i = (jax.lax.broadcasted_iota(jnp.int32, (i_cols, tb), 0)
                == iidx_ref[...]).astype(tab_dtype)

    u = jnp.dot(utab_ref[...], onehot_u,
                precision=precision, preferred_element_type=jnp.float32)
    it = jnp.dot(itab_ref[...], onehot_i,
                 precision=precision, preferred_element_type=jnp.float32)

    # Augmented rows already carry the biases, so the sublane reduction of the
    # elementwise product is  u·i + b_u + b_i  directly.  Lanes stay dense ->
    # full-width (1, TB) store.
    o_ref[...] = jnp.sum(u * it, axis=0, keepdims=True)


def _augment_table(emb_t, bias, *, bias_first):
    """Build the (D+2, num) augmented, layout-padded, transposed table.

    user: [emb; 1; b_u]   item: [emb; b_i; 1]
    so that sum_d u_aug[d] * i_aug[d] = u·i + b_u + b_i.
    """
    dtype = emb_t.dtype
    D, num = emb_t.shape
    ones = jnp.ones((1, num), dtype)
    b = bias.reshape(1, num).astype(dtype)
    rows = [emb_t, b, ones] if bias_first else [emb_t, ones, b]
    tab = jnp.concatenate(rows, axis=0)                       # (D+2, num)
    # Zero-pad to (mult-of-8 sublanes, mult-of-128 lanes): padded rows add 0
    # to the reduction; padded columns are never selected (indices < num).
    d2 = _round_up(D + 2, 8)
    n2 = _round_up(num, 128)
    return jnp.pad(tab, ((0, d2 - (D + 2)), (0, n2 - num)))


def mf_forward_pallas(user_emb_t, item_emb_t, user_bias, item_bias,
                      edge_index, *, block_b=2048):
    """Pallas implementation of MFModel.forward (eval mode).

    user_emb_t / item_emb_t : (D, num_users) / (D, num_items) — transposed
        nn.Embedding weights (f32 or bf16 storage).
    user_bias / item_bias   : (num_users, 1) / (num_items, 1) f32.
    edge_index              : (2, B) integer indices.
    Returns (B,) float32 scores.
    """
    user_idx = edge_index[0].astype(jnp.int32)
    item_idx = edge_index[1].astype(jnp.int32)
    B = user_idx.shape[0]

    # Fused, VMEM-resident, bias-augmented tables.
    user_tab = _augment_table(user_emb_t, user_bias, bias_first=False)
    item_tab = _augment_table(item_emb_t, item_bias, bias_first=True)
    d2, u_cols = user_tab.shape
    _, i_cols = item_tab.shape

    # Batch tile: large enough to amortize per-step overhead, clamped so the
    # grid keeps >= 4 steps (2 TensorCores on v7x x >= 2 pipelined steps),
    # always a multiple of the 128-lane width.
    tb = max(128, min(int(block_b), _round_up(pl.cdiv(B, 4), 128)))
    B_pad = _round_up(B, tb)
    grid_b = B_pad // tb
    pad = B_pad - B
    if pad:  # index 0 is always valid; padded rows are sliced off at the end.
        user_idx = jnp.pad(user_idx, (0, pad))
        item_idx = jnp.pad(item_idx, (0, pad))
    uidx = user_idx.reshape(1, B_pad)
    iidx = item_idx.reshape(1, B_pad)

    out = pl.pallas_call(
        mf_kernel,
        out_shape=jax.ShapeDtypeStruct((1, B_pad), jnp.float32),
        grid=(grid_b,),
        in_specs=[
            pl.BlockSpec((1, tb), lambda b: (0, b)),        # user indices
            pl.BlockSpec((1, tb), lambda b: (0, b)),        # item indices
            pl.BlockSpec((d2, u_cols), lambda b: (0, 0)),   # resident user tab
            pl.BlockSpec((d2, i_cols), lambda b: (0, 0)),   # resident item tab
        ],
        out_specs=pl.BlockSpec((1, tb), lambda b: (0, b)),
        compiler_params=pltpu.CompilerParams(
            dimension_semantics=("parallel",),
            vmem_limit_bytes=32 * 1024 * 1024,
        ),
    )(uidx, iidx, user_tab, item_tab)

    return out.reshape(B_pad)[:B]                                   # (B,)


def mf_forward_ref(user_emb_t, item_emb_t, user_bias, item_bias, edge_index):
    """Pure-JAX reference, mirrors the PyTorch forward in eval mode (tables
    are the transposes of the nn.Embedding weights; biases are applied in the
    table's storage dtype, matching the fused kernel)."""
    dtype = user_emb_t.dtype
    user_idx, item_idx = edge_index[0], edge_index[1]
    u = user_emb_t[:, user_idx].astype(jnp.float32)                 # (D, B)
    it = item_emb_t[:, item_idx].astype(jnp.float32)                # (D, B)
    b_u = user_bias[user_idx, 0].astype(dtype).astype(jnp.float32)
    b_i = item_bias[item_idx, 0].astype(dtype).astype(jnp.float32)
    return (u * it).sum(axis=0) + b_u + b_i


def xavier_uniform(key, shape):
    # nn.Embedding weight shape: (num_embeddings, emb_dim)
    fan_in, fan_out = shape[1], shape[0]
    limit = jnp.sqrt(6.0 / (fan_in + fan_out))
    return jax.random.uniform(key, shape, jnp.float32, -limit, limit)


if __name__ == "__main__":
    num_users, num_items, emb_dim = 512, 768, 32
    batch = 1000          # NOT a multiple of the tile -> exercises padding;
                          # tile clamps to 256 -> grid of 4 pipelined steps.

    key = jax.random.PRNGKey(0)
    k1, k2, k3, k4, k5, k6 = jax.random.split(key, 6)

    # Deterministic parameter init; tables stored transposed (D, num).
    user_emb_t = xavier_uniform(k1, (num_users, emb_dim)).T          # (D, U)
    item_emb_t = xavier_uniform(k2, (num_items, emb_dim)).T          # (D, I)
    user_bias = jax.random.normal(k3, (num_users, 1), jnp.float32)
    item_bias = jax.random.normal(k4, (num_items, 1), jnp.float32)

    user_idx = jax.random.randint(k5, (batch,), 0, num_users, jnp.int32)
    item_idx = jax.random.randint(k6, (batch,), 0, num_items, jnp.int32)
    edge_index = jnp.stack([user_idx, item_idx], axis=0)             # (2, B)

    # float32 table path — matches the PyTorch module (eval mode).
    out = mf_forward_pallas(user_emb_t, item_emb_t, user_bias, item_bias,
                            edge_index)
    out = jax.block_until_ready(out)
    ref = mf_forward_ref(user_emb_t, item_emb_t, user_bias, item_bias,
                         edge_index)
    assert out.shape == (batch,)
    assert jnp.allclose(out, ref, atol=1e-4, rtol=1e-4)

    # bf16 table-storage path (recommended default on v5e: halves the bytes of
    # the dominant stream); MXU gather + reduction still accumulate in f32.
    ue_bf16 = user_emb_t.astype(jnp.bfloat16)
    ie_bf16 = item_emb_t.astype(jnp.bfloat16)
    out_bf16 = mf_forward_pallas(ue_bf16, ie_bf16, user_bias, item_bias,
                                 edge_index)
    out_bf16 = jax.block_until_ready(out_bf16)
    ref_bf16 = mf_forward_ref(ue_bf16, ie_bf16, user_bias, item_bias,
                              edge_index)
    assert jnp.allclose(out_bf16, ref_bf16, atol=1e-4, rtol=1e-4)

    print("KERNEL_OK")
</pallas_src>

<mosaic_0001>
module attributes {stable_mosaic.version = 11 : i64} {
  func.func @mf_kernel(%arg0: i32, %arg1: memref<1x256xi32, #tpu.memory_space<vmem>>, %arg2: memref<1x256xi32, #tpu.memory_space<vmem>>, %arg3: memref<40x512xf32, #tpu.memory_space<vmem>>, %arg4: memref<40x768xf32, #tpu.memory_space<vmem>>, %arg5: memref<1x256xf32, #tpu.memory_space<vmem>>) attributes {dimension_semantics = [#tpu.dimension_semantics<parallel>], iteration_bounds = array<i64: 4>, scalar_prefetch = 0 : i64, scratch_operands = 0 : i64, tpu.core_type = #tpu.core_type<tc>, window_params = [{transform_indices = @transform_0, window_bounds = array<i64: 1, 256>}, {transform_indices = @transform_1, window_bounds = array<i64: 1, 256>}, {pipeline_mode = #tpu.pipeline_mode<synchronous>, transform_indices = @transform_2, window_bounds = array<i64: 40, 512>}, {pipeline_mode = #tpu.pipeline_mode<synchronous>, transform_indices = @transform_3, window_bounds = array<i64: 40, 768>}, {transform_indices = @transform_4, window_bounds = array<i64: 1, 256>}]} {
    %0 = tpu.iota {dimensions = array<i32: 0>} : vector<512x256xi32>
    %c0 = arith.constant 0 : index
    %c0_0 = arith.constant 0 : index
    %1 = vector.load %arg1[%c0, %c0_0] : memref<1x256xi32, #tpu.memory_space<vmem>>, vector<1x256xi32>
    %2 = vector.broadcast %1 : vector<1x256xi32> to vector<512x256xi32>
    %3 = arith.cmpi eq, %0, %2 : vector<512x256xi32>
    %4 = arith.extui %3 : vector<512x256xi1> to vector<512x256xi32>
    %5 = arith.sitofp %4 : vector<512x256xi32> to vector<512x256xf32>
    %6 = tpu.iota {dimensions = array<i32: 0>} : vector<768x256xi32>
    %c0_1 = arith.constant 0 : index
    %c0_2 = arith.constant 0 : index
    %7 = vector.load %arg2[%c0_1, %c0_2] : memref<1x256xi32, #tpu.memory_space<vmem>>, vector<1x256xi32>
    %8 = vector.broadcast %7 : vector<1x256xi32> to vector<768x256xi32>
    %9 = arith.cmpi eq, %6, %8 : vector<768x256xi32>
    %10 = arith.extui %9 : vector<768x256xi1> to vector<768x256xi32>
    %11 = arith.sitofp %10 : vector<768x256xi32> to vector<768x256xf32>
    %c0_3 = arith.constant 0 : index
    %c0_4 = arith.constant 0 : index
    %12 = vector.load %arg3[%c0_3, %c0_4] : memref<40x512xf32, #tpu.memory_space<vmem>>, vector<40x512xf32>
    %cst = arith.constant dense<0.000000e+00> : vector<40x256xf32>
    %13 = tpu.matmul %12, %5, %cst {dimension_numbers = #tpu.dot_dimension_numbers<[1], [0], [0], [1], [0, 0, 1, 1], [], []>, precision = #tpu.contract_precision<fp32>} : vector<40x512xf32>, vector<512x256xf32>, vector<40x256xf32> -> vector<40x256xf32>
    %c0_5 = arith.constant 0 : index
    %c0_6 = arith.constant 0 : index
    %14 = vector.load %arg4[%c0_5, %c0_6] : memref<40x768xf32, #tpu.memory_space<vmem>>, vector<40x768xf32>
    %cst_7 = arith.constant dense<0.000000e+00> : vector<40x256xf32>
    %15 = tpu.matmul %14, %11, %cst_7 {dimension_numbers = #tpu.dot_dimension_numbers<[1], [0], [0], [1], [0, 0, 1, 1], [], []>, precision = #tpu.contract_precision<fp32>} : vector<40x768xf32>, vector<768x256xf32>, vector<40x256xf32> -> vector<40x256xf32>
    %16 = arith.mulf %13, %15 : vector<40x256xf32>
    %cst_8 = arith.constant dense<0.000000e+00> : vector<256xf32>
    %17 = vector.multi_reduction <add>, %16, %cst_8 [0] : vector<40x256xf32> to vector<256xf32>
    %18 = vector.shape_cast %17 : vector<256xf32> to vector<1x256xf32>
    %c0_9 = arith.constant 0 : index
    %c0_10 = arith.constant 0 : index
    %19 = vector.load %arg5[%c0_9, %c0_10] : memref<1x256xf32, #tpu.memory_space<vmem>>, vector<1x256xf32>
    tpu.vector_store %arg5[%c0_9, %c0_10], %18 {strides = array<i32>} : memref<1x256xf32, #tpu.memory_space<vmem>>, vector<1x256xf32>,
    return
  }
  func.func @transform_0(%arg0: i32) -> (i32, i32) {
    %c0_i32 = arith.constant 0 : i32
    %c0_i32_0 = arith.constant 0 : i32
    return %c0_i32, %arg0 : i32, i32
  }
  func.func @transform_1(%arg0: i32) -> (i32, i32) {
    %c0_i32 = arith.constant 0 : i32
    %c0_i32_0 = arith.constant 0 : i32
    return %c0_i32, %arg0 : i32, i32
  }
  func.func @transform_2(%arg0: i32) -> (i32, i32) {
    %c0_i32 = arith.constant 0 : i32
    %c0_i32_0 = arith.constant 0 : i32
    %c0_i32_1 = arith.constant 0 : i32
    return %c0_i32, %c0_i32_0 : i32, i32
  }
  func.func @transform_3(%arg0: i32) -> (i32, i32) {
    %c0_i32 = arith.constant 0 : i32
    %c0_i32_0 = arith.constant 0 : i32
    %c0_i32_1 = arith.constant 0 : i32
    return %c0_i32, %c0_i32_0 : i32, i32
  }
  func.func @transform_4(%arg0: i32) -> (i32, i32) {
    %c0_i32 = arith.constant 0 : i32
    %c0_i32_0 = arith.constant 0 : i32
    return %c0_i32, %arg0 : i32, i32
  }
}

</mosaic_0001>

<llo_original>
// kernel: tpu_custom_call.1
$region0: #{tpu_custom_call.1}
  #allocation0 [shape = 'u32[]', space=smem, size = 0x4, offset = 0x4, fixed_abs, tag = 'smem constant byte address 0x4 - core index']
  #allocation1 [shape = 'u32[144,128]{1,0:T(1,128)}', space=vmem, size = 0x12000, scoped, tag = 'internal scratch']
  %s0 = inlined_call_operand.hbm [shape: s32[1,1024], index: 0, kind: input, shape index: {}]
  %s1 = inlined_call_operand.hbm [shape: s32[1,1024], index: 1, kind: input, shape index: {}]
  %s2 = inlined_call_operand.hbm [shape: f32[40,512], index: 2, kind: input, shape index: {}]
  %s3 = inlined_call_operand.hbm [shape: f32[40,768], index: 3, kind: input, shape index: {}]
  %s4 = inlined_call_operand.hbm [shape: f32[1,1024], index: 4, kind: output, shape index: {}]
  %s5 = sld [smem:[#allocation0]]
  $region65: #{tpu_custom_call.1} parent=0
    _
  %s7 = ssub.s32 1, %s5
  %s8 = scalar_select 0, %s7, %s5
  $region1: #{tpu_custom_call.1} parent=0
    #allocation2 [shape = 'u8[2048]{0}', space=vmem, size = 0x800, scoped, tag = 'input window, operand 0']
    #allocation3 [shape = 's32[2]{0}', space=sflag, size = 0x8, scoped, tag = 'scoped memory for tpu_custom_call.1']
    #allocation4 [shape = 's32[2]{0}', space=sflag, size = 0x8, scoped, tag = 'scoped memory for tpu_custom_call.1']
    #allocation5 [shape = 'u8[2048]{0}', space=vmem, size = 0x800, scoped, tag = 'input window, operand 1']
    #allocation6 [shape = 's32[2]{0}', space=sflag, size = 0x8, scoped, tag = 'scoped memory for tpu_custom_call.1']
    #allocation7 [shape = 'u8[81920]{0}', space=vmem, size = 0x14000, scoped, tag = 'input window, operand 2, single buffered']
    #allocation8 [shape = 'u8[122880]{0}', space=vmem, size = 0x1e000, scoped, tag = 'input window, operand 3, single buffered']
    #allocation9 [shape = 's32[1]{0}', space=sflag, size = 0x4, scoped, tag = 'scoped memory for tpu_custom_call.1']
    #allocation10 [shape = 'u8[2048]{0}', space=vmem, size = 0x800, scoped, tag = 'output window, operand 0']
    %9 = vsyncpa [#allocation3], 0
    %s10 = scalar_lea.sflag [#allocation3], 1
    %11 = vsyncpa %s10, 0
    %12 = vsyncpa [#allocation6], 0
    %s13 = scalar_lea.sflag [#allocation6], 1
    %14 = vsyncpa %s13, 0
    %15 = vsyncpa [#allocation9], 0
    %16 = vsyncpa [#allocation4], 0
    %s17 = scalar_lea.sflag [#allocation4], 1
    %18 = vsyncpa %s17, 0
    loop: start=0, step=1, limit=6
    $region2: #{tpu_custom_call.1} parent=1 // loop_pre_header
      _
    $region3: #{tpu_custom_call.1} parent=1 // loop_header
      %s20 = sphi 0, %s24
      %p21 = scmp.ge.s32.totalorder %s20, 6
      %s30 = sphi 0, %s32
      %s33 = sphi 0, %s30
      %s34 = sphi 0, %s33
      %s50 = sphi 0, %s34
      %s56 = sphi 0, %s58
      %s59 = sphi 0, %s56
      %s60 = sphi 0, %s59
      %s76 = sphi 0, %s60
      %s80 = sphi 0, %s80
      %s82 = sphi 0, %s80
      %s83 = sphi 0, %s82
      %s97 = sphi 0, %s83
      %s101 = sphi 0, %s101
      %s103 = sphi 0, %s101
      %s104 = sphi 0, %s103
      %s118 = sphi 0, %s104
      %s124 = sphi 0, %s126
      %s127 = sphi 0, %s124
      %s128 = sphi 0, %s127
      %s144 = sphi 0, %s128
    $region4: #{tpu_custom_call.1} parent=1 // loop_header_branch
      %23 = sbr.rel (%p21) target = $region8
    $region5: #{tpu_custom_call.1} parent=1 // loop_body
      %s25 = ssub.s32 %s20, 1
      %s26 = ssub.s32 %s20, 2
      %s27 = sadd.s32 %s20, 1
      %s28 = ssub.s32 %s20, %s27
      %p29 = scmp.eq.s32.totalorder %s28, 0
      %s31 = sadd.s32 %s30, 1
      %s32 = scalar_select %p29, %s30, %s31
      %p35 = pneg %p29
      %p36 = scmp.eq.s32.totalorder %s20, 3
      %p37 = por %p35, %p36
      %p38 = scmp.ne.s32.totalorder %s30, %s33
      %p39 = scmp.eq.s32.totalorder %s20, 0
      %p40 = por %p38, %p39
      %p41 = scmp.ne.s32.totalorder %s30, %s33
      %p42 = scmp.eq.s32.totalorder %s25, 3
      %p43 = por %p41, %p42
      %p44 = scmp.ne.s32.totalorder %s33, %s34
      %p45 = scmp.eq.s32.totalorder %s25, 0
      %p46 = por %p44, %p45
      %p47 = scmp.ne.s32.totalorder %s33, %s34
      %p48 = scmp.eq.s32.totalorder %s26, 3
      %p49 = por %p47, %p48
      %p51 = scmp.ne.s32.totalorder %s34, %s50
      %p52 = scmp.eq.s32.totalorder %s26, 0
      %p53 = por %p51, %p52
      %s54 = ssub.s32 %s20, %s27
      %p55 = scmp.eq.s32.totalorder %s54, 0
      %s57 = sadd.s32 %s56, 1
      %s58 = scalar_select %p55, %s56, %s57
      %p61 = pneg %p55
      %p62 = scmp.eq.s32.totalorder %s20, 3
      %p63 = por %p61, %p62
      %p64 = scmp.ne.s32.totalorder %s56, %s59
      %p65 = scmp.eq.s32.totalorder %s20, 0
      %p66 = por %p64, %p65
      %p67 = scmp.ne.s32.totalorder %s56, %s59
      %p68 = scmp.eq.s32.totalorder %s25, 3
      %p69 = por %p67, %p68
      %p70 = scmp.ne.s32.totalorder %s59, %s60
      %p71 = scmp.eq.s32.totalorder %s25, 0
      %p72 = por %p70, %p71
      %p73 = scmp.ne.s32.totalorder %s59, %s60
      %p74 = scmp.eq.s32.totalorder %s26, 3
      %p75 = por %p73, %p74
      %p77 = scmp.ne.s32.totalorder %s60, %s76
      %p78 = scmp.eq.s32.totalorder %s26, 0
      %p79 = por %p77, %p78
      %s81 = sadd.s32 %s80, 1
      %p84 = scmp.eq.s32.totalorder %s20, 3
      %p85 = scmp.ne.s32.totalorder %s80, %s82
      %p86 = scmp.eq.s32.totalorder %s20, 0
      %p87 = por %p85, %p86
      %p88 = scmp.ne.s32.totalorder %s80, %s82
      %p89 = scmp.eq.s32.totalorder %s25, 3
      %p90 = por %p88, %p89
      %p91 = scmp.ne.s32.totalorder %s82, %s83
      %p92 = scmp.eq.s32.totalorder %s25, 0
      %p93 = por %p91, %p92
      %p94 = scmp.ne.s32.totalorder %s82, %s83
      %p95 = scmp.eq.s32.totalorder %s26, 3
      %p96 = por %p94, %p95
      %p98 = scmp.ne.s32.totalorder %s83, %s97
      %p99 = scmp.eq.s32.totalorder %s26, 0
      %p100 = por %p98, %p99
      %s102 = sadd.s32 %s101, 1
      %p105 = scmp.eq.s32.totalorder %s20, 3
      %p106 = scmp.ne.s32.totalorder %s101, %s103
      %p107 = scmp.eq.s32.totalorder %s20, 0
      %p108 = por %p106, %p107
      %p109 = scmp.ne.s32.totalorder %s101, %s103
      %p110 = scmp.eq.s32.totalorder %s25, 3
      %p111 = por %p109, %p110
      %p112 = scmp.ne.s32.totalorder %s103, %s104
      %p113 = scmp.eq.s32.totalorder %s25, 0
      %p114 = por %p112, %p113
      %p115 = scmp.ne.s32.totalorder %s103, %s104
      %p116 = scmp.eq.s32.totalorder %s26, 3
      %p117 = por %p115, %p116
      %p119 = scmp.ne.s32.totalorder %s104, %s118
      %p120 = scmp.eq.s32.totalorder %s26, 0
      %p121 = por %p119, %p120
      %s122 = ssub.s32 %s20, %s27
      %p123 = scmp.eq.s32.totalorder %s122, 0
      %s125 = sadd.s32 %s124, 1
      %s126 = scalar_select %p123, %s124, %s125
      %p129 = pneg %p123
      %p130 = scmp.eq.s32.totalorder %s20, 3
      %p131 = por %p129, %p130
      %p132 = scmp.ne.s32.totalorder %s124, %s127
      %p133 = scmp.eq.s32.totalorder %s20, 0
      %p134 = por %p132, %p133
      %p135 = scmp.ne.s32.totalorder %s124, %s127
      %p136 = scmp.eq.s32.totalorder %s25, 3
      %p137 = por %p135, %p136
      %p138 = scmp.ne.s32.totalorder %s127, %s128
      %p139 = scmp.eq.s32.totalorder %s25, 0
      %p140 = por %p138, %p139
      %p141 = scmp.ne.s32.totalorder %s127, %s128
      %p142 = scmp.eq.s32.totalorder %s26, 3
      %p143 = por %p141, %p142
      %p145 = scmp.ne.s32.totalorder %s128, %s144
      %p146 = scmp.eq.s32.totalorder %s26, 0
      %p147 = por %p145, %p146
      %p148 = scmp.le.s32.totalorder 1, %s20
      %p149 = scmp.lt.s32.totalorder %s20, 5
      %p150 = pnand %p148, %p149
      %p151 = pneg %p150
      // Predicated region
      $region9: #{tpu_custom_call.1} parent=5 // pred_check
        _
      $region10: #{tpu_custom_call.1} parent=5 // pred_check_branch
        %153 = sbr.rel (%p150) target = $region12
      $region11: #{tpu_custom_call.1} parent=5 // pred_region
        %s154 = ssub.s32 %s20, 1
        // Predicated region
        $region13: #{tpu_custom_call.1} parent=11 // pred_check
          %p155 = pneg %p93
        $region14: #{tpu_custom_call.1} parent=11 // pred_check_branch
          %157 = sbr.rel (%p155) target = $region16
        $region15: #{tpu_custom_call.1} parent=11 // pred_region
          %s159 = ssub.s32 2560, 2560
          %160 = vsyncadd [#allocation6], %s159
          %s161 = sshll.u32 [#allocation7], 4
          %s162 = int_to_ptr.vmem [resolvable:$true] %s161
          %167 = dma.hbm_to_vmem [thread:$0]  %s2, 2560, %s162, [#allocation6], 512, 512, 32
        $region16: #{tpu_custom_call.1} parent=11 // pred_fallthru
          _
        // Predicated region
        $region17: #{tpu_custom_call.1} parent=11 // pred_check
          %p168 = pneg %p114
        $region18: #{tpu_custom_call.1} parent=11 // pred_check_branch
          %170 = sbr.rel (%p168) target = $region20
        $region19: #{tpu_custom_call.1} parent=11 // pred_region
          %s172 = ssub.s32 3840, 3840
          %173 = vsyncadd [#allocation9], %s172
          %s174 = sshll.u32 [#allocation8], 4
          %s175 = int_to_ptr.vmem [resolvable:$true] %s174
          %180 = dma.hbm_to_vmem [thread:$0]  %s3, 3840, %s175, [#allocation9], 768, 768, 48
        $region20: #{tpu_custom_call.1} parent=11 // pred_fallthru
          _
      $region12: #{tpu_custom_call.1} parent=5 // pred_fallthru
        _
      %p181 = scmp.lt.s32.totalorder %s20, 4
      // Predicated region
      $region21: #{tpu_custom_call.1} parent=5 // pred_check
        %p182 = pneg %p181
      $region22: #{tpu_custom_call.1} parent=5 // pred_check_branch
        %184 = sbr.rel (%p182) target = $region24
      $region23: #{tpu_custom_call.1} parent=5 // pred_region
        // Predicated region
        $region25: #{tpu_custom_call.1} parent=23 // pred_check
          %p185 = pneg %p40
        $region26: #{tpu_custom_call.1} parent=23 // pred_check_branch
          %187 = sbr.rel (%p185) target = $region28
        $region27: #{tpu_custom_call.1} parent=23 // pred_region
          %s188 = sand.u32 %s30, 1
          %s189 = scalar_lea.sflag [#allocation3], %s188
          %s190 = sand.u32 %s30, 1
          %s191 = smul.addr %s190, 2
          %s192 = scalar_lea.vmem [#allocation2], %s191
          %s193 = smul.u32 2, %s20
          %s195 = ssub.s32 32, 32
          %196 = vsyncadd %s189, %s195
          %s197 = smul.addr %s193, 16
          %s198 = scalar_lea.hbm %s0, %s197
          %s200 = sshll.u32 %s192, 4
          %s201 = int_to_ptr.vmem [resolvable:$true] %s200
          %203 = dma.hbm_to_vmem [thread:$0]  %s198, 32, %s201, %s189
        $region28: #{tpu_custom_call.1} parent=23 // pred_fallthru
          _
        // Predicated region
        $region29: #{tpu_custom_call.1} parent=23 // pred_check
          %p204 = pneg %p66
        $region30: #{tpu_custom_call.1} parent=23 // pred_check_branch
          %206 = sbr.rel (%p204) target = $region32
        $region31: #{tpu_custom_call.1} parent=23 // pred_region
          %s207 = sand.u32 %s20, 1
          %s208 = scalar_lea.sflag [#allocation6], %s207
          %s209 = sand.u32 %s56, 1
          %s210 = smul.addr %s209, 2
          %s211 = scalar_lea.vmem [#allocation5], %s210
          %s212 = smul.u32 2, %s20
          %s214 = ssub.s32 32, 32
          %215 = vsyncadd %s208, %s214
          %s216 = smul.addr %s212, 16
          %s217 = scalar_lea.hbm %s1, %s216
          %s219 = sshll.u32 %s211, 4
          %s220 = int_to_ptr.vmem [resolvable:$true] %s219
          %222 = dma.hbm_to_vmem [thread:$0]  %s217, 32, %s220, %s208
        $region32: #{tpu_custom_call.1} parent=23 // pred_fallthru
          _
      $region24: #{tpu_custom_call.1} parent=5 // pred_fallthru
        _
      %p223 = scmp.le.s32.totalorder 1, %s20
      %p224 = scmp.lt.s32.totalorder %s20, 5
      %p225 = pnand %p223, %p224
      %p226 = pneg %p225
      // Predicated region
      $region33: #{tpu_custom_call.1} parent=5 // pred_check
        _
      $region34: #{tpu_custom_call.1} parent=5 // pred_check_branch
        %228 = sbr.rel (%p225) target = $region36
      $region35: #{tpu_custom_call.1} parent=5 // pred_region
        %s229 = ssub.s32 %s20, 1
        %s230 = sand.u32 %s33, 1
        %s231 = scalar_lea.sflag [#allocation3], %s230
        %s232 = sand.u32 %s33, 1
        %s233 = smul.addr %s232, 2
        %s234 = scalar_lea.vmem [#allocation2], %s233
        // Predicated region
        $region37: #{tpu_custom_call.1} parent=35 // pred_check
          %p235 = pneg %p46
        $region38: #{tpu_custom_call.1} parent=35 // pred_check_branch
          %237 = sbr.rel (%p235) target = $region40
        $region39: #{tpu_custom_call.1} parent=35 // pred_region
          %238 = dma.done %s231, 32
        $region40: #{tpu_custom_call.1} parent=35 // pred_fallthru
          _
        %s239 = sand.u32 %s25, 1
        %s240 = scalar_lea.sflag [#allocation6], %s239
        %s241 = sand.u32 %s59, 1
        %s242 = smul.addr %s241, 2
        %s243 = scalar_lea.vmem [#allocation5], %s242
        // Predicated region
        $region41: #{tpu_custom_call.1} parent=35 // pred_check
          %p244 = pneg %p72
        $region42: #{tpu_custom_call.1} parent=35 // pred_check_branch
          %246 = sbr.rel (%p244) target = $region44
        $region43: #{tpu_custom_call.1} parent=35 // pred_region
          %247 = dma.done %s240, 32
        $region44: #{tpu_custom_call.1} parent=35 // pred_fallthru
          _
        // Predicated region
        $region45: #{tpu_custom_call.1} parent=35 // pred_check
          %p248 = pneg %p93
        $region46: #{tpu_custom_call.1} parent=35 // pred_check_branch
          %250 = sbr.rel (%p248) target = $region48
        $region47: #{tpu_custom_call.1} parent=35 // pred_region
          %251 = dma.done [#allocation6], 2560
        $region48: #{tpu_custom_call.1} parent=35 // pred_fallthru
          _
        // Predicated region
        $region49: #{tpu_custom_call.1} parent=35 // pred_check
          %p252 = pneg %p114
        $region50: #{tpu_custom_call.1} parent=35 // pred_check_branch
          %254 = sbr.rel (%p252) target = $region52
        $region51: #{tpu_custom_call.1} parent=35 // pred_region
          %255 = dma.done [#allocation9], 3840
        $region52: #{tpu_custom_call.1} parent=35 // pred_fallthru
          _
        %s256 = sand.u32 %s33, 1
        %s257 = scalar_lea.sflag [#allocation3], %s256
        %s258 = sand.u32 %s33, 1
        %s259 = smul.addr %s258, 2
        %s260 = scalar_lea.vmem [#allocation2], %s259
        %p261 = pneg %p46
        %p262 = pneg %p43
        %s263 = sand.u32 %s25, 1
        %s264 = scalar_lea.sflag [#allocation6], %s263
        %s265 = sand.u32 %s59, 1
        %s266 = smul.addr %s265, 2
        %s267 = scalar_lea.vmem [#allocation5], %s266
        %p268 = pneg %p72
        %p269 = pneg %p69
        %p270 = pneg %p93
        %p271 = pneg %p90
        %p272 = pneg %p114
        %p273 = pneg %p111
        %p274 = pneg %p140
        %p275 = pneg %p137
        %s276 = sand.u32 %s127, 1
        %s277 = scalar_lea.sflag [#allocation4], %s276
        %s278 = sand.u32 %s127, 1
        %s279 = smul.addr %s278, 2
        %s280 = scalar_lea.vmem [#allocation10], %s279
        %s281 = smul.u32 2, %s25
        %s282 = smul.u32 2, %s25
        %s283 = smul.u32 2, %s25
        %v284 = vlaneseq
        %v285 = vshrl.u32 %v284, 7
        %v286 = vadd.s32 %v285, 8
        %v287 = vadd.s32 %v285, 16
        %v288 = vadd.s32 %v285, 24
        %v289 = vadd.s32 %v285, 32
        %v290 = vadd.s32 %v285, 40
        %v291 = vadd.s32 %v285, 48
        %v292 = vadd.s32 %v285, 56
        %v293 = vadd.s32 %v285, 64
        %v294 = vadd.s32 %v285, 72
        %v295 = vadd.s32 %v285, 80
        %v296 = vadd.s32 %v285, 88
        %v297 = vadd.s32 %v285, 96
        %v298 = vadd.s32 %v285, 104
        %v299 = vadd.s32 %v285, 112
        %v300 = vadd.s32 %v285, 120
        %v301 = vadd.s32 %v285, 128
        %v302 = vadd.s32 %v285, 136
        %v303 = vadd.s32 %v285, 144
        %v304 = vadd.s32 %v285, 152
        %v305 = vadd.s32 %v285, 160
        %v306 = vadd.s32 %v285, 168
        %v307 = vadd.s32 %v285, 176
        %v308 = vadd.s32 %v285, 184
        %v309 = vadd.s32 %v285, 192
        %v310 = vadd.s32 %v285, 200
        %v311 = vadd.s32 %v285, 208
        %v312 = vadd.s32 %v285, 216
        %v313 = vadd.s32 %v285, 224
        %v314 = vadd.s32 %v285, 232
        %v315 = vadd.s32 %v285, 240
        %v316 = vadd.s32 %v285, 248
        %v317 = vadd.s32 %v285, 256
        %v318 = vadd.s32 %v285, 264
        %v319 = vadd.s32 %v285, 272
        %v320 = vadd.s32 %v285, 280
        %v321 = vadd.s32 %v285, 288
        %v322 = vadd.s32 %v285, 296
        %v323 = vadd.s32 %v285, 304
        %v324 = vadd.s32 %v285, 312
        %v325 = vadd.s32 %v285, 320
        %v326 = vadd.s32 %v285, 328
        %v327 = vadd.s32 %v285, 336
        %v328 = vadd.s32 %v285, 344
        %v329 = vadd.s32 %v285, 352
        %v330 = vadd.s32 %v285, 360
        %v331 = vadd.s32 %v285, 368
        %v332 = vadd.s32 %v285, 376
        %v333 = vadd.s32 %v285, 384
        %v334 = vadd.s32 %v285, 392
        %v335 = vadd.s32 %v285, 400
        %v336 = vadd.s32 %v285, 408
        %v337 = vadd.s32 %v285, 416
        %v338 = vadd.s32 %v285, 424
        %v339 = vadd.s32 %v285, 432
        %v340 = vadd.s32 %v285, 440
        %v341 = vadd.s32 %v285, 448
        %v342 = vadd.s32 %v285, 456
        %v343 = vadd.s32 %v285, 464
        %v344 = vadd.s32 %v285, 472
        %v345 = vadd.s32 %v285, 480
        %v346 = vadd.s32 %v285, 488
        %v347 = vadd.s32 %v285, 496
        %v348 = vadd.s32 %v285, 504
        %v349 = vld [vmem:[%s234] sm:$0x3]
        %v350 = vlaneseq
        %v351 = vshrl.u32 %v350, 7
        %v352 = vsub.s32 0, %v351
        %v353 = vrot.slane %v349, %v352
        %v354 = vlaneseq
        %v355 = vshrl.u32 %v354, 7
        %v356 = vsub.s32 1, %v355
        %v357 = vrot.slane %v349, %v356
        %vm358 = vcmp.eq.s32.totalorder %v285, %v353
        %vm359 = vcmp.eq.s32.totalorder %v285, %v357
        %vm360 = vcmp.eq.s32.totalorder %v286, %v353
        %vm361 = vcmp.eq.s32.totalorder %v286, %v357
        %vm362 = vcmp.eq.s32.totalorder %v287, %v353
        %vm363 = vcmp.eq.s32.totalorder %v287, %v357
        %vm364 = vcmp.eq.s32.totalorder %v288, %v353
        %vm365 = vcmp.eq.s32.totalorder %v288, %v357
        %vm366 = vcmp.eq.s32.totalorder %v289, %v353
        %vm367 = vcmp.eq.s32.totalorder %v289, %v357
        %vm368 = vcmp.eq.s32.totalorder %v290, %v353
        %vm369 = vcmp.eq.s32.totalorder %v290, %v357
        %vm370 = vcmp.eq.s32.totalorder %v291, %v353
        %vm371 = vcmp.eq.s32.totalorder %v291, %v357
        %vm372 = vcmp.eq.s32.totalorder %v292, %v353
        %vm373 = vcmp.eq.s32.totalorder %v292, %v357
        %vm374 = vcmp.eq.s32.totalorder %v293, %v353
        %vm375 = vcmp.eq.s32.totalorder %v293, %v357
        %vm376 = vcmp.eq.s32.totalorder %v294, %v353
        %vm377 = vcmp.eq.s32.totalorder %v294, %v357
        %vm378 = vcmp.eq.s32.totalorder %v295, %v353
        %vm379 = vcmp.eq.s32.totalorder %v295, %v357
        %vm380 = vcmp.eq.s32.totalorder %v296, %v353
        %vm381 = vcmp.eq.s32.totalorder %v296, %v357
        %vm382 = vcmp.eq.s32.totalorder %v297, %v353
        %vm383 = vcmp.eq.s32.totalorder %v297, %v357
        %vm384 = vcmp.eq.s32.totalorder %v298, %v353
        %vm385 = vcmp.eq.s32.totalorder %v298, %v357
        %vm386 = vcmp.eq.s32.totalorder %v299, %v353
        %vm387 = vcmp.eq.s32.totalorder %v299, %v357
        %vm388 = vcmp.eq.s32.totalorder %v300, %v353
        %vm389 = vcmp.eq.s32.totalorder %v300, %v357
        %vm390 = vcmp.eq.s32.totalorder %v301, %v353
        %vm391 = vcmp.eq.s32.totalorder %v301, %v357
        %vm392 = vcmp.eq.s32.totalorder %v302, %v353
        %vm393 = vcmp.eq.s32.totalorder %v302, %v357
        %vm394 = vcmp.eq.s32.totalorder %v303, %v353
        %vm395 = vcmp.eq.s32.totalorder %v303, %v357
        %vm396 = vcmp.eq.s32.totalorder %v304, %v353
        %vm397 = vcmp.eq.s32.totalorder %v304, %v357
        %vm398 = vcmp.eq.s32.totalorder %v305, %v353
        %vm399 = vcmp.eq.s32.totalorder %v305, %v357
        %vm400 = vcmp.eq.s32.totalorder %v306, %v353
        %vm401 = vcmp.eq.s32.totalorder %v306, %v357
        %vm402 = vcmp.eq.s32.totalorder %v307, %v353
        %vm403 = vcmp.eq.s32.totalorder %v307, %v357
        %vm404 = vcmp.eq.s32.totalorder %v308, %v353
        %vm405 = vcmp.eq.s32.totalorder %v308, %v357
        %vm406 = vcmp.eq.s32.totalorder %v309, %v353
        %vm407 = vcmp.eq.s32.totalorder %v309, %v357
        %vm408 = vcmp.eq.s32.totalorder %v310, %v353
        %vm409 = vcmp.eq.s32.totalorder %v310, %v357
        %vm410 = vcmp.eq.s32.totalorder %v311, %v353
        %vm411 = vcmp.eq.s32.totalorder %v311, %v357
        %vm412 = vcmp.eq.s32.totalorder %v312, %v353
        %vm413 = vcmp.eq.s32.totalorder %v312, %v357
        %vm414 = vcmp.eq.s32.totalorder %v313, %v353
        %vm415 = vcmp.eq.s32.totalorder %v313, %v357
        %vm416 = vcmp.eq.s32.totalorder %v314, %v353
        %vm417 = vcmp.eq.s32.totalorder %v314, %v357
        %vm418 = vcmp.eq.s32.totalorder %v315, %v353
        %vm419 = vcmp.eq.s32.totalorder %v315, %v357
        %vm420 = vcmp.eq.s32.totalorder %v316, %v353
        %vm421 = vcmp.eq.s32.totalorder %v316, %v357
        %vm422 = vcmp.eq.s32.totalorder %v317, %v353
        %vm423 = vcmp.eq.s32.totalorder %v317, %v357
        %vm424 = vcmp.eq.s32.totalorder %v318, %v353
        %vm425 = vcmp.eq.s32.totalorder %v318, %v357
        %vm426 = vcmp.eq.s32.totalorder %v319, %v353
        %vm427 = vcmp.eq.s32.totalorder %v319, %v357
        %vm428 = vcmp.eq.s32.totalorder %v320, %v353
        %vm429 = vcmp.eq.s32.totalorder %v320, %v357
        %vm430 = vcmp.eq.s32.totalorder %v321, %v353
        %vm431 = vcmp.eq.s32.totalorder %v321, %v357
        %vm432 = vcmp.eq.s32.totalorder %v322, %v353
        %vm433 = vcmp.eq.s32.totalorder %v322, %v357
        %vm434 = vcmp.eq.s32.totalorder %v323, %v353
        %vm435 = vcmp.eq.s32.totalorder %v323, %v357
        %vm436 = vcmp.eq.s32.totalorder %v324, %v353
        %vm437 = vcmp.eq.s32.totalorder %v324, %v357
        %vm438 = vcmp.eq.s32.totalorder %v325, %v353
        %vm439 = vcmp.eq.s32.totalorder %v325, %v357
        %vm440 = vcmp.eq.s32.totalorder %v326, %v353
        %vm441 = vcmp.eq.s32.totalorder %v326, %v357
        %vm442 = vcmp.eq.s32.totalorder %v327, %v353
        %vm443 = vcmp.eq.s32.totalorder %v327, %v357
        %vm444 = vcmp.eq.s32.totalorder %v328, %v353
        %vm445 = vcmp.eq.s32.totalorder %v328, %v357
        %vm446 = vcmp.eq.s32.totalorder %v329, %v353
        %vm447 = vcmp.eq.s32.totalorder %v329, %v357
        %vm448 = vcmp.eq.s32.totalorder %v330, %v353
        %vm449 = vcmp.eq.s32.totalorder %v330, %v357
        %vm450 = vcmp.eq.s32.totalorder %v331, %v353
        %vm451 = vcmp.eq.s32.totalorder %v331, %v357
        %vm452 = vcmp.eq.s32.totalorder %v332, %v353
        %vm453 = vcmp.eq.s32.totalorder %v332, %v357
        %vm454 = vcmp.eq.s32.totalorder %v333, %v353
        %vm455 = vcmp.eq.s32.totalorder %v333, %v357
        %vm456 = vcmp.eq.s32.totalorder %v334, %v353
        %vm457 = vcmp.eq.s32.totalorder %v334, %v357
        %vm458 = vcmp.eq.s32.totalorder %v335, %v353
        %vm459 = vcmp.eq.s32.totalorder %v335, %v357
        %vm460 = vcmp.eq.s32.totalorder %v336, %v353
        %vm461 = vcmp.eq.s32.totalorder %v336, %v357
        %vm462 = vcmp.eq.s32.totalorder %v337, %v353
        %vm463 = vcmp.eq.s32.totalorder %v337, %v357
        %vm464 = vcmp.eq.s32.totalorder %v338, %v353
        %vm465 = vcmp.eq.s32.totalorder %v338, %v357
        %vm466 = vcmp.eq.s32.totalorder %v339, %v353
        %vm467 = vcmp.eq.s32.totalorder %v339, %v357
        %vm468 = vcmp.eq.s32.totalorder %v340, %v353
        %vm469 = vcmp.eq.s32.totalorder %v340, %v357
        %vm470 = vcmp.eq.s32.totalorder %v341, %v353
        %vm471 = vcmp.eq.s32.totalorder %v341, %v357
        %vm472 = vcmp.eq.s32.totalorder %v342, %v353
        %vm473 = vcmp.eq.s32.totalorder %v342, %v357
        %vm474 = vcmp.eq.s32.totalorder %v343, %v353
        %vm475 = vcmp.eq.s32.totalorder %v343, %v357
        %vm476 = vcmp.eq.s32.totalorder %v344, %v353
        %vm477 = vcmp.eq.s32.totalorder %v344, %v357
        %vm478 = vcmp.eq.s32.totalorder %v345, %v353
        %vm479 = vcmp.eq.s32.totalorder %v345, %v357
        %vm480 = vcmp.eq.s32.totalorder %v346, %v353
        %vm481 = vcmp.eq.s32.totalorder %v346, %v357
        %vm482 = vcmp.eq.s32.totalorder %v347, %v353
        %vm483 = vcmp.eq.s32.totalorder %v347, %v357
        %vm484 = vcmp.eq.s32.totalorder %v348, %v353
        %vm485 = vcmp.eq.s32.totalorder %v348, %v357
        %v486 = vsel %vm358, 1, 0
        %v487 = vsel %vm359, 1, 0
        %v488 = vsel %vm360, 1, 0
        %v489 = vsel %vm361, 1, 0
        %v490 = vsel %vm362, 1, 0
        %v491 = vsel %vm363, 1, 0
        %v492 = vsel %vm364, 1, 0
        %v493 = vsel %vm365, 1, 0
        %v494 = vsel %vm366, 1, 0
        %v495 = vsel %vm367, 1, 0
        %v496 = vsel %vm368, 1, 0
        %v497 = vsel %vm369, 1, 0
        %v498 = vsel %vm370, 1, 0
        %v499 = vsel %vm371, 1, 0
        %v500 = vsel %vm372, 1, 0
        %v501 = vsel %vm373, 1, 0
        %v502 = vsel %vm374, 1, 0
        %v503 = vsel %vm375, 1, 0
        %v504 = vsel %vm376, 1, 0
        %v505 = vsel %vm377, 1, 0
        %v506 = vsel %vm378, 1, 0
        %v507 = vsel %vm379, 1, 0
        %v508 = vsel %vm380, 1, 0
        %v509 = vsel %vm381, 1, 0
        %v510 = vsel %vm382, 1, 0
        %v511 = vsel %vm383, 1, 0
        %v512 = vsel %vm384, 1, 0
        %v513 = vsel %vm385, 1, 0
        %v514 = vsel %vm386, 1, 0
        %v515 = vsel %vm387, 1, 0
        %v516 = vsel %vm388, 1, 0
        %v517 = vsel %vm389, 1, 0
        %v518 = vsel %vm390, 1, 0
        %v519 = vsel %vm391, 1, 0
        %v520 = vsel %vm392, 1, 0
        %v521 = vsel %vm393, 1, 0
        %v522 = vsel %vm394, 1, 0
        %v523 = vsel %vm395, 1, 0
        %v524 = vsel %vm396, 1, 0
        %v525 = vsel %vm397, 1, 0
        %v526 = vsel %vm398, 1, 0
        %v527 = vsel %vm399, 1, 0
        %v528 = vsel %vm400, 1, 0
        %v529 = vsel %vm401, 1, 0
        %v530 = vsel %vm402, 1, 0
        %v531 = vsel %vm403, 1, 0
        %v532 = vsel %vm404, 1, 0
        %v533 = vsel %vm405, 1, 0
        %v534 = vsel %vm406, 1, 0
        %v535 = vsel %vm407, 1, 0
        %v536 = vsel %vm408, 1, 0
        %v537 = vsel %vm409, 1, 0
        %v538 = vsel %vm410, 1, 0
        %v539 = vsel %vm411, 1, 0
        %v540 = vsel %vm412, 1, 0
        %v541 = vsel %vm413, 1, 0
        %v542 = vsel %vm414, 1, 0
        %v543 = vsel %vm415, 1, 0
        %v544 = vsel %vm416, 1, 0
        %v545 = vsel %vm417, 1, 0
        %v546 = vsel %vm418, 1, 0
        %v547 = vsel %vm419, 1, 0
        %v548 = vsel %vm420, 1, 0
        %v549 = vsel %vm421, 1, 0
        %v550 = vsel %vm422, 1, 0
        %v551 = vsel %vm423, 1, 0
        %v552 = vsel %vm424, 1, 0
        %v553 = vsel %vm425, 1, 0
        %v554 = vsel %vm426, 1, 0
        %v555 = vsel %vm427, 1, 0
        %v556 = vsel %vm428, 1, 0
        %v557 = vsel %vm429, 1, 0
        %v558 = vsel %vm430, 1, 0
        %v559 = vsel %vm431, 1, 0
        %v560 = vsel %vm432, 1, 0
        %v561 = vsel %vm433, 1, 0
        %v562 = vsel %vm434, 1, 0
        %v563 = vsel %vm435, 1, 0
        %v564 = vsel %vm436, 1, 0
        %v565 = vsel %vm437, 1, 0
        %v566 = vsel %vm438, 1, 0
        %v567 = vsel %vm439, 1, 0
        %v568 = vsel %vm440, 1, 0
        %v569 = vsel %vm441, 1, 0
        %v570 = vsel %vm442, 1, 0
        %v571 = vsel %vm443, 1, 0
        %v572 = vsel %vm444, 1, 0
        %v573 = vsel %vm445, 1, 0
        %v574 = vsel %vm446, 1, 0
        %v575 = vsel %vm447, 1, 0
        %v576 = vsel %vm448, 1, 0
        %v577 = vsel %vm449, 1, 0
        %v578 = vsel %vm450, 1, 0
        %v579 = vsel %vm451, 1, 0
        %v580 = vsel %vm452, 1, 0
        %v581 = vsel %vm453, 1, 0
        %v582 = vsel %vm454, 1, 0
        %v583 = vsel %vm455, 1, 0
        %v584 = vsel %vm456, 1, 0
        %v585 = vsel %vm457, 1, 0
        %v586 = vsel %vm458, 1, 0
        %v587 = vsel %vm459, 1, 0
        %v588 = vsel %vm460, 1, 0
        %v589 = vsel %vm461, 1, 0
        %v590 = vsel %vm462, 1, 0
        %v591 = vsel %vm463, 1, 0
        %v592 = vsel %vm464, 1, 0
        %v593 = vsel %vm465, 1, 0
        %v594 = vsel %vm466, 1, 0
        %v595 = vsel %vm467, 1, 0
        %v596 = vsel %vm468, 1, 0
        %v597 = vsel %vm469, 1, 0
        %v598 = vsel %vm470, 1, 0
        %v599 = vsel %vm471, 1, 0
        %v600 = vsel %vm472, 1, 0
        %v601 = vsel %vm473, 1, 0
        %v602 = vsel %vm474, 1, 0
        %v603 = vsel %vm475, 1, 0
        %v604 = vsel %vm476, 1, 0
        %v605 = vsel %vm477, 1, 0
        %v606 = vsel %vm478, 1, 0
        %v607 = vsel %vm479, 1, 0
        %v608 = vsel %vm480, 1, 0
        %v609 = vsel %vm481, 1, 0
        %v610 = vsel %vm482, 1, 0
        %v611 = vsel %vm483, 1, 0
        %v612 = vsel %vm484, 1, 0
        %v613 = vsel %vm485, 1, 0
        %v614 = vcvt.s32.f32 %v486
        %v615 = vcvt.s32.f32 %v487
        %v616 = vcvt.s32.f32 %v488
        %v617 = vcvt.s32.f32 %v489
        %v618 = vcvt.s32.f32 %v490
        %v619 = vcvt.s32.f32 %v491
        %v620 = vcvt.s32.f32 %v492
        %v621 = vcvt.s32.f32 %v493
        %v622 = vcvt.s32.f32 %v494
        %v623 = vcvt.s32.f32 %v495
        %v624 = vcvt.s32.f32 %v496
        %v625 = vcvt.s32.f32 %v497
        %v626 = vcvt.s32.f32 %v498
        %v627 = vcvt.s32.f32 %v499
        %v628 = vcvt.s32.f32 %v500
        %v629 = vcvt.s32.f32 %v501
        %v630 = vcvt.s32.f32 %v502
        %v631 = vcvt.s32.f32 %v503
        %v632 = vcvt.s32.f32 %v504
        %v633 = vcvt.s32.f32 %v505
        %v634 = vcvt.s32.f32 %v506
        %v635 = vcvt.s32.f32 %v507
        %v636 = vcvt.s32.f32 %v508
        %v637 = vcvt.s32.f32 %v509
        %v638 = vcvt.s32.f32 %v510
        %v639 = vcvt.s32.f32 %v511
        %v640 = vcvt.s32.f32 %v512
        %v641 = vcvt.s32.f32 %v513
        %v642 = vcvt.s32.f32 %v514
        %v643 = vcvt.s32.f32 %v515
        %v644 = vcvt.s32.f32 %v516
        %v645 = vcvt.s32.f32 %v517
        %v646 = vcvt.s32.f32 %v518
        %v647 = vcvt.s32.f32 %v519
        %v648 = vcvt.s32.f32 %v520
        %v649 = vcvt.s32.f32 %v521
        %v650 = vcvt.s32.f32 %v522
        %v651 = vcvt.s32.f32 %v523
        %v652 = vcvt.s32.f32 %v524
        %v653 = vcvt.s32.f32 %v525
        %v654 = vcvt.s32.f32 %v526
        %v655 = vcvt.s32.f32 %v527
        %v656 = vcvt.s32.f32 %v528
        %v657 = vcvt.s32.f32 %v529
        %v658 = vcvt.s32.f32 %v530
        %v659 = vcvt.s32.f32 %v531
        %v660 = vcvt.s32.f32 %v532
        %v661 = vcvt.s32.f32 %v533
        %v662 = vcvt.s32.f32 %v534
        %v663 = vcvt.s32.f32 %v535
        %v664 = vcvt.s32.f32 %v536
        %v665 = vcvt.s32.f32 %v537
        %v666 = vcvt.s32.f32 %v538
        %v667 = vcvt.s32.f32 %v539
        %v668 = vcvt.s32.f32 %v540
        %v669 = vcvt.s32.f32 %v541
        %v670 = vcvt.s32.f32 %v542
        %v671 = vcvt.s32.f32 %v543
        %v672 = vcvt.s32.f32 %v544
        %v673 = vcvt.s32.f32 %v545
        %v674 = vcvt.s32.f32 %v546
        %v675 = vcvt.s32.f32 %v547
        %v676 = vcvt.s32.f32 %v548
        %v677 = vcvt.s32.f32 %v549
        %v678 = vcvt.s32.f32 %v550
        %v679 = vcvt.s32.f32 %v551
        %v680 = vcvt.s32.f32 %v552
        %v681 = vcvt.s32.f32 %v553
        %v682 = vcvt.s32.f32 %v554
        %v683 = vcvt.s32.f32 %v555
        %v684 = vcvt.s32.f32 %v556
        %v685 = vcvt.s32.f32 %v557
        %v686 = vcvt.s32.f32 %v558
        %v687 = vcvt.s32.f32 %v559
        %v688 = vcvt.s32.f32 %v560
        %v689 = vcvt.s32.f32 %v561
        %v690 = vcvt.s32.f32 %v562
        %v691 = vcvt.s32.f32 %v563
        %v692 = vcvt.s32.f32 %v564
        %v693 = vcvt.s32.f32 %v565
        %v694 = vcvt.s32.f32 %v566
        %v695 = vcvt.s32.f32 %v567
        %v696 = vcvt.s32.f32 %v568
        %v697 = vcvt.s32.f32 %v569
        %v698 = vcvt.s32.f32 %v570
        %v699 = vcvt.s32.f32 %v571
        %v700 = vcvt.s32.f32 %v572
        %v701 = vcvt.s32.f32 %v573
        %v702 = vcvt.s32.f32 %v574
        %v703 = vcvt.s32.f32 %v575
        %v704 = vcvt.s32.f32 %v576
        %v705 = vcvt.s32.f32 %v577
        %v706 = vcvt.s32.f32 %v578
        %v707 = vcvt.s32.f32 %v579
        %v708 = vcvt.s32.f32 %v580
        %v709 = vcvt.s32.f32 %v581
        %v710 = vcvt.s32.f32 %v582
        %v711 = vcvt.s32.f32 %v583
        %v712 = vcvt.s32.f32 %v584
        %v713 = vcvt.s32.f32 %v585
        %v714 = vcvt.s32.f32 %v586
        %v715 = vcvt.s32.f32 %v587
        %v716 = vcvt.s32.f32 %v588
        %v717 = vcvt.s32.f32 %v589
        %v718 = vcvt.s32.f32 %v590
        %v719 = vcvt.s32.f32 %v591
        %v720 = vcvt.s32.f32 %v592
        %v721 = vcvt.s32.f32 %v593
        %v722 = vcvt.s32.f32 %v594
        %v723 = vcvt.s32.f32 %v595
        %v724 = vcvt.s32.f32 %v596
        %v725 = vcvt.s32.f32 %v597
        %v726 = vcvt.s32.f32 %v598
        %v727 = vcvt.s32.f32 %v599
        %v728 = vcvt.s32.f32 %v600
        %v729 = vcvt.s32.f32 %v601
        %v730 = vcvt.s32.f32 %v602
        %v731 = vcvt.s32.f32 %v603
        %v732 = vcvt.s32.f32 %v604
        %v733 = vcvt.s32.f32 %v605
        %v734 = vcvt.s32.f32 %v606
        %v735 = vcvt.s32.f32 %v607
        %v736 = vcvt.s32.f32 %v608
        %v737 = vcvt.s32.f32 %v609
        %v738 = vcvt.s32.f32 %v610
        %v739 = vcvt.s32.f32 %v611
        %v740 = vcvt.s32.f32 %v612
        %v741 = vcvt.s32.f32 %v613
        %v742 = vadd.s32 %v285, 512
        %v743 = vadd.s32 %v285, 520
        %v744 = vadd.s32 %v285, 528
        %v745 = vadd.s32 %v285, 536
        %v746 = vadd.s32 %v285, 544
        %v747 = vadd.s32 %v285, 552
        %v748 = vadd.s32 %v285, 560
        %v749 = vadd.s32 %v285, 568
        %v750 = vadd.s32 %v285, 576
        %v751 = vadd.s32 %v285, 584
        %v752 = vadd.s32 %v285, 592
        %v753 = vadd.s32 %v285, 600
        %v754 = vadd.s32 %v285, 608
        %v755 = vadd.s32 %v285, 616
        %v756 = vadd.s32 %v285, 624
        %v757 = vadd.s32 %v285, 632
        %v758 = vadd.s32 %v285, 640
        %v759 = vadd.s32 %v285, 648
        %v760 = vadd.s32 %v285, 656
        %v761 = vadd.s32 %v285, 664
        %v762 = vadd.s32 %v285, 672
        %v763 = vadd.s32 %v285, 680
        %v764 = vadd.s32 %v285, 688
        %v765 = vadd.s32 %v285, 696
        %v766 = vadd.s32 %v285, 704
        %v767 = vadd.s32 %v285, 712
        %v768 = vadd.s32 %v285, 720
        %v769 = vadd.s32 %v285, 728
        %v770 = vadd.s32 %v285, 736
        %v771 = vadd.s32 %v285, 744
        %v772 = vadd.s32 %v285, 752
        %v773 = vadd.s32 %v285, 760
        %v774 = vld [vmem:[%s243] sm:$0x3]
        %v775 = vlaneseq
        %v776 = vshrl.u32 %v775, 7
        %v777 = vsub.s32 0, %v776
        %v778 = vrot.slane %v774, %v777
        %v779 = vlaneseq
        %v780 = vshrl.u32 %v779, 7
        %v781 = vsub.s32 1, %v780
        %v782 = vrot.slane %v774, %v781
        %vm783 = vcmp.eq.s32.totalorder %v285, %v778
        %vm784 = vcmp.eq.s32.totalorder %v285, %v782
        %vm785 = vcmp.eq.s32.totalorder %v286, %v778
        %vm786 = vcmp.eq.s32.totalorder %v286, %v782
        %vm787 = vcmp.eq.s32.totalorder %v287, %v778
        %vm788 = vcmp.eq.s32.totalorder %v287, %v782
        %vm789 = vcmp.eq.s32.totalorder %v288, %v778
        %vm790 = vcmp.eq.s32.totalorder %v288, %v782
        %vm791 = vcmp.eq.s32.totalorder %v289, %v778
        %vm792 = vcmp.eq.s32.totalorder %v289, %v782
        %vm793 = vcmp.eq.s32.totalorder %v290, %v778
        %vm794 = vcmp.eq.s32.totalorder %v290, %v782
        %vm795 = vcmp.eq.s32.totalorder %v291, %v778
        %vm796 = vcmp.eq.s32.totalorder %v291, %v782
        %vm797 = vcmp.eq.s32.totalorder %v292, %v778
        %vm798 = vcmp.eq.s32.totalorder %v292, %v782
        %vm799 = vcmp.eq.s32.totalorder %v293, %v778
        %vm800 = vcmp.eq.s32.totalorder %v293, %v782
        %vm801 = vcmp.eq.s32.totalorder %v294, %v778
        %vm802 = vcmp.eq.s32.totalorder %v294, %v782
        %vm803 = vcmp.eq.s32.totalorder %v295, %v778
        %vm804 = vcmp.eq.s32.totalorder %v295, %v782
        %vm805 = vcmp.eq.s32.totalorder %v296, %v778
        %vm806 = vcmp.eq.s32.totalorder %v296, %v782
        %vm807 = vcmp.eq.s32.totalorder %v297, %v778
        %vm808 = vcmp.eq.s32.totalorder %v297, %v782
        %vm809 = vcmp.eq.s32.totalorder %v298, %v778
        %vm810 = vcmp.eq.s32.totalorder %v298, %v782
        %vm811 = vcmp.eq.s32.totalorder %v299, %v778
        %vm812 = vcmp.eq.s32.totalorder %v299, %v782
        %vm813 = vcmp.eq.s32.totalorder %v300, %v778
        %vm814 = vcmp.eq.s32.totalorder %v300, %v782
        %vm815 = vcmp.eq.s32.totalorder %v301, %v778
        %vm816 = vcmp.eq.s32.totalorder %v301, %v782
        %vm817 = vcmp.eq.s32.totalorder %v302, %v778
        %vm818 = vcmp.eq.s32.totalorder %v302, %v782
        %vm819 = vcmp.eq.s32.totalorder %v303, %v778
        %vm820 = vcmp.eq.s32.totalorder %v303, %v782
        %vm821 = vcmp.eq.s32.totalorder %v304, %v778
        %vm822 = vcmp.eq.s32.totalorder %v304, %v782
        %vm823 = vcmp.eq.s32.totalorder %v305, %v778
        %vm824 = vcmp.eq.s32.totalorder %v305, %v782
        %vm825 = vcmp.eq.s32.totalorder %v306, %v778
        %vm826 = vcmp.eq.s32.totalorder %v306, %v782
        %vm827 = vcmp.eq.s32.totalorder %v307, %v778
        %vm828 = vcmp.eq.s32.totalorder %v307, %v782
        %vm829 = vcmp.eq.s32.totalorder %v308, %v778
        %vm830 = vcmp.eq.s32.totalorder %v308, %v782
        %vm831 = vcmp.eq.s32.totalorder %v309, %v778
        %vm832 = vcmp.eq.s32.totalorder %v309, %v782
        %vm833 = vcmp.eq.s32.totalorder %v310, %v778
        %vm834 = vcmp.eq.s32.totalorder %v310, %v782
        %vm835 = vcmp.eq.s32.totalorder %v311, %v778
        %vm836 = vcmp.eq.s32.totalorder %v311, %v782
        %vm837 = vcmp.eq.s32.totalorder %v312, %v778
        %vm838 = vcmp.eq.s32.totalorder %v312, %v782
        %vm839 = vcmp.eq.s32.totalorder %v313, %v778
        %vm840 = vcmp.eq.s32.totalorder %v313, %v782
        %vm841 = vcmp.eq.s32.totalorder %v314, %v778
        %vm842 = vcmp.eq.s32.totalorder %v314, %v782
        %vm843 = vcmp.eq.s32.totalorder %v315, %v778
        %vm844 = vcmp.eq.s32.totalorder %v315, %v782
        %vm845 = vcmp.eq.s32.totalorder %v316, %v778
        %vm846 = vcmp.eq.s32.totalorder %v316, %v782
        %vm847 = vcmp.eq.s32.totalorder %v317, %v778
        %vm848 = vcmp.eq.s32.totalorder %v317, %v782
        %vm849 = vcmp.eq.s32.totalorder %v318, %v778
        %vm850 = vcmp.eq.s32.totalorder %v318, %v782
        %vm851 = vcmp.eq.s32.totalorder %v319, %v778
        %vm852 = vcmp.eq.s32.totalorder %v319, %v782
        %vm853 = vcmp.eq.s32.totalorder %v320, %v778
        %vm854 = vcmp.eq.s32.totalorder %v320, %v782
        %vm855 = vcmp.eq.s32.totalorder %v321, %v778
        %vm856 = vcmp.eq.s32.totalorder %v321, %v782
        %vm857 = vcmp.eq.s32.totalorder %v322, %v778
        %vm858 = vcmp.eq.s32.totalorder %v322, %v782
        %vm859 = vcmp.eq.s32.totalorder %v323, %v778
        %vm860 = vcmp.eq.s32.totalorder %v323, %v782
        %vm861 = vcmp.eq.s32.totalorder %v324, %v778
        %vm862 = vcmp.eq.s32.totalorder %v324, %v782
        %vm863 = vcmp.eq.s32.totalorder %v325, %v778
        %vm864 = vcmp.eq.s32.totalorder %v325, %v782
        %vm865 = vcmp.eq.s32.totalorder %v326, %v778
        %vm866 = vcmp.eq.s32.totalorder %v326, %v782
        %vm867 = vcmp.eq.s32.totalorder %v327, %v778
        %vm868 = vcmp.eq.s32.totalorder %v327, %v782
        %vm869 = vcmp.eq.s32.totalorder %v328, %v778
        %vm870 = vcmp.eq.s32.totalorder %v328, %v782
        %vm871 = vcmp.eq.s32.totalorder %v329, %v778
        %vm872 = vcmp.eq.s32.totalorder %v329, %v782
        %vm873 = vcmp.eq.s32.totalorder %v330, %v778
        %vm874 = vcmp.eq.s32.totalorder %v330, %v782
        %vm875 = vcmp.eq.s32.totalorder %v331, %v778
        %vm876 = vcmp.eq.s32.totalorder %v331, %v782
        %vm877 = vcmp.eq.s32.totalorder %v332, %v778
        %vm878 = vcmp.eq.s32.totalorder %v332, %v782
        %vm879 = vcmp.eq.s32.totalorder %v333, %v778
        %vm880 = vcmp.eq.s32.totalorder %v333, %v782
        %vm881 = vcmp.eq.s32.totalorder %v334, %v778
        %vm882 = vcmp.eq.s32.totalorder %v334, %v782
        %vm883 = vcmp.eq.s32.totalorder %v335, %v778
        %vm884 = vcmp.eq.s32.totalorder %v335, %v782
        %vm885 = vcmp.eq.s32.totalorder %v336, %v778
        %vm886 = vcmp.eq.s32.totalorder %v336, %v782
        %vm887 = vcmp.eq.s32.totalorder %v337, %v778
        %vm888 = vcmp.eq.s32.totalorder %v337, %v782
        %vm889 = vcmp.eq.s32.totalorder %v338, %v778
        %vm890 = vcmp.eq.s32.totalorder %v338, %v782
        %vm891 = vcmp.eq.s32.totalorder %v339, %v778
        %vm892 = vcmp.eq.s32.totalorder %v339, %v782
        %vm893 = vcmp.eq.s32.totalorder %v340, %v778
        %vm894 = vcmp.eq.s32.totalorder %v340, %v782
        %vm895 = vcmp.eq.s32.totalorder %v341, %v778
        %vm896 = vcmp.eq.s32.totalorder %v341, %v782
        %vm897 = vcmp.eq.s32.totalorder %v342, %v778
        %vm898 = vcmp.eq.s32.totalorder %v342, %v782
        %vm899 = vcmp.eq.s32.totalorder %v343, %v778
        %vm900 = vcmp.eq.s32.totalorder %v343, %v782
        %vm901 = vcmp.eq.s32.totalorder %v344, %v778
        %vm902 = vcmp.eq.s32.totalorder %v344, %v782
        %vm903 = vcmp.eq.s32.totalorder %v345, %v778
        %vm904 = vcmp.eq.s32.totalorder %v345, %v782
        %vm905 = vcmp.eq.s32.totalorder %v346, %v778
        %vm906 = vcmp.eq.s32.totalorder %v346, %v782
        %vm907 = vcmp.eq.s32.totalorder %v347, %v778
        %vm908 = vcmp.eq.s32.totalorder %v347, %v782
        %vm909 = vcmp.eq.s32.totalorder %v348, %v778
        %vm910 = vcmp.eq.s32.totalorder %v348, %v782
        %vm911 = vcmp.eq.s32.totalorder %v742, %v778
        %vm912 = vcmp.eq.s32.totalorder %v742, %v782
        %vm913 = vcmp.eq.s32.totalorder %v743, %v778
        %vm914 = vcmp.eq.s32.totalorder %v743, %v782
        %vm915 = vcmp.eq.s32.totalorder %v744, %v778
        %vm916 = vcmp.eq.s32.totalorder %v744, %v782
        %vm917 = vcmp.eq.s32.totalorder %v745, %v778
        %vm918 = vcmp.eq.s32.totalorder %v745, %v782
        %vm919 = vcmp.eq.s32.totalorder %v746, %v778
        %vm920 = vcmp.eq.s32.totalorder %v746, %v782
        %vm921 = vcmp.eq.s32.totalorder %v747, %v778
        %vm922 = vcmp.eq.s32.totalorder %v747, %v782
        %vm923 = vcmp.eq.s32.totalorder %v748, %v778
        %vm924 = vcmp.eq.s32.totalorder %v748, %v782
        %vm925 = vcmp.eq.s32.totalorder %v749, %v778
        %vm926 = vcmp.eq.s32.totalorder %v749, %v782
        %vm927 = vcmp.eq.s32.totalorder %v750, %v778
        %vm928 = vcmp.eq.s32.totalorder %v750, %v782
        %vm929 = vcmp.eq.s32.totalorder %v751, %v778
        %vm930 = vcmp.eq.s32.totalorder %v751, %v782
        %vm931 = vcmp.eq.s32.totalorder %v752, %v778
        %vm932 = vcmp.eq.s32.totalorder %v752, %v782
        %vm933 = vcmp.eq.s32.totalorder %v753, %v778
        %vm934 = vcmp.eq.s32.totalorder %v753, %v782
        %vm935 = vcmp.eq.s32.totalorder %v754, %v778
        %vm936 = vcmp.eq.s32.totalorder %v754, %v782
        %vm937 = vcmp.eq.s32.totalorder %v755, %v778
        %vm938 = vcmp.eq.s32.totalorder %v755, %v782
        %vm939 = vcmp.eq.s32.totalorder %v756, %v778
        %vm940 = vcmp.eq.s32.totalorder %v756, %v782
        %vm941 = vcmp.eq.s32.totalorder %v757, %v778
        %vm942 = vcmp.eq.s32.totalorder %v757, %v782
        %vm943 = vcmp.eq.s32.totalorder %v758, %v778
        %vm944 = vcmp.eq.s32.totalorder %v758, %v782
        %vm945 = vcmp.eq.s32.totalorder %v759, %v778
        %vm946 = vcmp.eq.s32.totalorder %v759, %v782
        %vm947 = vcmp.eq.s32.totalorder %v760, %v778
        %vm948 = vcmp.eq.s32.totalorder %v760, %v782
        %vm949 = vcmp.eq.s32.totalorder %v761, %v778
        %vm950 = vcmp.eq.s32.totalorder %v761, %v782
        %vm951 = vcmp.eq.s32.totalorder %v762, %v778
        %vm952 = vcmp.eq.s32.totalorder %v762, %v782
        %vm953 = vcmp.eq.s32.totalorder %v763, %v778
        %vm954 = vcmp.eq.s32.totalorder %v763, %v782
        %vm955 = vcmp.eq.s32.totalorder %v764, %v778
        %vm956 = vcmp.eq.s32.totalorder %v764, %v782
        %vm957 = vcmp.eq.s32.totalorder %v765, %v778
        %vm958 = vcmp.eq.s32.totalorder %v765, %v782
        %vm959 = vcmp.eq.s32.totalorder %v766, %v778
        %vm960 = vcmp.eq.s32.totalorder %v766, %v782
        %vm961 = vcmp.eq.s32.totalorder %v767, %v778
        %vm962 = vcmp.eq.s32.totalorder %v767, %v782
        %vm963 = vcmp.eq.s32.totalorder %v768, %v778
        %vm964 = vcmp.eq.s32.totalorder %v768, %v782
        %vm965 = vcmp.eq.s32.totalorder %v769, %v778
        %vm966 = vcmp.eq.s32.totalorder %v769, %v782
        %vm967 = vcmp.eq.s32.totalorder %v770, %v778
        %vm968 = vcmp.eq.s32.totalorder %v770, %v782
        %vm969 = vcmp.eq.s32.totalorder %v771, %v778
        %vm970 = vcmp.eq.s32.totalorder %v771, %v782
        %vm971 = vcmp.eq.s32.totalorder %v772, %v778
        %vm972 = vcmp.eq.s32.totalorder %v772, %v782
        %vm973 = vcmp.eq.s32.totalorder %v773, %v778
        %vm974 = vcmp.eq.s32.totalorder %v773, %v782
        %v975 = vsel %vm783, 1, 0
        %v976 = vsel %vm784, 1, 0
        %v977 = vsel %vm785, 1, 0
        %v978 = vsel %vm786, 1, 0
        %v979 = vsel %vm787, 1, 0
        %v980 = vsel %vm788, 1, 0
        %v981 = vsel %vm789, 1, 0
        %v982 = vsel %vm790, 1, 0
        %v983 = vsel %vm791, 1, 0
        %v984 = vsel %vm792, 1, 0
        %v985 = vsel %vm793, 1, 0
        %v986 = vsel %vm794, 1, 0
        %v987 = vsel %vm795, 1, 0
        %v988 = vsel %vm796, 1, 0
        %v989 = vsel %vm797, 1, 0
        %v990 = vsel %vm798, 1, 0
        %v991 = vsel %vm799, 1, 0
        %v992 = vsel %vm800, 1, 0
        %v993 = vsel %vm801, 1, 0
        %v994 = vsel %vm802, 1, 0
        %v995 = vsel %vm803, 1, 0
        %v996 = vsel %vm804, 1, 0
        %v997 = vsel %vm805, 1, 0
        %v998 = vsel %vm806, 1, 0
        %v999 = vsel %vm807, 1, 0
        %v1000 = vsel %vm808, 1, 0
        %v1001 = vsel %vm809, 1, 0
        %v1002 = vsel %vm810, 1, 0
        %v1003 = vsel %vm811, 1, 0
        %v1004 = vsel %vm812, 1, 0
        %v1005 = vsel %vm813, 1, 0
        %v1006 = vsel %vm814, 1, 0
        %v1007 = vsel %vm815, 1, 0
        %v1008 = vsel %vm816, 1, 0
        %v1009 = vsel %vm817, 1, 0
        %v1010 = vsel %vm818, 1, 0
        %v1011 = vsel %vm819, 1, 0
        %v1012 = vsel %vm820, 1, 0
        %v1013 = vsel %vm821, 1, 0
        %v1014 = vsel %vm822, 1, 0
        %v1015 = vsel %vm823, 1, 0
        %v1016 = vsel %vm824, 1, 0
        %v1017 = vsel %vm825, 1, 0
        %v1018 = vsel %vm826, 1, 0
        %v1019 = vsel %vm827, 1, 0
        %v1020 = vsel %vm828, 1, 0
        %v1021 = vsel %vm829, 1, 0
        %v1022 = vsel %vm830, 1, 0
        %v1023 = vsel %vm831, 1, 0
        %v1024 = vsel %vm832, 1, 0
        %v1025 = vsel %vm833, 1, 0
        %v1026 = vsel %vm834, 1, 0
        %v1027 = vsel %vm835, 1, 0
        %v1028 = vsel %vm836, 1, 0
        %v1029 = vsel %vm837, 1, 0
        %v1030 = vsel %vm838, 1, 0
        %v1031 = vsel %vm839, 1, 0
        %v1032 = vsel %vm840, 1, 0
        %v1033 = vsel %vm841, 1, 0
        %v1034 = vsel %vm842, 1, 0
        %v1035 = vsel %vm843, 1, 0
        %v1036 = vsel %vm844, 1, 0
        %v1037 = vsel %vm845, 1, 0
        %v1038 = vsel %vm846, 1, 0
        %v1039 = vsel %vm847, 1, 0
        %v1040 = vsel %vm848, 1, 0
        %v1041 = vsel %vm849, 1, 0
        %v1042 = vsel %vm850, 1, 0
        %v1043 = vsel %vm851, 1, 0
        %v1044 = vsel %vm852, 1, 0
        %v1045 = vsel %vm853, 1, 0
        %v1046 = vsel %vm854, 1, 0
        %v1047 = vsel %vm855, 1, 0
        %v1048 = vsel %vm856, 1, 0
        %v1049 = vsel %vm857, 1, 0
        %v1050 = vsel %vm858, 1, 0
        %v1051 = vsel %vm859, 1, 0
        %v1052 = vsel %vm860, 1, 0
        %v1053 = vsel %vm861, 1, 0
        %v1054 = vsel %vm862, 1, 0
        %v1055 = vsel %vm863, 1, 0
        %v1056 = vsel %vm864, 1, 0
        %v1057 = vsel %vm865, 1, 0
        %v1058 = vsel %vm866, 1, 0
        %v1059 = vsel %vm867, 1, 0
        %v1060 = vsel %vm868, 1, 0
        %v1061 = vsel %vm869, 1, 0
        %v1062 = vsel %vm870, 1, 0
        %v1063 = vsel %vm871, 1, 0
        %v1064 = vsel %vm872, 1, 0
        %v1065 = vsel %vm873, 1, 0
        %v1066 = vsel %vm874, 1, 0
        %v1067 = vsel %vm875, 1, 0
        %v1068 = vsel %vm876, 1, 0
        %v1069 = vsel %vm877, 1, 0
        %v1070 = vsel %vm878, 1, 0
        %v1071 = vsel %vm879, 1, 0
        %v1072 = vsel %vm880, 1, 0
        %v1073 = vsel %vm881, 1, 0
        %v1074 = vsel %vm882, 1, 0
        %v1075 = vsel %vm883, 1, 0
        %v1076 = vsel %vm884, 1, 0
        %v1077 = vsel %vm885, 1, 0
        %v1078 = vsel %vm886, 1, 0
        %v1079 = vsel %vm887, 1, 0
        %v1080 = vsel %vm888, 1, 0
        %v1081 = vsel %vm889, 1, 0
        %v1082 = vsel %vm890, 1, 0
        %v1083 = vsel %vm891, 1, 0
        %v1084 = vsel %vm892, 1, 0
        %v1085 = vsel %vm893, 1, 0
        %v1086 = vsel %vm894, 1, 0
        %v1087 = vsel %vm895, 1, 0
        %v1088 = vsel %vm896, 1, 0
        %v1089 = vsel %vm897, 1, 0
        %v1090 = vsel %vm898, 1, 0
        %v1091 = vsel %vm899, 1, 0
        %v1092 = vsel %vm900, 1, 0
        %v1093 = vsel %vm901, 1, 0
        %v1094 = vsel %vm902, 1, 0
        %v1095 = vsel %vm903, 1, 0
        %v1096 = vsel %vm904, 1, 0
        %v1097 = vsel %vm905, 1, 0
        %v1098 = vsel %vm906, 1, 0
        %v1099 = vsel %vm907, 1, 0
        %v1100 = vsel %vm908, 1, 0
        %v1101 = vsel %vm909, 1, 0
        %v1102 = vsel %vm910, 1, 0
        %v1103 = vsel %vm911, 1, 0
        %v1104 = vsel %vm912, 1, 0
        %v1105 = vsel %vm913, 1, 0
        %v1106 = vsel %vm914, 1, 0
        %v1107 = vsel %vm915, 1, 0
        %v1108 = vsel %vm916, 1, 0
        %v1109 = vsel %vm917, 1, 0
        %v1110 = vsel %vm918, 1, 0
        %v1111 = vsel %vm919, 1, 0
        %v1112 = vsel %vm920, 1, 0
        %v1113 = vsel %vm921, 1, 0
        %v1114 = vsel %vm922, 1, 0
        %v1115 = vsel %vm923, 1, 0
        %v1116 = vsel %vm924, 1, 0
        %v1117 = vsel %vm925, 1, 0
        %v1118 = vsel %vm926, 1, 0
        %v1119 = vsel %vm927, 1, 0
        %v1120 = vsel %vm928, 1, 0
        %v1121 = vsel %vm929, 1, 0
        %v1122 = vsel %vm930, 1, 0
        %v1123 = vsel %vm931, 1, 0
        %v1124 = vsel %vm932, 1, 0
        %v1125 = vsel %vm933, 1, 0
        %v1126 = vsel %vm934, 1, 0
        %v1127 = vsel %vm935, 1, 0
        %v1128 = vsel %vm936, 1, 0
        %v1129 = vsel %vm937, 1, 0
        %v1130 = vsel %vm938, 1, 0
        %v1131 = vsel %vm939, 1, 0
        %v1132 = vsel %vm940, 1, 0
        %v1133 = vsel %vm941, 1, 0
        %v1134 = vsel %vm942, 1, 0
        %v1135 = vsel %vm943, 1, 0
        %v1136 = vsel %vm944, 1, 0
        %v1137 = vsel %vm945, 1, 0
        %v1138 = vsel %vm946, 1, 0
        %v1139 = vsel %vm947, 1, 0
        %v1140 = vsel %vm948, 1, 0
        %v1141 = vsel %vm949, 1, 0
        %v1142 = vsel %vm950, 1, 0
        %v1143 = vsel %vm951, 1, 0
        %v1144 = vsel %vm952, 1, 0
        %v1145 = vsel %vm953, 1, 0
        %v1146 = vsel %vm954, 1, 0
        %v1147 = vsel %vm955, 1, 0
        %v1148 = vsel %vm956, 1, 0
        %v1149 = vsel %vm957, 1, 0
        %v1150 = vsel %vm958, 1, 0
        %v1151 = vsel %vm959, 1, 0
        %v1152 = vsel %vm960, 1, 0
        %v1153 = vsel %vm961, 1, 0
        %v1154 = vsel %vm962, 1, 0
        %v1155 = vsel %vm963, 1, 0
        %v1156 = vsel %vm964, 1, 0
        %v1157 = vsel %vm965, 1, 0
        %v1158 = vsel %vm966, 1, 0
        %v1159 = vsel %vm967, 1, 0
        %v1160 = vsel %vm968, 1, 0
        %v1161 = vsel %vm969, 1, 0
        %v1162 = vsel %vm970, 1, 0
        %v1163 = vsel %vm971, 1, 0
        %v1164 = vsel %vm972, 1, 0
        %v1165 = vsel %vm973, 1, 0
        %v1166 = vsel %vm974, 1, 0
        %v1167 = vcvt.s32.f32 %v975
        %v1168 = vcvt.s32.f32 %v976
        %v1169 = vcvt.s32.f32 %v977
        %v1170 = vcvt.s32.f32 %v978
        %v1171 = vcvt.s32.f32 %v979
        %v1172 = vcvt.s32.f32 %v980
        %v1173 = vcvt.s32.f32 %v981
        %v1174 = vcvt.s32.f32 %v982
        %v1175 = vcvt.s32.f32 %v983
        %v1176 = vcvt.s32.f32 %v984
        %v1177 = vcvt.s32.f32 %v985
        %v1178 = vcvt.s32.f32 %v986
        %v1179 = vcvt.s32.f32 %v987
        %v1180 = vcvt.s32.f32 %v988
        %v1181 = vcvt.s32.f32 %v989
        %v1182 = vcvt.s32.f32 %v990
        %v1183 = vcvt.s32.f32 %v991
        %v1184 = vcvt.s32.f32 %v992
        %v1185 = vcvt.s32.f32 %v993
        %v1186 = vcvt.s32.f32 %v994
        %v1187 = vcvt.s32.f32 %v995
        %v1188 = vcvt.s32.f32 %v996
        %v1189 = vcvt.s32.f32 %v997
        %v1190 = vcvt.s32.f32 %v998
        %v1191 = vcvt.s32.f32 %v999
        %v1192 = vcvt.s32.f32 %v1000
        %v1193 = vcvt.s32.f32 %v1001
        %v1194 = vcvt.s32.f32 %v1002
        %v1195 = vcvt.s32.f32 %v1003
        %v1196 = vcvt.s32.f32 %v1004
        %v1197 = vcvt.s32.f32 %v1005
        %v1198 = vcvt.s32.f32 %v1006
        %v1199 = vcvt.s32.f32 %v1007
        %v1200 = vcvt.s32.f32 %v1008
        %v1201 = vcvt.s32.f32 %v1009
        %v1202 = vcvt.s32.f32 %v1010
        %v1203 = vcvt.s32.f32 %v1011
        %v1204 = vcvt.s32.f32 %v1012
        %v1205 = vcvt.s32.f32 %v1013
        %v1206 = vcvt.s32.f32 %v1014
        %v1207 = vcvt.s32.f32 %v1015
        %v1208 = vcvt.s32.f32 %v1016
        %v1209 = vcvt.s32.f32 %v1017
        %v1210 = vcvt.s32.f32 %v1018
        %v1211 = vcvt.s32.f32 %v1019
        %v1212 = vcvt.s32.f32 %v1020
        %v1213 = vcvt.s32.f32 %v1021
        %v1214 = vcvt.s32.f32 %v1022
        %v1215 = vcvt.s32.f32 %v1023
        %v1216 = vcvt.s32.f32 %v1024
        %v1217 = vcvt.s32.f32 %v1025
        %v1218 = vcvt.s32.f32 %v1026
        %v1219 = vcvt.s32.f32 %v1027
        %v1220 = vcvt.s32.f32 %v1028
        %v1221 = vcvt.s32.f32 %v1029
        %v1222 = vcvt.s32.f32 %v1030
        %v1223 = vcvt.s32.f32 %v1031
        %v1224 = vcvt.s32.f32 %v1032
        %v1225 = vcvt.s32.f32 %v1033
        %v1226 = vcvt.s32.f32 %v1034
        %v1227 = vcvt.s32.f32 %v1035
        %v1228 = vcvt.s32.f32 %v1036
        %v1229 = vcvt.s32.f32 %v1037
        %v1230 = vcvt.s32.f32 %v1038
        %v1231 = vcvt.s32.f32 %v1039
        %v1232 = vcvt.s32.f32 %v1040
        %v1233 = vcvt.s32.f32 %v1041
        %v1234 = vcvt.s32.f32 %v1042
        %v1235 = vcvt.s32.f32 %v1043
        %v1236 = vcvt.s32.f32 %v1044
        %v1237 = vcvt.s32.f32 %v1045
        %v1238 = vcvt.s32.f32 %v1046
        %v1239 = vcvt.s32.f32 %v1047
        %v1240 = vcvt.s32.f32 %v1048
        %v1241 = vcvt.s32.f32 %v1049
        %v1242 = vcvt.s32.f32 %v1050
        %v1243 = vcvt.s32.f32 %v1051
        %v1244 = vcvt.s32.f32 %v1052
        %v1245 = vcvt.s32.f32 %v1053
        %v1246 = vcvt.s32.f32 %v1054
        %v1247 = vcvt.s32.f32 %v1055
        %v1248 = vcvt.s32.f32 %v1056
        %v1249 = vcvt.s32.f32 %v1057
        %v1250 = vcvt.s32.f32 %v1058
        %v1251 = vcvt.s32.f32 %v1059
        %v1252 = vcvt.s32.f32 %v1060
        %v1253 = vcvt.s32.f32 %v1061
        %v1254 = vcvt.s32.f32 %v1062
        %v1255 = vcvt.s32.f32 %v1063
        %v1256 = vcvt.s32.f32 %v1064
        %v1257 = vcvt.s32.f32 %v1065
        %v1258 = vcvt.s32.f32 %v1066
        %v1259 = vcvt.s32.f32 %v1067
        %v1260 = vcvt.s32.f32 %v1068
        %v1261 = vcvt.s32.f32 %v1069
        %v1262 = vcvt.s32.f32 %v1070
        %v1263 = vcvt.s32.f32 %v1071
        %v1264 = vcvt.s32.f32 %v1072
        %v1265 = vcvt.s32.f32 %v1073
        %v1266 = vcvt.s32.f32 %v1074
        %v1267 = vcvt.s32.f32 %v1075
        %v1268 = vcvt.s32.f32 %v1076
        %v1269 = vcvt.s32.f32 %v1077
        %v1270 = vcvt.s32.f32 %v1078
        %v1271 = vcvt.s32.f32 %v1079
        %v1272 = vcvt.s32.f32 %v1080
        %v1273 = vcvt.s32.f32 %v1081
        %v1274 = vcvt.s32.f32 %v1082
        %v1275 = vcvt.s32.f32 %v1083
        %v1276 = vcvt.s32.f32 %v1084
        %v1277 = vcvt.s32.f32 %v1085
        %v1278 = vcvt.s32.f32 %v1086
        %v1279 = vcvt.s32.f32 %v1087
        %v1280 = vcvt.s32.f32 %v1088
        %v1281 = vcvt.s32.f32 %v1089
        %v1282 = vcvt.s32.f32 %v1090
        %v1283 = vcvt.s32.f32 %v1091
        %v1284 = vcvt.s32.f32 %v1092
        %v1285 = vcvt.s32.f32 %v1093
        %v1286 = vcvt.s32.f32 %v1094
        %v1287 = vcvt.s32.f32 %v1095
        %v1288 = vcvt.s32.f32 %v1096
        %v1289 = vcvt.s32.f32 %v1097
        %v1290 = vcvt.s32.f32 %v1098
        %v1291 = vcvt.s32.f32 %v1099
        %v1292 = vcvt.s32.f32 %v1100
        %v1293 = vcvt.s32.f32 %v1101
        %v1294 = vcvt.s32.f32 %v1102
        %v1295 = vcvt.s32.f32 %v1103
        %v1296 = vcvt.s32.f32 %v1104
        %v1297 = vcvt.s32.f32 %v1105
        %v1298 = vcvt.s32.f32 %v1106
        %v1299 = vcvt.s32.f32 %v1107
        %v1300 = vcvt.s32.f32 %v1108
        %v1301 = vcvt.s32.f32 %v1109
        %v1302 = vcvt.s32.f32 %v1110
        %v1303 = vcvt.s32.f32 %v1111
        %v1304 = vcvt.s32.f32 %v1112
        %v1305 = vcvt.s32.f32 %v1113
        %v1306 = vcvt.s32.f32 %v1114
        %v1307 = vcvt.s32.f32 %v1115
        %v1308 = vcvt.s32.f32 %v1116
        %v1309 = vcvt.s32.f32 %v1117
        %v1310 = vcvt.s32.f32 %v1118
        %v1311 = vcvt.s32.f32 %v1119
        %v1312 = vcvt.s32.f32 %v1120
        %v1313 = vcvt.s32.f32 %v1121
        %v1314 = vcvt.s32.f32 %v1122
        %v1315 = vcvt.s32.f32 %v1123
        %v1316 = vcvt.s32.f32 %v1124
        %v1317 = vcvt.s32.f32 %v1125
        %v1318 = vcvt.s32.f32 %v1126
        %v1319 = vcvt.s32.f32 %v1127
        %v1320 = vcvt.s32.f32 %v1128
        %v1321 = vcvt.s32.f32 %v1129
        %v1322 = vcvt.s32.f32 %v1130
        %v1323 = vcvt.s32.f32 %v1131
        %v1324 = vcvt.s32.f32 %v1132
        %v1325 = vcvt.s32.f32 %v1133
        %v1326 = vcvt.s32.f32 %v1134
        %v1327 = vcvt.s32.f32 %v1135
        %v1328 = vcvt.s32.f32 %v1136
        %v1329 = vcvt.s32.f32 %v1137
        %v1330 = vcvt.s32.f32 %v1138
        %v1331 = vcvt.s32.f32 %v1139
        %v1332 = vcvt.s32.f32 %v1140
        %v1333 = vcvt.s32.f32 %v1141
        %v1334 = vcvt.s32.f32 %v1142
        %v1335 = vcvt.s32.f32 %v1143
        %v1336 = vcvt.s32.f32 %v1144
        %v1337 = vcvt.s32.f32 %v1145
        %v1338 = vcvt.s32.f32 %v1146
        %v1339 = vcvt.s32.f32 %v1147
        %v1340 = vcvt.s32.f32 %v1148
        %v1341 = vcvt.s32.f32 %v1149
        %v1342 = vcvt.s32.f32 %v1150
        %v1343 = vcvt.s32.f32 %v1151
        %v1344 = vcvt.s32.f32 %v1152
        %v1345 = vcvt.s32.f32 %v1153
        %v1346 = vcvt.s32.f32 %v1154
        %v1347 = vcvt.s32.f32 %v1155
        %v1348 = vcvt.s32.f32 %v1156
        %v1349 = vcvt.s32.f32 %v1157
        %v1350 = vcvt.s32.f32 %v1158
        %v1351 = vcvt.s32.f32 %v1159
        %v1352 = vcvt.s32.f32 %v1160
        %v1353 = vcvt.s32.f32 %v1161
        %v1354 = vcvt.s32.f32 %v1162
        %v1355 = vcvt.s32.f32 %v1163
        %v1356 = vcvt.s32.f32 %v1164
        %v1357 = vcvt.s32.f32 %v1165
        %v1358 = vcvt.s32.f32 %v1166
        %v1359 = vld [vmem:[#allocation7] sm:$0xff]
        %v1360 = vld [vmem:[#allocation7 + $0x8] sm:$0xff]
        %v1361 = vld [vmem:[#allocation7 + $0x10] sm:$0xff]
        %v1362 = vld [vmem:[#allocation7 + $0x18] sm:$0xff]
        %v1363 = vld [vmem:[#allocation7 + $0x20] sm:$0xff]
        %v1364 = vld [vmem:[#allocation7 + $0x28] sm:$0xff]
        %v1365 = vld [vmem:[#allocation7 + $0x30] sm:$0xff]
        %v1366 = vld [vmem:[#allocation7 + $0x38] sm:$0xff]
        %v1367 = vld [vmem:[#allocation7 + $0x40] sm:$0xff]
        %v1368 = vld [vmem:[#allocation7 + $0x48] sm:$0xff]
        %v1369 = vld [vmem:[#allocation7 + $0x50] sm:$0xff]
        %v1370 = vld [vmem:[#allocation7 + $0x58] sm:$0xff]
        %v1371 = vld [vmem:[#allocation7 + $0x60] sm:$0xff]
        %v1372 = vld [vmem:[#allocation7 + $0x68] sm:$0xff]
        %v1373 = vld [vmem:[#allocation7 + $0x70] sm:$0xff]
        %v1374 = vld [vmem:[#allocation7 + $0x78] sm:$0xff]
        %v1375 = vld [vmem:[#allocation7 + $0x80] sm:$0xff]
        %v1376 = vld [vmem:[#allocation7 + $0x88] sm:$0xff]
        %v1377 = vld [vmem:[#allocation7 + $0x90] sm:$0xff]
        %v1378 = vld [vmem:[#allocation7 + $0x98] sm:$0xff]
        %v1379 = vand.u32 %v615, 4294901760
        %1380 = vmatprep.subr.mxu0 %v1379
        %v1381 = vand.u32 %v614, 4294901760
        %1382 = vmatpush1.msra.mxu0 %v1381
        %v1383 = vand.u32 %v617, 4294901760
        %1384 = vmatprep.subr.mxu0 %v1383
        %v1385 = vand.u32 %v616, 4294901760
        %1386 = vmatpush1.msra.mxu0 %v1385
        %v1387 = vand.u32 %v619, 4294901760
        %1388 = vmatprep.subr.mxu0 %v1387
        %v1389 = vand.u32 %v618, 4294901760
        %1390 = vmatpush1.msra.mxu0 %v1389
        %v1391 = vand.u32 %v621, 4294901760
        %1392 = vmatprep.subr.mxu0 %v1391
        %v1393 = vand.u32 %v620, 4294901760
        %1394 = vmatpush1.msra.mxu0 %v1393
        %v1395 = vand.u32 %v623, 4294901760
        %1396 = vmatprep.subr.mxu0 %v1395
        %v1397 = vand.u32 %v622, 4294901760
        %1398 = vmatpush1.msra.mxu0 %v1397
        %v1399 = vand.u32 %v625, 4294901760
        %1400 = vmatprep.subr.mxu0 %v1399
        %v1401 = vand.u32 %v624, 4294901760
        %1402 = vmatpush1.msra.mxu0 %v1401
        %v1403 = vand.u32 %v627, 4294901760
        %1404 = vmatprep.subr.mxu0 %v1403
        %v1405 = vand.u32 %v626, 4294901760
        %1406 = vmatpush1.msra.mxu0 %v1405
        %v1407 = vand.u32 %v629, 4294901760
        %1408 = vmatprep.subr.mxu0 %v1407
        %v1409 = vand.u32 %v628, 4294901760
        %1410 = vmatpush1.msra.mxu0 %v1409
        %v1411 = vand.u32 %v631, 4294901760
        %1412 = vmatprep.subr.mxu0 %v1411
        %v1413 = vand.u32 %v630, 4294901760
        %1414 = vmatpush1.msra.mxu0 %v1413
        %v1415 = vand.u32 %v633, 4294901760
        %1416 = vmatprep.subr.mxu0 %v1415
        %v1417 = vand.u32 %v632, 4294901760
        %1418 = vmatpush1.msra.mxu0 %v1417
        %v1419 = vand.u32 %v635, 4294901760
        %1420 = vmatprep.subr.mxu0 %v1419
        %v1421 = vand.u32 %v634, 4294901760
        %1422 = vmatpush1.msra.mxu0 %v1421
        %v1423 = vand.u32 %v637, 4294901760
        %1424 = vmatprep.subr.mxu0 %v1423
        %v1425 = vand.u32 %v636, 4294901760
        %1426 = vmatpush1.msra.mxu0 %v1425
        %v1427 = vand.u32 %v639, 4294901760
        %1428 = vmatprep.subr.mxu0 %v1427
        %v1429 = vand.u32 %v638, 4294901760
        %1430 = vmatpush1.msra.mxu0 %v1429
        %v1431 = vand.u32 %v641, 4294901760
        %1432 = vmatprep.subr.mxu0 %v1431
        %v1433 = vand.u32 %v640, 4294901760
        %1434 = vmatpush1.msra.mxu0 %v1433
        %v1435 = vand.u32 %v643, 4294901760
        %1436 = vmatprep.subr.mxu0 %v1435
        %v1437 = vand.u32 %v642, 4294901760
        %1438 = vmatpush1.msra.mxu0 %v1437
        %v1439 = vand.u32 %v645, 4294901760
        %1440 = vmatprep.subr.mxu0 %v1439
        %v1441 = vand.u32 %v644, 4294901760
        %1442 = vmatpush1.msra.mxu0 %v1441
        %v1443 = vand.u32 %v647, 4294901760
        %1444 = vmatprep.subr.mxu0 %v1443
        %v1445 = vand.u32 %v646, 4294901760
        %1446 = vmatpush1.msra.mxu0 %v1445
        %v1447 = vand.u32 %v649, 4294901760
        %1448 = vmatprep.subr.mxu0 %v1447
        %v1449 = vand.u32 %v648, 4294901760
        %1450 = vmatpush1.msra.mxu0 %v1449
        %v1451 = vand.u32 %v651, 4294901760
        %1452 = vmatprep.subr.mxu0 %v1451
        %v1453 = vand.u32 %v650, 4294901760
        %1454 = vmatpush1.msra.mxu0 %v1453
        %v1455 = vand.u32 %v653, 4294901760
        %1456 = vmatprep.subr.mxu0 %v1455
        %v1457 = vand.u32 %v652, 4294901760
        %1458 = vmatpush1.msra.mxu0 %v1457
        %v1459 = vand.u32 %v655, 4294901760
        %1460 = vmatprep.subr.mxu0 %v1459
        %v1461 = vand.u32 %v654, 4294901760
        %1462 = vmatpush1.msra.mxu0 %v1461
        %v1463 = vand.u32 %v657, 4294901760
        %1464 = vmatprep.subr.mxu0 %v1463
        %v1465 = vand.u32 %v656, 4294901760
        %1466 = vmatpush1.msra.mxu0 %v1465
        %v1467 = vand.u32 %v659, 4294901760
        %1468 = vmatprep.subr.mxu0 %v1467
        %v1469 = vand.u32 %v658, 4294901760
        %1470 = vmatpush1.msra.mxu0 %v1469
        %v1471 = vand.u32 %v661, 4294901760
        %1472 = vmatprep.subr.mxu0 %v1471
        %v1473 = vand.u32 %v660, 4294901760
        %1474 = vmatpush1.msra.mxu0 %v1473
        %v1475 = vand.u32 %v663, 4294901760
        %1476 = vmatprep.subr.mxu0 %v1475
        %v1477 = vand.u32 %v662, 4294901760
        %1478 = vmatpush1.msra.mxu0 %v1477
        %v1479 = vand.u32 %v665, 4294901760
        %1480 = vmatprep.subr.mxu0 %v1479
        %v1481 = vand.u32 %v664, 4294901760
        %1482 = vmatpush1.msra.mxu0 %v1481
        %v1483 = vand.u32 %v667, 4294901760
        %1484 = vmatprep.subr.mxu0 %v1483
        %v1485 = vand.u32 %v666, 4294901760
        %1486 = vmatpush1.msra.mxu0 %v1485
        %v1487 = vand.u32 %v669, 4294901760
        %1488 = vmatprep.subr.mxu0 %v1487
        %v1489 = vand.u32 %v668, 4294901760
        %1490 = vmatpush1.msra.mxu0 %v1489
        %v1491 = vand.u32 %v671, 4294901760
        %1492 = vmatprep.subr.mxu0 %v1491
        %v1493 = vand.u32 %v670, 4294901760
        %1494 = vmatpush1.msra.mxu0 %v1493
        %v1495 = vand.u32 %v673, 4294901760
        %1496 = vmatprep.subr.mxu0 %v1495
        %v1497 = vand.u32 %v672, 4294901760
        %1498 = vmatpush1.msra.mxu0 %v1497
        %v1499 = vand.u32 %v675, 4294901760
        %1500 = vmatprep.subr.mxu0 %v1499
        %v1501 = vand.u32 %v674, 4294901760
        %1502 = vmatpush1.msra.mxu0 %v1501
        %v1503 = vand.u32 %v677, 4294901760
        %1504 = vmatprep.subr.mxu0 %v1503
        %v1505 = vand.u32 %v676, 4294901760
        %1506 = vmatpush1.msra.mxu0 %v1505
        %v1507 = vand.u32 %v1360, 4294901760
        %v1508 = vsub.f32 %v1360, %v1507
        %v1509 = vand.u32 %v1508, 4294901760
        %v1510 = vsub.f32 %v1508, %v1509
        %v1511 = vand.u32 %v1510, 4294901760
        %1512 = vmatprep.mubr.f32.mxu0 %v1511
        %v1513 = vand.u32 %v1359, 4294901760
        %v1514 = vsub.f32 %v1359, %v1513
        %v1515 = vand.u32 %v1514, 4294901760
        %v1516 = vsub.f32 %v1514, %v1515
        %v1517 = vand.u32 %v1516, 4294901760
        %1518 = vmatmul.mubr.f32.gmra.mrb[0].mxu0 %v1517
        %v1519 = vpop.f32.mrb[0].mxu0
        %v1520 = vadd.f32 0.0, %v1519
        %v1521 = vpop.f32.mrb[0].mxu0
        %v1522 = vadd.f32 0.0, %v1521
        %v1523 = vand.u32 %v1364, 4294901760
        %v1524 = vsub.f32 %v1364, %v1523
        %v1525 = vand.u32 %v1524, 4294901760
        %v1526 = vsub.f32 %v1524, %v1525
        %v1527 = vand.u32 %v1526, 4294901760
        %1528 = vmatprep.mubr.f32.mxu0 %v1527
        %v1529 = vand.u32 %v1363, 4294901760
        %v1530 = vsub.f32 %v1363, %v1529
        %v1531 = vand.u32 %v1530, 4294901760
        %v1532 = vsub.f32 %v1530, %v1531
        %v1533 = vand.u32 %v1532, 4294901760
        %1534 = vmatmul.mubr.f32.gmra.mrb[0].mxu0 %v1533
        %v1535 = vpop.f32.mrb[0].mxu0
        %v1536 = vadd.f32 0.0, %v1535
        %v1537 = vpop.f32.mrb[0].mxu0
        %v1538 = vadd.f32 0.0, %v1537
        %v1539 = vand.u32 %v1368, 4294901760
        %v1540 = vsub.f32 %v1368, %v1539
        %v1541 = vand.u32 %v1540, 4294901760
        %v1542 = vsub.f32 %v1540, %v1541
        %v1543 = vand.u32 %v1542, 4294901760
        %1544 = vmatprep.mubr.f32.mxu0 %v1543
        %v1545 = vand.u32 %v1367, 4294901760
        %v1546 = vsub.f32 %v1367, %v1545
        %v1547 = vand.u32 %v1546, 4294901760
        %v1548 = vsub.f32 %v1546, %v1547
        %v1549 = vand.u32 %v1548, 4294901760
        %1550 = vmatmul.mubr.f32.gmra.mrb[0].mxu0 %v1549
        %v1551 = vpop.f32.mrb[0].mxu0
        %v1552 = vadd.f32 0.0, %v1551
        %v1553 = vpop.f32.mrb[0].mxu0
        %v1554 = vadd.f32 0.0, %v1553
        %v1555 = vand.u32 %v1372, 4294901760
        %v1556 = vsub.f32 %v1372, %v1555
        %v1557 = vand.u32 %v1556, 4294901760
        %v1558 = vsub.f32 %v1556, %v1557
        %v1559 = vand.u32 %v1558, 4294901760
        %1560 = vmatprep.mubr.f32.mxu0 %v1559
        %v1561 = vand.u32 %v1371, 4294901760
        %v1562 = vsub.f32 %v1371, %v1561
        %v1563 = vand.u32 %v1562, 4294901760
        %v1564 = vsub.f32 %v1562, %v1563
        %v1565 = vand.u32 %v1564, 4294901760
        %1566 = vmatmul.mubr.f32.gmra.mrb[0].mxu0 %v1565
        %v1567 = vpop.f32.mrb[0].mxu0
        %v1568 = vadd.f32 0.0, %v1567
        %v1569 = vpop.f32.mrb[0].mxu0
        %v1570 = vadd.f32 0.0, %v1569
        %v1571 = vand.u32 %v1376, 4294901760
        %v1572 = vsub.f32 %v1376, %v1571
        %v1573 = vand.u32 %v1572, 4294901760
        %v1574 = vsub.f32 %v1572, %v1573
        %v1575 = vand.u32 %v1574, 4294901760
        %1576 = vmatprep.mubr.f32.mxu0 %v1575
        %v1577 = vand.u32 %v1375, 4294901760
        %v1578 = vsub.f32 %v1375, %v1577
        %v1579 = vand.u32 %v1578, 4294901760
        %v1580 = vsub.f32 %v1578, %v1579
        %v1581 = vand.u32 %v1580, 4294901760
        %1582 = vmatmul.mubr.f32.gmra.mrb[0].mxu0 %v1581
        %v1583 = vpop.f32.mrb[0].mxu0
        %v1584 = vadd.f32 0.0, %v1583
        %v1585 = vpop.f32.mrb[0].mxu0
        %v1586 = vadd.f32 0.0, %v1585
        %1587 = vdwg.mxu0
        %v1588 = vand.u32 %v615, 4294901760
        %v1589 = vsub.f32 %v615, %v1588
        %v1590 = vand.u32 %v1589, 4294901760
        %v1591 = vsub.f32 %v1589, %v1590
        %v1592 = vand.u32 %v1591, 4294901760
        %1593 = vmatprep.subr.mxu0 %v1592
        %v1594 = vand.u32 %v614, 4294901760
        %v1595 = vsub.f32 %v614, %v1594
        %v1596 = vand.u32 %v1595, 4294901760
        %v1597 = vsub.f32 %v1595, %v1596
        %v1598 = vand.u32 %v1597, 4294901760
        %1599 = vmatpush1.msra.mxu0 %v1598
        %v1600 = vand.u32 %v617, 4294901760
        %v1601 = vsub.f32 %v617, %v1600
        %v1602 = vand.u32 %v1601, 4294901760
        %v1603 = vsub.f32 %v1601, %v1602
        %v1604 = vand.u32 %v1603, 4294901760
        %1605 = vmatprep.subr.mxu0 %v1604
        %v1606 = vand.u32 %v616, 4294901760
        %v1607 = vsub.f32 %v616, %v1606
        %v1608 = vand.u32 %v1607, 4294901760
        %v1609 = vsub.f32 %v1607, %v1608
        %v1610 = vand.u32 %v1609, 4294901760
        %1611 = vmatpush1.msra.mxu0 %v1610
        %v1612 = vand.u32 %v619, 4294901760
        %v1613 = vsub.f32 %v619, %v1612
        %v1614 = vand.u32 %v1613, 4294901760
        %v1615 = vsub.f32 %v1613, %v1614
        %v1616 = vand.u32 %v1615, 4294901760
        %1617 = vmatprep.subr.mxu0 %v1616
        %v1618 = vand.u32 %v618, 4294901760
        %v1619 = vsub.f32 %v618, %v1618
        %v1620 = vand.u32 %v1619, 4294901760
        %v1621 = vsub.f32 %v1619, %v1620
        %v1622 = vand.u32 %v1621, 4294901760
        %1623 = vmatpush1.msra.mxu0 %v1622
        %v1624 = vand.u32 %v621, 4294901760
        %v1625 = vsub.f32 %v621, %v1624
        %v1626 = vand.u32 %v1625, 4294901760
        %v1627 = vsub.f32 %v1625, %v1626
        %v1628 = vand.u32 %v1627, 4294901760
        %1629 = vmatprep.subr.mxu0 %v1628
        %v1630 = vand.u32 %v620, 4294901760
        %v1631 = vsub.f32 %v620, %v1630
        %v1632 = vand.u32 %v1631, 4294901760
        %v1633 = vsub.f32 %v1631, %v1632
        %v1634 = vand.u32 %v1633, 4294901760
        %1635 = vmatpush1.msra.mxu0 %v1634
        %v1636 = vand.u32 %v623, 4294901760
        %v1637 = vsub.f32 %v623, %v1636
        %v1638 = vand.u32 %v1637, 4294901760
        %v1639 = vsub.f32 %v1637, %v1638
        %v1640 = vand.u32 %v1639, 4294901760
        %1641 = vmatprep.subr.mxu0 %v1640
        %v1642 = vand.u32 %v622, 4294901760
        %v1643 = vsub.f32 %v622, %v1642
        %v1644 = vand.u32 %v1643, 4294901760
        %v1645 = vsub.f32 %v1643, %v1644
        %v1646 = vand.u32 %v1645, 4294901760
        %1647 = vmatpush1.msra.mxu0 %v1646
        %v1648 = vand.u32 %v625, 4294901760
        %v1649 = vsub.f32 %v625, %v1648
        %v1650 = vand.u32 %v1649, 4294901760
        %v1651 = vsub.f32 %v1649, %v1650
        %v1652 = vand.u32 %v1651, 4294901760
        %1653 = vmatprep.subr.mxu0 %v1652
        %v1654 = vand.u32 %v624, 4294901760
        %v1655 = vsub.f32 %v624, %v1654
        %v1656 = vand.u32 %v1655, 4294901760
        %v1657 = vsub.f32 %v1655, %v1656
        %v1658 = vand.u32 %v1657, 4294901760
        %1659 = vmatpush1.msra.mxu0 %v1658
        %v1660 = vand.u32 %v627, 4294901760
        %v1661 = vsub.f32 %v627, %v1660
        %v1662 = vand.u32 %v1661, 4294901760
        %v1663 = vsub.f32 %v1661, %v1662
        %v1664 = vand.u32 %v1663, 4294901760
        %1665 = vmatprep.subr.mxu0 %v1664
        %v1666 = vand.u32 %v626, 4294901760
        %v1667 = vsub.f32 %v626, %v1666
        %v1668 = vand.u32 %v1667, 4294901760
        %v1669 = vsub.f32 %v1667, %v1668
        %v1670 = vand.u32 %v1669, 4294901760
        %1671 = vmatpush1.msra.mxu0 %v1670
        %v1672 = vand.u32 %v629, 4294901760
        %v1673 = vsub.f32 %v629, %v1672
        %v1674 = vand.u32 %v1673, 4294901760
        %v1675 = vsub.f32 %v1673, %v1674
        %v1676 = vand.u32 %v1675, 4294901760
        %1677 = vmatprep.subr.mxu0 %v1676
        %v1678 = vand.u32 %v628, 4294901760
        %v1679 = vsub.f32 %v628, %v1678
        %v1680 = vand.u32 %v1679, 4294901760
        %v1681 = vsub.f32 %v1679, %v1680
        %v1682 = vand.u32 %v1681, 4294901760
        %1683 = vmatpush1.msra.mxu0 %v1682
        %v1684 = vand.u32 %v631, 4294901760
        %v1685 = vsub.f32 %v631, %v1684
        %v1686 = vand.u32 %v1685, 4294901760
        %v1687 = vsub.f32 %v1685, %v1686
        %v1688 = vand.u32 %v1687, 4294901760
        %1689 = vmatprep.subr.mxu0 %v1688
        %v1690 = vand.u32 %v630, 4294901760
        %v1691 = vsub.f32 %v630, %v1690
        %v1692 = vand.u32 %v1691, 4294901760
        %v1693 = vsub.f32 %v1691, %v1692
        %v1694 = vand.u32 %v1693, 4294901760
        %1695 = vmatpush1.msra.mxu0 %v1694
        %v1696 = vand.u32 %v633, 4294901760
        %v1697 = vsub.f32 %v633, %v1696
        %v1698 = vand.u32 %v1697, 4294901760
        %v1699 = vsub.f32 %v1697, %v1698
        %v1700 = vand.u32 %v1699, 4294901760
        %1701 = vmatprep.subr.mxu0 %v1700
        %v1702 = vand.u32 %v632, 4294901760
        %v1703 = vsub.f32 %v632, %v1702
        %v1704 = vand.u32 %v1703, 4294901760
        %v1705 = vsub.f32 %v1703, %v1704
        %v1706 = vand.u32 %v1705, 4294901760
        %1707 = vmatpush1.msra.mxu0 %v1706
        %v1708 = vand.u32 %v635, 4294901760
        %v1709 = vsub.f32 %v635, %v1708
        %v1710 = vand.u32 %v1709, 4294901760
        %v1711 = vsub.f32 %v1709, %v1710
        %v1712 = vand.u32 %v1711, 4294901760
        %1713 = vmatprep.subr.mxu0 %v1712
        %v1714 = vand.u32 %v634, 4294901760
        %v1715 = vsub.f32 %v634, %v1714
        %v1716 = vand.u32 %v1715, 4294901760
        %v1717 = vsub.f32 %v1715, %v1716
        %v1718 = vand.u32 %v1717, 4294901760
        %1719 = vmatpush1.msra.mxu0 %v1718
        %v1720 = vand.u32 %v637, 4294901760
        %v1721 = vsub.f32 %v637, %v1720
        %v1722 = vand.u32 %v1721, 4294901760
        %v1723 = vsub.f32 %v1721, %v1722
        %v1724 = vand.u32 %v1723, 4294901760
        %1725 = vmatprep.subr.mxu0 %v1724
        %v1726 = vand.u32 %v636, 4294901760
        %v1727 = vsub.f32 %v636, %v1726
        %v1728 = vand.u32 %v1727, 4294901760
        %v1729 = vsub.f32 %v1727, %v1728
        %v1730 = vand.u32 %v1729, 4294901760
        %1731 = vmatpush1.msra.mxu0 %v1730
        %v1732 = vand.u32 %v639, 4294901760
        %v1733 = vsub.f32 %v639, %v1732
        %v1734 = vand.u32 %v1733, 4294901760
        %v1735 = vsub.f32 %v1733, %v1734
        %v1736 = vand.u32 %v1735, 4294901760
        %1737 = vmatprep.subr.mxu0 %v1736
        %v1738 = vand.u32 %v638, 4294901760
        %v1739 = vsub.f32 %v638, %v1738
        %v1740 = vand.u32 %v1739, 4294901760
        %v1741 = vsub.f32 %v1739, %v1740
        %v1742 = vand.u32 %v1741, 4294901760
        %1743 = vmatpush1.msra.mxu0 %v1742
        %v1744 = vand.u32 %v641, 4294901760
        %v1745 = vsub.f32 %v641, %v1744
        %v1746 = vand.u32 %v1745, 4294901760
        %v1747 = vsub.f32 %v1745, %v1746
        %v1748 = vand.u32 %v1747, 4294901760
        %1749 = vmatprep.subr.mxu0 %v1748
        %v1750 = vand.u32 %v640, 4294901760
        %v1751 = vsub.f32 %v640, %v1750
        %v1752 = vand.u32 %v1751, 4294901760
        %v1753 = vsub.f32 %v1751, %v1752
        %v1754 = vand.u32 %v1753, 4294901760
        %1755 = vmatpush1.msra.mxu0 %v1754
        %v1756 = vand.u32 %v643, 4294901760
        %v1757 = vsub.f32 %v643, %v1756
        %v1758 = vand.u32 %v1757, 4294901760
        %v1759 = vsub.f32 %v1757, %v1758
        %v1760 = vand.u32 %v1759, 4294901760
        %1761 = vmatprep.subr.mxu0 %v1760
        %v1762 = vand.u32 %v642, 4294901760
        %v1763 = vsub.f32 %v642, %v1762
        %v1764 = vand.u32 %v1763, 4294901760
        %v1765 = vsub.f32 %v1763, %v1764
        %v1766 = vand.u32 %v1765, 4294901760
        %1767 = vmatpush1.msra.mxu0 %v1766
        %v1768 = vand.u32 %v645, 4294901760
        %v1769 = vsub.f32 %v645, %v1768
        %v1770 = vand.u32 %v1769, 4294901760
        %v1771 = vsub.f32 %v1769, %v1770
        %v1772 = vand.u32 %v1771, 4294901760
        %1773 = vmatprep.subr.mxu0 %v1772
        %v1774 = vand.u32 %v644, 4294901760
        %v1775 = vsub.f32 %v644, %v1774
        %v1776 = vand.u32 %v1775, 4294901760
        %v1777 = vsub.f32 %v1775, %v1776
        %v1778 = vand.u32 %v1777, 4294901760
        %1779 = vmatpush1.msra.mxu0 %v1778
        %v1780 = vand.u32 %v647, 4294901760
        %v1781 = vsub.f32 %v647, %v1780
        %v1782 = vand.u32 %v1781, 4294901760
        %v1783 = vsub.f32 %v1781, %v1782
        %v1784 = vand.u32 %v1783, 4294901760
        %1785 = vmatprep.subr.mxu0 %v1784
        %v1786 = vand.u32 %v646, 4294901760
        %v1787 = vsub.f32 %v646, %v1786
        %v1788 = vand.u32 %v1787, 4294901760
        %v1789 = vsub.f32 %v1787, %v1788
        %v1790 = vand.u32 %v1789, 4294901760
        %1791 = vmatpush1.msra.mxu0 %v1790
        %v1792 = vand.u32 %v649, 4294901760
        %v1793 = vsub.f32 %v649, %v1792
        %v1794 = vand.u32 %v1793, 4294901760
        %v1795 = vsub.f32 %v1793, %v1794
        %v1796 = vand.u32 %v1795, 4294901760
        %1797 = vmatprep.subr.mxu0 %v1796
        %v1798 = vand.u32 %v648, 4294901760
        %v1799 = vsub.f32 %v648, %v1798
        %v1800 = vand.u32 %v1799, 4294901760
        %v1801 = vsub.f32 %v1799, %v1800
        %v1802 = vand.u32 %v1801, 4294901760
        %1803 = vmatpush1.msra.mxu0 %v1802
        %v1804 = vand.u32 %v651, 4294901760
        %v1805 = vsub.f32 %v651, %v1804
        %v1806 = vand.u32 %v1805, 4294901760
        %v1807 = vsub.f32 %v1805, %v1806
        %v1808 = vand.u32 %v1807, 4294901760
        %1809 = vmatprep.subr.mxu0 %v1808
        %v1810 = vand.u32 %v650, 4294901760
        %v1811 = vsub.f32 %v650, %v1810
        %v1812 = vand.u32 %v1811, 4294901760
        %v1813 = vsub.f32 %v1811, %v1812
        %v1814 = vand.u32 %v1813, 4294901760
        %1815 = vmatpush1.msra.mxu0 %v1814
        %v1816 = vand.u32 %v653, 4294901760
        %v1817 = vsub.f32 %v653, %v1816
        %v1818 = vand.u32 %v1817, 4294901760
        %v1819 = vsub.f32 %v1817, %v1818
        %v1820 = vand.u32 %v1819, 4294901760
        %1821 = vmatprep.subr.mxu0 %v1820
        %v1822 = vand.u32 %v652, 4294901760
        %v1823 = vsub.f32 %v652, %v1822
        %v1824 = vand.u32 %v1823, 4294901760
        %v1825 = vsub.f32 %v1823, %v1824
        %v1826 = vand.u32 %v1825, 4294901760
        %1827 = vmatpush1.msra.mxu0 %v1826
        %v1828 = vand.u32 %v655, 4294901760
        %v1829 = vsub.f32 %v655, %v1828
        %v1830 = vand.u32 %v1829, 4294901760
        %v1831 = vsub.f32 %v1829, %v1830
        %v1832 = vand.u32 %v1831, 4294901760
        %1833 = vmatprep.subr.mxu0 %v1832
        %v1834 = vand.u32 %v654, 4294901760
        %v1835 = vsub.f32 %v654, %v1834
        %v1836 = vand.u32 %v1835, 4294901760
        %v1837 = vsub.f32 %v1835, %v1836
        %v1838 = vand.u32 %v1837, 4294901760
        %1839 = vmatpush1.msra.mxu0 %v1838
        %v1840 = vand.u32 %v657, 4294901760
        %v1841 = vsub.f32 %v657, %v1840
        %v1842 = vand.u32 %v1841, 4294901760
        %v1843 = vsub.f32 %v1841, %v1842
        %v1844 = vand.u32 %v1843, 4294901760
        %1845 = vmatprep.subr.mxu0 %v1844
        %v1846 = vand.u32 %v656, 4294901760
        %v1847 = vsub.f32 %v656, %v1846
        %v1848 = vand.u32 %v1847, 4294901760
        %v1849 = vsub.f32 %v1847, %v1848
        %v1850 = vand.u32 %v1849, 4294901760
        %1851 = vmatpush1.msra.mxu0 %v1850
        %v1852 = vand.u32 %v659, 4294901760
        %v1853 = vsub.f32 %v659, %v1852
        %v1854 = vand.u32 %v1853, 4294901760
        %v1855 = vsub.f32 %v1853, %v1854
        %v1856 = vand.u32 %v1855, 4294901760
        %1857 = vmatprep.subr.mxu0 %v1856
        %v1858 = vand.u32 %v658, 4294901760
        %v1859 = vsub.f32 %v658, %v1858
        %v1860 = vand.u32 %v1859, 4294901760
        %v1861 = vsub.f32 %v1859, %v1860
        %v1862 = vand.u32 %v1861, 4294901760
        %1863 = vmatpush1.msra.mxu0 %v1862
        %v1864 = vand.u32 %v661, 4294901760
        %v1865 = vsub.f32 %v661, %v1864
        %v1866 = vand.u32 %v1865, 4294901760
        %v1867 = vsub.f32 %v1865, %v1866
        %v1868 = vand.u32 %v1867, 4294901760
        %1869 = vmatprep.subr.mxu0 %v1868
        %v1870 = vand.u32 %v660, 4294901760
        %v1871 = vsub.f32 %v660, %v1870
        %v1872 = vand.u32 %v1871, 4294901760
        %v1873 = vsub.f32 %v1871, %v1872
        %v1874 = vand.u32 %v1873, 4294901760
        %1875 = vmatpush1.msra.mxu0 %v1874
        %v1876 = vand.u32 %v663, 4294901760
        %v1877 = vsub.f32 %v663, %v1876
        %v1878 = vand.u32 %v1877, 4294901760
        %v1879 = vsub.f32 %v1877, %v1878
        %v1880 = vand.u32 %v1879, 4294901760
        %1881 = vmatprep.subr.mxu0 %v1880
        %v1882 = vand.u32 %v662, 4294901760
        %v1883 = vsub.f32 %v662, %v1882
        %v1884 = vand.u32 %v1883, 4294901760
        %v1885 = vsub.f32 %v1883, %v1884
        %v1886 = vand.u32 %v1885, 4294901760
        %1887 = vmatpush1.msra.mxu0 %v1886
        %v1888 = vand.u32 %v665, 4294901760
        %v1889 = vsub.f32 %v665, %v1888
        %v1890 = vand.u32 %v1889, 4294901760
        %v1891 = vsub.f32 %v1889, %v1890
        %v1892 = vand.u32 %v1891, 4294901760
        %1893 = vmatprep.subr.mxu0 %v1892
        %v1894 = vand.u32 %v664, 4294901760
        %v1895 = vsub.f32 %v664, %v1894
        %v1896 = vand.u32 %v1895, 4294901760
        %v1897 = vsub.f32 %v1895, %v1896
        %v1898 = vand.u32 %v1897, 4294901760
        %1899 = vmatpush1.msra.mxu0 %v1898
        %v1900 = vand.u32 %v667, 4294901760
        %v1901 = vsub.f32 %v667, %v1900
        %v1902 = vand.u32 %v1901, 4294901760
        %v1903 = vsub.f32 %v1901, %v1902
        %v1904 = vand.u32 %v1903, 4294901760
        %1905 = vmatprep.subr.mxu0 %v1904
        %v1906 = vand.u32 %v666, 4294901760
        %v1907 = vsub.f32 %v666, %v1906
        %v1908 = vand.u32 %v1907, 4294901760
        %v1909 = vsub.f32 %v1907, %v1908
        %v1910 = vand.u32 %v1909, 4294901760
        %1911 = vmatpush1.msra.mxu0 %v1910
        %v1912 = vand.u32 %v669, 4294901760
        %v1913 = vsub.f32 %v669, %v1912
        %v1914 = vand.u32 %v1913, 4294901760
        %v1915 = vsub.f32 %v1913, %v1914
        %v1916 = vand.u32 %v1915, 4294901760
        %1917 = vmatprep.subr.mxu0 %v1916
        %v1918 = vand.u32 %v668, 4294901760
        %v1919 = vsub.f32 %v668, %v1918
        %v1920 = vand.u32 %v1919, 4294901760
        %v1921 = vsub.f32 %v1919, %v1920
        %v1922 = vand.u32 %v1921, 4294901760
        %1923 = vmatpush1.msra.mxu0 %v1922
        %v1924 = vand.u32 %v671, 4294901760
        %v1925 = vsub.f32 %v671, %v1924
        %v1926 = vand.u32 %v1925, 4294901760
        %v1927 = vsub.f32 %v1925, %v1926
        %v1928 = vand.u32 %v1927, 4294901760
        %1929 = vmatprep.subr.mxu0 %v1928
        %v1930 = vand.u32 %v670, 4294901760
        %v1931 = vsub.f32 %v670, %v1930
        %v1932 = vand.u32 %v1931, 4294901760
        %v1933 = vsub.f32 %v1931, %v1932
        %v1934 = vand.u32 %v1933, 4294901760
        %1935 = vmatpush1.msra.mxu0 %v1934
        %v1936 = vand.u32 %v673, 4294901760
        %v1937 = vsub.f32 %v673, %v1936
        %v1938 = vand.u32 %v1937, 4294901760
        %v1939 = vsub.f32 %v1937, %v1938
        %v1940 = vand.u32 %v1939, 4294901760
        %1941 = vmatprep.subr.mxu0 %v1940
        %v1942 = vand.u32 %v672, 4294901760
        %v1943 = vsub.f32 %v672, %v1942
        %v1944 = vand.u32 %v1943, 4294901760
        %v1945 = vsub.f32 %v1943, %v1944
        %v1946 = vand.u32 %v1945, 4294901760
        %1947 = vmatpush1.msra.mxu0 %v1946
        %v1948 = vand.u32 %v675, 4294901760
        %v1949 = vsub.f32 %v675, %v1948
        %v1950 = vand.u32 %v1949, 4294901760
        %v1951 = vsub.f32 %v1949, %v1950
        %v1952 = vand.u32 %v1951, 4294901760
        %1953 = vmatprep.subr.mxu0 %v1952
        %v1954 = vand.u32 %v674, 4294901760
        %v1955 = vsub.f32 %v674, %v1954
        %v1956 = vand.u32 %v1955, 4294901760
        %v1957 = vsub.f32 %v1955, %v1956
        %v1958 = vand.u32 %v1957, 4294901760
        %1959 = vmatpush1.msra.mxu0 %v1958
        %v1960 = vand.u32 %v677, 4294901760
        %v1961 = vsub.f32 %v677, %v1960
        %v1962 = vand.u32 %v1961, 4294901760
        %v1963 = vsub.f32 %v1961, %v1962
        %v1964 = vand.u32 %v1963, 4294901760
        %1965 = vmatprep.subr.mxu0 %v1964
        %v1966 = vand.u32 %v676, 4294901760
        %v1967 = vsub.f32 %v676, %v1966
        %v1968 = vand.u32 %v1967, 4294901760
        %v1969 = vsub.f32 %v1967, %v1968
        %v1970 = vand.u32 %v1969, 4294901760
        %1971 = vmatpush1.msra.mxu0 %v1970
        %v1972 = vand.u32 %v1360, 4294901760
        %1973 = vmatprep.mubr.f32.mxu0 %v1972
        %v1974 = vand.u32 %v1359, 4294901760
        %1975 = vmatmul.mubr.f32.gmra.mrb[0].mxu0 %v1974
        %v1976 = vpop.f32.mrb[0].mxu0
        %v1977 = vadd.f32 %v1520, %v1976
        %v1978 = vpop.f32.mrb[0].mxu0
        %v1979 = vadd.f32 %v1522, %v1978
        %v1980 = vand.u32 %v1364, 4294901760
        %1981 = vmatprep.mubr.f32.mxu0 %v1980
        %v1982 = vand.u32 %v1363, 4294901760
        %1983 = vmatmul.mubr.f32.gmra.mrb[0].mxu0 %v1982
        %v1984 = vpop.f32.mrb[0].mxu0
        %v1985 = vadd.f32 %v1536, %v1984
        %v1986 = vpop.f32.mrb[0].mxu0
        %v1987 = vadd.f32 %v1538, %v1986
        %v1988 = vand.u32 %v1368, 4294901760
        %1989 = vmatprep.mubr.f32.mxu0 %v1988
        %v1990 = vand.u32 %v1367, 4294901760
        %1991 = vmatmul.mubr.f32.gmra.mrb[0].mxu0 %v1990
        %v1992 = vpop.f32.mrb[0].mxu0
        %v1993 = vadd.f32 %v1552, %v1992
        %v1994 = vpop.f32.mrb[0].mxu0
        %v1995 = vadd.f32 %v1554, %v1994
        %v1996 = vand.u32 %v1372, 4294901760
        %1997 = vmatprep.mubr.f32.mxu0 %v1996
        %v1998 = vand.u32 %v1371, 4294901760
        %1999 = vmatmul.mubr.f32.gmra.mrb[0].mxu0 %v1998
        %v2000 = vpop.f32.mrb[0].mxu0
        %v2001 = vadd.f32 %v1568, %v2000
        %v2002 = vpop.f32.mrb[0].mxu0
        %v2003 = vadd.f32 %v1570, %v2002
        %v2004 = vand.u32 %v1376, 4294901760
        %2005 = vmatprep.mubr.f32.mxu0 %v2004
        %v2006 = vand.u32 %v1375, 4294901760
        %2007 = vmatmul.mubr.f32.gmra.mrb[0].mxu0 %v2006
        %v2008 = vpop.f32.mrb[0].mxu0
        %v2009 = vadd.f32 %v1584, %v2008
        %v2010 = vpop.f32.mrb[0].mxu0
        %v2011 = vadd.f32 %v1586, %v2010
        %2012 = vdwg.mxu0
        %v2013 = vand.u32 %v615, 4294901760
        %v2014 = vsub.f32 %v615, %v2013
        %2015 = vmatprep.subr.mxu0 %v2014
        %v2016 = vand.u32 %v614, 4294901760
        %v2017 = vsub.f32 %v614, %v2016
        %2018 = vmatpush1.msra.mxu0 %v2017
        %v2019 = vand.u32 %v617, 4294901760
        %v2020 = vsub.f32 %v617, %v2019
        %2021 = vmatprep.subr.mxu0 %v2020
        %v2022 = vand.u32 %v616, 4294901760
        %v2023 = vsub.f32 %v616, %v2022
        %2024 = vmatpush1.msra.mxu0 %v2023
        %v2025 = vand.u32 %v619, 4294901760
        %v2026 = vsub.f32 %v619, %v2025
        %2027 = vmatprep.subr.mxu0 %v2026
        %v2028 = vand.u32 %v618, 4294901760
        %v2029 = vsub.f32 %v618, %v2028
        %2030 = vmatpush1.msra.mxu0 %v2029
        %v2031 = vand.u32 %v621, 4294901760
        %v2032 = vsub.f32 %v621, %v2031
        %2033 = vmatprep.subr.mxu0 %v2032
        %v2034 = vand.u32 %v620, 4294901760
        %v2035 = vsub.f32 %v620, %v2034
        %2036 = vmatpush1.msra.mxu0 %v2035
        %v2037 = vand.u32 %v623, 4294901760
        %v2038 = vsub.f32 %v623, %v2037
        %2039 = vmatprep.subr.mxu0 %v2038
        %v2040 = vand.u32 %v622, 4294901760
        %v2041 = vsub.f32 %v622, %v2040
        %2042 = vmatpush1.msra.mxu0 %v2041
        %v2043 = vand.u32 %v625, 4294901760
        %v2044 = vsub.f32 %v625, %v2043
        %2045 = vmatprep.subr.mxu0 %v2044
        %v2046 = vand.u32 %v624, 4294901760
        %v2047 = vsub.f32 %v624, %v2046
        %2048 = vmatpush1.msra.mxu0 %v2047
        %v2049 = vand.u32 %v627, 4294901760
        %v2050 = vsub.f32 %v627, %v2049
        %2051 = vmatprep.subr.mxu0 %v2050
        %v2052 = vand.u32 %v626, 4294901760
        %v2053 = vsub.f32 %v626, %v2052
        %2054 = vmatpush1.msra.mxu0 %v2053
        %v2055 = vand.u32 %v629, 4294901760
        %v2056 = vsub.f32 %v629, %v2055
        %2057 = vmatprep.subr.mxu0 %v2056
        %v2058 = vand.u32 %v628, 4294901760
        %v2059 = vsub.f32 %v628, %v2058
        %2060 = vmatpush1.msra.mxu0 %v2059
        %v2061 = vand.u32 %v631, 4294901760
        %v2062 = vsub.f32 %v631, %v2061
        %2063 = vmatprep.subr.mxu0 %v2062
        %v2064 = vand.u32 %v630, 4294901760
        %v2065 = vsub.f32 %v630, %v2064
        %2066 = vmatpush1.msra.mxu0 %v2065
        %v2067 = vand.u32 %v633, 4294901760
        %v2068 = vsub.f32 %v633, %v2067
        %2069 = vmatprep.subr.mxu0 %v2068
        %v2070 = vand.u32 %v632, 4294901760
        %v2071 = vsub.f32 %v632, %v2070
        %2072 = vmatpush1.msra.mxu0 %v2071
        %v2073 = vand.u32 %v635, 4294901760
        %v2074 = vsub.f32 %v635, %v2073
        %2075 = vmatprep.subr.mxu0 %v2074
        %v2076 = vand.u32 %v634, 4294901760
        %v2077 = vsub.f32 %v634, %v2076
        %2078 = vmatpush1.msra.mxu0 %v2077
        %v2079 = vand.u32 %v637, 4294901760
        %v2080 = vsub.f32 %v637, %v2079
        %2081 = vmatprep.subr.mxu0 %v2080
        %v2082 = vand.u32 %v636, 4294901760
        %v2083 = vsub.f32 %v636, %v2082
        %2084 = vmatpush1.msra.mxu0 %v2083
        %v2085 = vand.u32 %v639, 4294901760
        %v2086 = vsub.f32 %v639, %v2085
        %2087 = vmatprep.subr.mxu0 %v2086
        %v2088 = vand.u32 %v638, 4294901760
        %v2089 = vsub.f32 %v638, %v2088
        %2090 = vmatpush1.msra.mxu0 %v2089
        %v2091 = vand.u32 %v641, 4294901760
        %v2092 = vsub.f32 %v641, %v2091
        %2093 = vmatprep.subr.mxu0 %v2092
        %v2094 = vand.u32 %v640, 4294901760
        %v2095 = vsub.f32 %v640, %v2094
        %2096 = vmatpush1.msra.mxu0 %v2095
        %v2097 = vand.u32 %v643, 4294901760
        %v2098 = vsub.f32 %v643, %v2097
        %2099 = vmatprep.subr.mxu0 %v2098
        %v2100 = vand.u32 %v642, 4294901760
        %v2101 = vsub.f32 %v642, %v2100
        %2102 = vmatpush1.msra.mxu0 %v2101
        %v2103 = vand.u32 %v645, 4294901760
        %v2104 = vsub.f32 %v645, %v2103
        %2105 = vmatprep.subr.mxu0 %v2104
        %v2106 = vand.u32 %v644, 4294901760
        %v2107 = vsub.f32 %v644, %v2106
        %2108 = vmatpush1.msra.mxu0 %v2107
        %v2109 = vand.u32 %v647, 4294901760
        %v2110 = vsub.f32 %v647, %v2109
        %2111 = vmatprep.subr.mxu0 %v2110
        %v2112 = vand.u32 %v646, 4294901760
        %v2113 = vsub.f32 %v646, %v2112
        %2114 = vmatpush1.msra.mxu0 %v2113
        %v2115 = vand.u32 %v649, 4294901760
        %v2116 = vsub.f32 %v649, %v2115
        %2117 = vmatprep.subr.mxu0 %v2116
        %v2118 = vand.u32 %v648, 4294901760
        %v2119 = vsub.f32 %v648, %v2118
        %2120 = vmatpush1.msra.mxu0 %v2119
        %v2121 = vand.u32 %v651, 4294901760
        %v2122 = vsub.f32 %v651, %v2121
        %2123 = vmatprep.subr.mxu0 %v2122
        %v2124 = vand.u32 %v650, 4294901760
        %v2125 = vsub.f32 %v650, %v2124
        %2126 = vmatpush1.msra.mxu0 %v2125
        %v2127 = vand.u32 %v653, 4294901760
        %v2128 = vsub.f32 %v653, %v2127
        %2129 = vmatprep.subr.mxu0 %v2128
        %v2130 = vand.u32 %v652, 4294901760
        %v2131 = vsub.f32 %v652, %v2130
        %2132 = vmatpush1.msra.mxu0 %v2131
        %v2133 = vand.u32 %v655, 4294901760
        %v2134 = vsub.f32 %v655, %v2133
        %2135 = vmatprep.subr.mxu0 %v2134
        %v2136 = vand.u32 %v654, 4294901760
        %v2137 = vsub.f32 %v654, %v2136
        %2138 = vmatpush1.msra.mxu0 %v2137
        %v2139 = vand.u32 %v657, 4294901760
        %v2140 = vsub.f32 %v657, %v2139
        %2141 = vmatprep.subr.mxu0 %v2140
        %v2142 = vand.u32 %v656, 4294901760
        %v2143 = vsub.f32 %v656, %v2142
        %2144 = vmatpush1.msra.mxu0 %v2143
        %v2145 = vand.u32 %v659, 4294901760
        %v2146 = vsub.f32 %v659, %v2145
        %2147 = vmatprep.subr.mxu0 %v2146
        %v2148 = vand.u32 %v658, 4294901760
        %v2149 = vsub.f32 %v658, %v2148
        %2150 = vmatpush1.msra.mxu0 %v2149
        %v2151 = vand.u32 %v661, 4294901760
        %v2152 = vsub.f32 %v661, %v2151
        %2153 = vmatprep.subr.mxu0 %v2152
        %v2154 = vand.u32 %v660, 4294901760
        %v2155 = vsub.f32 %v660, %v2154
        %2156 = vmatpush1.msra.mxu0 %v2155
        %v2157 = vand.u32 %v663, 4294901760
        %v2158 = vsub.f32 %v663, %v2157
        %2159 = vmatprep.subr.mxu0 %v2158
        %v2160 = vand.u32 %v662, 4294901760
        %v2161 = vsub.f32 %v662, %v2160
        %2162 = vmatpush1.msra.mxu0 %v2161
        %v2163 = vand.u32 %v665, 4294901760
        %v2164 = vsub.f32 %v665, %v2163
        %2165 = vmatprep.subr.mxu0 %v2164
        %v2166 = vand.u32 %v664, 4294901760
        %v2167 = vsub.f32 %v664, %v2166
        %2168 = vmatpush1.msra.mxu0 %v2167
        %v2169 = vand.u32 %v667, 4294901760
        %v2170 = vsub.f32 %v667, %v2169
        %2171 = vmatprep.subr.mxu0 %v2170
        %v2172 = vand.u32 %v666, 4294901760
        %v2173 = vsub.f32 %v666, %v2172
        %2174 = vmatpush1.msra.mxu0 %v2173
        %v2175 = vand.u32 %v669, 4294901760
        %v2176 = vsub.f32 %v669, %v2175
        %2177 = vmatprep.subr.mxu0 %v2176
        %v2178 = vand.u32 %v668, 4294901760
        %v2179 = vsub.f32 %v668, %v2178
        %2180 = vmatpush1.msra.mxu0 %v2179
        %v2181 = vand.u32 %v671, 4294901760
        %v2182 = vsub.f32 %v671, %v2181
        %2183 = vmatprep.subr.mxu0 %v2182
        %v2184 = vand.u32 %v670, 4294901760
        %v2185 = vsub.f32 %v670, %v2184
        %2186 = vmatpush1.msra.mxu0 %v2185
        %v2187 = vand.u32 %v673, 4294901760
        %v2188 = vsub.f32 %v673, %v2187
        %2189 = vmatprep.subr.mxu0 %v2188
        %v2190 = vand.u32 %v672, 4294901760
        %v2191 = vsub.f32 %v672, %v2190
        %2192 = vmatpush1.msra.mxu0 %v2191
        %v2193 = vand.u32 %v675, 4294901760
        %v2194 = vsub.f32 %v675, %v2193
        %2195 = vmatprep.subr.mxu0 %v2194
        %v2196 = vand.u32 %v674, 4294901760
        %v2197 = vsub.f32 %v674, %v2196
        %2198 = vmatpush1.msra.mxu0 %v2197
        %v2199 = vand.u32 %v677, 4294901760
        %v2200 = vsub.f32 %v677, %v2199
        %2201 = vmatprep.subr.mxu0 %v2200
        %v2202 = vand.u32 %v676, 4294901760
        %v2203 = vsub.f32 %v676, %v2202
        %2204 = vmatpush1.msra.mxu0 %v2203
        %v2205 = vand.u32 %v1360, 4294901760
        %v2206 = vsub.f32 %v1360, %v2205
        %2207 = vmatprep.mubr.f32.mxu0 %v2206
        %v2208 = vand.u32 %v1359, 4294901760
        %v2209 = vsub.f32 %v1359, %v2208
        %2210 = vmatmul.mubr.f32.gmra.mrb[0].mxu0 %v2209
        %v2211 = vpop.f32.mrb[0].mxu0
        %v2212 = vadd.f32 %v1977, %v2211
        %v2213 = vpop.f32.mrb[0].mxu0
        %v2214 = vadd.f32 %v1979, %v2213
        %v2215 = vand.u32 %v1364, 4294901760
        %v2216 = vsub.f32 %v1364, %v2215
        %2217 = vmatprep.mubr.f32.mxu0 %v2216
        %v2218 = vand.u32 %v1363, 4294901760
        %v2219 = vsub.f32 %v1363, %v2218
        %2220 = vmatmul.mubr.f32.gmra.mrb[0].mxu0 %v2219
        %v2221 = vpop.f32.mrb[0].mxu0
        %v2222 = vadd.f32 %v1985, %v2221
        %v2223 = vpop.f32.mrb[0].mxu0
        %v2224 = vadd.f32 %v1987, %v2223
        %v2225 = vand.u32 %v1368, 4294901760
        %v2226 = vsub.f32 %v1368, %v2225
        %2227 = vmatprep.mubr.f32.mxu0 %v2226
        %v2228 = vand.u32 %v1367, 4294901760
        %v2229 = vsub.f32 %v1367, %v2228
        %2230 = vmatmul.mubr.f32.gmra.mrb[0].mxu0 %v2229
        %v2231 = vpop.f32.mrb[0].mxu0
        %v2232 = vadd.f32 %v1993, %v2231
        %v2233 = vpop.f32.mrb[0].mxu0
        %v2234 = vadd.f32 %v1995, %v2233
        %v2235 = vand.u32 %v1372, 4294901760
        %v2236 = vsub.f32 %v1372, %v2235
        %2237 = vmatprep.mubr.f32.mxu0 %v2236
        %v2238 = vand.u32 %v1371, 4294901760
        %v2239 = vsub.f32 %v1371, %v2238
        %2240 = vmatmul.mubr.f32.gmra.mrb[0].mxu0 %v2239
        %v2241 = vpop.f32.mrb[0].mxu0
        %v2242 = vadd.f32 %v2001, %v2241
        %v2243 = vpop.f32.mrb[0].mxu0
        %v2244 = vadd.f32 %v2003, %v2243
        %v2245 = vand.u32 %v1376, 4294901760
        %v2246 = vsub.f32 %v1376, %v2245
        %2247 = vmatprep.mubr.f32.mxu0 %v2246
        %v2248 = vand.u32 %v1375, 4294901760
        %v2249 = vsub.f32 %v1375, %v2248
        %2250 = vmatmul.mubr.f32.gmra.mrb[0].mxu0 %v2249
        %v2251 = vpop.f32.mrb[0].mxu0
        %v2252 = vadd.f32 %v2009, %v2251
        %v2253 = vpop.f32.mrb[0].mxu0
        %v2254 = vadd.f32 %v2011, %v2253
        %2255 = vdwg.mxu0
        %v2256 = vand.u32 %v615, 4294901760
        %2257 = vmatprep.subr.mxu0 %v2256
        %v2258 = vand.u32 %v614, 4294901760
        %2259 = vmatpush1.msra.mxu0 %v2258
        %v2260 = vand.u32 %v617, 4294901760
        %2261 = vmatprep.subr.mxu0 %v2260
        %v2262 = vand.u32 %v616, 4294901760
        %2263 = vmatpush1.msra.mxu0 %v2262
        %v2264 = vand.u32 %v619, 4294901760
        %2265 = vmatprep.subr.mxu0 %v2264
        %v2266 = vand.u32 %v618, 4294901760
        %2267 = vmatpush1.msra.mxu0 %v2266
        %v2268 = vand.u32 %v621, 4294901760
        %2269 = vmatprep.subr.mxu0 %v2268
        %v2270 = vand.u32 %v620, 4294901760
        %2271 = vmatpush1.msra.mxu0 %v2270
        %v2272 = vand.u32 %v623, 4294901760
        %2273 = vmatprep.subr.mxu0 %v2272
        %v2274 = vand.u32 %v622, 4294901760
        %2275 = vmatpush1.msra.mxu0 %v2274
        %v2276 = vand.u32 %v625, 4294901760
        %2277 = vmatprep.subr.mxu0 %v2276
        %v2278 = vand.u32 %v624, 4294901760
        %2279 = vmatpush1.msra.mxu0 %v2278
        %v2280 = vand.u32 %v627, 4294901760
        %2281 = vmatprep.subr.mxu0 %v2280
        %v2282 = vand.u32 %v626, 4294901760
        %2283 = vmatpush1.msra.mxu0 %v2282
        %v2284 = vand.u32 %v629, 4294901760
        %2285 = vmatprep.subr.mxu0 %v2284
        %v2286 = vand.u32 %v628, 4294901760
        %2287 = vmatpush1.msra.mxu0 %v2286
        %v2288 = vand.u32 %v631, 4294901760
        %2289 = vmatprep.subr.mxu0 %v2288
        %v2290 = vand.u32 %v630, 4294901760
        %2291 = vmatpush1.msra.mxu0 %v2290
        %v2292 = vand.u32 %v633, 4294901760
        %2293 = vmatprep.subr.mxu0 %v2292
        %v2294 = vand.u32 %v632, 4294901760
        %2295 = vmatpush1.msra.mxu0 %v2294
        %v2296 = vand.u32 %v635, 4294901760
        %2297 = vmatprep.subr.mxu0 %v2296
        %v2298 = vand.u32 %v634, 4294901760
        %2299 = vmatpush1.msra.mxu0 %v2298
        %v2300 = vand.u32 %v637, 4294901760
        %2301 = vmatprep.subr.mxu0 %v2300
        %v2302 = vand.u32 %v636, 4294901760
        %2303 = vmatpush1.msra.mxu0 %v2302
        %v2304 = vand.u32 %v639, 4294901760
        %2305 = vmatprep.subr.mxu0 %v2304
        %v2306 = vand.u32 %v638, 4294901760
        %2307 = vmatpush1.msra.mxu0 %v2306
        %v2308 = vand.u32 %v641, 4294901760
        %2309 = vmatprep.subr.mxu0 %v2308
        %v2310 = vand.u32 %v640, 4294901760
        %2311 = vmatpush1.msra.mxu0 %v2310
        %v2312 = vand.u32 %v643, 4294901760
        %2313 = vmatprep.subr.mxu0 %v2312
        %v2314 = vand.u32 %v642, 4294901760
        %2315 = vmatpush1.msra.mxu0 %v2314
        %v2316 = vand.u32 %v645, 4294901760
        %2317 = vmatprep.subr.mxu0 %v2316
        %v2318 = vand.u32 %v644, 4294901760
        %2319 = vmatpush1.msra.mxu0 %v2318
        %v2320 = vand.u32 %v647, 4294901760
        %2321 = vmatprep.subr.mxu0 %v2320
        %v2322 = vand.u32 %v646, 4294901760
        %2323 = vmatpush1.msra.mxu0 %v2322
        %v2324 = vand.u32 %v649, 4294901760
        %2325 = vmatprep.subr.mxu0 %v2324
        %v2326 = vand.u32 %v648, 4294901760
        %2327 = vmatpush1.msra.mxu0 %v2326
        %v2328 = vand.u32 %v651, 4294901760
        %2329 = vmatprep.subr.mxu0 %v2328
        %v2330 = vand.u32 %v650, 4294901760
        %2331 = vmatpush1.msra.mxu0 %v2330
        %v2332 = vand.u32 %v653, 4294901760
        %2333 = vmatprep.subr.mxu0 %v2332
        %v2334 = vand.u32 %v652, 4294901760
        %2335 = vmatpush1.msra.mxu0 %v2334
        %v2336 = vand.u32 %v655, 4294901760
        %2337 = vmatprep.subr.mxu0 %v2336
        %v2338 = vand.u32 %v654, 4294901760
        %2339 = vmatpush1.msra.mxu0 %v2338
        %v2340 = vand.u32 %v657, 4294901760
        %2341 = vmatprep.subr.mxu0 %v2340
        %v2342 = vand.u32 %v656, 4294901760
        %2343 = vmatpush1.msra.mxu0 %v2342
        %v2344 = vand.u32 %v659, 4294901760
        %2345 = vmatprep.subr.mxu0 %v2344
        %v2346 = vand.u32 %v658, 4294901760
        %2347 = vmatpush1.msra.mxu0 %v2346
        %v2348 = vand.u32 %v661, 4294901760
        %2349 = vmatprep.subr.mxu0 %v2348
        %v2350 = vand.u32 %v660, 4294901760
        %2351 = vmatpush1.msra.mxu0 %v2350
        %v2352 = vand.u32 %v663, 4294901760
        %2353 = vmatprep.subr.mxu0 %v2352
        %v2354 = vand.u32 %v662, 4294901760
        %2355 = vmatpush1.msra.mxu0 %v2354
        %v2356 = vand.u32 %v665, 4294901760
        %2357 = vmatprep.subr.mxu0 %v2356
        %v2358 = vand.u32 %v664, 4294901760
        %2359 = vmatpush1.msra.mxu0 %v2358
        %v2360 = vand.u32 %v667, 4294901760
        %2361 = vmatprep.subr.mxu0 %v2360
        %v2362 = vand.u32 %v666, 4294901760
        %2363 = vmatpush1.msra.mxu0 %v2362
        %v2364 = vand.u32 %v669, 4294901760
        %2365 = vmatprep.subr.mxu0 %v2364
        %v2366 = vand.u32 %v668, 4294901760
        %2367 = vmatpush1.msra.mxu0 %v2366
        %v2368 = vand.u32 %v671, 4294901760
        %2369 = vmatprep.subr.mxu0 %v2368
        %v2370 = vand.u32 %v670, 4294901760
        %2371 = vmatpush1.msra.mxu0 %v2370
        %v2372 = vand.u32 %v673, 4294901760
        %2373 = vmatprep.subr.mxu0 %v2372
        %v2374 = vand.u32 %v672, 4294901760
        %2375 = vmatpush1.msra.mxu0 %v2374
        %v2376 = vand.u32 %v675, 4294901760
        %2377 = vmatprep.subr.mxu0 %v2376
        %v2378 = vand.u32 %v674, 4294901760
        %2379 = vmatpush1.msra.mxu0 %v2378
        %v2380 = vand.u32 %v677, 4294901760
        %2381 = vmatprep.subr.mxu0 %v2380
        %v2382 = vand.u32 %v676, 4294901760
        %2383 = vmatpush1.msra.mxu0 %v2382
        %v2384 = vand.u32 %v1360, 4294901760
        %v2385 = vsub.f32 %v1360, %v2384
        %v2386 = vand.u32 %v2385, 4294901760
        %2387 = vmatprep.mubr.f32.mxu0 %v2386
        %v2388 = vand.u32 %v1359, 4294901760
        %v2389 = vsub.f32 %v1359, %v2388
        %v2390 = vand.u32 %v2389, 4294901760
        %2391 = vmatmul.mubr.f32.gmra.mrb[0].mxu0 %v2390
        %v2392 = vpop.f32.mrb[0].mxu0
        %v2393 = vadd.f32 %v2212, %v2392
        %v2394 = vpop.f32.mrb[0].mxu0
        %v2395 = vadd.f32 %v2214, %v2394
        %v2396 = vand.u32 %v1364, 4294901760
        %v2397 = vsub.f32 %v1364, %v2396
        %v2398 = vand.u32 %v2397, 4294901760
        %2399 = vmatprep.mubr.f32.mxu0 %v2398
        %v2400 = vand.u32 %v1363, 4294901760
        %v2401 = vsub.f32 %v1363, %v2400
        %v2402 = vand.u32 %v2401, 4294901760
        %2403 = vmatmul.mubr.f32.gmra.mrb[0].mxu0 %v2402
        %v2404 = vpop.f32.mrb[0].mxu0
        %v2405 = vadd.f32 %v2222, %v2404
        %v2406 = vpop.f32.mrb[0].mxu0
        %v2407 = vadd.f32 %v2224, %v2406
        %v2408 = vand.u32 %v1368, 4294901760
        %v2409 = vsub.f32 %v1368, %v2408
        %v2410 = vand.u32 %v2409, 4294901760
        %2411 = vmatprep.mubr.f32.mxu0 %v2410
        %v2412 = vand.u32 %v1367, 4294901760
        %v2413 = vsub.f32 %v1367, %v2412
        %v2414 = vand.u32 %v2413, 4294901760
        %2415 = vmatmul.mubr.f32.gmra.mrb[0].mxu0 %v2414
        %v2416 = vpop.f32.mrb[0].mxu0
        %v2417 = vadd.f32 %v2232, %v2416
        %v2418 = vpop.f32.mrb[0].mxu0
        %v2419 = vadd.f32 %v2234, %v2418
        %v2420 = vand.u32 %v1372, 4294901760
        %v2421 = vsub.f32 %v1372, %v2420
        %v2422 = vand.u32 %v2421, 4294901760
        %2423 = vmatprep.mubr.f32.mxu0 %v2422
        %v2424 = vand.u32 %v1371, 4294901760
        %v2425 = vsub.f32 %v1371, %v2424
        %v2426 = vand.u32 %v2425, 4294901760
        %2427 = vmatmul.mubr.f32.gmra.mrb[0].mxu0 %v2426
        %v2428 = vpop.f32.mrb[0].mxu0
        %v2429 = vadd.f32 %v2242, %v2428
        %v2430 = vpop.f32.mrb[0].mxu0
        %v2431 = vadd.f32 %v2244, %v2430
        %v2432 = vand.u32 %v1376, 4294901760
        %v2433 = vsub.f32 %v1376, %v2432
        %v2434 = vand.u32 %v2433, 4294901760
        %2435 = vmatprep.mubr.f32.mxu0 %v2434
        %v2436 = vand.u32 %v1375, 4294901760
        %v2437 = vsub.f32 %v1375, %v2436
        %v2438 = vand.u32 %v2437, 4294901760
        %2439 = vmatmul.mubr.f32.gmra.mrb[0].mxu0 %v2438
        %v2440 = vpop.f32.mrb[0].mxu0
        %v2441 = vadd.f32 %v2252, %v2440
        %v2442 = vpop.f32.mrb[0].mxu0
        %v2443 = vadd.f32 %v2254, %v2442
        %2444 = vdwg.mxu0
        %v2445 = vand.u32 %v615, 4294901760
        %v2446 = vsub.f32 %v615, %v2445
        %v2447 = vand.u32 %v2446, 4294901760
        %2448 = vmatprep.subr.mxu0 %v2447
        %v2449 = vand.u32 %v614, 4294901760
        %v2450 = vsub.f32 %v614, %v2449
        %v2451 = vand.u32 %v2450, 4294901760
        %2452 = vmatpush1.msra.mxu0 %v2451
        %v2453 = vand.u32 %v617, 4294901760
        %v2454 = vsub.f32 %v617, %v2453
        %v2455 = vand.u32 %v2454, 4294901760
        %2456 = vmatprep.subr.mxu0 %v2455
        %v2457 = vand.u32 %v616, 4294901760
        %v2458 = vsub.f32 %v616, %v2457
        %v2459 = vand.u32 %v2458, 4294901760
        %2460 = vmatpush1.msra.mxu0 %v2459
        %v2461 = vand.u32 %v619, 4294901760
        %v2462 = vsub.f32 %v619, %v2461
        %v2463 = vand.u32 %v2462, 4294901760
        %2464 = vmatprep.subr.mxu0 %v2463
        %v2465 = vand.u32 %v618, 4294901760
        %v2466 = vsub.f32 %v618, %v2465
        %v2467 = vand.u32 %v2466, 4294901760
        %2468 = vmatpush1.msra.mxu0 %v2467
        %v2469 = vand.u32 %v621, 4294901760
        %v2470 = vsub.f32 %v621, %v2469
        %v2471 = vand.u32 %v2470, 4294901760
        %2472 = vmatprep.subr.mxu0 %v2471
        %v2473 = vand.u32 %v620, 4294901760
        %v2474 = vsub.f32 %v620, %v2473
        %v2475 = vand.u32 %v2474, 4294901760
        %2476 = vmatpush1.msra.mxu0 %v2475
        %v2477 = vand.u32 %v623, 4294901760
        %v2478 = vsub.f32 %v623, %v2477
        %v2479 = vand.u32 %v2478, 4294901760
        %2480 = vmatprep.subr.mxu0 %v2479
        %v2481 = vand.u32 %v622, 4294901760
        %v2482 = vsub.f32 %v622, %v2481
        %v2483 = vand.u32 %v2482, 4294901760
        %2484 = vmatpush1.msra.mxu0 %v2483
        %v2485 = vand.u32 %v625, 4294901760
        %v2486 = vsub.f32 %v625, %v2485
        %v2487 = vand.u32 %v2486, 4294901760
        %2488 = vmatprep.subr.mxu0 %v2487
        %v2489 = vand.u32 %v624, 4294901760
        %v2490 = vsub.f32 %v624, %v2489
        %v2491 = vand.u32 %v2490, 4294901760
        %2492 = vmatpush1.msra.mxu0 %v2491
        %v2493 = vand.u32 %v627, 4294901760
        %v2494 = vsub.f32 %v627, %v2493
        %v2495 = vand.u32 %v2494, 4294901760
        %2496 = vmatprep.subr.mxu0 %v2495
        %v2497 = vand.u32 %v626, 4294901760
        %v2498 = vsub.f32 %v626, %v2497
        %v2499 = vand.u32 %v2498, 4294901760
        %2500 = vmatpush1.msra.mxu0 %v2499
        %v2501 = vand.u32 %v629, 4294901760
        %v2502 = vsub.f32 %v629, %v2501
        %v2503 = vand.u32 %v2502, 4294901760
        %2504 = vmatprep.subr.mxu0 %v2503
        %v2505 = vand.u32 %v628, 4294901760
        %v2506 = vsub.f32 %v628, %v2505
        %v2507 = vand.u32 %v2506, 4294901760
        %2508 = vmatpush1.msra.mxu0 %v2507
        %v2509 = vand.u32 %v631, 4294901760
        %v2510 = vsub.f32 %v631, %v2509
        %v2511 = vand.u32 %v2510, 4294901760
        %2512 = vmatprep.subr.mxu0 %v2511
        %v2513 = vand.u32 %v630, 4294901760
        %v2514 = vsub.f32 %v630, %v2513
        %v2515 = vand.u32 %v2514, 4294901760
        %2516 = vmatpush1.msra.mxu0 %v2515
        %v2517 = vand.u32 %v633, 4294901760
        %v2518 = vsub.f32 %v633, %v2517
        %v2519 = vand.u32 %v2518, 4294901760
        %2520 = vmatprep.subr.mxu0 %v2519
        %v2521 = vand.u32 %v632, 4294901760
        %v2522 = vsub.f32 %v632, %v2521
        %v2523 = vand.u32 %v2522, 4294901760
        %2524 = vmatpush1.msra.mxu0 %v2523
        %v2525 = vand.u32 %v635, 4294901760
        %v2526 = vsub.f32 %v635, %v2525
        %v2527 = vand.u32 %v2526, 4294901760
        %2528 = vmatprep.subr.mxu0 %v2527
        %v2529 = vand.u32 %v634, 4294901760
        %v2530 = vsub.f32 %v634, %v2529
        %v2531 = vand.u32 %v2530, 4294901760
        %2532 = vmatpush1.msra.mxu0 %v2531
        %v2533 = vand.u32 %v637, 4294901760
        %v2534 = vsub.f32 %v637, %v2533
        %v2535 = vand.u32 %v2534, 4294901760
        %2536 = vmatprep.subr.mxu0 %v2535
        %v2537 = vand.u32 %v636, 4294901760
        %v2538 = vsub.f32 %v636, %v2537
        %v2539 = vand.u32 %v2538, 4294901760
        %2540 = vmatpush1.msra.mxu0 %v2539
        %v2541 = vand.u32 %v639, 4294901760
        %v2542 = vsub.f32 %v639, %v2541
        %v2543 = vand.u32 %v2542, 4294901760
        %2544 = vmatprep.subr.mxu0 %v2543
        %v2545 = vand.u32 %v638, 4294901760
        %v2546 = vsub.f32 %v638, %v2545
        %v2547 = vand.u32 %v2546, 4294901760
        %2548 = vmatpush1.msra.mxu0 %v2547
        %v2549 = vand.u32 %v641, 4294901760
        %v2550 = vsub.f32 %v641, %v2549
        %v2551 = vand.u32 %v2550, 4294901760
        %2552 = vmatprep.subr.mxu0 %v2551
        %v2553 = vand.u32 %v640, 4294901760
        %v2554 = vsub.f32 %v640, %v2553
        %v2555 = vand.u32 %v2554, 4294901760
        %2556 = vmatpush1.msra.mxu0 %v2555
        %v2557 = vand.u32 %v643, 4294901760
        %v2558 = vsub.f32 %v643, %v2557
        %v2559 = vand.u32 %v2558, 4294901760
        %2560 = vmatprep.subr.mxu0 %v2559
        %v2561 = vand.u32 %v642, 4294901760
        %v2562 = vsub.f32 %v642, %v2561
        %v2563 = vand.u32 %v2562, 4294901760
        %2564 = vmatpush1.msra.mxu0 %v2563
        %v2565 = vand.u32 %v645, 4294901760
        %v2566 = vsub.f32 %v645, %v2565
        %v2567 = vand.u32 %v2566, 4294901760
        %2568 = vmatprep.subr.mxu0 %v2567
        %v2569 = vand.u32 %v644, 4294901760
        %v2570 = vsub.f32 %v644, %v2569
        %v2571 = vand.u32 %v2570, 4294901760
        %2572 = vmatpush1.msra.mxu0 %v2571
        %v2573 = vand.u32 %v647, 4294901760
        %v2574 = vsub.f32 %v647, %v2573
        %v2575 = vand.u32 %v2574, 4294901760
        %2576 = vmatprep.subr.mxu0 %v2575
        %v2577 = vand.u32 %v646, 4294901760
        %v2578 = vsub.f32 %v646, %v2577
        %v2579 = vand.u32 %v2578, 4294901760
        %2580 = vmatpush1.msra.mxu0 %v2579
        %v2581 = vand.u32 %v649, 4294901760
        %v2582 = vsub.f32 %v649, %v2581
        %v2583 = vand.u32 %v2582, 4294901760
        %2584 = vmatprep.subr.mxu0 %v2583
        %v2585 = vand.u32 %v648, 4294901760
        %v2586 = vsub.f32 %v648, %v2585
        %v2587 = vand.u32 %v2586, 4294901760
        %2588 = vmatpush1.msra.mxu0 %v2587
        %v2589 = vand.u32 %v651, 4294901760
        %v2590 = vsub.f32 %v651, %v2589
        %v2591 = vand.u32 %v2590, 4294901760
        %2592 = vmatprep.subr.mxu0 %v2591
        %v2593 = vand.u32 %v650, 4294901760
        %v2594 = vsub.f32 %v650, %v2593
        %v2595 = vand.u32 %v2594, 4294901760
        %2596 = vmatpush1.msra.mxu0 %v2595
        %v2597 = vand.u32 %v653, 4294901760
        %v2598 = vsub.f32 %v653, %v2597
        %v2599 = vand.u32 %v2598, 4294901760
        %2600 = vmatprep.subr.mxu0 %v2599
        %v2601 = vand.u32 %v652, 4294901760
        %v2602 = vsub.f32 %v652, %v2601
        %v2603 = vand.u32 %v2602, 4294901760
        %2604 = vmatpush1.msra.mxu0 %v2603
        %v2605 = vand.u32 %v655, 4294901760
        %v2606 = vsub.f32 %v655, %v2605
        %v2607 = vand.u32 %v2606, 4294901760
        %2608 = vmatprep.subr.mxu0 %v2607
        %v2609 = vand.u32 %v654, 4294901760
        %v2610 = vsub.f32 %v654, %v2609
        %v2611 = vand.u32 %v2610, 4294901760
        %2612 = vmatpush1.msra.mxu0 %v2611
        %v2613 = vand.u32 %v657, 4294901760
        %v2614 = vsub.f32 %v657, %v2613
        %v2615 = vand.u32 %v2614, 4294901760
        %2616 = vmatprep.subr.mxu0 %v2615
        %v2617 = vand.u32 %v656, 4294901760
        %v2618 = vsub.f32 %v656, %v2617
        %v2619 = vand.u32 %v2618, 4294901760
        %2620 = vmatpush1.msra.mxu0 %v2619
        %v2621 = vand.u32 %v659, 4294901760
        %v2622 = vsub.f32 %v659, %v2621
        %v2623 = vand.u32 %v2622, 4294901760
        %2624 = vmatprep.subr.mxu0 %v2623
        %v2625 = vand.u32 %v658, 4294901760
        %v2626 = vsub.f32 %v658, %v2625
        %v2627 = vand.u32 %v2626, 4294901760
        %2628 = vmatpush1.msra.mxu0 %v2627
        %v2629 = vand.u32 %v661, 4294901760
        %v2630 = vsub.f32 %v661, %v2629
        %v2631 = vand.u32 %v2630, 4294901760
        %2632 = vmatprep.subr.mxu0 %v2631
        %v2633 = vand.u32 %v660, 4294901760
        %v2634 = vsub.f32 %v660, %v2633
        %v2635 = vand.u32 %v2634, 4294901760
        %2636 = vmatpush1.msra.mxu0 %v2635
        %v2637 = vand.u32 %v663, 4294901760
        %v2638 = vsub.f32 %v663, %v2637
        %v2639 = vand.u32 %v2638, 4294901760
        %2640 = vmatprep.subr.mxu0 %v2639
        %v2641 = vand.u32 %v662, 4294901760
        %v2642 = vsub.f32 %v662, %v2641
        %v2643 = vand.u32 %v2642, 4294901760
        %2644 = vmatpush1.msra.mxu0 %v2643
        %v2645 = vand.u32 %v665, 4294901760
        %v2646 = vsub.f32 %v665, %v2645
        %v2647 = vand.u32 %v2646, 4294901760
        %2648 = vmatprep.subr.mxu0 %v2647
        %v2649 = vand.u32 %v664, 4294901760
        %v2650 = vsub.f32 %v664, %v2649
        %v2651 = vand.u32 %v2650, 4294901760
        %2652 = vmatpush1.msra.mxu0 %v2651
        %v2653 = vand.u32 %v667, 4294901760
        %v2654 = vsub.f32 %v667, %v2653
        %v2655 = vand.u32 %v2654, 4294901760
        %2656 = vmatprep.subr.mxu0 %v2655
        %v2657 = vand.u32 %v666, 4294901760
        %v2658 = vsub.f32 %v666, %v2657
        %v2659 = vand.u32 %v2658, 4294901760
        %2660 = vmatpush1.msra.mxu0 %v2659
        %v2661 = vand.u32 %v669, 4294901760
        %v2662 = vsub.f32 %v669, %v2661
        %v2663 = vand.u32 %v2662, 4294901760
        %2664 = vmatprep.subr.mxu0 %v2663
        %v2665 = vand.u32 %v668, 4294901760
        %v2666 = vsub.f32 %v668, %v2665
        %v2667 = vand.u32 %v2666, 4294901760
        %2668 = vmatpush1.msra.mxu0 %v2667
        %v2669 = vand.u32 %v671, 4294901760
        %v2670 = vsub.f32 %v671, %v2669
        %v2671 = vand.u32 %v2670, 4294901760
        %2672 = vmatprep.subr.mxu0 %v2671
        %v2673 = vand.u32 %v670, 4294901760
        %v2674 = vsub.f32 %v670, %v2673
        %v2675 = vand.u32 %v2674, 4294901760
        %2676 = vmatpush1.msra.mxu0 %v2675
        %v2677 = vand.u32 %v673, 4294901760
        %v2678 = vsub.f32 %v673, %v2677
        %v2679 = vand.u32 %v2678, 4294901760
        %2680 = vmatprep.subr.mxu0 %v2679
        %v2681 = vand.u32 %v672, 4294901760
        %v2682 = vsub.f32 %v672, %v2681
        %v2683 = vand.u32 %v2682, 4294901760
        %2684 = vmatpush1.msra.mxu0 %v2683
        %v2685 = vand.u32 %v675, 4294901760
        %v2686 = vsub.f32 %v675, %v2685
        %v2687 = vand.u32 %v2686, 4294901760
        %2688 = vmatprep.subr.mxu0 %v2687
        %v2689 = vand.u32 %v674, 4294901760
        %v2690 = vsub.f32 %v674, %v2689
        %v2691 = vand.u32 %v2690, 4294901760
        %2692 = vmatpush1.msra.mxu0 %v2691
        %v2693 = vand.u32 %v677, 4294901760
        %v2694 = vsub.f32 %v677, %v2693
        %v2695 = vand.u32 %v2694, 4294901760
        %2696 = vmatprep.subr.mxu0 %v2695
        %v2697 = vand.u32 %v676, 4294901760
        %v2698 = vsub.f32 %v676, %v2697
        %v2699 = vand.u32 %v2698, 4294901760
        %2700 = vmatpush1.msra.mxu0 %v2699
        %v2701 = vand.u32 %v1360, 4294901760
        %2702 = vmatprep.mubr.f32.mxu0 %v2701
        %v2703 = vand.u32 %v1359, 4294901760
        %2704 = vmatmul.mubr.f32.gmra.mrb[0].mxu0 %v2703
        %v2705 = vpop.f32.mrb[0].mxu0
        %v2706 = vadd.f32 %v2393, %v2705
        %v2707 = vpop.f32.mrb[0].mxu0
        %v2708 = vadd.f32 %v2395, %v2707
        %v2709 = vand.u32 %v1364, 4294901760
        %2710 = vmatprep.mubr.f32.mxu0 %v2709
        %v2711 = vand.u32 %v1363, 4294901760
        %2712 = vmatmul.mubr.f32.gmra.mrb[0].mxu0 %v2711
        %v2713 = vpop.f32.mrb[0].mxu0
        %v2714 = vadd.f32 %v2405, %v2713
        %v2715 = vpop.f32.mrb[0].mxu0
        %v2716 = vadd.f32 %v2407, %v2715
        %v2717 = vand.u32 %v1368, 4294901760
        %2718 = vmatprep.mubr.f32.mxu0 %v2717
        %v2719 = vand.u32 %v1367, 4294901760
        %2720 = vmatmul.mubr.f32.gmra.mrb[0].mxu0 %v2719
        %v2721 = vpop.f32.mrb[0].mxu0
        %v2722 = vadd.f32 %v2417, %v2721
        %v2723 = vpop.f32.mrb[0].mxu0
        %v2724 = vadd.f32 %v2419, %v2723
        %v2725 = vand.u32 %v1372, 4294901760
        %2726 = vmatprep.mubr.f32.mxu0 %v2725
        %v2727 = vand.u32 %v1371, 4294901760
        %2728 = vmatmul.mubr.f32.gmra.mrb[0].mxu0 %v2727
        %v2729 = vpop.f32.mrb[0].mxu0
        %v2730 = vadd.f32 %v2429, %v2729
        %v2731 = vpop.f32.mrb[0].mxu0
        %v2732 = vadd.f32 %v2431, %v2731
        %v2733 = vand.u32 %v1376, 4294901760
        %2734 = vmatprep.mubr.f32.mxu0 %v2733
        %v2735 = vand.u32 %v1375, 4294901760
        %2736 = vmatmul.mubr.f32.gmra.mrb[0].mxu0 %v2735
        %v2737 = vpop.f32.mrb[0].mxu0
        %v2738 = vadd.f32 %v2441, %v2737
        %v2739 = vpop.f32.mrb[0].mxu0
        %v2740 = vadd.f32 %v2443, %v2739
        %2741 = vdwg.mxu0
        %v2742 = vand.u32 %v615, 4294901760
        %2743 = vmatprep.subr.mxu0 %v2742
        %v2744 = vand.u32 %v614, 4294901760
        %2745 = vmatpush1.msra.mxu0 %v2744
        %v2746 = vand.u32 %v617, 4294901760
        %2747 = vmatprep.subr.mxu0 %v2746
        %v2748 = vand.u32 %v616, 4294901760
        %2749 = vmatpush1.msra.mxu0 %v2748
        %v2750 = vand.u32 %v619, 4294901760
        %2751 = vmatprep.subr.mxu0 %v2750
        %v2752 = vand.u32 %v618, 4294901760
        %2753 = vmatpush1.msra.mxu0 %v2752
        %v2754 = vand.u32 %v621, 4294901760
        %2755 = vmatprep.subr.mxu0 %v2754
        %v2756 = vand.u32 %v620, 4294901760
        %2757 = vmatpush1.msra.mxu0 %v2756
        %v2758 = vand.u32 %v623, 4294901760
        %2759 = vmatprep.subr.mxu0 %v2758
        %v2760 = vand.u32 %v622, 4294901760
        %2761 = vmatpush1.msra.mxu0 %v2760
        %v2762 = vand.u32 %v625, 4294901760
        %2763 = vmatprep.subr.mxu0 %v2762
        %v2764 = vand.u32 %v624, 4294901760
        %2765 = vmatpush1.msra.mxu0 %v2764
        %v2766 = vand.u32 %v627, 4294901760
        %2767 = vmatprep.subr.mxu0 %v2766
        %v2768 = vand.u32 %v626, 4294901760
        %2769 = vmatpush1.msra.mxu0 %v2768
        %v2770 = vand.u32 %v629, 4294901760
        %2771 = vmatprep.subr.mxu0 %v2770
        %v2772 = vand.u32 %v628, 4294901760
        %2773 = vmatpush1.msra.mxu0 %v2772
        %v2774 = vand.u32 %v631, 4294901760
        %2775 = vmatprep.subr.mxu0 %v2774
        %v2776 = vand.u32 %v630, 4294901760
        %2777 = vmatpush1.msra.mxu0 %v2776
        %v2778 = vand.u32 %v633, 4294901760
        %2779 = vmatprep.subr.mxu0 %v2778
        %v2780 = vand.u32 %v632, 4294901760
        %2781 = vmatpush1.msra.mxu0 %v2780
        %v2782 = vand.u32 %v635, 4294901760
        %2783 = vmatprep.subr.mxu0 %v2782
        %v2784 = vand.u32 %v634, 4294901760
        %2785 = vmatpush1.msra.mxu0 %v2784
        %v2786 = vand.u32 %v637, 4294901760
        %2787 = vmatprep.subr.mxu0 %v2786
        %v2788 = vand.u32 %v636, 4294901760
        %2789 = vmatpush1.msra.mxu0 %v2788
        %v2790 = vand.u32 %v639, 4294901760
        %2791 = vmatprep.subr.mxu0 %v2790
        %v2792 = vand.u32 %v638, 4294901760
        %2793 = vmatpush1.msra.mxu0 %v2792
        %v2794 = vand.u32 %v641, 4294901760
        %2795 = vmatprep.subr.mxu0 %v2794
        %v2796 = vand.u32 %v640, 4294901760
        %2797 = vmatpush1.msra.mxu0 %v2796
        %v2798 = vand.u32 %v643, 4294901760
        %2799 = vmatprep.subr.mxu0 %v2798
        %v2800 = vand.u32 %v642, 4294901760
        %2801 = vmatpush1.msra.mxu0 %v2800
        %v2802 = vand.u32 %v645, 4294901760
        %2803 = vmatprep.subr.mxu0 %v2802
        %v2804 = vand.u32 %v644, 4294901760
        %2805 = vmatpush1.msra.mxu0 %v2804
        %v2806 = vand.u32 %v647, 4294901760
        %2807 = vmatprep.subr.mxu0 %v2806
        %v2808 = vand.u32 %v646, 4294901760
        %2809 = vmatpush1.msra.mxu0 %v2808
        %v2810 = vand.u32 %v649, 4294901760
        %2811 = vmatprep.subr.mxu0 %v2810
        %v2812 = vand.u32 %v648, 4294901760
        %2813 = vmatpush1.msra.mxu0 %v2812
        %v2814 = vand.u32 %v651, 4294901760
        %2815 = vmatprep.subr.mxu0 %v2814
        %v2816 = vand.u32 %v650, 4294901760
        %2817 = vmatpush1.msra.mxu0 %v2816
        %v2818 = vand.u32 %v653, 4294901760
        %2819 = vmatprep.subr.mxu0 %v2818
        %v2820 = vand.u32 %v652, 4294901760
        %2821 = vmatpush1.msra.mxu0 %v2820
        %v2822 = vand.u32 %v655, 4294901760
        %2823 = vmatprep.subr.mxu0 %v2822
        %v2824 = vand.u32 %v654, 4294901760
        %2825 = vmatpush1.msra.mxu0 %v2824
        %v2826 = vand.u32 %v657, 4294901760
        %2827 = vmatprep.subr.mxu0 %v2826
        %v2828 = vand.u32 %v656, 4294901760
        %2829 = vmatpush1.msra.mxu0 %v2828
        %v2830 = vand.u32 %v659, 4294901760
        %2831 = vmatprep.subr.mxu0 %v2830
        %v2832 = vand.u32 %v658, 4294901760
        %2833 = vmatpush1.msra.mxu0 %v2832
        %v2834 = vand.u32 %v661, 4294901760
        %2835 = vmatprep.subr.mxu0 %v2834
        %v2836 = vand.u32 %v660, 4294901760
        %2837 = vmatpush1.msra.mxu0 %v2836
        %v2838 = vand.u32 %v663, 4294901760
        %2839 = vmatprep.subr.mxu0 %v2838
        %v2840 = vand.u32 %v662, 4294901760
        %2841 = vmatpush1.msra.mxu0 %v2840
        %v2842 = vand.u32 %v665, 4294901760
        %2843 = vmatprep.subr.mxu0 %v2842
        %v2844 = vand.u32 %v664, 4294901760
        %2845 = vmatpush1.msra.mxu0 %v2844
        %v2846 = vand.u32 %v667, 4294901760
        %2847 = vmatprep.subr.mxu0 %v2846
        %v2848 = vand.u32 %v666, 4294901760
        %2849 = vmatpush1.msra.mxu0 %v2848
        %v2850 = vand.u32 %v669, 4294901760
        %2851 = vmatprep.subr.mxu0 %v2850
        %v2852 = vand.u32 %v668, 4294901760
        %2853 = vmatpush1.msra.mxu0 %v2852
        %v2854 = vand.u32 %v671, 4294901760
        %2855 = vmatprep.subr.mxu0 %v2854
        %v2856 = vand.u32 %v670, 4294901760
        %2857 = vmatpush1.msra.mxu0 %v2856
        %v2858 = vand.u32 %v673, 4294901760
        %2859 = vmatprep.subr.mxu0 %v2858
        %v2860 = vand.u32 %v672, 4294901760
        %2861 = vmatpush1.msra.mxu0 %v2860
        %v2862 = vand.u32 %v675, 4294901760
        %2863 = vmatprep.subr.mxu0 %v2862
        %v2864 = vand.u32 %v674, 4294901760
        %2865 = vmatpush1.msra.mxu0 %v2864
        %v2866 = vand.u32 %v677, 4294901760
        %2867 = vmatprep.subr.mxu0 %v2866
        %v2868 = vand.u32 %v676, 4294901760
        %2869 = vmatpush1.msra.mxu0 %v2868
        %v2870 = vand.u32 %v1360, 4294901760
        %2871 = vmatprep.mubr.f32.mxu0 %v2870
        %v2872 = vand.u32 %v1359, 4294901760
        %2873 = vmatmul.mubr.f32.gmra.mrb[0].mxu0 %v2872
        %v2874 = vpop.f32.mrb[0].mxu0
        %v2875 = vadd.f32 %v2706, %v2874
        %v2876 = vpop.f32.mrb[0].mxu0
        %v2877 = vadd.f32 %v2708, %v2876
        %v2878 = vand.u32 %v1364, 4294901760
        %2879 = vmatprep.mubr.f32.mxu0 %v2878
        %v2880 = vand.u32 %v1363, 4294901760
        %2881 = vmatmul.mubr.f32.gmra.mrb[0].mxu0 %v2880
        %v2882 = vpop.f32.mrb[0].mxu0
        %v2883 = vadd.f32 %v2714, %v2882
        %v2884 = vpop.f32.mrb[0].mxu0
        %v2885 = vadd.f32 %v2716, %v2884
        %v2886 = vand.u32 %v1368, 4294901760
        %2887 = vmatprep.mubr.f32.mxu0 %v2886
        %v2888 = vand.u32 %v1367, 4294901760
        %2889 = vmatmul.mubr.f32.gmra.mrb[0].mxu0 %v2888
        %v2890 = vpop.f32.mrb[0].mxu0
        %v2891 = vadd.f32 %v2722, %v2890
        %v2892 = vpop.f32.mrb[0].mxu0
        %v2893 = vadd.f32 %v2724, %v2892
        %v2894 = vand.u32 %v1372, 4294901760
        %2895 = vmatprep.mubr.f32.mxu0 %v2894
        %v2896 = vand.u32 %v1371, 4294901760
        %2897 = vmatmul.mubr.f32.gmra.mrb[0].mxu0 %v2896
        %v2898 = vpop.f32.mrb[0].mxu0
        %v2899 = vadd.f32 %v2730, %v2898
        %v2900 = vpop.f32.mrb[0].mxu0
        %v2901 = vadd.f32 %v2732, %v2900
        %v2902 = vand.u32 %v1376, 4294901760
        %2903 = vmatprep.mubr.f32.mxu0 %v2902
        %v2904 = vand.u32 %v1375, 4294901760
        %2905 = vmatmul.mubr.f32.gmra.mrb[0].mxu0 %v2904
        %v2906 = vpop.f32.mrb[0].mxu0
        %v2907 = vadd.f32 %v2738, %v2906
        %v2908 = vpop.f32.mrb[0].mxu0
        %v2909 = vadd.f32 %v2740, %v2908
        %2910 = vdwg.mxu0
        %v2911 = vand.u32 %v679, 4294901760
        %2912 = vmatprep.subr.mxu0 %v2911
        %v2913 = vand.u32 %v678, 4294901760
        %2914 = vmatpush1.msra.mxu0 %v2913
        %v2915 = vand.u32 %v681, 4294901760
        %2916 = vmatprep.subr.mxu0 %v2915
        %v2917 = vand.u32 %v680, 4294901760
        %2918 = vmatpush1.msra.mxu0 %v2917
        %v2919 = vand.u32 %v683, 4294901760
        %2920 = vmatprep.subr.mxu0 %v2919
        %v2921 = vand.u32 %v682, 4294901760
        %2922 = vmatpush1.msra.mxu0 %v2921
        %v2923 = vand.u32 %v685, 4294901760
        %2924 = vmatprep.subr.mxu0 %v2923
        %v2925 = vand.u32 %v684, 4294901760
        %2926 = vmatpush1.msra.mxu0 %v2925
        %v2927 = vand.u32 %v687, 4294901760
        %2928 = vmatprep.subr.mxu0 %v2927
        %v2929 = vand.u32 %v686, 4294901760
        %2930 = vmatpush1.msra.mxu0 %v2929
        %v2931 = vand.u32 %v689, 4294901760
        %2932 = vmatprep.subr.mxu0 %v2931
        %v2933 = vand.u32 %v688, 4294901760
        %2934 = vmatpush1.msra.mxu0 %v2933
        %v2935 = vand.u32 %v691, 4294901760
        %2936 = vmatprep.subr.mxu0 %v2935
        %v2937 = vand.u32 %v690, 4294901760
        %2938 = vmatpush1.msra.mxu0 %v2937
        %v2939 = vand.u32 %v693, 4294901760
        %2940 = vmatprep.subr.mxu0 %v2939
        %v2941 = vand.u32 %v692, 4294901760
        %2942 = vmatpush1.msra.mxu0 %v2941
        %v2943 = vand.u32 %v695, 4294901760
        %2944 = vmatprep.subr.mxu0 %v2943
        %v2945 = vand.u32 %v694, 4294901760
        %2946 = vmatpush1.msra.mxu0 %v2945
        %v2947 = vand.u32 %v697, 4294901760
        %2948 = vmatprep.subr.mxu0 %v2947
        %v2949 = vand.u32 %v696, 4294901760
        %2950 = vmatpush1.msra.mxu0 %v2949
        %v2951 = vand.u32 %v699, 4294901760
        %2952 = vmatprep.subr.mxu0 %v2951
        %v2953 = vand.u32 %v698, 4294901760
        %2954 = vmatpush1.msra.mxu0 %v2953
        %v2955 = vand.u32 %v701, 4294901760
        %2956 = vmatprep.subr.mxu0 %v2955
        %v2957 = vand.u32 %v700, 4294901760
        %2958 = vmatpush1.msra.mxu0 %v2957
        %v2959 = vand.u32 %v703, 4294901760
        %2960 = vmatprep.subr.mxu0 %v2959
        %v2961 = vand.u32 %v702, 4294901760
        %2962 = vmatpush1.msra.mxu0 %v2961
        %v2963 = vand.u32 %v705, 4294901760
        %2964 = vmatprep.subr.mxu0 %v2963
        %v2965 = vand.u32 %v704, 4294901760
        %2966 = vmatpush1.msra.mxu0 %v2965
        %v2967 = vand.u32 %v707, 4294901760
        %2968 = vmatprep.subr.mxu0 %v2967
        %v2969 = vand.u32 %v706, 4294901760
        %2970 = vmatpush1.msra.mxu0 %v2969
        %v2971 = vand.u32 %v709, 4294901760
        %2972 = vmatprep.subr.mxu0 %v2971
        %v2973 = vand.u32 %v708, 4294901760
        %2974 = vmatpush1.msra.mxu0 %v2973
        %v2975 = vand.u32 %v711, 4294901760
        %2976 = vmatprep.subr.mxu0 %v2975
        %v2977 = vand.u32 %v710, 4294901760
        %2978 = vmatpush1.msra.mxu0 %v2977
        %v2979 = vand.u32 %v713, 4294901760
        %2980 = vmatprep.subr.mxu0 %v2979
        %v2981 = vand.u32 %v712, 4294901760
        %2982 = vmatpush1.msra.mxu0 %v2981
        %v2983 = vand.u32 %v715, 4294901760
        %2984 = vmatprep.subr.mxu0 %v2983
        %v2985 = vand.u32 %v714, 4294901760
        %2986 = vmatpush1.msra.mxu0 %v2985
        %v2987 = vand.u32 %v717, 4294901760
        %2988 = vmatprep.subr.mxu0 %v2987
        %v2989 = vand.u32 %v716, 4294901760
        %2990 = vmatpush1.msra.mxu0 %v2989
        %v2991 = vand.u32 %v719, 4294901760
        %2992 = vmatprep.subr.mxu0 %v2991
        %v2993 = vand.u32 %v718, 4294901760
        %2994 = vmatpush1.msra.mxu0 %v2993
        %v2995 = vand.u32 %v721, 4294901760
        %2996 = vmatprep.subr.mxu0 %v2995
        %v2997 = vand.u32 %v720, 4294901760
        %2998 = vmatpush1.msra.mxu0 %v2997
        %v2999 = vand.u32 %v723, 4294901760
        %3000 = vmatprep.subr.mxu0 %v2999
        %v3001 = vand.u32 %v722, 4294901760
        %3002 = vmatpush1.msra.mxu0 %v3001
        %v3003 = vand.u32 %v725, 4294901760
        %3004 = vmatprep.subr.mxu0 %v3003
        %v3005 = vand.u32 %v724, 4294901760
        %3006 = vmatpush1.msra.mxu0 %v3005
        %v3007 = vand.u32 %v727, 4294901760
        %3008 = vmatprep.subr.mxu0 %v3007
        %v3009 = vand.u32 %v726, 4294901760
        %3010 = vmatpush1.msra.mxu0 %v3009
        %v3011 = vand.u32 %v729, 4294901760
        %3012 = vmatprep.subr.mxu0 %v3011
        %v3013 = vand.u32 %v728, 4294901760
        %3014 = vmatpush1.msra.mxu0 %v3013
        %v3015 = vand.u32 %v731, 4294901760
        %3016 = vmatprep.subr.mxu0 %v3015
        %v3017 = vand.u32 %v730, 4294901760
        %3018 = vmatpush1.msra.mxu0 %v3017
        %v3019 = vand.u32 %v733, 4294901760
        %3020 = vmatprep.subr.mxu0 %v3019
        %v3021 = vand.u32 %v732, 4294901760
        %3022 = vmatpush1.msra.mxu0 %v3021
        %v3023 = vand.u32 %v735, 4294901760
        %3024 = vmatprep.subr.mxu0 %v3023
        %v3025 = vand.u32 %v734, 4294901760
        %3026 = vmatpush1.msra.mxu0 %v3025
        %v3027 = vand.u32 %v737, 4294901760
        %3028 = vmatprep.subr.mxu0 %v3027
        %v3029 = vand.u32 %v736, 4294901760
        %3030 = vmatpush1.msra.mxu0 %v3029
        %v3031 = vand.u32 %v739, 4294901760
        %3032 = vmatprep.subr.mxu0 %v3031
        %v3033 = vand.u32 %v738, 4294901760
        %3034 = vmatpush1.msra.mxu0 %v3033
        %v3035 = vand.u32 %v741, 4294901760
        %3036 = vmatprep.subr.mxu0 %v3035
        %v3037 = vand.u32 %v740, 4294901760
        %3038 = vmatpush1.msra.mxu0 %v3037
        %v3039 = vand.u32 %v1362, 4294901760
        %v3040 = vsub.f32 %v1362, %v3039
        %v3041 = vand.u32 %v3040, 4294901760
        %v3042 = vsub.f32 %v3040, %v3041
        %v3043 = vand.u32 %v3042, 4294901760
        %3044 = vmatprep.mubr.f32.mxu0 %v3043
        %v3045 = vand.u32 %v1361, 4294901760
        %v3046 = vsub.f32 %v1361, %v3045
        %v3047 = vand.u32 %v3046, 4294901760
        %v3048 = vsub.f32 %v3046, %v3047
        %v3049 = vand.u32 %v3048, 4294901760
        %3050 = vmatmul.mubr.f32.gmra.mrb[0].mxu0 %v3049
        %v3051 = vpop.f32.mrb[0].mxu0
        %v3052 = vadd.f32 %v2875, %v3051
        %v3053 = vpop.f32.mrb[0].mxu0
        %v3054 = vadd.f32 %v2877, %v3053
        %v3055 = vand.u32 %v1366, 4294901760
        %v3056 = vsub.f32 %v1366, %v3055
        %v3057 = vand.u32 %v3056, 4294901760
        %v3058 = vsub.f32 %v3056, %v3057
        %v3059 = vand.u32 %v3058, 4294901760
        %3060 = vmatprep.mubr.f32.mxu0 %v3059
        %v3061 = vand.u32 %v1365, 4294901760
        %v3062 = vsub.f32 %v1365, %v3061
        %v3063 = vand.u32 %v3062, 4294901760
        %v3064 = vsub.f32 %v3062, %v3063
        %v3065 = vand.u32 %v3064, 4294901760
        %3066 = vmatmul.mubr.f32.gmra.mrb[0].mxu0 %v3065
        %v3067 = vpop.f32.mrb[0].mxu0
        %v3068 = vadd.f32 %v2883, %v3067
        %v3069 = vpop.f32.mrb[0].mxu0
        %v3070 = vadd.f32 %v2885, %v3069
        %v3071 = vand.u32 %v1370, 4294901760
        %v3072 = vsub.f32 %v1370, %v3071
        %v3073 = vand.u32 %v3072, 4294901760
        %v3074 = vsub.f32 %v3072, %v3073
        %v3075 = vand.u32 %v3074, 4294901760
        %3076 = vmatprep.mubr.f32.mxu0 %v3075
        %v3077 = vand.u32 %v1369, 4294901760
        %v3078 = vsub.f32 %v1369, %v3077
        %v3079 = vand.u32 %v3078, 4294901760
        %v3080 = vsub.f32 %v3078, %v3079
        %v3081 = vand.u32 %v3080, 4294901760
        %3082 = vmatmul.mubr.f32.gmra.mrb[0].mxu0 %v3081
        %v3083 = vpop.f32.mrb[0].mxu0
        %v3084 = vadd.f32 %v2891, %v3083
        %v3085 = vpop.f32.mrb[0].mxu0
        %v3086 = vadd.f32 %v2893, %v3085
        %v3087 = vand.u32 %v1374, 4294901760
        %v3088 = vsub.f32 %v1374, %v3087
        %v3089 = vand.u32 %v3088, 4294901760
        %v3090 = vsub.f32 %v3088, %v3089
        %v3091 = vand.u32 %v3090, 4294901760
        %3092 = vmatprep.mubr.f32.mxu0 %v3091
        %v3093 = vand.u32 %v1373, 4294901760
        %v3094 = vsub.f32 %v1373, %v3093
        %v3095 = vand.u32 %v3094, 4294901760
        %v3096 = vsub.f32 %v3094, %v3095
        %v3097 = vand.u32 %v3096, 4294901760
        %3098 = vmatmul.mubr.f32.gmra.mrb[0].mxu0 %v3097
        %v3099 = vpop.f32.mrb[0].mxu0
        %v3100 = vadd.f32 %v2899, %v3099
        %v3101 = vpop.f32.mrb[0].mxu0
        %v3102 = vadd.f32 %v2901, %v3101
        %v3103 = vand.u32 %v1378, 4294901760
        %v3104 = vsub.f32 %v1378, %v3103
        %v3105 = vand.u32 %v3104, 4294901760
        %v3106 = vsub.f32 %v3104, %v3105
        %v3107 = vand.u32 %v3106, 4294901760
        %3108 = vmatprep.mubr.f32.mxu0 %v3107
        %v3109 = vand.u32 %v1377, 4294901760
        %v3110 = vsub.f32 %v1377, %v3109
        %v3111 = vand.u32 %v3110, 4294901760
        %v3112 = vsub.f32 %v3110, %v3111
        %v3113 = vand.u32 %v3112, 4294901760
        %3114 = vmatmul.mubr.f32.gmra.mrb[0].mxu0 %v3113
        %v3115 = vpop.f32.mrb[0].mxu0
        %v3116 = vadd.f32 %v2907, %v3115
        %v3117 = vpop.f32.mrb[0].mxu0
        %v3118 = vadd.f32 %v2909, %v3117
        %3119 = vdwg.mxu0
        %v3120 = vand.u32 %v679, 4294901760
        %v3121 = vsub.f32 %v679, %v3120
        %v3122 = vand.u32 %v3121, 4294901760
        %v3123 = vsub.f32 %v3121, %v3122
        %v3124 = vand.u32 %v3123, 4294901760
        %3125 = vmatprep.subr.mxu0 %v3124
        %v3126 = vand.u32 %v678, 4294901760
        %v3127 = vsub.f32 %v678, %v3126
        %v3128 = vand.u32 %v3127, 4294901760
        %v3129 = vsub.f32 %v3127, %v3128
        %v3130 = vand.u32 %v3129, 4294901760
        %3131 = vmatpush1.msra.mxu0 %v3130
        %v3132 = vand.u32 %v681, 4294901760
        %v3133 = vsub.f32 %v681, %v3132
        %v3134 = vand.u32 %v3133, 4294901760
        %v3135 = vsub.f32 %v3133, %v3134
        %v3136 = vand.u32 %v3135, 4294901760
        %3137 = vmatprep.subr.mxu0 %v3136
        %v3138 = vand.u32 %v680, 4294901760
        %v3139 = vsub.f32 %v680, %v3138
        %v3140 = vand.u32 %v3139, 4294901760
        %v3141 = vsub.f32 %v3139, %v3140
        %v3142 = vand.u32 %v3141, 4294901760
        %3143 = vmatpush1.msra.mxu0 %v3142
        %v3144 = vand.u32 %v683, 4294901760
        %v3145 = vsub.f32 %v683, %v3144
        %v3146 = vand.u32 %v3145, 4294901760
        %v3147 = vsub.f32 %v3145, %v3146
        %v3148 = vand.u32 %v3147, 4294901760
        %3149 = vmatprep.subr.mxu0 %v3148
        %v3150 = vand.u32 %v682, 4294901760
        %v3151 = vsub.f32 %v682, %v3150
        %v3152 = vand.u32 %v3151, 4294901760
        %v3153 = vsub.f32 %v3151, %v3152
        %v3154 = vand.u32 %v3153, 4294901760
        %3155 = vmatpush1.msra.mxu0 %v3154
        %v3156 = vand.u32 %v685, 4294901760
        %v3157 = vsub.f32 %v685, %v3156
        %v3158 = vand.u32 %v3157, 4294901760
        %v3159 = vsub.f32 %v3157, %v3158
        %v3160 = vand.u32 %v3159, 4294901760
        %3161 = vmatprep.subr.mxu0 %v3160
        %v3162 = vand.u32 %v684, 4294901760
        %v3163 = vsub.f32 %v684, %v3162
        %v3164 = vand.u32 %v3163, 4294901760
        %v3165 = vsub.f32 %v3163, %v3164
        %v3166 = vand.u32 %v3165, 4294901760
        %3167 = vmatpush1.msra.mxu0 %v3166
        %v3168 = vand.u32 %v687, 4294901760
        %v3169 = vsub.f32 %v687, %v3168
        %v3170 = vand.u32 %v3169, 4294901760
        %v3171 = vsub.f32 %v3169, %v3170
        %v3172 = vand.u32 %v3171, 4294901760
        %3173 = vmatprep.subr.mxu0 %v3172
        %v3174 = vand.u32 %v686, 4294901760
        %v3175 = vsub.f32 %v686, %v3174
        %v3176 = vand.u32 %v3175, 4294901760
        %v3177 = vsub.f32 %v3175, %v3176
        %v3178 = vand.u32 %v3177, 4294901760
        %3179 = vmatpush1.msra.mxu0 %v3178
        %v3180 = vand.u32 %v689, 4294901760
        %v3181 = vsub.f32 %v689, %v3180
        %v3182 = vand.u32 %v3181, 4294901760
        %v3183 = vsub.f32 %v3181, %v3182
        %v3184 = vand.u32 %v3183, 4294901760
        %3185 = vmatprep.subr.mxu0 %v3184
        %v3186 = vand.u32 %v688, 4294901760
        %v3187 = vsub.f32 %v688, %v3186
        %v3188 = vand.u32 %v3187, 4294901760
        %v3189 = vsub.f32 %v3187, %v3188
        %v3190 = vand.u32 %v3189, 4294901760
        %3191 = vmatpush1.msra.mxu0 %v3190
        %v3192 = vand.u32 %v691, 4294901760
        %v3193 = vsub.f32 %v691, %v3192
        %v3194 = vand.u32 %v3193, 4294901760
        %v3195 = vsub.f32 %v3193, %v3194
        %v3196 = vand.u32 %v3195, 4294901760
        %3197 = vmatprep.subr.mxu0 %v3196
        %v3198 = vand.u32 %v690, 4294901760
        %v3199 = vsub.f32 %v690, %v3198
        %v3200 = vand.u32 %v3199, 4294901760
        %v3201 = vsub.f32 %v3199, %v3200
        %v3202 = vand.u32 %v3201, 4294901760
        %3203 = vmatpush1.msra.mxu0 %v3202
        %v3204 = vand.u32 %v693, 4294901760
        %v3205 = vsub.f32 %v693, %v3204
        %v3206 = vand.u32 %v3205, 4294901760
        %v3207 = vsub.f32 %v3205, %v3206
        %v3208 = vand.u32 %v3207, 4294901760
        %3209 = vmatprep.subr.mxu0 %v3208
        %v3210 = vand.u32 %v692, 4294901760
        %v3211 = vsub.f32 %v692, %v3210
        %v3212 = vand.u32 %v3211, 4294901760
        %v3213 = vsub.f32 %v3211, %v3212
        %v3214 = vand.u32 %v3213, 4294901760
        %3215 = vmatpush1.msra.mxu0 %v3214
        %v3216 = vand.u32 %v695, 4294901760
        %v3217 = vsub.f32 %v695, %v3216
        %v3218 = vand.u32 %v3217, 4294901760
        %v3219 = vsub.f32 %v3217, %v3218
        %v3220 = vand.u32 %v3219, 4294901760
        %3221 = vmatprep.subr.mxu0 %v3220
        %v3222 = vand.u32 %v694, 4294901760
        %v3223 = vsub.f32 %v694, %v3222
        %v3224 = vand.u32 %v3223, 4294901760
        %v3225 = vsub.f32 %v3223, %v3224
        %v3226 = vand.u32 %v3225, 4294901760
        %3227 = vmatpush1.msra.mxu0 %v3226
        %v3228 = vand.u32 %v697, 4294901760
        %v3229 = vsub.f32 %v697, %v3228
        %v3230 = vand.u32 %v3229, 4294901760
        %v3231 = vsub.f32 %v3229, %v3230
        %v3232 = vand.u32 %v3231, 4294901760
        %3233 = vmatprep.subr.mxu0 %v3232
        %v3234 = vand.u32 %v696, 4294901760
        %v3235 = vsub.f32 %v696, %v3234
        %v3236 = vand.u32 %v3235, 4294901760
        %v3237 = vsub.f32 %v3235, %v3236
        %v3238 = vand.u32 %v3237, 4294901760
        %3239 = vmatpush1.msra.mxu0 %v3238
        %v3240 = vand.u32 %v699, 4294901760
        %v3241 = vsub.f32 %v699, %v3240
        %v3242 = vand.u32 %v3241, 4294901760
        %v3243 = vsub.f32 %v3241, %v3242
        %v3244 = vand.u32 %v3243, 4294901760
        %3245 = vmatprep.subr.mxu0 %v3244
        %v3246 = vand.u32 %v698, 4294901760
        %v3247 = vsub.f32 %v698, %v3246
        %v3248 = vand.u32 %v3247, 4294901760
        %v3249 = vsub.f32 %v3247, %v3248
        %v3250 = vand.u32 %v3249, 4294901760
        %3251 = vmatpush1.msra.mxu0 %v3250
        %v3252 = vand.u32 %v701, 4294901760
        %v3253 = vsub.f32 %v701, %v3252
        %v3254 = vand.u32 %v3253, 4294901760
        %v3255 = vsub.f32 %v3253, %v3254
        %v3256 = vand.u32 %v3255, 4294901760
        %3257 = vmatprep.subr.mxu0 %v3256
        %v3258 = vand.u32 %v700, 4294901760
        %v3259 = vsub.f32 %v700, %v3258
        %v3260 = vand.u32 %v3259, 4294901760
        %v3261 = vsub.f32 %v3259, %v3260
        %v3262 = vand.u32 %v3261, 4294901760
        %3263 = vmatpush1.msra.mxu0 %v3262
        %v3264 = vand.u32 %v703, 4294901760
        %v3265 = vsub.f32 %v703, %v3264
        %v3266 = vand.u32 %v3265, 4294901760
        %v3267 = vsub.f32 %v3265, %v3266
        %v3268 = vand.u32 %v3267, 4294901760
        %3269 = vmatprep.subr.mxu0 %v3268
        %v3270 = vand.u32 %v702, 4294901760
        %v3271 = vsub.f32 %v702, %v3270
        %v3272 = vand.u32 %v3271, 4294901760
        %v3273 = vsub.f32 %v3271, %v3272
        %v3274 = vand.u32 %v3273, 4294901760
        %3275 = vmatpush1.msra.mxu0 %v3274
        %v3276 = vand.u32 %v705, 4294901760
        %v3277 = vsub.f32 %v705, %v3276
        %v3278 = vand.u32 %v3277, 4294901760
        %v3279 = vsub.f32 %v3277, %v3278
        %v3280 = vand.u32 %v3279, 4294901760
        %3281 = vmatprep.subr.mxu0 %v3280
        %v3282 = vand.u32 %v704, 4294901760
        %v3283 = vsub.f32 %v704, %v3282
        %v3284 = vand.u32 %v3283, 4294901760
        %v3285 = vsub.f32 %v3283, %v3284
        %v3286 = vand.u32 %v3285, 4294901760
        %3287 = vmatpush1.msra.mxu0 %v3286
        %v3288 = vand.u32 %v707, 4294901760
        %v3289 = vsub.f32 %v707, %v3288
        %v3290 = vand.u32 %v3289, 4294901760
        %v3291 = vsub.f32 %v3289, %v3290
        %v3292 = vand.u32 %v3291, 4294901760
        %3293 = vmatprep.subr.mxu0 %v3292
        %v3294 = vand.u32 %v706, 4294901760
        %v3295 = vsub.f32 %v706, %v3294
        %v3296 = vand.u32 %v3295, 4294901760
        %v3297 = vsub.f32 %v3295, %v3296
        %v3298 = vand.u32 %v3297, 4294901760
        %3299 = vmatpush1.msra.mxu0 %v3298
        %v3300 = vand.u32 %v709, 4294901760
        %v3301 = vsub.f32 %v709, %v3300
        %v3302 = vand.u32 %v3301, 4294901760
        %v3303 = vsub.f32 %v3301, %v3302
        %v3304 = vand.u32 %v3303, 4294901760
        %3305 = vmatprep.subr.mxu0 %v3304
        %v3306 = vand.u32 %v708, 4294901760
        %v3307 = vsub.f32 %v708, %v3306
        %v3308 = vand.u32 %v3307, 4294901760
        %v3309 = vsub.f32 %v3307, %v3308
        %v3310 = vand.u32 %v3309, 4294901760
        %3311 = vmatpush1.msra.mxu0 %v3310
        %v3312 = vand.u32 %v711, 4294901760
        %v3313 = vsub.f32 %v711, %v3312
        %v3314 = vand.u32 %v3313, 4294901760
        %v3315 = vsub.f32 %v3313, %v3314
        %v3316 = vand.u32 %v3315, 4294901760
        %3317 = vmatprep.subr.mxu0 %v3316
        %v3318 = vand.u32 %v710, 4294901760
        %v3319 = vsub.f32 %v710, %v3318
        %v3320 = vand.u32 %v3319, 4294901760
        %v3321 = vsub.f32 %v3319, %v3320
        %v3322 = vand.u32 %v3321, 4294901760
        %3323 = vmatpush1.msra.mxu0 %v3322
        %v3324 = vand.u32 %v713, 4294901760
        %v3325 = vsub.f32 %v713, %v3324
        %v3326 = vand.u32 %v3325, 4294901760
        %v3327 = vsub.f32 %v3325, %v3326
        %v3328 = vand.u32 %v3327, 4294901760
        %3329 = vmatprep.subr.mxu0 %v3328
        %v3330 = vand.u32 %v712, 4294901760
        %v3331 = vsub.f32 %v712, %v3330
        %v3332 = vand.u32 %v3331, 4294901760
        %v3333 = vsub.f32 %v3331, %v3332
        %v3334 = vand.u32 %v3333, 4294901760
        %3335 = vmatpush1.msra.mxu0 %v3334
        %v3336 = vand.u32 %v715, 4294901760
        %v3337 = vsub.f32 %v715, %v3336
        %v3338 = vand.u32 %v3337, 4294901760
        %v3339 = vsub.f32 %v3337, %v3338
        %v3340 = vand.u32 %v3339, 4294901760
        %3341 = vmatprep.subr.mxu0 %v3340
        %v3342 = vand.u32 %v714, 4294901760
        %v3343 = vsub.f32 %v714, %v3342
        %v3344 = vand.u32 %v3343, 4294901760
        %v3345 = vsub.f32 %v3343, %v3344
        %v3346 = vand.u32 %v3345, 4294901760
        %3347 = vmatpush1.msra.mxu0 %v3346
        %v3348 = vand.u32 %v717, 4294901760
        %v3349 = vsub.f32 %v717, %v3348
        %v3350 = vand.u32 %v3349, 4294901760
        %v3351 = vsub.f32 %v3349, %v3350
        %v3352 = vand.u32 %v3351, 4294901760
        %3353 = vmatprep.subr.mxu0 %v3352
        %v3354 = vand.u32 %v716, 4294901760
        %v3355 = vsub.f32 %v716, %v3354
        %v3356 = vand.u32 %v3355, 4294901760
        %v3357 = vsub.f32 %v3355, %v3356
        %v3358 = vand.u32 %v3357, 4294901760
        %3359 = vmatpush1.msra.mxu0 %v3358
        %v3360 = vand.u32 %v719, 4294901760
        %v3361 = vsub.f32 %v719, %v3360
        %v3362 = vand.u32 %v3361, 4294901760
        %v3363 = vsub.f32 %v3361, %v3362
        %v3364 = vand.u32 %v3363, 4294901760
        %3365 = vmatprep.subr.mxu0 %v3364
        %v3366 = vand.u32 %v718, 4294901760
        %v3367 = vsub.f32 %v718, %v3366
        %v3368 = vand.u32 %v3367, 4294901760
        %v3369 = vsub.f32 %v3367, %v3368
        %v3370 = vand.u32 %v3369, 4294901760
        %3371 = vmatpush1.msra.mxu0 %v3370
        %v3372 = vand.u32 %v721, 4294901760
        %v3373 = vsub.f32 %v721, %v3372
        %v3374 = vand.u32 %v3373, 4294901760
        %v3375 = vsub.f32 %v3373, %v3374
        %v3376 = vand.u32 %v3375, 4294901760
        %3377 = vmatprep.subr.mxu0 %v3376
        %v3378 = vand.u32 %v720, 4294901760
        %v3379 = vsub.f32 %v720, %v3378
        %v3380 = vand.u32 %v3379, 4294901760
        %v3381 = vsub.f32 %v3379, %v3380
        %v3382 = vand.u32 %v3381, 4294901760
        %3383 = vmatpush1.msra.mxu0 %v3382
        %v3384 = vand.u32 %v723, 4294901760
        %v3385 = vsub.f32 %v723, %v3384
        %v3386 = vand.u32 %v3385, 4294901760
        %v3387 = vsub.f32 %v3385, %v3386
        %v3388 = vand.u32 %v3387, 4294901760
        %3389 = vmatprep.subr.mxu0 %v3388
        %v3390 = vand.u32 %v722, 4294901760
        %v3391 = vsub.f32 %v722, %v3390
        %v3392 = vand.u32 %v3391, 4294901760
        %v3393 = vsub.f32 %v3391, %v3392
        %v3394 = vand.u32 %v3393, 4294901760
        %3395 = vmatpush1.msra.mxu0 %v3394
        %v3396 = vand.u32 %v725, 4294901760
        %v3397 = vsub.f32 %v725, %v3396
        %v3398 = vand.u32 %v3397, 4294901760
        %v3399 = vsub.f32 %v3397, %v3398
        %v3400 = vand.u32 %v3399, 4294901760
        %3401 = vmatprep.subr.mxu0 %v3400
        %v3402 = vand.u32 %v724, 4294901760
        %v3403 = vsub.f32 %v724, %v3402
        %v3404 = vand.u32 %v3403, 4294901760
        %v3405 = vsub.f32 %v3403, %v3404
        %v3406 = vand.u32 %v3405, 4294901760
        %3407 = vmatpush1.msra.mxu0 %v3406
        %v3408 = vand.u32 %v727, 4294901760
        %v3409 = vsub.f32 %v727, %v3408
        %v3410 = vand.u32 %v3409, 4294901760
        %v3411 = vsub.f32 %v3409, %v3410
        %v3412 = vand.u32 %v3411, 4294901760
        %3413 = vmatprep.subr.mxu0 %v3412
        %v3414 = vand.u32 %v726, 4294901760
        %v3415 = vsub.f32 %v726, %v3414
        %v3416 = vand.u32 %v3415, 4294901760
        %v3417 = vsub.f32 %v3415, %v3416
        %v3418 = vand.u32 %v3417, 4294901760
        %3419 = vmatpush1.msra.mxu0 %v3418
        %v3420 = vand.u32 %v729, 4294901760
        %v3421 = vsub.f32 %v729, %v3420
        %v3422 = vand.u32 %v3421, 4294901760
        %v3423 = vsub.f32 %v3421, %v3422
        %v3424 = vand.u32 %v3423, 4294901760
        %3425 = vmatprep.subr.mxu0 %v3424
        %v3426 = vand.u32 %v728, 4294901760
        %v3427 = vsub.f32 %v728, %v3426
        %v3428 = vand.u32 %v3427, 4294901760
        %v3429 = vsub.f32 %v3427, %v3428
        %v3430 = vand.u32 %v3429, 4294901760
        %3431 = vmatpush1.msra.mxu0 %v3430
        %v3432 = vand.u32 %v731, 4294901760
        %v3433 = vsub.f32 %v731, %v3432
        %v3434 = vand.u32 %v3433, 4294901760
        %v3435 = vsub.f32 %v3433, %v3434
        %v3436 = vand.u32 %v3435, 4294901760
        %3437 = vmatprep.subr.mxu0 %v3436
        %v3438 = vand.u32 %v730, 4294901760
        %v3439 = vsub.f32 %v730, %v3438
        %v3440 = vand.u32 %v3439, 4294901760
        %v3441 = vsub.f32 %v3439, %v3440
        %v3442 = vand.u32 %v3441, 4294901760
        %3443 = vmatpush1.msra.mxu0 %v3442
        %v3444 = vand.u32 %v733, 4294901760
        %v3445 = vsub.f32 %v733, %v3444
        %v3446 = vand.u32 %v3445, 4294901760
        %v3447 = vsub.f32 %v3445, %v3446
        %v3448 = vand.u32 %v3447, 4294901760
        %3449 = vmatprep.subr.mxu0 %v3448
        %v3450 = vand.u32 %v732, 4294901760
        %v3451 = vsub.f32 %v732, %v3450
        %v3452 = vand.u32 %v3451, 4294901760
        %v3453 = vsub.f32 %v3451, %v3452
        %v3454 = vand.u32 %v3453, 4294901760
        %3455 = vmatpush1.msra.mxu0 %v3454
        %v3456 = vand.u32 %v735, 4294901760
        %v3457 = vsub.f32 %v735, %v3456
        %v3458 = vand.u32 %v3457, 4294901760
        %v3459 = vsub.f32 %v3457, %v3458
        %v3460 = vand.u32 %v3459, 4294901760
        %3461 = vmatprep.subr.mxu0 %v3460
        %v3462 = vand.u32 %v734, 4294901760
        %v3463 = vsub.f32 %v734, %v3462
        %v3464 = vand.u32 %v3463, 4294901760
        %v3465 = vsub.f32 %v3463, %v3464
        %v3466 = vand.u32 %v3465, 4294901760
        %3467 = vmatpush1.msra.mxu0 %v3466
        %v3468 = vand.u32 %v737, 4294901760
        %v3469 = vsub.f32 %v737, %v3468
        %v3470 = vand.u32 %v3469, 4294901760
        %v3471 = vsub.f32 %v3469, %v3470
        %v3472 = vand.u32 %v3471, 4294901760
        %3473 = vmatprep.subr.mxu0 %v3472
        %v3474 = vand.u32 %v736, 4294901760
        %v3475 = vsub.f32 %v736, %v3474
        %v3476 = vand.u32 %v3475, 4294901760
        %v3477 = vsub.f32 %v3475, %v3476
        %v3478 = vand.u32 %v3477, 4294901760
        %3479 = vmatpush1.msra.mxu0 %v3478
        %v3480 = vand.u32 %v739, 4294901760
        %v3481 = vsub.f32 %v739, %v3480
        %v3482 = vand.u32 %v3481, 4294901760
        %v3483 = vsub.f32 %v3481, %v3482
        %v3484 = vand.u32 %v3483, 4294901760
        %3485 = vmatprep.subr.mxu0 %v3484
        %v3486 = vand.u32 %v738, 4294901760
        %v3487 = vsub.f32 %v738, %v3486
        %v3488 = vand.u32 %v3487, 4294901760
        %v3489 = vsub.f32 %v3487, %v3488
        %v3490 = vand.u32 %v3489, 4294901760
        %3491 = vmatpush1.msra.mxu0 %v3490
        %v3492 = vand.u32 %v741, 4294901760
        %v3493 = vsub.f32 %v741, %v3492
        %v3494 = vand.u32 %v3493, 4294901760
        %v3495 = vsub.f32 %v3493, %v3494
        %v3496 = vand.u32 %v3495, 4294901760
        %3497 = vmatprep.subr.mxu0 %v3496
        %v3498 = vand.u32 %v740, 4294901760
        %v3499 = vsub.f32 %v740, %v3498
        %v3500 = vand.u32 %v3499, 4294901760
        %v3501 = vsub.f32 %v3499, %v3500
        %v3502 = vand.u32 %v3501, 4294901760
        %3503 = vmatpush1.msra.mxu0 %v3502
        %v3504 = vand.u32 %v1362, 4294901760
        %3505 = vmatprep.mubr.f32.mxu0 %v3504
        %v3506 = vand.u32 %v1361, 4294901760
        %3507 = vmatmul.mubr.f32.gmra.mrb[0].mxu0 %v3506
        %v3508 = vpop.f32.mrb[0].mxu0
        %v3509 = vadd.f32 %v3052, %v3508
        %v3510 = vpop.f32.mrb[0].mxu0
        %v3511 = vadd.f32 %v3054, %v3510
        %v3512 = vand.u32 %v1366, 4294901760
        %3513 = vmatprep.mubr.f32.mxu0 %v3512
        %v3514 = vand.u32 %v1365, 4294901760
        %3515 = vmatmul.mubr.f32.gmra.mrb[0].mxu0 %v3514
        %v3516 = vpop.f32.mrb[0].mxu0
        %v3517 = vadd.f32 %v3068, %v3516
        %v3518 = vpop.f32.mrb[0].mxu0
        %v3519 = vadd.f32 %v3070, %v3518
        %v3520 = vand.u32 %v1370, 4294901760
        %3521 = vmatprep.mubr.f32.mxu0 %v3520
        %v3522 = vand.u32 %v1369, 4294901760
        %3523 = vmatmul.mubr.f32.gmra.mrb[0].mxu0 %v3522
        %v3524 = vpop.f32.mrb[0].mxu0
        %v3525 = vadd.f32 %v3084, %v3524
        %v3526 = vpop.f32.mrb[0].mxu0
        %v3527 = vadd.f32 %v3086, %v3526
        %v3528 = vand.u32 %v1374, 4294901760
        %3529 = vmatprep.mubr.f32.mxu0 %v3528
        %v3530 = vand.u32 %v1373, 4294901760
        %3531 = vmatmul.mubr.f32.gmra.mrb[0].mxu0 %v3530
        %v3532 = vpop.f32.mrb[0].mxu0
        %v3533 = vadd.f32 %v3100, %v3532
        %v3534 = vpop.f32.mrb[0].mxu0
        %v3535 = vadd.f32 %v3102, %v3534
        %v3536 = vand.u32 %v1378, 4294901760
        %3537 = vmatprep.mubr.f32.mxu0 %v3536
        %v3538 = vand.u32 %v1377, 4294901760
        %3539 = vmatmul.mubr.f32.gmra.mrb[0].mxu0 %v3538
        %v3540 = vpop.f32.mrb[0].mxu0
        %v3541 = vadd.f32 %v3116, %v3540
        %v3542 = vpop.f32.mrb[0].mxu0
        %v3543 = vadd.f32 %v3118, %v3542
        %3544 = vdwg.mxu0
        %v3545 = vand.u32 %v679, 4294901760
        %v3546 = vsub.f32 %v679, %v3545
        %3547 = vmatprep.subr.mxu0 %v3546
        %v3548 = vand.u32 %v678, 4294901760
        %v3549 = vsub.f32 %v678, %v3548
        %3550 = vmatpush1.msra.mxu0 %v3549
        %v3551 = vand.u32 %v681, 4294901760
        %v3552 = vsub.f32 %v681, %v3551
        %3553 = vmatprep.subr.mxu0 %v3552
        %v3554 = vand.u32 %v680, 4294901760
        %v3555 = vsub.f32 %v680, %v3554
        %3556 = vmatpush1.msra.mxu0 %v3555
        %v3557 = vand.u32 %v683, 4294901760
        %v3558 = vsub.f32 %v683, %v3557
        %3559 = vmatprep.subr.mxu0 %v3558
        %v3560 = vand.u32 %v682, 4294901760
        %v3561 = vsub.f32 %v682, %v3560
        %3562 = vmatpush1.msra.mxu0 %v3561
        %v3563 = vand.u32 %v685, 4294901760
        %v3564 = vsub.f32 %v685, %v3563
        %3565 = vmatprep.subr.mxu0 %v3564
        %v3566 = vand.u32 %v684, 4294901760
        %v3567 = vsub.f32 %v684, %v3566
        %3568 = vmatpush1.msra.mxu0 %v3567
        %v3569 = vand.u32 %v687, 4294901760
        %v3570 = vsub.f32 %v687, %v3569
        %3571 = vmatprep.subr.mxu0 %v3570
        %v3572 = vand.u32 %v686, 4294901760
        %v3573 = vsub.f32 %v686, %v3572
        %3574 = vmatpush1.msra.mxu0 %v3573
        %v3575 = vand.u32 %v689, 4294901760
        %v3576 = vsub.f32 %v689, %v3575
        %3577 = vmatprep.subr.mxu0 %v3576
        %v3578 = vand.u32 %v688, 4294901760
        %v3579 = vsub.f32 %v688, %v3578
        %3580 = vmatpush1.msra.mxu0 %v3579
        %v3581 = vand.u32 %v691, 4294901760
        %v3582 = vsub.f32 %v691, %v3581
        %3583 = vmatprep.subr.mxu0 %v3582
        %v3584 = vand.u32 %v690, 4294901760
        %v3585 = vsub.f32 %v690, %v3584
        %3586 = vmatpush1.msra.mxu0 %v3585
        %v3587 = vand.u32 %v693, 4294901760
        %v3588 = vsub.f32 %v693, %v3587
        %3589 = vmatprep.subr.mxu0 %v3588
        %v3590 = vand.u32 %v692, 4294901760
        %v3591 = vsub.f32 %v692, %v3590
        %3592 = vmatpush1.msra.mxu0 %v3591
        %v3593 = vand.u32 %v695, 4294901760
        %v3594 = vsub.f32 %v695, %v3593
        %3595 = vmatprep.subr.mxu0 %v3594
        %v3596 = vand.u32 %v694, 4294901760
        %v3597 = vsub.f32 %v694, %v3596
        %3598 = vmatpush1.msra.mxu0 %v3597
        %v3599 = vand.u32 %v697, 4294901760
        %v3600 = vsub.f32 %v697, %v3599
        %3601 = vmatprep.subr.mxu0 %v3600
        %v3602 = vand.u32 %v696, 4294901760
        %v3603 = vsub.f32 %v696, %v3602
        %3604 = vmatpush1.msra.mxu0 %v3603
        %v3605 = vand.u32 %v699, 4294901760
        %v3606 = vsub.f32 %v699, %v3605
        %3607 = vmatprep.subr.mxu0 %v3606
        %v3608 = vand.u32 %v698, 4294901760
        %v3609 = vsub.f32 %v698, %v3608
        %3610 = vmatpush1.msra.mxu0 %v3609
        %v3611 = vand.u32 %v701, 4294901760
        %v3612 = vsub.f32 %v701, %v3611
        %3613 = vmatprep.subr.mxu0 %v3612
        %v3614 = vand.u32 %v700, 4294901760
        %v3615 = vsub.f32 %v700, %v3614
        %3616 = vmatpush1.msra.mxu0 %v3615
        %v3617 = vand.u32 %v703, 4294901760
        %v3618 = vsub.f32 %v703, %v3617
        %3619 = vmatprep.subr.mxu0 %v3618
        %v3620 = vand.u32 %v702, 4294901760
        %v3621 = vsub.f32 %v702, %v3620
        %3622 = vmatpush1.msra.mxu0 %v3621
        %v3623 = vand.u32 %v705, 4294901760
        %v3624 = vsub.f32 %v705, %v3623
        %3625 = vmatprep.subr.mxu0 %v3624
        %v3626 = vand.u32 %v704, 4294901760
        %v3627 = vsub.f32 %v704, %v3626
        %3628 = vmatpush1.msra.mxu0 %v3627
        %v3629 = vand.u32 %v707, 4294901760
        %v3630 = vsub.f32 %v707, %v3629
        %3631 = vmatprep.subr.mxu0 %v3630
        %v3632 = vand.u32 %v706, 4294901760
        %v3633 = vsub.f32 %v706, %v3632
        %3634 = vmatpush1.msra.mxu0 %v3633
        %v3635 = vand.u32 %v709, 4294901760
        %v3636 = vsub.f32 %v709, %v3635
        %3637 = vmatprep.subr.mxu0 %v3636
        %v3638 = vand.u32 %v708, 4294901760
        %v3639 = vsub.f32 %v708, %v3638
        %3640 = vmatpush1.msra.mxu0 %v3639
        %v3641 = vand.u32 %v711, 4294901760
        %v3642 = vsub.f32 %v711, %v3641
        %3643 = vmatprep.subr.mxu0 %v3642
        %v3644 = vand.u32 %v710, 4294901760
        %v3645 = vsub.f32 %v710, %v3644
        %3646 = vmatpush1.msra.mxu0 %v3645
        %v3647 = vand.u32 %v713, 4294901760
        %v3648 = vsub.f32 %v713, %v3647
        %3649 = vmatprep.subr.mxu0 %v3648
        %v3650 = vand.u32 %v712, 4294901760
        %v3651 = vsub.f32 %v712, %v3650
        %3652 = vmatpush1.msra.mxu0 %v3651
        %v3653 = vand.u32 %v715, 4294901760
        %v3654 = vsub.f32 %v715, %v3653
        %3655 = vmatprep.subr.mxu0 %v3654
        %v3656 = vand.u32 %v714, 4294901760
        %v3657 = vsub.f32 %v714, %v3656
        %3658 = vmatpush1.msra.mxu0 %v3657
        %v3659 = vand.u32 %v717, 4294901760
        %v3660 = vsub.f32 %v717, %v3659
        %3661 = vmatprep.subr.mxu0 %v3660
        %v3662 = vand.u32 %v716, 4294901760
        %v3663 = vsub.f32 %v716, %v3662
        %3664 = vmatpush1.msra.mxu0 %v3663
        %v3665 = vand.u32 %v719, 4294901760
        %v3666 = vsub.f32 %v719, %v3665
        %3667 = vmatprep.subr.mxu0 %v3666
        %v3668 = vand.u32 %v718, 4294901760
        %v3669 = vsub.f32 %v718, %v3668
        %3670 = vmatpush1.msra.mxu0 %v3669
        %v3671 = vand.u32 %v721, 4294901760
        %v3672 = vsub.f32 %v721, %v3671
        %3673 = vmatprep.subr.mxu0 %v3672
        %v3674 = vand.u32 %v720, 4294901760
        %v3675 = vsub.f32 %v720, %v3674
        %3676 = vmatpush1.msra.mxu0 %v3675
        %v3677 = vand.u32 %v723, 4294901760
        %v3678 = vsub.f32 %v723, %v3677
        %3679 = vmatprep.subr.mxu0 %v3678
        %v3680 = vand.u32 %v722, 4294901760
        %v3681 = vsub.f32 %v722, %v3680
        %3682 = vmatpush1.msra.mxu0 %v3681
        %v3683 = vand.u32 %v725, 4294901760
        %v3684 = vsub.f32 %v725, %v3683
        %3685 = vmatprep.subr.mxu0 %v3684
        %v3686 = vand.u32 %v724, 4294901760
        %v3687 = vsub.f32 %v724, %v3686
        %3688 = vmatpush1.msra.mxu0 %v3687
        %v3689 = vand.u32 %v727, 4294901760
        %v3690 = vsub.f32 %v727, %v3689
        %3691 = vmatprep.subr.mxu0 %v3690
        %v3692 = vand.u32 %v726, 4294901760
        %v3693 = vsub.f32 %v726, %v3692
        %3694 = vmatpush1.msra.mxu0 %v3693
        %v3695 = vand.u32 %v729, 4294901760
        %v3696 = vsub.f32 %v729, %v3695
        %3697 = vmatprep.subr.mxu0 %v3696
        %v3698 = vand.u32 %v728, 4294901760
        %v3699 = vsub.f32 %v728, %v3698
        %3700 = vmatpush1.msra.mxu0 %v3699
        %v3701 = vand.u32 %v731, 4294901760
        %v3702 = vsub.f32 %v731, %v3701
        %3703 = vmatprep.subr.mxu0 %v3702
        %v3704 = vand.u32 %v730, 4294901760
        %v3705 = vsub.f32 %v730, %v3704
        %3706 = vmatpush1.msra.mxu0 %v3705
        %v3707 = vand.u32 %v733, 4294901760
        %v3708 = vsub.f32 %v733, %v3707
        %3709 = vmatprep.subr.mxu0 %v3708
        %v3710 = vand.u32 %v732, 4294901760
        %v3711 = vsub.f32 %v732, %v3710
        %3712 = vmatpush1.msra.mxu0 %v3711
        %v3713 = vand.u32 %v735, 4294901760
        %v3714 = vsub.f32 %v735, %v3713
        %3715 = vmatprep.subr.mxu0 %v3714
        %v3716 = vand.u32 %v734, 4294901760
        %v3717 = vsub.f32 %v734, %v3716
        %3718 = vmatpush1.msra.mxu0 %v3717
        %v3719 = vand.u32 %v737, 4294901760
        %v3720 = vsub.f32 %v737, %v3719
        %3721 = vmatprep.subr.mxu0 %v3720
        %v3722 = vand.u32 %v736, 4294901760
        %v3723 = vsub.f32 %v736, %v3722
        %3724 = vmatpush1.msra.mxu0 %v3723
        %v3725 = vand.u32 %v739, 4294901760
        %v3726 = vsub.f32 %v739, %v3725
        %3727 = vmatprep.subr.mxu0 %v3726
        %v3728 = vand.u32 %v738, 4294901760
        %v3729 = vsub.f32 %v738, %v3728
        %3730 = vmatpush1.msra.mxu0 %v3729
        %v3731 = vand.u32 %v741, 4294901760
        %v3732 = vsub.f32 %v741, %v3731
        %3733 = vmatprep.subr.mxu0 %v3732
        %v3734 = vand.u32 %v740, 4294901760
        %v3735 = vsub.f32 %v740, %v3734
        %3736 = vmatpush1.msra.mxu0 %v3735
        %v3737 = vand.u32 %v1362, 4294901760
        %v3738 = vsub.f32 %v1362, %v3737
        %3739 = vmatprep.mubr.f32.mxu0 %v3738
        %v3740 = vand.u32 %v1361, 4294901760
        %v3741 = vsub.f32 %v1361, %v3740
        %3742 = vmatmul.mubr.f32.gmra.mrb[0].mxu0 %v3741
        %v3743 = vpop.f32.mrb[0].mxu0
        %v3744 = vadd.f32 %v3509, %v3743
        %v3745 = vpop.f32.mrb[0].mxu0
        %v3746 = vadd.f32 %v3511, %v3745
        %v3747 = vand.u32 %v1366, 4294901760
        %v3748 = vsub.f32 %v1366, %v3747
        %3749 = vmatprep.mubr.f32.mxu0 %v3748
        %v3750 = vand.u32 %v1365, 4294901760
        %v3751 = vsub.f32 %v1365, %v3750
        %3752 = vmatmul.mubr.f32.gmra.mrb[0].mxu0 %v3751
        %v3753 = vpop.f32.mrb[0].mxu0
        %v3754 = vadd.f32 %v3517, %v3753
        %v3755 = vpop.f32.mrb[0].mxu0
        %v3756 = vadd.f32 %v3519, %v3755
        %v3757 = vand.u32 %v1370, 4294901760
        %v3758 = vsub.f32 %v1370, %v3757
        %3759 = vmatprep.mubr.f32.mxu0 %v3758
        %v3760 = vand.u32 %v1369, 4294901760
        %v3761 = vsub.f32 %v1369, %v3760
        %3762 = vmatmul.mubr.f32.gmra.mrb[0].mxu0 %v3761
        %v3763 = vpop.f32.mrb[0].mxu0
        %v3764 = vadd.f32 %v3525, %v3763
        %v3765 = vpop.f32.mrb[0].mxu0
        %v3766 = vadd.f32 %v3527, %v3765
        %v3767 = vand.u32 %v1374, 4294901760
        %v3768 = vsub.f32 %v1374, %v3767
        %3769 = vmatprep.mubr.f32.mxu0 %v3768
        %v3770 = vand.u32 %v1373, 4294901760
        %v3771 = vsub.f32 %v1373, %v3770
        %3772 = vmatmul.mubr.f32.gmra.mrb[0].mxu0 %v3771
        %v3773 = vpop.f32.mrb[0].mxu0
        %v3774 = vadd.f32 %v3533, %v3773
        %v3775 = vpop.f32.mrb[0].mxu0
        %v3776 = vadd.f32 %v3535, %v3775
        %v3777 = vand.u32 %v1378, 4294901760
        %v3778 = vsub.f32 %v1378, %v3777
        %3779 = vmatprep.mubr.f32.mxu0 %v3778
        %v3780 = vand.u32 %v1377, 4294901760
        %v3781 = vsub.f32 %v1377, %v3780
        %3782 = vmatmul.mubr.f32.gmra.mrb[0].mxu0 %v3781
        %v3783 = vpop.f32.mrb[0].mxu0
        %v3784 = vadd.f32 %v3541, %v3783
        %v3785 = vpop.f32.mrb[0].mxu0
        %v3786 = vadd.f32 %v3543, %v3785
        %3787 = vdwg.mxu0
        %v3788 = vand.u32 %v679, 4294901760
        %3789 = vmatprep.subr.mxu0 %v3788
        %v3790 = vand.u32 %v678, 4294901760
        %3791 = vmatpush1.msra.mxu0 %v3790
        %v3792 = vand.u32 %v681, 4294901760
        %3793 = vmatprep.subr.mxu0 %v3792
        %v3794 = vand.u32 %v680, 4294901760
        %3795 = vmatpush1.msra.mxu0 %v3794
        %v3796 = vand.u32 %v683, 4294901760
        %3797 = vmatprep.subr.mxu0 %v3796
        %v3798 = vand.u32 %v682, 4294901760
        %3799 = vmatpush1.msra.mxu0 %v3798
        %v3800 = vand.u32 %v685, 4294901760
        %3801 = vmatprep.subr.mxu0 %v3800
        %v3802 = vand.u32 %v684, 4294901760
        %3803 = vmatpush1.msra.mxu0 %v3802
        %v3804 = vand.u32 %v687, 4294901760
        %3805 = vmatprep.subr.mxu0 %v3804
        %v3806 = vand.u32 %v686, 4294901760
        %3807 = vmatpush1.msra.mxu0 %v3806
        %v3808 = vand.u32 %v689, 4294901760
        %3809 = vmatprep.subr.mxu0 %v3808
        %v3810 = vand.u32 %v688, 4294901760
        %3811 = vmatpush1.msra.mxu0 %v3810
        %v3812 = vand.u32 %v691, 4294901760
        %3813 = vmatprep.subr.mxu0 %v3812
        %v3814 = vand.u32 %v690, 4294901760
        %3815 = vmatpush1.msra.mxu0 %v3814
        %v3816 = vand.u32 %v693, 4294901760
        %3817 = vmatprep.subr.mxu0 %v3816
        %v3818 = vand.u32 %v692, 4294901760
        %3819 = vmatpush1.msra.mxu0 %v3818
        %v3820 = vand.u32 %v695, 4294901760
        %3821 = vmatprep.subr.mxu0 %v3820
        %v3822 = vand.u32 %v694, 4294901760
        %3823 = vmatpush1.msra.mxu0 %v3822
        %v3824 = vand.u32 %v697, 4294901760
        %3825 = vmatprep.subr.mxu0 %v3824
        %v3826 = vand.u32 %v696, 4294901760
        %3827 = vmatpush1.msra.mxu0 %v3826
        %v3828 = vand.u32 %v699, 4294901760
        %3829 = vmatprep.subr.mxu0 %v3828
        %v3830 = vand.u32 %v698, 4294901760
        %3831 = vmatpush1.msra.mxu0 %v3830
        %v3832 = vand.u32 %v701, 4294901760
        %3833 = vmatprep.subr.mxu0 %v3832
        %v3834 = vand.u32 %v700, 4294901760
        %3835 = vmatpush1.msra.mxu0 %v3834
        %v3836 = vand.u32 %v703, 4294901760
        %3837 = vmatprep.subr.mxu0 %v3836
        %v3838 = vand.u32 %v702, 4294901760
        %3839 = vmatpush1.msra.mxu0 %v3838
        %v3840 = vand.u32 %v705, 4294901760
        %3841 = vmatprep.subr.mxu0 %v3840
        %v3842 = vand.u32 %v704, 4294901760
        %3843 = vmatpush1.msra.mxu0 %v3842
        %v3844 = vand.u32 %v707, 4294901760
        %3845 = vmatprep.subr.mxu0 %v3844
        %v3846 = vand.u32 %v706, 4294901760
        %3847 = vmatpush1.msra.mxu0 %v3846
        %v3848 = vand.u32 %v709, 4294901760
        %3849 = vmatprep.subr.mxu0 %v3848
        %v3850 = vand.u32 %v708, 4294901760
        %3851 = vmatpush1.msra.mxu0 %v3850
        %v3852 = vand.u32 %v711, 4294901760
        %3853 = vmatprep.subr.mxu0 %v3852
        %v3854 = vand.u32 %v710, 4294901760
        %3855 = vmatpush1.msra.mxu0 %v3854
        %v3856 = vand.u32 %v713, 4294901760
        %3857 = vmatprep.subr.mxu0 %v3856
        %v3858 = vand.u32 %v712, 4294901760
        %3859 = vmatpush1.msra.mxu0 %v3858
        %v3860 = vand.u32 %v715, 4294901760
        %3861 = vmatprep.subr.mxu0 %v3860
        %v3862 = vand.u32 %v714, 4294901760
        %3863 = vmatpush1.msra.mxu0 %v3862
        %v3864 = vand.u32 %v717, 4294901760
        %3865 = vmatprep.subr.mxu0 %v3864
        %v3866 = vand.u32 %v716, 4294901760
        %3867 = vmatpush1.msra.mxu0 %v3866
        %v3868 = vand.u32 %v719, 4294901760
        %3869 = vmatprep.subr.mxu0 %v3868
        %v3870 = vand.u32 %v718, 4294901760
        %3871 = vmatpush1.msra.mxu0 %v3870
        %v3872 = vand.u32 %v721, 4294901760
        %3873 = vmatprep.subr.mxu0 %v3872
        %v3874 = vand.u32 %v720, 4294901760
        %3875 = vmatpush1.msra.mxu0 %v3874
        %v3876 = vand.u32 %v723, 4294901760
        %3877 = vmatprep.subr.mxu0 %v3876
        %v3878 = vand.u32 %v722, 4294901760
        %3879 = vmatpush1.msra.mxu0 %v3878
        %v3880 = vand.u32 %v725, 4294901760
        %3881 = vmatprep.subr.mxu0 %v3880
        %v3882 = vand.u32 %v724, 4294901760
        %3883 = vmatpush1.msra.mxu0 %v3882
        %v3884 = vand.u32 %v727, 4294901760
        %3885 = vmatprep.subr.mxu0 %v3884
        %v3886 = vand.u32 %v726, 4294901760
        %3887 = vmatpush1.msra.mxu0 %v3886
        %v3888 = vand.u32 %v729, 4294901760
        %3889 = vmatprep.subr.mxu0 %v3888
        %v3890 = vand.u32 %v728, 4294901760
        %3891 = vmatpush1.msra.mxu0 %v3890
        %v3892 = vand.u32 %v731, 4294901760
        %3893 = vmatprep.subr.mxu0 %v3892
        %v3894 = vand.u32 %v730, 4294901760
        %3895 = vmatpush1.msra.mxu0 %v3894
        %v3896 = vand.u32 %v733, 4294901760
        %3897 = vmatprep.subr.mxu0 %v3896
        %v3898 = vand.u32 %v732, 4294901760
        %3899 = vmatpush1.msra.mxu0 %v3898
        %v3900 = vand.u32 %v735, 4294901760
        %3901 = vmatprep.subr.mxu0 %v3900
        %v3902 = vand.u32 %v734, 4294901760
        %3903 = vmatpush1.msra.mxu0 %v3902
        %v3904 = vand.u32 %v737, 4294901760
        %3905 = vmatprep.subr.mxu0 %v3904
        %v3906 = vand.u32 %v736, 4294901760
        %3907 = vmatpush1.msra.mxu0 %v3906
        %v3908 = vand.u32 %v739, 4294901760
        %3909 = vmatprep.subr.mxu0 %v3908
        %v3910 = vand.u32 %v738, 4294901760
        %3911 = vmatpush1.msra.mxu0 %v3910
        %v3912 = vand.u32 %v741, 4294901760
        %3913 = vmatprep.subr.mxu0 %v3912
        %v3914 = vand.u32 %v740, 4294901760
        %3915 = vmatpush1.msra.mxu0 %v3914
        %v3916 = vand.u32 %v1362, 4294901760
        %v3917 = vsub.f32 %v1362, %v3916
        %v3918 = vand.u32 %v3917, 4294901760
        %3919 = vmatprep.mubr.f32.mxu0 %v3918
        %v3920 = vand.u32 %v1361, 4294901760
        %v3921 = vsub.f32 %v1361, %v3920
        %v3922 = vand.u32 %v3921, 4294901760
        %3923 = vmatmul.mubr.f32.gmra.mrb[0].mxu0 %v3922
        %v3924 = vpop.f32.mrb[0].mxu0
        %v3925 = vadd.f32 %v3744, %v3924
        %v3926 = vpop.f32.mrb[0].mxu0
        %v3927 = vadd.f32 %v3746, %v3926
        %v3928 = vand.u32 %v1366, 4294901760
        %v3929 = vsub.f32 %v1366, %v3928
        %v3930 = vand.u32 %v3929, 4294901760
        %3931 = vmatprep.mubr.f32.mxu0 %v3930
        %v3932 = vand.u32 %v1365, 4294901760
        %v3933 = vsub.f32 %v1365, %v3932
        %v3934 = vand.u32 %v3933, 4294901760
        %3935 = vmatmul.mubr.f32.gmra.mrb[0].mxu0 %v3934
        %v3936 = vpop.f32.mrb[0].mxu0
        %v3937 = vadd.f32 %v3754, %v3936
        %v3938 = vpop.f32.mrb[0].mxu0
        %v3939 = vadd.f32 %v3756, %v3938
        %v3940 = vand.u32 %v1370, 4294901760
        %v3941 = vsub.f32 %v1370, %v3940
        %v3942 = vand.u32 %v3941, 4294901760
        %3943 = vmatprep.mubr.f32.mxu0 %v3942
        %v3944 = vand.u32 %v1369, 4294901760
        %v3945 = vsub.f32 %v1369, %v3944
        %v3946 = vand.u32 %v3945, 4294901760
        %3947 = vmatmul.mubr.f32.gmra.mrb[0].mxu0 %v3946
        %v3948 = vpop.f32.mrb[0].mxu0
        %v3949 = vadd.f32 %v3764, %v3948
        %v3950 = vpop.f32.mrb[0].mxu0
        %v3951 = vadd.f32 %v3766, %v3950
        %v3952 = vand.u32 %v1374, 4294901760
        %v3953 = vsub.f32 %v1374, %v3952
        %v3954 = vand.u32 %v3953, 4294901760
        %3955 = vmatprep.mubr.f32.mxu0 %v3954
        %v3956 = vand.u32 %v1373, 4294901760
        %v3957 = vsub.f32 %v1373, %v3956
        %v3958 = vand.u32 %v3957, 4294901760
        %3959 = vmatmul.mubr.f32.gmra.mrb[0].mxu0 %v3958
        %v3960 = vpop.f32.mrb[0].mxu0
        %v3961 = vadd.f32 %v3774, %v3960
        %v3962 = vpop.f32.mrb[0].mxu0
        %v3963 = vadd.f32 %v3776, %v3962
        %v3964 = vand.u32 %v1378, 4294901760
        %v3965 = vsub.f32 %v1378, %v3964
        %v3966 = vand.u32 %v3965, 4294901760
        %3967 = vmatprep.mubr.f32.mxu0 %v3966
        %v3968 = vand.u32 %v1377, 4294901760
        %v3969 = vsub.f32 %v1377, %v3968
        %v3970 = vand.u32 %v3969, 4294901760
        %3971 = vmatmul.mubr.f32.gmra.mrb[0].mxu0 %v3970
        %v3972 = vpop.f32.mrb[0].mxu0
        %v3973 = vadd.f32 %v3784, %v3972
        %v3974 = vpop.f32.mrb[0].mxu0
        %v3975 = vadd.f32 %v3786, %v3974
        %3976 = vdwg.mxu0
        %v3977 = vand.u32 %v679, 4294901760
        %v3978 = vsub.f32 %v679, %v3977
        %v3979 = vand.u32 %v3978, 4294901760
        %3980 = vmatprep.subr.mxu0 %v3979
        %v3981 = vand.u32 %v678, 4294901760
        %v3982 = vsub.f32 %v678, %v3981
        %v3983 = vand.u32 %v3982, 4294901760
        %3984 = vmatpush1.msra.mxu0 %v3983
        %v3985 = vand.u32 %v681, 4294901760
        %v3986 = vsub.f32 %v681, %v3985
        %v3987 = vand.u32 %v3986, 4294901760
        %3988 = vmatprep.subr.mxu0 %v3987
        %v3989 = vand.u32 %v680, 4294901760
        %v3990 = vsub.f32 %v680, %v3989
        %v3991 = vand.u32 %v3990, 4294901760
        %3992 = vmatpush1.msra.mxu0 %v3991
        %v3993 = vand.u32 %v683, 4294901760
        %v3994 = vsub.f32 %v683, %v3993
        %v3995 = vand.u32 %v3994, 4294901760
        %3996 = vmatprep.subr.mxu0 %v3995
        %v3997 = vand.u32 %v682, 4294901760
        %v3998 = vsub.f32 %v682, %v3997
        %v3999 = vand.u32 %v3998, 4294901760
        %4000 = vmatpush1.msra.mxu0 %v3999
        %v4001 = vand.u32 %v685, 4294901760
        %v4002 = vsub.f32 %v685, %v4001
        %v4003 = vand.u32 %v4002, 4294901760
        %4004 = vmatprep.subr.mxu0 %v4003
        %v4005 = vand.u32 %v684, 4294901760
        %v4006 = vsub.f32 %v684, %v4005
        %v4007 = vand.u32 %v4006, 4294901760
        %4008 = vmatpush1.msra.mxu0 %v4007
        %v4009 = vand.u32 %v687, 4294901760
        %v4010 = vsub.f32 %v687, %v4009
        %v4011 = vand.u32 %v4010, 4294901760
        %4012 = vmatprep.subr.mxu0 %v4011
        %v4013 = vand.u32 %v686, 4294901760
        %v4014 = vsub.f32 %v686, %v4013
        %v4015 = vand.u32 %v4014, 4294901760
        %4016 = vmatpush1.msra.mxu0 %v4015
        %v4017 = vand.u32 %v689, 4294901760
        %v4018 = vsub.f32 %v689, %v4017
        %v4019 = vand.u32 %v4018, 4294901760
        %4020 = vmatprep.subr.mxu0 %v4019
        %v4021 = vand.u32 %v688, 4294901760
        %v4022 = vsub.f32 %v688, %v4021
        %v4023 = vand.u32 %v4022, 4294901760
        %4024 = vmatpush1.msra.mxu0 %v4023
        %v4025 = vand.u32 %v691, 4294901760
        %v4026 = vsub.f32 %v691, %v4025
        %v4027 = vand.u32 %v4026, 4294901760
        %4028 = vmatprep.subr.mxu0 %v4027
        %v4029 = vand.u32 %v690, 4294901760
        %v4030 = vsub.f32 %v690, %v4029
        %v4031 = vand.u32 %v4030, 4294901760
        %4032 = vmatpush1.msra.mxu0 %v4031
        %v4033 = vand.u32 %v693, 4294901760
        %v4034 = vsub.f32 %v693, %v4033
        %v4035 = vand.u32 %v4034, 4294901760
        %4036 = vmatprep.subr.mxu0 %v4035
        %v4037 = vand.u32 %v692, 4294901760
        %v4038 = vsub.f32 %v692, %v4037
        %v4039 = vand.u32 %v4038, 4294901760
        %4040 = vmatpush1.msra.mxu0 %v4039
        %v4041 = vand.u32 %v695, 4294901760
        %v4042 = vsub.f32 %v695, %v4041
        %v4043 = vand.u32 %v4042, 4294901760
        %4044 = vmatprep.subr.mxu0 %v4043
        %v4045 = vand.u32 %v694, 4294901760
        %v4046 = vsub.f32 %v694, %v4045
        %v4047 = vand.u32 %v4046, 4294901760
        %4048 = vmatpush1.msra.mxu0 %v4047
        %v4049 = vand.u32 %v697, 4294901760
        %v4050 = vsub.f32 %v697, %v4049
        %v4051 = vand.u32 %v4050, 4294901760
        %4052 = vmatprep.subr.mxu0 %v4051
        %v4053 = vand.u32 %v696, 4294901760
        %v4054 = vsub.f32 %v696, %v4053
        %v4055 = vand.u32 %v4054, 4294901760
        %4056 = vmatpush1.msra.mxu0 %v4055
        %v4057 = vand.u32 %v699, 4294901760
        %v4058 = vsub.f32 %v699, %v4057
        %v4059 = vand.u32 %v4058, 4294901760
        %4060 = vmatprep.subr.mxu0 %v4059
        %v4061 = vand.u32 %v698, 4294901760
        %v4062 = vsub.f32 %v698, %v4061
        %v4063 = vand.u32 %v4062, 4294901760
        %4064 = vmatpush1.msra.mxu0 %v4063
        %v4065 = vand.u32 %v701, 4294901760
        %v4066 = vsub.f32 %v701, %v4065
        %v4067 = vand.u32 %v4066, 4294901760
        %4068 = vmatprep.subr.mxu0 %v4067
        %v4069 = vand.u32 %v700, 4294901760
        %v4070 = vsub.f32 %v700, %v4069
        %v4071 = vand.u32 %v4070, 4294901760
        %4072 = vmatpush1.msra.mxu0 %v4071
        %v4073 = vand.u32 %v703, 4294901760
        %v4074 = vsub.f32 %v703, %v4073
        %v4075 = vand.u32 %v4074, 4294901760
        %4076 = vmatprep.subr.mxu0 %v4075
        %v4077 = vand.u32 %v702, 4294901760
        %v4078 = vsub.f32 %v702, %v4077
        %v4079 = vand.u32 %v4078, 4294901760
        %4080 = vmatpush1.msra.mxu0 %v4079
        %v4081 = vand.u32 %v705, 4294901760
        %v4082 = vsub.f32 %v705, %v4081
        %v4083 = vand.u32 %v4082, 4294901760
        %4084 = vmatprep.subr.mxu0 %v4083
        %v4085 = vand.u32 %v704, 4294901760
        %v4086 = vsub.f32 %v704, %v4085
        %v4087 = vand.u32 %v4086, 4294901760
        %4088 = vmatpush1.msra.mxu0 %v4087
        %v4089 = vand.u32 %v707, 4294901760
        %v4090 = vsub.f32 %v707, %v4089
        %v4091 = vand.u32 %v4090, 4294901760
        %4092 = vmatprep.subr.mxu0 %v4091
        %v4093 = vand.u32 %v706, 4294901760
        %v4094 = vsub.f32 %v706, %v4093
        %v4095 = vand.u32 %v4094, 4294901760
        %4096 = vmatpush1.msra.mxu0 %v4095
        %v4097 = vand.u32 %v709, 4294901760
        %v4098 = vsub.f32 %v709, %v4097
        %v4099 = vand.u32 %v4098, 4294901760
        %4100 = vmatprep.subr.mxu0 %v4099
        %v4101 = vand.u32 %v708, 4294901760
        %v4102 = vsub.f32 %v708, %v4101
        %v4103 = vand.u32 %v4102, 4294901760
        %4104 = vmatpush1.msra.mxu0 %v4103
        %v4105 = vand.u32 %v711, 4294901760
        %v4106 = vsub.f32 %v711, %v4105
        %v4107 = vand.u32 %v4106, 4294901760
        %4108 = vmatprep.subr.mxu0 %v4107
        %v4109 = vand.u32 %v710, 4294901760
        %v4110 = vsub.f32 %v710, %v4109
        %v4111 = vand.u32 %v4110, 4294901760
        %4112 = vmatpush1.msra.mxu0 %v4111
        %v4113 = vand.u32 %v713, 4294901760
        %v4114 = vsub.f32 %v713, %v4113
        %v4115 = vand.u32 %v4114, 4294901760
        %4116 = vmatprep.subr.mxu0 %v4115
        %v4117 = vand.u32 %v712, 4294901760
        %v4118 = vsub.f32 %v712, %v4117
        %v4119 = vand.u32 %v4118, 4294901760
        %4120 = vmatpush1.msra.mxu0 %v4119
        %v4121 = vand.u32 %v715, 4294901760
        %v4122 = vsub.f32 %v715, %v4121
        %v4123 = vand.u32 %v4122, 4294901760
        %4124 = vmatprep.subr.mxu0 %v4123
        %v4125 = vand.u32 %v714, 4294901760
        %v4126 = vsub.f32 %v714, %v4125
        %v4127 = vand.u32 %v4126, 4294901760
        %4128 = vmatpush1.msra.mxu0 %v4127
        %v4129 = vand.u32 %v717, 4294901760
        %v4130 = vsub.f32 %v717, %v4129
        %v4131 = vand.u32 %v4130, 4294901760
        %4132 = vmatprep.subr.mxu0 %v4131
        %v4133 = vand.u32 %v716, 4294901760
        %v4134 = vsub.f32 %v716, %v4133
        %v4135 = vand.u32 %v4134, 4294901760
        %4136 = vmatpush1.msra.mxu0 %v4135
        %v4137 = vand.u32 %v719, 4294901760
        %v4138 = vsub.f32 %v719, %v4137
        %v4139 = vand.u32 %v4138, 4294901760
        %4140 = vmatprep.subr.mxu0 %v4139
        %v4141 = vand.u32 %v718, 4294901760
        %v4142 = vsub.f32 %v718, %v4141
        %v4143 = vand.u32 %v4142, 4294901760
        %4144 = vmatpush1.msra.mxu0 %v4143
        %v4145 = vand.u32 %v721, 4294901760
        %v4146 = vsub.f32 %v721, %v4145
        %v4147 = vand.u32 %v4146, 4294901760
        %4148 = vmatprep.subr.mxu0 %v4147
        %v4149 = vand.u32 %v720, 4294901760
        %v4150 = vsub.f32 %v720, %v4149
        %v4151 = vand.u32 %v4150, 4294901760
        %4152 = vmatpush1.msra.mxu0 %v4151
        %v4153 = vand.u32 %v723, 4294901760
        %v4154 = vsub.f32 %v723, %v4153
        %v4155 = vand.u32 %v4154, 4294901760
        %4156 = vmatprep.subr.mxu0 %v4155
        %v4157 = vand.u32 %v722, 4294901760
        %v4158 = vsub.f32 %v722, %v4157
        %v4159 = vand.u32 %v4158, 4294901760
        %4160 = vmatpush1.msra.mxu0 %v4159
        %v4161 = vand.u32 %v725, 4294901760
        %v4162 = vsub.f32 %v725, %v4161
        %v4163 = vand.u32 %v4162, 4294901760
        %4164 = vmatprep.subr.mxu0 %v4163
        %v4165 = vand.u32 %v724, 4294901760
        %v4166 = vsub.f32 %v724, %v4165
        %v4167 = vand.u32 %v4166, 4294901760
        %4168 = vmatpush1.msra.mxu0 %v4167
        %v4169 = vand.u32 %v727, 4294901760
        %v4170 = vsub.f32 %v727, %v4169
        %v4171 = vand.u32 %v4170, 4294901760
        %4172 = vmatprep.subr.mxu0 %v4171
        %v4173 = vand.u32 %v726, 4294901760
        %v4174 = vsub.f32 %v726, %v4173
        %v4175 = vand.u32 %v4174, 4294901760
        %4176 = vmatpush1.msra.mxu0 %v4175
        %v4177 = vand.u32 %v729, 4294901760
        %v4178 = vsub.f32 %v729, %v4177
        %v4179 = vand.u32 %v4178, 4294901760
        %4180 = vmatprep.subr.mxu0 %v4179
        %v4181 = vand.u32 %v728, 4294901760
        %v4182 = vsub.f32 %v728, %v4181
        %v4183 = vand.u32 %v4182, 4294901760
        %4184 = vmatpush1.msra.mxu0 %v4183
        %v4185 = vand.u32 %v731, 4294901760
        %v4186 = vsub.f32 %v731, %v4185
        %v4187 = vand.u32 %v4186, 4294901760
        %4188 = vmatprep.subr.mxu0 %v4187
        %v4189 = vand.u32 %v730, 4294901760
        %v4190 = vsub.f32 %v730, %v4189
        %v4191 = vand.u32 %v4190, 4294901760
        %4192 = vmatpush1.msra.mxu0 %v4191
        %v4193 = vand.u32 %v733, 4294901760
        %v4194 = vsub.f32 %v733, %v4193
        %v4195 = vand.u32 %v4194, 4294901760
        %4196 = vmatprep.subr.mxu0 %v4195
        %v4197 = vand.u32 %v732, 4294901760
        %v4198 = vsub.f32 %v732, %v4197
        %v4199 = vand.u32 %v4198, 4294901760
        %4200 = vmatpush1.msra.mxu0 %v4199
        %v4201 = vand.u32 %v735, 4294901760
        %v4202 = vsub.f32 %v735, %v4201
        %v4203 = vand.u32 %v4202, 4294901760
        %4204 = vmatprep.subr.mxu0 %v4203
        %v4205 = vand.u32 %v734, 4294901760
        %v4206 = vsub.f32 %v734, %v4205
        %v4207 = vand.u32 %v4206, 4294901760
        %4208 = vmatpush1.msra.mxu0 %v4207
        %v4209 = vand.u32 %v737, 4294901760
        %v4210 = vsub.f32 %v737, %v4209
        %v4211 = vand.u32 %v4210, 4294901760
        %4212 = vmatprep.subr.mxu0 %v4211
        %v4213 = vand.u32 %v736, 4294901760
        %v4214 = vsub.f32 %v736, %v4213
        %v4215 = vand.u32 %v4214, 4294901760
        %4216 = vmatpush1.msra.mxu0 %v4215
        %v4217 = vand.u32 %v739, 4294901760
        %v4218 = vsub.f32 %v739, %v4217
        %v4219 = vand.u32 %v4218, 4294901760
        %4220 = vmatprep.subr.mxu0 %v4219
        %v4221 = vand.u32 %v738, 4294901760
        %v4222 = vsub.f32 %v738, %v4221
        %v4223 = vand.u32 %v4222, 4294901760
        %4224 = vmatpush1.msra.mxu0 %v4223
        %v4225 = vand.u32 %v741, 4294901760
        %v4226 = vsub.f32 %v741, %v4225
        %v4227 = vand.u32 %v4226, 4294901760
        %4228 = vmatprep.subr.mxu0 %v4227
        %v4229 = vand.u32 %v740, 4294901760
        %v4230 = vsub.f32 %v740, %v4229
        %v4231 = vand.u32 %v4230, 4294901760
        %4232 = vmatpush1.msra.mxu0 %v4231
        %v4233 = vand.u32 %v1362, 4294901760
        %4234 = vmatprep.mubr.f32.mxu0 %v4233
        %v4235 = vand.u32 %v1361, 4294901760
        %4236 = vmatmul.mubr.f32.gmra.mrb[0].mxu0 %v4235
        %v4237 = vpop.f32.mrb[0].mxu0
        %v4238 = vadd.f32 %v3925, %v4237
        %v4239 = vpop.f32.mrb[0].mxu0
        %v4240 = vadd.f32 %v3927, %v4239
        %v4241 = vand.u32 %v1366, 4294901760
        %4242 = vmatprep.mubr.f32.mxu0 %v4241
        %v4243 = vand.u32 %v1365, 4294901760
        %4244 = vmatmul.mubr.f32.gmra.mrb[0].mxu0 %v4243
        %v4245 = vpop.f32.mrb[0].mxu0
        %v4246 = vadd.f32 %v3937, %v4245
        %v4247 = vpop.f32.mrb[0].mxu0
        %v4248 = vadd.f32 %v3939, %v4247
        %v4249 = vand.u32 %v1370, 4294901760
        %4250 = vmatprep.mubr.f32.mxu0 %v4249
        %v4251 = vand.u32 %v1369, 4294901760
        %4252 = vmatmul.mubr.f32.gmra.mrb[0].mxu0 %v4251
        %v4253 = vpop.f32.mrb[0].mxu0
        %v4254 = vadd.f32 %v3949, %v4253
        %v4255 = vpop.f32.mrb[0].mxu0
        %v4256 = vadd.f32 %v3951, %v4255
        %v4257 = vand.u32 %v1374, 4294901760
        %4258 = vmatprep.mubr.f32.mxu0 %v4257
        %v4259 = vand.u32 %v1373, 4294901760
        %4260 = vmatmul.mubr.f32.gmra.mrb[0].mxu0 %v4259
        %v4261 = vpop.f32.mrb[0].mxu0
        %v4262 = vadd.f32 %v3961, %v4261
        %v4263 = vpop.f32.mrb[0].mxu0
        %v4264 = vadd.f32 %v3963, %v4263
        %v4265 = vand.u32 %v1378, 4294901760
        %4266 = vmatprep.mubr.f32.mxu0 %v4265
        %v4267 = vand.u32 %v1377, 4294901760
        %4268 = vmatmul.mubr.f32.gmra.mrb[0].mxu0 %v4267
        %v4269 = vpop.f32.mrb[0].mxu0
        %v4270 = vadd.f32 %v3973, %v4269
        %v4271 = vpop.f32.mrb[0].mxu0
        %v4272 = vadd.f32 %v3975, %v4271
        %4273 = vdwg.mxu0
        %v4274 = vand.u32 %v679, 4294901760
        %4275 = vmatprep.subr.mxu0 %v4274
        %v4276 = vand.u32 %v678, 4294901760
        %4277 = vmatpush1.msra.mxu0 %v4276
        %v4278 = vand.u32 %v681, 4294901760
        %4279 = vmatprep.subr.mxu0 %v4278
        %v4280 = vand.u32 %v680, 4294901760
        %4281 = vmatpush1.msra.mxu0 %v4280
        %v4282 = vand.u32 %v683, 4294901760
        %4283 = vmatprep.subr.mxu0 %v4282
        %v4284 = vand.u32 %v682, 4294901760
        %4285 = vmatpush1.msra.mxu0 %v4284
        %v4286 = vand.u32 %v685, 4294901760
        %4287 = vmatprep.subr.mxu0 %v4286
        %v4288 = vand.u32 %v684, 4294901760
        %4289 = vmatpush1.msra.mxu0 %v4288
        %v4290 = vand.u32 %v687, 4294901760
        %4291 = vmatprep.subr.mxu0 %v4290
        %v4292 = vand.u32 %v686, 4294901760
        %4293 = vmatpush1.msra.mxu0 %v4292
        %v4294 = vand.u32 %v689, 4294901760
        %4295 = vmatprep.subr.mxu0 %v4294
        %v4296 = vand.u32 %v688, 4294901760
        %4297 = vmatpush1.msra.mxu0 %v4296
        %v4298 = vand.u32 %v691, 4294901760
        %4299 = vmatprep.subr.mxu0 %v4298
        %v4300 = vand.u32 %v690, 4294901760
        %4301 = vmatpush1.msra.mxu0 %v4300
        %v4302 = vand.u32 %v693, 4294901760
        %4303 = vmatprep.subr.mxu0 %v4302
        %v4304 = vand.u32 %v692, 4294901760
        %4305 = vmatpush1.msra.mxu0 %v4304
        %v4306 = vand.u32 %v695, 4294901760
        %4307 = vmatprep.subr.mxu0 %v4306
        %v4308 = vand.u32 %v694, 4294901760
        %4309 = vmatpush1.msra.mxu0 %v4308
        %v4310 = vand.u32 %v697, 4294901760
        %4311 = vmatprep.subr.mxu0 %v4310
        %v4312 = vand.u32 %v696, 4294901760
        %4313 = vmatpush1.msra.mxu0 %v4312
        %v4314 = vand.u32 %v699, 4294901760
        %4315 = vmatprep.subr.mxu0 %v4314
        %v4316 = vand.u32 %v698, 4294901760
        %4317 = vmatpush1.msra.mxu0 %v4316
        %v4318 = vand.u32 %v701, 4294901760
        %4319 = vmatprep.subr.mxu0 %v4318
        %v4320 = vand.u32 %v700, 4294901760
        %4321 = vmatpush1.msra.mxu0 %v4320
        %v4322 = vand.u32 %v703, 4294901760
        %4323 = vmatprep.subr.mxu0 %v4322
        %v4324 = vand.u32 %v702, 4294901760
        %4325 = vmatpush1.msra.mxu0 %v4324
        %v4326 = vand.u32 %v705, 4294901760
        %4327 = vmatprep.subr.mxu0 %v4326
        %v4328 = vand.u32 %v704, 4294901760
        %4329 = vmatpush1.msra.mxu0 %v4328
        %v4330 = vand.u32 %v707, 4294901760
        %4331 = vmatprep.subr.mxu0 %v4330
        %v4332 = vand.u32 %v706, 4294901760
        %4333 = vmatpush1.msra.mxu0 %v4332
        %v4334 = vand.u32 %v709, 4294901760
        %4335 = vmatprep.subr.mxu0 %v4334
        %v4336 = vand.u32 %v708, 4294901760
        %4337 = vmatpush1.msra.mxu0 %v4336
        %v4338 = vand.u32 %v711, 4294901760
        %4339 = vmatprep.subr.mxu0 %v4338
        %v4340 = vand.u32 %v710, 4294901760
        %4341 = vmatpush1.msra.mxu0 %v4340
        %v4342 = vand.u32 %v713, 4294901760
        %4343 = vmatprep.subr.mxu0 %v4342
        %v4344 = vand.u32 %v712, 4294901760
        %4345 = vmatpush1.msra.mxu0 %v4344
        %v4346 = vand.u32 %v715, 4294901760
        %4347 = vmatprep.subr.mxu0 %v4346
        %v4348 = vand.u32 %v714, 4294901760
        %4349 = vmatpush1.msra.mxu0 %v4348
        %v4350 = vand.u32 %v717, 4294901760
        %4351 = vmatprep.subr.mxu0 %v4350
        %v4352 = vand.u32 %v716, 4294901760
        %4353 = vmatpush1.msra.mxu0 %v4352
        %v4354 = vand.u32 %v719, 4294901760
        %4355 = vmatprep.subr.mxu0 %v4354
        %v4356 = vand.u32 %v718, 4294901760
        %4357 = vmatpush1.msra.mxu0 %v4356
        %v4358 = vand.u32 %v721, 4294901760
        %4359 = vmatprep.subr.mxu0 %v4358
        %v4360 = vand.u32 %v720, 4294901760
        %4361 = vmatpush1.msra.mxu0 %v4360
        %v4362 = vand.u32 %v723, 4294901760
        %4363 = vmatprep.subr.mxu0 %v4362
        %v4364 = vand.u32 %v722, 4294901760
        %4365 = vmatpush1.msra.mxu0 %v4364
        %v4366 = vand.u32 %v725, 4294901760
        %4367 = vmatprep.subr.mxu0 %v4366
        %v4368 = vand.u32 %v724, 4294901760
        %4369 = vmatpush1.msra.mxu0 %v4368
        %v4370 = vand.u32 %v727, 4294901760
        %4371 = vmatprep.subr.mxu0 %v4370
        %v4372 = vand.u32 %v726, 4294901760
        %4373 = vmatpush1.msra.mxu0 %v4372
        %v4374 = vand.u32 %v729, 4294901760
        %4375 = vmatprep.subr.mxu0 %v4374
        %v4376 = vand.u32 %v728, 4294901760
        %4377 = vmatpush1.msra.mxu0 %v4376
        %v4378 = vand.u32 %v731, 4294901760
        %4379 = vmatprep.subr.mxu0 %v4378
        %v4380 = vand.u32 %v730, 4294901760
        %4381 = vmatpush1.msra.mxu0 %v4380
        %v4382 = vand.u32 %v733, 4294901760
        %4383 = vmatprep.subr.mxu0 %v4382
        %v4384 = vand.u32 %v732, 4294901760
        %4385 = vmatpush1.msra.mxu0 %v4384
        %v4386 = vand.u32 %v735, 4294901760
        %4387 = vmatprep.subr.mxu0 %v4386
        %v4388 = vand.u32 %v734, 4294901760
        %4389 = vmatpush1.msra.mxu0 %v4388
        %v4390 = vand.u32 %v737, 4294901760
        %4391 = vmatprep.subr.mxu0 %v4390
        %v4392 = vand.u32 %v736, 4294901760
        %4393 = vmatpush1.msra.mxu0 %v4392
        %v4394 = vand.u32 %v739, 4294901760
        %4395 = vmatprep.subr.mxu0 %v4394
        %v4396 = vand.u32 %v738, 4294901760
        %4397 = vmatpush1.msra.mxu0 %v4396
        %v4398 = vand.u32 %v741, 4294901760
        %4399 = vmatprep.subr.mxu0 %v4398
        %v4400 = vand.u32 %v740, 4294901760
        %4401 = vmatpush1.msra.mxu0 %v4400
        %v4402 = vand.u32 %v1362, 4294901760
        %4403 = vmatprep.mubr.f32.mxu0 %v4402
        %v4404 = vand.u32 %v1361, 4294901760
        %4405 = vmatmul.mubr.f32.gmra.mrb[0].mxu0 %v4404
        %v4406 = vpop.f32.mrb[0].mxu0
        %v4407 = vadd.f32 %v4238, %v4406
        %v4408 = vpop.f32.mrb[0].mxu0
        %v4409 = vadd.f32 %v4240, %v4408
        %v4410 = vand.u32 %v1366, 4294901760
        %4411 = vmatprep.mubr.f32.mxu0 %v4410
        %v4412 = vand.u32 %v1365, 4294901760
        %4413 = vmatmul.mubr.f32.gmra.mrb[0].mxu0 %v4412
        %v4414 = vpop.f32.mrb[0].mxu0
        %v4415 = vadd.f32 %v4246, %v4414
        %v4416 = vpop.f32.mrb[0].mxu0
        %v4417 = vadd.f32 %v4248, %v4416
        %v4418 = vand.u32 %v1370, 4294901760
        %4419 = vmatprep.mubr.f32.mxu0 %v4418
        %v4420 = vand.u32 %v1369, 4294901760
        %4421 = vmatmul.mubr.f32.gmra.mrb[0].mxu0 %v4420
        %v4422 = vpop.f32.mrb[0].mxu0
        %v4423 = vadd.f32 %v4254, %v4422
        %v4424 = vpop.f32.mrb[0].mxu0
        %v4425 = vadd.f32 %v4256, %v4424
        %v4426 = vand.u32 %v1374, 4294901760
        %4427 = vmatprep.mubr.f32.mxu0 %v4426
        %v4428 = vand.u32 %v1373, 4294901760
        %4429 = vmatmul.mubr.f32.gmra.mrb[0].mxu0 %v4428
        %v4430 = vpop.f32.mrb[0].mxu0
        %v4431 = vadd.f32 %v4262, %v4430
        %v4432 = vpop.f32.mrb[0].mxu0
        %v4433 = vadd.f32 %v4264, %v4432
        %v4434 = vand.u32 %v1378, 4294901760
        %4435 = vmatprep.mubr.f32.mxu0 %v4434
        %v4436 = vand.u32 %v1377, 4294901760
        %4437 = vmatmul.mubr.f32.gmra.mrb[0].mxu0 %v4436
        %v4438 = vpop.f32.mrb[0].mxu0
        %v4439 = vadd.f32 %v4270, %v4438
        %v4440 = vpop.f32.mrb[0].mxu0
        %v4441 = vadd.f32 %v4272, %v4440
        %4442 = vdwg.mxu0
        %v4443 = vld [vmem:[#allocation8] sm:$0xff]
        %v4444 = vld [vmem:[#allocation8 + $0x8] sm:$0xff]
        %v4445 = vld [vmem:[#allocation8 + $0x10] sm:$0xff]
        %v4446 = vld [vmem:[#allocation8 + $0x18] sm:$0xff]
        %v4447 = vld [vmem:[#allocation8 + $0x20] sm:$0xff]
        %v4448 = vld [vmem:[#allocation8 + $0x28] sm:$0xff]
        %v4449 = vld [vmem:[#allocation8 + $0x30] sm:$0xff]
        %v4450 = vld [vmem:[#allocation8 + $0x38] sm:$0xff]
        %v4451 = vld [vmem:[#allocation8 + $0x40] sm:$0xff]
        %v4452 = vld [vmem:[#allocation8 + $0x48] sm:$0xff]
        %v4453 = vld [vmem:[#allocation8 + $0x50] sm:$0xff]
        %v4454 = vld [vmem:[#allocation8 + $0x58] sm:$0xff]
        %v4455 = vld [vmem:[#allocation8 + $0x60] sm:$0xff]
        %v4456 = vld [vmem:[#allocation8 + $0x68] sm:$0xff]
        %v4457 = vld [vmem:[#allocation8 + $0x70] sm:$0xff]
        %v4458 = vld [vmem:[#allocation8 + $0x78] sm:$0xff]
        %v4459 = vld [vmem:[#allocation8 + $0x80] sm:$0xff]
        %v4460 = vld [vmem:[#allocation8 + $0x88] sm:$0xff]
        %v4461 = vld [vmem:[#allocation8 + $0x90] sm:$0xff]
        %v4462 = vld [vmem:[#allocation8 + $0x98] sm:$0xff]
        %v4463 = vld [vmem:[#allocation8 + $0xa0] sm:$0xff]
        %v4464 = vld [vmem:[#allocation8 + $0xa8] sm:$0xff]
        %v4465 = vld [vmem:[#allocation8 + $0xb0] sm:$0xff]
        %v4466 = vld [vmem:[#allocation8 + $0xb8] sm:$0xff]
        %v4467 = vld [vmem:[#allocation8 + $0xc0] sm:$0xff]
        %v4468 = vld [vmem:[#allocation8 + $0xc8] sm:$0xff]
        %v4469 = vld [vmem:[#allocation8 + $0xd0] sm:$0xff]
        %v4470 = vld [vmem:[#allocation8 + $0xd8] sm:$0xff]
        %v4471 = vld [vmem:[#allocation8 + $0xe0] sm:$0xff]
        %v4472 = vld [vmem:[#allocation8 + $0xe8] sm:$0xff]
        %v4473 = vand.u32 %v1168, 4294901760
        %4474 = vmatprep.subr.mxu0 %v4473
        %v4475 = vand.u32 %v1167, 4294901760
        %4476 = vmatpush1.msra.mxu0 %v4475
        %v4477 = vand.u32 %v1170, 4294901760
        %4478 = vmatprep.subr.mxu0 %v4477
        %v4479 = vand.u32 %v1169, 4294901760
        %4480 = vmatpush1.msra.mxu0 %v4479
        %v4481 = vand.u32 %v1172, 4294901760
        %4482 = vmatprep.subr.mxu0 %v4481
        %v4483 = vand.u32 %v1171, 4294901760
        %4484 = vmatpush1.msra.mxu0 %v4483
        %v4485 = vand.u32 %v1174, 4294901760
        %4486 = vmatprep.subr.mxu0 %v4485
        %v4487 = vand.u32 %v1173, 4294901760
        %4488 = vmatpush1.msra.mxu0 %v4487
        %v4489 = vand.u32 %v1176, 4294901760
        %4490 = vmatprep.subr.mxu0 %v4489
        %v4491 = vand.u32 %v1175, 4294901760
        %4492 = vmatpush1.msra.mxu0 %v4491
        %v4493 = vand.u32 %v1178, 4294901760
        %4494 = vmatprep.subr.mxu0 %v4493
        %v4495 = vand.u32 %v1177, 4294901760
        %4496 = vmatpush1.msra.mxu0 %v4495
        %v4497 = vand.u32 %v1180, 4294901760
        %4498 = vmatprep.subr.mxu0 %v4497
        %v4499 = vand.u32 %v1179, 4294901760
        %4500 = vmatpush1.msra.mxu0 %v4499
        %v4501 = vand.u32 %v1182, 4294901760
        %4502 = vmatprep.subr.mxu0 %v4501
        %v4503 = vand.u32 %v1181, 4294901760
        %4504 = vmatpush1.msra.mxu0 %v4503
        %v4505 = vand.u32 %v1184, 4294901760
        %4506 = vmatprep.subr.mxu0 %v4505
        %v4507 = vand.u32 %v1183, 4294901760
        %4508 = vmatpush1.msra.mxu0 %v4507
        %v4509 = vand.u32 %v1186, 4294901760
        %4510 = vmatprep.subr.mxu0 %v4509
        %v4511 = vand.u32 %v1185, 4294901760
        %4512 = vmatpush1.msra.mxu0 %v4511
        %v4513 = vand.u32 %v1188, 4294901760
        %4514 = vmatprep.subr.mxu0 %v4513
        %v4515 = vand.u32 %v1187, 4294901760
        %4516 = vmatpush1.msra.mxu0 %v4515
        %v4517 = vand.u32 %v1190, 4294901760
        %4518 = vmatprep.subr.mxu0 %v4517
        %v4519 = vand.u32 %v1189, 4294901760
        %4520 = vmatpush1.msra.mxu0 %v4519
        %v4521 = vand.u32 %v1192, 4294901760
        %4522 = vmatprep.subr.mxu0 %v4521
        %v4523 = vand.u32 %v1191, 4294901760
        %4524 = vmatpush1.msra.mxu0 %v4523
        %v4525 = vand.u32 %v1194, 4294901760
        %4526 = vmatprep.subr.mxu0 %v4525
        %v4527 = vand.u32 %v1193, 4294901760
        %4528 = vmatpush1.msra.mxu0 %v4527
        %v4529 = vand.u32 %v1196, 4294901760
        %4530 = vmatprep.subr.mxu0 %v4529
        %v4531 = vand.u32 %v1195, 4294901760
        %4532 = vmatpush1.msra.mxu0 %v4531
        %v4533 = vand.u32 %v1198, 4294901760
        %4534 = vmatprep.subr.mxu0 %v4533
        %v4535 = vand.u32 %v1197, 4294901760
        %4536 = vmatpush1.msra.mxu0 %v4535
        %v4537 = vand.u32 %v1200, 4294901760
        %4538 = vmatprep.subr.mxu0 %v4537
        %v4539 = vand.u32 %v1199, 4294901760
        %4540 = vmatpush1.msra.mxu0 %v4539
        %v4541 = vand.u32 %v1202, 4294901760
        %4542 = vmatprep.subr.mxu0 %v4541
        %v4543 = vand.u32 %v1201, 4294901760
        %4544 = vmatpush1.msra.mxu0 %v4543
        %v4545 = vand.u32 %v1204, 4294901760
        %4546 = vmatprep.subr.mxu0 %v4545
        %v4547 = vand.u32 %v1203, 4294901760
        %4548 = vmatpush1.msra.mxu0 %v4547
        %v4549 = vand.u32 %v1206, 4294901760
        %4550 = vmatprep.subr.mxu0 %v4549
        %v4551 = vand.u32 %v1205, 4294901760
        %4552 = vmatpush1.msra.mxu0 %v4551
        %v4553 = vand.u32 %v1208, 4294901760
        %4554 = vmatprep.subr.mxu0 %v4553
        %v4555 = vand.u32 %v1207, 4294901760
        %4556 = vmatpush1.msra.mxu0 %v4555
        %v4557 = vand.u32 %v1210, 4294901760
        %4558 = vmatprep.subr.mxu0 %v4557
        %v4559 = vand.u32 %v1209, 4294901760
        %4560 = vmatpush1.msra.mxu0 %v4559
        %v4561 = vand.u32 %v1212, 4294901760
        %4562 = vmatprep.subr.mxu0 %v4561
        %v4563 = vand.u32 %v1211, 4294901760
        %4564 = vmatpush1.msra.mxu0 %v4563
        %v4565 = vand.u32 %v1214, 4294901760
        %4566 = vmatprep.subr.mxu0 %v4565
        %v4567 = vand.u32 %v1213, 4294901760
        %4568 = vmatpush1.msra.mxu0 %v4567
        %v4569 = vand.u32 %v1216, 4294901760
        %4570 = vmatprep.subr.mxu0 %v4569
        %v4571 = vand.u32 %v1215, 4294901760
        %4572 = vmatpush1.msra.mxu0 %v4571
        %v4573 = vand.u32 %v1218, 4294901760
        %4574 = vmatprep.subr.mxu0 %v4573
        %v4575 = vand.u32 %v1217, 4294901760
        %4576 = vmatpush1.msra.mxu0 %v4575
        %v4577 = vand.u32 %v1220, 4294901760
        %4578 = vmatprep.subr.mxu0 %v4577
        %v4579 = vand.u32 %v1219, 4294901760
        %4580 = vmatpush1.msra.mxu0 %v4579
        %v4581 = vand.u32 %v1222, 4294901760
        %4582 = vmatprep.subr.mxu0 %v4581
        %v4583 = vand.u32 %v1221, 4294901760
        %4584 = vmatpush1.msra.mxu0 %v4583
        %v4585 = vand.u32 %v1224, 4294901760
        %4586 = vmatprep.subr.mxu0 %v4585
        %v4587 = vand.u32 %v1223, 4294901760
        %4588 = vmatpush1.msra.mxu0 %v4587
        %v4589 = vand.u32 %v1226, 4294901760
        %4590 = vmatprep.subr.mxu0 %v4589
        %v4591 = vand.u32 %v1225, 4294901760
        %4592 = vmatpush1.msra.mxu0 %v4591
        %v4593 = vand.u32 %v1228, 4294901760
        %4594 = vmatprep.subr.mxu0 %v4593
        %v4595 = vand.u32 %v1227, 4294901760
        %4596 = vmatpush1.msra.mxu0 %v4595
        %v4597 = vand.u32 %v1230, 4294901760
        %4598 = vmatprep.subr.mxu0 %v4597
        %v4599 = vand.u32 %v1229, 4294901760
        %4600 = vmatpush1.msra.mxu0 %v4599
        %v4601 = vand.u32 %v4444, 4294901760
        %v4602 = vsub.f32 %v4444, %v4601
        %v4603 = vand.u32 %v4602, 4294901760
        %v4604 = vsub.f32 %v4602, %v4603
        %v4605 = vand.u32 %v4604, 4294901760
        %4606 = vmatprep.mubr.f32.mxu0 %v4605
        %v4607 = vand.u32 %v4443, 4294901760
        %v4608 = vsub.f32 %v4443, %v4607
        %v4609 = vand.u32 %v4608, 4294901760
        %v4610 = vsub.f32 %v4608, %v4609
        %v4611 = vand.u32 %v4610, 4294901760
        %4612 = vmatmul.mubr.f32.gmra.mrb[0].mxu0 %v4611
        %v4613 = vpop.f32.mrb[0].mxu0
        %v4614 = vadd.f32 0.0, %v4613
        %v4615 = vpop.f32.mrb[0].mxu0
        %v4616 = vadd.f32 0.0, %v4615
        %v4617 = vand.u32 %v4450, 4294901760
        %v4618 = vsub.f32 %v4450, %v4617
        %v4619 = vand.u32 %v4618, 4294901760
        %v4620 = vsub.f32 %v4618, %v4619
        %v4621 = vand.u32 %v4620, 4294901760
        %4622 = vmatprep.mubr.f32.mxu0 %v4621
        %v4623 = vand.u32 %v4449, 4294901760
        %v4624 = vsub.f32 %v4449, %v4623
        %v4625 = vand.u32 %v4624, 4294901760
        %v4626 = vsub.f32 %v4624, %v4625
        %v4627 = vand.u32 %v4626, 4294901760
        %4628 = vmatmul.mubr.f32.gmra.mrb[0].mxu0 %v4627
        %v4629 = vpop.f32.mrb[0].mxu0
        %v4630 = vadd.f32 0.0, %v4629
        %v4631 = vpop.f32.mrb[0].mxu0
        %v4632 = vadd.f32 0.0, %v4631
        %v4633 = vand.u32 %v4456, 4294901760
        %v4634 = vsub.f32 %v4456, %v4633
        %v4635 = vand.u32 %v4634, 4294901760
        %v4636 = vsub.f32 %v4634, %v4635
        %v4637 = vand.u32 %v4636, 4294901760
        %4638 = vmatprep.mubr.f32.mxu0 %v4637
        %v4639 = vand.u32 %v4455, 4294901760
        %v4640 = vsub.f32 %v4455, %v4639
        %v4641 = vand.u32 %v4640, 4294901760
        %v4642 = vsub.f32 %v4640, %v4641
        %v4643 = vand.u32 %v4642, 4294901760
        %4644 = vmatmul.mubr.f32.gmra.mrb[0].mxu0 %v4643
        %v4645 = vpop.f32.mrb[0].mxu0
        %v4646 = vadd.f32 0.0, %v4645
        %v4647 = vpop.f32.mrb[0].mxu0
        %v4648 = vadd.f32 0.0, %v4647
        %v4649 = vand.u32 %v4462, 4294901760
        %v4650 = vsub.f32 %v4462, %v4649
        %v4651 = vand.u32 %v4650, 4294901760
        %v4652 = vsub.f32 %v4650, %v4651
        %v4653 = vand.u32 %v4652, 4294901760
        %4654 = vmatprep.mubr.f32.mxu0 %v4653
        %v4655 = vand.u32 %v4461, 4294901760
        %v4656 = vsub.f32 %v4461, %v4655
        %v4657 = vand.u32 %v4656, 4294901760
        %v4658 = vsub.f32 %v4656, %v4657
        %v4659 = vand.u32 %v4658, 4294901760
        %4660 = vmatmul.mubr.f32.gmra.mrb[0].mxu0 %v4659
        %v4661 = vpop.f32.mrb[0].mxu0
        %v4662 = vadd.f32 0.0, %v4661
        %v4663 = vpop.f32.mrb[0].mxu0
        %v4664 = vadd.f32 0.0, %v4663
        %v4665 = vand.u32 %v4468, 4294901760
        %v4666 = vsub.f32 %v4468, %v4665
        %v4667 = vand.u32 %v4666, 4294901760
        %v4668 = vsub.f32 %v4666, %v4667
        %v4669 = vand.u32 %v4668, 4294901760
        %4670 = vmatprep.mubr.f32.mxu0 %v4669
        %v4671 = vand.u32 %v4467, 4294901760
        %v4672 = vsub.f32 %v4467, %v4671
        %v4673 = vand.u32 %v4672, 4294901760
        %v4674 = vsub.f32 %v4672, %v4673
        %v4675 = vand.u32 %v4674, 4294901760
        %4676 = vmatmul.mubr.f32.gmra.mrb[0].mxu0 %v4675
        %v4677 = vpop.f32.mrb[0].mxu0
        %v4678 = vadd.f32 0.0, %v4677
        %v4679 = vpop.f32.mrb[0].mxu0
        %v4680 = vadd.f32 0.0, %v4679
        %4681 = vdwg.mxu0
        %v4682 = vand.u32 %v1168, 4294901760
        %v4683 = vsub.f32 %v1168, %v4682
        %v4684 = vand.u32 %v4683, 4294901760
        %v4685 = vsub.f32 %v4683, %v4684
        %v4686 = vand.u32 %v4685, 4294901760
        %4687 = vmatprep.subr.mxu0 %v4686
        %v4688 = vand.u32 %v1167, 4294901760
        %v4689 = vsub.f32 %v1167, %v4688
        %v4690 = vand.u32 %v4689, 4294901760
        %v4691 = vsub.f32 %v4689, %v4690
        %v4692 = vand.u32 %v4691, 4294901760
        %4693 = vmatpush1.msra.mxu0 %v4692
        %v4694 = vand.u32 %v1170, 4294901760
        %v4695 = vsub.f32 %v1170, %v4694
        %v4696 = vand.u32 %v4695, 4294901760
        %v4697 = vsub.f32 %v4695, %v4696
        %v4698 = vand.u32 %v4697, 4294901760
        %4699 = vmatprep.subr.mxu0 %v4698
        %v4700 = vand.u32 %v1169, 4294901760
        %v4701 = vsub.f32 %v1169, %v4700
        %v4702 = vand.u32 %v4701, 4294901760
        %v4703 = vsub.f32 %v4701, %v4702
        %v4704 = vand.u32 %v4703, 4294901760
        %4705 = vmatpush1.msra.mxu0 %v4704
        %v4706 = vand.u32 %v1172, 4294901760
        %v4707 = vsub.f32 %v1172, %v4706
        %v4708 = vand.u32 %v4707, 4294901760
        %v4709 = vsub.f32 %v4707, %v4708
        %v4710 = vand.u32 %v4709, 4294901760
        %4711 = vmatprep.subr.mxu0 %v4710
        %v4712 = vand.u32 %v1171, 4294901760
        %v4713 = vsub.f32 %v1171, %v4712
        %v4714 = vand.u32 %v4713, 4294901760
        %v4715 = vsub.f32 %v4713, %v4714
        %v4716 = vand.u32 %v4715, 4294901760
        %4717 = vmatpush1.msra.mxu0 %v4716
        %v4718 = vand.u32 %v1174, 4294901760
        %v4719 = vsub.f32 %v1174, %v4718
        %v4720 = vand.u32 %v4719, 4294901760
        %v4721 = vsub.f32 %v4719, %v4720
        %v4722 = vand.u32 %v4721, 4294901760
        %4723 = vmatprep.subr.mxu0 %v4722
        %v4724 = vand.u32 %v1173, 4294901760
        %v4725 = vsub.f32 %v1173, %v4724
        %v4726 = vand.u32 %v4725, 4294901760
        %v4727 = vsub.f32 %v4725, %v4726
        %v4728 = vand.u32 %v4727, 4294901760
        %4729 = vmatpush1.msra.mxu0 %v4728
        %v4730 = vand.u32 %v1176, 4294901760
        %v4731 = vsub.f32 %v1176, %v4730
        %v4732 = vand.u32 %v4731, 4294901760
        %v4733 = vsub.f32 %v4731, %v4732
        %v4734 = vand.u32 %v4733, 4294901760
        %4735 = vmatprep.subr.mxu0 %v4734
        %v4736 = vand.u32 %v1175, 4294901760
        %v4737 = vsub.f32 %v1175, %v4736
        %v4738 = vand.u32 %v4737, 4294901760
        %v4739 = vsub.f32 %v4737, %v4738
        %v4740 = vand.u32 %v4739, 4294901760
        %4741 = vmatpush1.msra.mxu0 %v4740
        %v4742 = vand.u32 %v1178, 4294901760
        %v4743 = vsub.f32 %v1178, %v4742
        %v4744 = vand.u32 %v4743, 4294901760
        %v4745 = vsub.f32 %v4743, %v4744
        %v4746 = vand.u32 %v4745, 4294901760
        %4747 = vmatprep.subr.mxu0 %v4746
        %v4748 = vand.u32 %v1177, 4294901760
        %v4749 = vsub.f32 %v1177, %v4748
        %v4750 = vand.u32 %v4749, 4294901760
        %v4751 = vsub.f32 %v4749, %v4750
        %v4752 = vand.u32 %v4751, 4294901760
        %4753 = vmatpush1.msra.mxu0 %v4752
        %v4754 = vand.u32 %v1180, 4294901760
        %v4755 = vsub.f32 %v1180, %v4754
        %v4756 = vand.u32 %v4755, 4294901760
        %v4757 = vsub.f32 %v4755, %v4756
        %v4758 = vand.u32 %v4757, 4294901760
        %4759 = vmatprep.subr.mxu0 %v4758
        %v4760 = vand.u32 %v1179, 4294901760
        %v4761 = vsub.f32 %v1179, %v4760
        %v4762 = vand.u32 %v4761, 4294901760
        %v4763 = vsub.f32 %v4761, %v4762
        %v4764 = vand.u32 %v4763, 4294901760
        %4765 = vmatpush1.msra.mxu0 %v4764
        %v4766 = vand.u32 %v1182, 4294901760
        %v4767 = vsub.f32 %v1182, %v4766
        %v4768 = vand.u32 %v4767, 4294901760
        %v4769 = vsub.f32 %v4767, %v4768
        %v4770 = vand.u32 %v4769, 4294901760
        %4771 = vmatprep.subr.mxu0 %v4770
        %v4772 = vand.u32 %v1181, 4294901760
        %v4773 = vsub.f32 %v1181, %v4772
        %v4774 = vand.u32 %v4773, 4294901760
        %v4775 = vsub.f32 %v4773, %v4774
        %v4776 = vand.u32 %v4775, 4294901760
        %4777 = vmatpush1.msra.mxu0 %v4776
        %v4778 = vand.u32 %v1184, 4294901760
        %v4779 = vsub.f32 %v1184, %v4778
        %v4780 = vand.u32 %v4779, 4294901760
        %v4781 = vsub.f32 %v4779, %v4780
        %v4782 = vand.u32 %v4781, 4294901760
        %4783 = vmatprep.subr.mxu0 %v4782
        %v4784 = vand.u32 %v1183, 4294901760
        %v4785 = vsub.f32 %v1183, %v4784
        %v4786 = vand.u32 %v4785, 4294901760
        %v4787 = vsub.f32 %v4785, %v4786
        %v4788 = vand.u32 %v4787, 4294901760
        %4789 = vmatpush1.msra.mxu0 %v4788
        %v4790 = vand.u32 %v1186, 4294901760
        %v4791 = vsub.f32 %v1186, %v4790
        %v4792 = vand.u32 %v4791, 4294901760
        %v4793 = vsub.f32 %v4791, %v4792
        %v4794 = vand.u32 %v4793, 4294901760
        %4795 = vmatprep.subr.mxu0 %v4794
        %v4796 = vand.u32 %v1185, 4294901760
        %v4797 = vsub.f32 %v1185, %v4796
        %v4798 = vand.u32 %v4797, 4294901760
        %v4799 = vsub.f32 %v4797, %v4798
        %v4800 = vand.u32 %v4799, 4294901760
        %4801 = vmatpush1.msra.mxu0 %v4800
        %v4802 = vand.u32 %v1188, 4294901760
        %v4803 = vsub.f32 %v1188, %v4802
        %v4804 = vand.u32 %v4803, 4294901760
        %v4805 = vsub.f32 %v4803, %v4804
        %v4806 = vand.u32 %v4805, 4294901760
        %4807 = vmatprep.subr.mxu0 %v4806
        %v4808 = vand.u32 %v1187, 4294901760
        %v4809 = vsub.f32 %v1187, %v4808
        %v4810 = vand.u32 %v4809, 4294901760
        %v4811 = vsub.f32 %v4809, %v4810
        %v4812 = vand.u32 %v4811, 4294901760
        %4813 = vmatpush1.msra.mxu0 %v4812
        %v4814 = vand.u32 %v1190, 4294901760
        %v4815 = vsub.f32 %v1190, %v4814
        %v4816 = vand.u32 %v4815, 4294901760
        %v4817 = vsub.f32 %v4815, %v4816
        %v4818 = vand.u32 %v4817, 4294901760
        %4819 = vmatprep.subr.mxu0 %v4818
        %v4820 = vand.u32 %v1189, 4294901760
        %v4821 = vsub.f32 %v1189, %v4820
        %v4822 = vand.u32 %v4821, 4294901760
        %v4823 = vsub.f32 %v4821, %v4822
        %v4824 = vand.u32 %v4823, 4294901760
        %4825 = vmatpush1.msra.mxu0 %v4824
        %v4826 = vand.u32 %v1192, 4294901760
        %v4827 = vsub.f32 %v1192, %v4826
        %v4828 = vand.u32 %v4827, 4294901760
        %v4829 = vsub.f32 %v4827, %v4828
        %v4830 = vand.u32 %v4829, 4294901760
        %4831 = vmatprep.subr.mxu0 %v4830
        %v4832 = vand.u32 %v1191, 4294901760
        %v4833 = vsub.f32 %v1191, %v4832
        %v4834 = vand.u32 %v4833, 4294901760
        %v4835 = vsub.f32 %v4833, %v4834
        %v4836 = vand.u32 %v4835, 4294901760
        %4837 = vmatpush1.msra.mxu0 %v4836
        %v4838 = vand.u32 %v1194, 4294901760
        %v4839 = vsub.f32 %v1194, %v4838
        %v4840 = vand.u32 %v4839, 4294901760
        %v4841 = vsub.f32 %v4839, %v4840
        %v4842 = vand.u32 %v4841, 4294901760
        %4843 = vmatprep.subr.mxu0 %v4842
        %v4844 = vand.u32 %v1193, 4294901760
        %v4845 = vsub.f32 %v1193, %v4844
        %v4846 = vand.u32 %v4845, 4294901760
        %v4847 = vsub.f32 %v4845, %v4846
        %v4848 = vand.u32 %v4847, 4294901760
        %4849 = vmatpush1.msra.mxu0 %v4848
        %v4850 = vand.u32 %v1196, 4294901760
        %v4851 = vsub.f32 %v1196, %v4850
        %v4852 = vand.u32 %v4851, 4294901760
        %v4853 = vsub.f32 %v4851, %v4852
        %v4854 = vand.u32 %v4853, 4294901760
        %4855 = vmatprep.subr.mxu0 %v4854
        %v4856 = vand.u32 %v1195, 4294901760
        %v4857 = vsub.f32 %v1195, %v4856
        %v4858 = vand.u32 %v4857, 4294901760
        %v4859 = vsub.f32 %v4857, %v4858
        %v4860 = vand.u32 %v4859, 4294901760
        %4861 = vmatpush1.msra.mxu0 %v4860
        %v4862 = vand.u32 %v1198, 4294901760
        %v4863 = vsub.f32 %v1198, %v4862
        %v4864 = vand.u32 %v4863, 4294901760
        %v4865 = vsub.f32 %v4863, %v4864
        %v4866 = vand.u32 %v4865, 4294901760
        %4867 = vmatprep.subr.mxu0 %v4866
        %v4868 = vand.u32 %v1197, 4294901760
        %v4869 = vsub.f32 %v1197, %v4868
        %v4870 = vand.u32 %v4869, 4294901760
        %v4871 = vsub.f32 %v4869, %v4870
        %v4872 = vand.u32 %v4871, 4294901760
        %4873 = vmatpush1.msra.mxu0 %v4872
        %v4874 = vand.u32 %v1200, 4294901760
        %v4875 = vsub.f32 %v1200, %v4874
        %v4876 = vand.u32 %v4875, 4294901760
        %v4877 = vsub.f32 %v4875, %v4876
        %v4878 = vand.u32 %v4877, 4294901760
        %4879 = vmatprep.subr.mxu0 %v4878
        %v4880 = vand.u32 %v1199, 4294901760
        %v4881 = vsub.f32 %v1199, %v4880
        %v4882 = vand.u32 %v4881, 4294901760
        %v4883 = vsub.f32 %v4881, %v4882
        %v4884 = vand.u32 %v4883, 4294901760
        %4885 = vmatpush1.msra.mxu0 %v4884
        %v4886 = vand.u32 %v1202, 4294901760
        %v4887 = vsub.f32 %v1202, %v4886
        %v4888 = vand.u32 %v4887, 4294901760
        %v4889 = vsub.f32 %v4887, %v4888
        %v4890 = vand.u32 %v4889, 4294901760
        %4891 = vmatprep.subr.mxu0 %v4890
        %v4892 = vand.u32 %v1201, 4294901760
        %v4893 = vsub.f32 %v1201, %v4892
        %v4894 = vand.u32 %v4893, 4294901760
        %v4895 = vsub.f32 %v4893, %v4894
        %v4896 = vand.u32 %v4895, 4294901760
        %4897 = vmatpush1.msra.mxu0 %v4896
        %v4898 = vand.u32 %v1204, 4294901760
        %v4899 = vsub.f32 %v1204, %v4898
        %v4900 = vand.u32 %v4899, 4294901760
        %v4901 = vsub.f32 %v4899, %v4900
        %v4902 = vand.u32 %v4901, 4294901760
        %4903 = vmatprep.subr.mxu0 %v4902
        %v4904 = vand.u32 %v1203, 4294901760
        %v4905 = vsub.f32 %v1203, %v4904
        %v4906 = vand.u32 %v4905, 4294901760
        %v4907 = vsub.f32 %v4905, %v4906
        %v4908 = vand.u32 %v4907, 4294901760
        %4909 = vmatpush1.msra.mxu0 %v4908
        %v4910 = vand.u32 %v1206, 4294901760
        %v4911 = vsub.f32 %v1206, %v4910
        %v4912 = vand.u32 %v4911, 4294901760
        %v4913 = vsub.f32 %v4911, %v4912
        %v4914 = vand.u32 %v4913, 4294901760
        %4915 = vmatprep.subr.mxu0 %v4914
        %v4916 = vand.u32 %v1205, 4294901760
        %v4917 = vsub.f32 %v1205, %v4916
        %v4918 = vand.u32 %v4917, 4294901760
        %v4919 = vsub.f32 %v4917, %v4918
        %v4920 = vand.u32 %v4919, 4294901760
        %4921 = vmatpush1.msra.mxu0 %v4920
        %v4922 = vand.u32 %v1208, 4294901760
        %v4923 = vsub.f32 %v1208, %v4922
        %v4924 = vand.u32 %v4923, 4294901760
        %v4925 = vsub.f32 %v4923, %v4924
        %v4926 = vand.u32 %v4925, 4294901760
        %4927 = vmatprep.subr.mxu0 %v4926
        %v4928 = vand.u32 %v1207, 4294901760
        %v4929 = vsub.f32 %v1207, %v4928
        %v4930 = vand.u32 %v4929, 4294901760
        %v4931 = vsub.f32 %v4929, %v4930
        %v4932 = vand.u32 %v4931, 4294901760
        %4933 = vmatpush1.msra.mxu0 %v4932
        %v4934 = vand.u32 %v1210, 4294901760
        %v4935 = vsub.f32 %v1210, %v4934
        %v4936 = vand.u32 %v4935, 4294901760
        %v4937 = vsub.f32 %v4935, %v4936
        %v4938 = vand.u32 %v4937, 4294901760
        %4939 = vmatprep.subr.mxu0 %v4938
        %v4940 = vand.u32 %v1209, 4294901760
        %v4941 = vsub.f32 %v1209, %v4940
        %v4942 = vand.u32 %v4941, 4294901760
        %v4943 = vsub.f32 %v4941, %v4942
        %v4944 = vand.u32 %v4943, 4294901760
        %4945 = vmatpush1.msra.mxu0 %v4944
        %v4946 = vand.u32 %v1212, 4294901760
        %v4947 = vsub.f32 %v1212, %v4946
        %v4948 = vand.u32 %v4947, 4294901760
        %v4949 = vsub.f32 %v4947, %v4948
        %v4950 = vand.u32 %v4949, 4294901760
        %4951 = vmatprep.subr.mxu0 %v4950
        %v4952 = vand.u32 %v1211, 4294901760
        %v4953 = vsub.f32 %v1211, %v4952
        %v4954 = vand.u32 %v4953, 4294901760
        %v4955 = vsub.f32 %v4953, %v4954
        %v4956 = vand.u32 %v4955, 4294901760
        %4957 = vmatpush1.msra.mxu0 %v4956
        %v4958 = vand.u32 %v1214, 4294901760
        %v4959 = vsub.f32 %v1214, %v4958
        %v4960 = vand.u32 %v4959, 4294901760
        %v4961 = vsub.f32 %v4959, %v4960
        %v4962 = vand.u32 %v4961, 4294901760
        %4963 = vmatprep.subr.mxu0 %v4962
        %v4964 = vand.u32 %v1213, 4294901760
        %v4965 = vsub.f32 %v1213, %v4964
        %v4966 = vand.u32 %v4965, 4294901760
        %v4967 = vsub.f32 %v4965, %v4966
        %v4968 = vand.u32 %v4967, 4294901760
        %4969 = vmatpush1.msra.mxu0 %v4968
        %v4970 = vand.u32 %v1216, 4294901760
        %v4971 = vsub.f32 %v1216, %v4970
        %v4972 = vand.u32 %v4971, 4294901760
        %v4973 = vsub.f32 %v4971, %v4972
        %v4974 = vand.u32 %v4973, 4294901760
        %4975 = vmatprep.subr.mxu0 %v4974
        %v4976 = vand.u32 %v1215, 4294901760
        %v4977 = vsub.f32 %v1215, %v4976
        %v4978 = vand.u32 %v4977, 4294901760
        %v4979 = vsub.f32 %v4977, %v4978
        %v4980 = vand.u32 %v4979, 4294901760
        %4981 = vmatpush1.msra.mxu0 %v4980
        %v4982 = vand.u32 %v1218, 4294901760
        %v4983 = vsub.f32 %v1218, %v4982
        %v4984 = vand.u32 %v4983, 4294901760
        %v4985 = vsub.f32 %v4983, %v4984
        %v4986 = vand.u32 %v4985, 4294901760
        %4987 = vmatprep.subr.mxu0 %v4986
        %v4988 = vand.u32 %v1217, 4294901760
        %v4989 = vsub.f32 %v1217, %v4988
        %v4990 = vand.u32 %v4989, 4294901760
        %v4991 = vsub.f32 %v4989, %v4990
        %v4992 = vand.u32 %v4991, 4294901760
        %4993 = vmatpush1.msra.mxu0 %v4992
        %v4994 = vand.u32 %v1220, 4294901760
        %v4995 = vsub.f32 %v1220, %v4994
        %v4996 = vand.u32 %v4995, 4294901760
        %v4997 = vsub.f32 %v4995, %v4996
        %v4998 = vand.u32 %v4997, 4294901760
        %4999 = vmatprep.subr.mxu0 %v4998
        %v5000 = vand.u32 %v1219, 4294901760
        %v5001 = vsub.f32 %v1219, %v5000
        %v5002 = vand.u32 %v5001, 4294901760
        %v5003 = vsub.f32 %v5001, %v5002
        %v5004 = vand.u32 %v5003, 4294901760
        %5005 = vmatpush1.msra.mxu0 %v5004
        %v5006 = vand.u32 %v1222, 4294901760
        %v5007 = vsub.f32 %v1222, %v5006
        %v5008 = vand.u32 %v5007, 4294901760
        %v5009 = vsub.f32 %v5007, %v5008
        %v5010 = vand.u32 %v5009, 4294901760
        %5011 = vmatprep.subr.mxu0 %v5010
        %v5012 = vand.u32 %v1221, 4294901760
        %v5013 = vsub.f32 %v1221, %v5012
        %v5014 = vand.u32 %v5013, 4294901760
        %v5015 = vsub.f32 %v5013, %v5014
        %v5016 = vand.u32 %v5015, 4294901760
        %5017 = vmatpush1.msra.mxu0 %v5016
        %v5018 = vand.u32 %v1224, 4294901760
        %v5019 = vsub.f32 %v1224, %v5018
        %v5020 = vand.u32 %v5019, 4294901760
        %v5021 = vsub.f32 %v5019, %v5020
        %v5022 = vand.u32 %v5021, 4294901760
        %5023 = vmatprep.subr.mxu0 %v5022
        %v5024 = vand.u32 %v1223, 4294901760
        %v5025 = vsub.f32 %v1223, %v5024
        %v5026 = vand.u32 %v5025, 4294901760
        %v5027 = vsub.f32 %v5025, %v5026
        %v5028 = vand.u32 %v5027, 4294901760
        %5029 = vmatpush1.msra.mxu0 %v5028
        %v5030 = vand.u32 %v1226, 4294901760
        %v5031 = vsub.f32 %v1226, %v5030
        %v5032 = vand.u32 %v5031, 4294901760
        %v5033 = vsub.f32 %v5031, %v5032
        %v5034 = vand.u32 %v5033, 4294901760
        %5035 = vmatprep.subr.mxu0 %v5034
        %v5036 = vand.u32 %v1225, 4294901760
        %v5037 = vsub.f32 %v1225, %v5036
        %v5038 = vand.u32 %v5037, 4294901760
        %v5039 = vsub.f32 %v5037, %v5038
        %v5040 = vand.u32 %v5039, 4294901760
        %5041 = vmatpush1.msra.mxu0 %v5040
        %v5042 = vand.u32 %v1228, 4294901760
        %v5043 = vsub.f32 %v1228, %v5042
        %v5044 = vand.u32 %v5043, 4294901760
        %v5045 = vsub.f32 %v5043, %v5044
        %v5046 = vand.u32 %v5045, 4294901760
        %5047 = vmatprep.subr.mxu0 %v5046
        %v5048 = vand.u32 %v1227, 4294901760
        %v5049 = vsub.f32 %v1227, %v5048
        %v5050 = vand.u32 %v5049, 4294901760
        %v5051 = vsub.f32 %v5049, %v5050
        %v5052 = vand.u32 %v5051, 4294901760
        %5053 = vmatpush1.msra.mxu0 %v5052
        %v5054 = vand.u32 %v1230, 4294901760
        %v5055 = vsub.f32 %v1230, %v5054
        %v5056 = vand.u32 %v5055, 4294901760
        %v5057 = vsub.f32 %v5055, %v5056
        %v5058 = vand.u32 %v5057, 4294901760
        %5059 = vmatprep.subr.mxu0 %v5058
        %v5060 = vand.u32 %v1229, 4294901760
        %v5061 = vsub.f32 %v1229, %v5060
        %v5062 = vand.u32 %v5061, 4294901760
        %v5063 = vsub.f32 %v5061, %v5062
        %v5064 = vand.u32 %v5063, 4294901760
        %5065 = vmatpush1.msra.mxu0 %v5064
        %v5066 = vand.u32 %v4444, 4294901760
        %5067 = vmatprep.mubr.f32.mxu0 %v5066
        %v5068 = vand.u32 %v4443, 4294901760
        %5069 = vmatmul.mubr.f32.gmra.mrb[0].mxu0 %v5068
        %v5070 = vpop.f32.mrb[0].mxu0
        %v5071 = vadd.f32 %v4614, %v5070
        %v5072 = vpop.f32.mrb[0].mxu0
        %v5073 = vadd.f32 %v4616, %v5072
        %v5074 = vand.u32 %v4450, 4294901760
        %5075 = vmatprep.mubr.f32.mxu0 %v5074
        %v5076 = vand.u32 %v4449, 4294901760
        %5077 = vmatmul.mubr.f32.gmra.mrb[0].mxu0 %v5076
        %v5078 = vpop.f32.mrb[0].mxu0
        %v5079 = vadd.f32 %v4630, %v5078
        %v5080 = vpop.f32.mrb[0].mxu0
        %v5081 = vadd.f32 %v4632, %v5080
        %v5082 = vand.u32 %v4456, 4294901760
        %5083 = vmatprep.mubr.f32.mxu0 %v5082
        %v5084 = vand.u32 %v4455, 4294901760
        %5085 = vmatmul.mubr.f32.gmra.mrb[0].mxu0 %v5084
        %v5086 = vpop.f32.mrb[0].mxu0
        %v5087 = vadd.f32 %v4646, %v5086
        %v5088 = vpop.f32.mrb[0].mxu0
        %v5089 = vadd.f32 %v4648, %v5088
        %v5090 = vand.u32 %v4462, 4294901760
        %5091 = vmatprep.mubr.f32.mxu0 %v5090
        %v5092 = vand.u32 %v4461, 4294901760
        %5093 = vmatmul.mubr.f32.gmra.mrb[0].mxu0 %v5092
        %v5094 = vpop.f32.mrb[0].mxu0
        %v5095 = vadd.f32 %v4662, %v5094
        %v5096 = vpop.f32.mrb[0].mxu0
        %v5097 = vadd.f32 %v4664, %v5096
        %v5098 = vand.u32 %v4468, 4294901760
        %5099 = vmatprep.mubr.f32.mxu0 %v5098
        %v5100 = vand.u32 %v4467, 4294901760
        %5101 = vmatmul.mubr.f32.gmra.mrb[0].mxu0 %v5100
        %v5102 = vpop.f32.mrb[0].mxu0
        %v5103 = vadd.f32 %v4678, %v5102
        %v5104 = vpop.f32.mrb[0].mxu0
        %v5105 = vadd.f32 %v4680, %v5104
        %5106 = vdwg.mxu0
        %v5107 = vand.u32 %v1168, 4294901760
        %v5108 = vsub.f32 %v1168, %v5107
        %5109 = vmatprep.subr.mxu0 %v5108
        %v5110 = vand.u32 %v1167, 4294901760
        %v5111 = vsub.f32 %v1167, %v5110
        %5112 = vmatpush1.msra.mxu0 %v5111
        %v5113 = vand.u32 %v1170, 4294901760
        %v5114 = vsub.f32 %v1170, %v5113
        %5115 = vmatprep.subr.mxu0 %v5114
        %v5116 = vand.u32 %v1169, 4294901760
        %v5117 = vsub.f32 %v1169, %v5116
        %5118 = vmatpush1.msra.mxu0 %v5117
        %v5119 = vand.u32 %v1172, 4294901760
        %v5120 = vsub.f32 %v1172, %v5119
        %5121 = vmatprep.subr.mxu0 %v5120
        %v5122 = vand.u32 %v1171, 4294901760
        %v5123 = vsub.f32 %v1171, %v5122
        %5124 = vmatpush1.msra.mxu0 %v5123
        %v5125 = vand.u32 %v1174, 4294901760
        %v5126 = vsub.f32 %v1174, %v5125
        %5127 = vmatprep.subr.mxu0 %v5126
        %v5128 = vand.u32 %v1173, 4294901760
        %v5129 = vsub.f32 %v1173, %v5128
        %5130 = vmatpush1.msra.mxu0 %v5129
        %v5131 = vand.u32 %v1176, 4294901760
        %v5132 = vsub.f32 %v1176, %v5131
        %5133 = vmatprep.subr.mxu0 %v5132
        %v5134 = vand.u32 %v1175, 4294901760
        %v5135 = vsub.f32 %v1175, %v5134
        %5136 = vmatpush1.msra.mxu0 %v5135
        %v5137 = vand.u32 %v1178, 4294901760
        %v5138 = vsub.f32 %v1178, %v5137
        %5139 = vmatprep.subr.mxu0 %v5138
        %v5140 = vand.u32 %v1177, 4294901760
        %v5141 = vsub.f32 %v1177, %v5140
        %5142 = vmatpush1.msra.mxu0 %v5141
        %v5143 = vand.u32 %v1180, 4294901760
        %v5144 = vsub.f32 %v1180, %v5143
        %5145 = vmatprep.subr.mxu0 %v5144
        %v5146 = vand.u32 %v1179, 4294901760
        %v5147 = vsub.f32 %v1179, %v5146
        %5148 = vmatpush1.msra.mxu0 %v5147
        %v5149 = vand.u32 %v1182, 4294901760
        %v5150 = vsub.f32 %v1182, %v5149
        %5151 = vmatprep.subr.mxu0 %v5150
        %v5152 = vand.u32 %v1181, 4294901760
        %v5153 = vsub.f32 %v1181, %v5152
        %5154 = vmatpush1.msra.mxu0 %v5153
        %v5155 = vand.u32 %v1184, 4294901760
        %v5156 = vsub.f32 %v1184, %v5155
        %5157 = vmatprep.subr.mxu0 %v5156
        %v5158 = vand.u32 %v1183, 4294901760
        %v5159 = vsub.f32 %v1183, %v5158
        %5160 = vmatpush1.msra.mxu0 %v5159
        %v5161 = vand.u32 %v1186, 4294901760
        %v5162 = vsub.f32 %v1186, %v5161
        %5163 = vmatprep.subr.mxu0 %v5162
        %v5164 = vand.u32 %v1185, 4294901760
        %v5165 = vsub.f32 %v1185, %v5164
        %5166 = vmatpush1.msra.mxu0 %v5165
        %v5167 = vand.u32 %v1188, 4294901760
        %v5168 = vsub.f32 %v1188, %v5167
        %5169 = vmatprep.subr.mxu0 %v5168
        %v5170 = vand.u32 %v1187, 4294901760
        %v5171 = vsub.f32 %v1187, %v5170
        %5172 = vmatpush1.msra.mxu0 %v5171
        %v5173 = vand.u32 %v1190, 4294901760
        %v5174 = vsub.f32 %v1190, %v5173
        %5175 = vmatprep.subr.mxu0 %v5174
        %v5176 = vand.u32 %v1189, 4294901760
        %v5177 = vsub.f32 %v1189, %v5176
        %5178 = vmatpush1.msra.mxu0 %v5177
        %v5179 = vand.u32 %v1192, 4294901760
        %v5180 = vsub.f32 %v1192, %v5179
        %5181 = vmatprep.subr.mxu0 %v5180
        %v5182 = vand.u32 %v1191, 4294901760
        %v5183 = vsub.f32 %v1191, %v5182
        %5184 = vmatpush1.msra.mxu0 %v5183
        %v5185 = vand.u32 %v1194, 4294901760
        %v5186 = vsub.f32 %v1194, %v5185
        %5187 = vmatprep.subr.mxu0 %v5186
        %v5188 = vand.u32 %v1193, 4294901760
        %v5189 = vsub.f32 %v1193, %v5188
        %5190 = vmatpush1.msra.mxu0 %v5189
        %v5191 = vand.u32 %v1196, 4294901760
        %v5192 = vsub.f32 %v1196, %v5191
        %5193 = vmatprep.subr.mxu0 %v5192
        %v5194 = vand.u32 %v1195, 4294901760
        %v5195 = vsub.f32 %v1195, %v5194
        %5196 = vmatpush1.msra.mxu0 %v5195
        %v5197 = vand.u32 %v1198, 4294901760
        %v5198 = vsub.f32 %v1198, %v5197
        %5199 = vmatprep.subr.mxu0 %v5198
        %v5200 = vand.u32 %v1197, 4294901760
        %v5201 = vsub.f32 %v1197, %v5200
        %5202 = vmatpush1.msra.mxu0 %v5201
        %v5203 = vand.u32 %v1200, 4294901760
        %v5204 = vsub.f32 %v1200, %v5203
        %5205 = vmatprep.subr.mxu0 %v5204
        %v5206 = vand.u32 %v1199, 4294901760
        %v5207 = vsub.f32 %v1199, %v5206
        %5208 = vmatpush1.msra.mxu0 %v5207
        %v5209 = vand.u32 %v1202, 4294901760
        %v5210 = vsub.f32 %v1202, %v5209
        %5211 = vmatprep.subr.mxu0 %v5210
        %v5212 = vand.u32 %v1201, 4294901760
        %v5213 = vsub.f32 %v1201, %v5212
        %5214 = vmatpush1.msra.mxu0 %v5213
        %v5215 = vand.u32 %v1204, 4294901760
        %v5216 = vsub.f32 %v1204, %v5215
        %5217 = vmatprep.subr.mxu0 %v5216
        %v5218 = vand.u32 %v1203, 4294901760
        %v5219 = vsub.f32 %v1203, %v5218
        %5220 = vmatpush1.msra.mxu0 %v5219
        %v5221 = vand.u32 %v1206, 4294901760
        %v5222 = vsub.f32 %v1206, %v5221
        %5223 = vmatprep.subr.mxu0 %v5222
        %v5224 = vand.u32 %v1205, 4294901760
        %v5225 = vsub.f32 %v1205, %v5224
        %5226 = vmatpush1.msra.mxu0 %v5225
        %v5227 = vand.u32 %v1208, 4294901760
        %v5228 = vsub.f32 %v1208, %v5227
        %5229 = vmatprep.subr.mxu0 %v5228
        %v5230 = vand.u32 %v1207, 4294901760
        %v5231 = vsub.f32 %v1207, %v5230
        %5232 = vmatpush1.msra.mxu0 %v5231
        %v5233 = vand.u32 %v1210, 4294901760
        %v5234 = vsub.f32 %v1210, %v5233
        %5235 = vmatprep.subr.mxu0 %v5234
        %v5236 = vand.u32 %v1209, 4294901760
        %v5237 = vsub.f32 %v1209, %v5236
        %5238 = vmatpush1.msra.mxu0 %v5237
        %v5239 = vand.u32 %v1212, 4294901760
        %v5240 = vsub.f32 %v1212, %v5239
        %5241 = vmatprep.subr.mxu0 %v5240
        %v5242 = vand.u32 %v1211, 4294901760
        %v5243 = vsub.f32 %v1211, %v5242
        %5244 = vmatpush1.msra.mxu0 %v5243
        %v5245 = vand.u32 %v1214, 4294901760
        %v5246 = vsub.f32 %v1214, %v5245
        %5247 = vmatprep.subr.mxu0 %v5246
        %v5248 = vand.u32 %v1213, 4294901760
        %v5249 = vsub.f32 %v1213, %v5248
        %5250 = vmatpush1.msra.mxu0 %v5249
        %v5251 = vand.u32 %v1216, 4294901760
        %v5252 = vsub.f32 %v1216, %v5251
        %5253 = vmatprep.subr.mxu0 %v5252
        %v5254 = vand.u32 %v1215, 4294901760
        %v5255 = vsub.f32 %v1215, %v5254
        %5256 = vmatpush1.msra.mxu0 %v5255
        %v5257 = vand.u32 %v1218, 4294901760
        %v5258 = vsub.f32 %v1218, %v5257
        %5259 = vmatprep.subr.mxu0 %v5258
        %v5260 = vand.u32 %v1217, 4294901760
        %v5261 = vsub.f32 %v1217, %v5260
        %5262 = vmatpush1.msra.mxu0 %v5261
        %v5263 = vand.u32 %v1220, 4294901760
        %v5264 = vsub.f32 %v1220, %v5263
        %5265 = vmatprep.subr.mxu0 %v5264
        %v5266 = vand.u32 %v1219, 4294901760
        %v5267 = vsub.f32 %v1219, %v5266
        %5268 = vmatpush1.msra.mxu0 %v5267
        %v5269 = vand.u32 %v1222, 4294901760
        %v5270 = vsub.f32 %v1222, %v5269
        %5271 = vmatprep.subr.mxu0 %v5270
        %v5272 = vand.u32 %v1221, 4294901760
        %v5273 = vsub.f32 %v1221, %v5272
        %5274 = vmatpush1.msra.mxu0 %v5273
        %v5275 = vand.u32 %v1224, 4294901760
        %v5276 = vsub.f32 %v1224, %v5275
        %5277 = vmatprep.subr.mxu0 %v5276
        %v5278 = vand.u32 %v1223, 4294901760
        %v5279 = vsub.f32 %v1223, %v5278
        %5280 = vmatpush1.msra.mxu0 %v5279
        %v5281 = vand.u32 %v1226, 4294901760
        %v5282 = vsub.f32 %v1226, %v5281
        %5283 = vmatprep.subr.mxu0 %v5282
        %v5284 = vand.u32 %v1225, 4294901760
        %v5285 = vsub.f32 %v1225, %v5284
        %5286 = vmatpush1.msra.mxu0 %v5285
        %v5287 = vand.u32 %v1228, 4294901760
        %v5288 = vsub.f32 %v1228, %v5287
        %5289 = vmatprep.subr.mxu0 %v5288
        %v5290 = vand.u32 %v1227, 4294901760
        %v5291 = vsub.f32 %v1227, %v5290
        %5292 = vmatpush1.msra.mxu0 %v5291
        %v5293 = vand.u32 %v1230, 4294901760
        %v5294 = vsub.f32 %v1230, %v5293
        %5295 = vmatprep.subr.mxu0 %v5294
        %v5296 = vand.u32 %v1229, 4294901760
        %v5297 = vsub.f32 %v1229, %v5296
        %5298 = vmatpush1.msra.mxu0 %v5297
        %v5299 = vand.u32 %v4444, 4294901760
        %v5300 = vsub.f32 %v4444, %v5299
        %5301 = vmatprep.mubr.f32.mxu0 %v5300
        %v5302 = vand.u32 %v4443, 4294901760
        %v5303 = vsub.f32 %v4443, %v5302
        %5304 = vmatmul.mubr.f32.gmra.mrb[0].mxu0 %v5303
        %v5305 = vpop.f32.mrb[0].mxu0
        %v5306 = vadd.f32 %v5071, %v5305
        %v5307 = vpop.f32.mrb[0].mxu0
        %v5308 = vadd.f32 %v5073, %v5307
        %v5309 = vand.u32 %v4450, 4294901760
        %v5310 = vsub.f32 %v4450, %v5309
        %5311 = vmatprep.mubr.f32.mxu0 %v5310
        %v5312 = vand.u32 %v4449, 4294901760
        %v5313 = vsub.f32 %v4449, %v5312
        %5314 = vmatmul.mubr.f32.gmra.mrb[0].mxu0 %v5313
        %v5315 = vpop.f32.mrb[0].mxu0
        %v5316 = vadd.f32 %v5079, %v5315
        %v5317 = vpop.f32.mrb[0].mxu0
        %v5318 = vadd.f32 %v5081, %v5317
        %v5319 = vand.u32 %v4456, 4294901760
        %v5320 = vsub.f32 %v4456, %v5319
        %5321 = vmatprep.mubr.f32.mxu0 %v5320
        %v5322 = vand.u32 %v4455, 4294901760
        %v5323 = vsub.f32 %v4455, %v5322
        %5324 = vmatmul.mubr.f32.gmra.mrb[0].mxu0 %v5323
        %v5325 = vpop.f32.mrb[0].mxu0
        %v5326 = vadd.f32 %v5087, %v5325
        %v5327 = vpop.f32.mrb[0].mxu0
        %v5328 = vadd.f32 %v5089, %v5327
        %v5329 = vand.u32 %v4462, 4294901760
        %v5330 = vsub.f32 %v4462, %v5329
        %5331 = vmatprep.mubr.f32.mxu0 %v5330
        %v5332 = vand.u32 %v4461, 4294901760
        %v5333 = vsub.f32 %v4461, %v5332
        %5334 = vmatmul.mubr.f32.gmra.mrb[0].mxu0 %v5333
        %v5335 = vpop.f32.mrb[0].mxu0
        %v5336 = vadd.f32 %v5095, %v5335
        %v5337 = vpop.f32.mrb[0].mxu0
        %v5338 = vadd.f32 %v5097, %v5337
        %v5339 = vand.u32 %v4468, 4294901760
        %v5340 = vsub.f32 %v4468, %v5339
        %5341 = vmatprep.mubr.f32.mxu0 %v5340
        %v5342 = vand.u32 %v4467, 4294901760
        %v5343 = vsub.f32 %v4467, %v5342
        %5344 = vmatmul.mubr.f32.gmra.mrb[0].mxu0 %v5343
        %v5345 = vpop.f32.mrb[0].mxu0
        %v5346 = vadd.f32 %v5103, %v5345
        %v5347 = vpop.f32.mrb[0].mxu0
        %v5348 = vadd.f32 %v5105, %v5347
        %5349 = vdwg.mxu0
        %v5350 = vand.u32 %v1168, 4294901760
        %5351 = vmatprep.subr.mxu0 %v5350
        %v5352 = vand.u32 %v1167, 4294901760
        %5353 = vmatpush1.msra.mxu0 %v5352
        %v5354 = vand.u32 %v1170, 4294901760
        %5355 = vmatprep.subr.mxu0 %v5354
        %v5356 = vand.u32 %v1169, 4294901760
        %5357 = vmatpush1.msra.mxu0 %v5356
        %v5358 = vand.u32 %v1172, 4294901760
        %5359 = vmatprep.subr.mxu0 %v5358
        %v5360 = vand.u32 %v1171, 4294901760
        %5361 = vmatpush1.msra.mxu0 %v5360
        %v5362 = vand.u32 %v1174, 4294901760
        %5363 = vmatprep.subr.mxu0 %v5362
        %v5364 = vand.u32 %v1173, 4294901760
        %5365 = vmatpush1.msra.mxu0 %v5364
        %v5366 = vand.u32 %v1176, 4294901760
        %5367 = vmatprep.subr.mxu0 %v5366
        %v5368 = vand.u32 %v1175, 4294901760
        %5369 = vmatpush1.msra.mxu0 %v5368
        %v5370 = vand.u32 %v1178, 4294901760
        %5371 = vmatprep.subr.mxu0 %v5370
        %v5372 = vand.u32 %v1177, 4294901760
        %5373 = vmatpush1.msra.mxu0 %v5372
        %v5374 = vand.u32 %v1180, 4294901760
        %5375 = vmatprep.subr.mxu0 %v5374
        %v5376 = vand.u32 %v1179, 4294901760
        %5377 = vmatpush1.msra.mxu0 %v5376
        %v5378 = vand.u32 %v1182, 4294901760
        %5379 = vmatprep.subr.mxu0 %v5378
        %v5380 = vand.u32 %v1181, 4294901760
        %5381 = vmatpush1.msra.mxu0 %v5380
        %v5382 = vand.u32 %v1184, 4294901760
        %5383 = vmatprep.subr.mxu0 %v5382
        %v5384 = vand.u32 %v1183, 4294901760
        %5385 = vmatpush1.msra.mxu0 %v5384
        %v5386 = vand.u32 %v1186, 4294901760
        %5387 = vmatprep.subr.mxu0 %v5386
        %v5388 = vand.u32 %v1185, 4294901760
        %5389 = vmatpush1.msra.mxu0 %v5388
        %v5390 = vand.u32 %v1188, 4294901760
        %5391 = vmatprep.subr.mxu0 %v5390
        %v5392 = vand.u32 %v1187, 4294901760
        %5393 = vmatpush1.msra.mxu0 %v5392
        %v5394 = vand.u32 %v1190, 4294901760
        %5395 = vmatprep.subr.mxu0 %v5394
        %v5396 = vand.u32 %v1189, 4294901760
        %5397 = vmatpush1.msra.mxu0 %v5396
        %v5398 = vand.u32 %v1192, 4294901760
        %5399 = vmatprep.subr.mxu0 %v5398
        %v5400 = vand.u32 %v1191, 4294901760
        %5401 = vmatpush1.msra.mxu0 %v5400
        %v5402 = vand.u32 %v1194, 4294901760
        %5403 = vmatprep.subr.mxu0 %v5402
        %v5404 = vand.u32 %v1193, 4294901760
        %5405 = vmatpush1.msra.mxu0 %v5404
        %v5406 = vand.u32 %v1196, 4294901760
        %5407 = vmatprep.subr.mxu0 %v5406
        %v5408 = vand.u32 %v1195, 4294901760
        %5409 = vmatpush1.msra.mxu0 %v5408
        %v5410 = vand.u32 %v1198, 4294901760
        %5411 = vmatprep.subr.mxu0 %v5410
        %v5412 = vand.u32 %v1197, 4294901760
        %5413 = vmatpush1.msra.mxu0 %v5412
        %v5414 = vand.u32 %v1200, 4294901760
        %5415 = vmatprep.subr.mxu0 %v5414
        %v5416 = vand.u32 %v1199, 4294901760
        %5417 = vmatpush1.msra.mxu0 %v5416
        %v5418 = vand.u32 %v1202, 4294901760
        %5419 = vmatprep.subr.mxu0 %v5418
        %v5420 = vand.u32 %v1201, 4294901760
        %5421 = vmatpush1.msra.mxu0 %v5420
        %v5422 = vand.u32 %v1204, 4294901760
        %5423 = vmatprep.subr.mxu0 %v5422
        %v5424 = vand.u32 %v1203, 4294901760
        %5425 = vmatpush1.msra.mxu0 %v5424
        %v5426 = vand.u32 %v1206, 4294901760
        %5427 = vmatprep.subr.mxu0 %v5426
        %v5428 = vand.u32 %v1205, 4294901760
        %5429 = vmatpush1.msra.mxu0 %v5428
        %v5430 = vand.u32 %v1208, 4294901760
        %5431 = vmatprep.subr.mxu0 %v5430
        %v5432 = vand.u32 %v1207, 4294901760
        %5433 = vmatpush1.msra.mxu0 %v5432
        %v5434 = vand.u32 %v1210, 4294901760
        %5435 = vmatprep.subr.mxu0 %v5434
        %v5436 = vand.u32 %v1209, 4294901760
        %5437 = vmatpush1.msra.mxu0 %v5436
        %v5438 = vand.u32 %v1212, 4294901760
        %5439 = vmatprep.subr.mxu0 %v5438
        %v5440 = vand.u32 %v1211, 4294901760
        %5441 = vmatpush1.msra.mxu0 %v5440
        %v5442 = vand.u32 %v1214, 4294901760
        %5443 = vmatprep.subr.mxu0 %v5442
        %v5444 = vand.u32 %v1213, 4294901760
        %5445 = vmatpush1.msra.mxu0 %v5444
        %v5446 = vand.u32 %v1216, 4294901760
        %5447 = vmatprep.subr.mxu0 %v5446
        %v5448 = vand.u32 %v1215, 4294901760
        %5449 = vmatpush1.msra.mxu0 %v5448
        %v5450 = vand.u32 %v1218, 4294901760
        %5451 = vmatprep.subr.mxu0 %v5450
        %v5452 = vand.u32 %v1217, 4294901760
        %5453 = vmatpush1.msra.mxu0 %v5452
        %v5454 = vand.u32 %v1220, 4294901760
        %5455 = vmatprep.subr.mxu0 %v5454
        %v5456 = vand.u32 %v1219, 4294901760
        %5457 = vmatpush1.msra.mxu0 %v5456
        %v5458 = vand.u32 %v1222, 4294901760
        %5459 = vmatprep.subr.mxu0 %v5458
        %v5460 = vand.u32 %v1221, 4294901760
        %5461 = vmatpush1.msra.mxu0 %v5460
        %v5462 = vand.u32 %v1224, 4294901760
        %5463 = vmatprep.subr.mxu0 %v5462
        %v5464 = vand.u32 %v1223, 4294901760
        %5465 = vmatpush1.msra.mxu0 %v5464
        %v5466 = vand.u32 %v1226, 4294901760
        %5467 = vmatprep.subr.mxu0 %v5466
        %v5468 = vand.u32 %v1225, 4294901760
        %5469 = vmatpush1.msra.mxu0 %v5468
        %v5470 = vand.u32 %v1228, 4294901760
        %5471 = vmatprep.subr.mxu0 %v5470
        %v5472 = vand.u32 %v1227, 4294901760
        %5473 = vmatpush1.msra.mxu0 %v5472
        %v5474 = vand.u32 %v1230, 4294901760
        %5475 = vmatprep.subr.mxu0 %v5474
        %v5476 = vand.u32 %v1229, 4294901760
        %5477 = vmatpush1.msra.mxu0 %v5476
        %v5478 = vand.u32 %v4444, 4294901760
        %v5479 = vsub.f32 %v4444, %v5478
        %v5480 = vand.u32 %v5479, 4294901760
        %5481 = vmatprep.mubr.f32.mxu0 %v5480
        %v5482 = vand.u32 %v4443, 4294901760
        %v5483 = vsub.f32 %v4443, %v5482
        %v5484 = vand.u32 %v5483, 4294901760
        %5485 = vmatmul.mubr.f32.gmra.mrb[0].mxu0 %v5484
        %v5486 = vpop.f32.mrb[0].mxu0
        %v5487 = vadd.f32 %v5306, %v5486
        %v5488 = vpop.f32.mrb[0].mxu0
        %v5489 = vadd.f32 %v5308, %v5488
        %v5490 = vand.u32 %v4450, 4294901760
        %v5491 = vsub.f32 %v4450, %v5490
        %v5492 = vand.u32 %v5491, 4294901760
        %5493 = vmatprep.mubr.f32.mxu0 %v5492
        %v5494 = vand.u32 %v4449, 4294901760
        %v5495 = vsub.f32 %v4449, %v5494
        %v5496 = vand.u32 %v5495, 4294901760
        %5497 = vmatmul.mubr.f32.gmra.mrb[0].mxu0 %v5496
        %v5498 = vpop.f32.mrb[0].mxu0
        %v5499 = vadd.f32 %v5316, %v5498
        %v5500 = vpop.f32.mrb[0].mxu0
        %v5501 = vadd.f32 %v5318, %v5500
        %v5502 = vand.u32 %v4456, 4294901760
        %v5503 = vsub.f32 %v4456, %v5502
        %v5504 = vand.u32 %v5503, 4294901760
        %5505 = vmatprep.mubr.f32.mxu0 %v5504
        %v5506 = vand.u32 %v4455, 4294901760
        %v5507 = vsub.f32 %v4455, %v5506
        %v5508 = vand.u32 %v5507, 4294901760
        %5509 = vmatmul.mubr.f32.gmra.mrb[0].mxu0 %v5508
        %v5510 = vpop.f32.mrb[0].mxu0
        %v5511 = vadd.f32 %v5326, %v5510
        %v5512 = vpop.f32.mrb[0].mxu0
        %v5513 = vadd.f32 %v5328, %v5512
        %v5514 = vand.u32 %v4462, 4294901760
        %v5515 = vsub.f32 %v4462, %v5514
        %v5516 = vand.u32 %v5515, 4294901760
        %5517 = vmatprep.mubr.f32.mxu0 %v5516
        %v5518 = vand.u32 %v4461, 4294901760
        %v5519 = vsub.f32 %v4461, %v5518
        %v5520 = vand.u32 %v5519, 4294901760
        %5521 = vmatmul.mubr.f32.gmra.mrb[0].mxu0 %v5520
        %v5522 = vpop.f32.mrb[0].mxu0
        %v5523 = vadd.f32 %v5336, %v5522
        %v5524 = vpop.f32.mrb[0].mxu0
        %v5525 = vadd.f32 %v5338, %v5524
        %v5526 = vand.u32 %v4468, 4294901760
        %v5527 = vsub.f32 %v4468, %v5526
        %v5528 = vand.u32 %v5527, 4294901760
        %5529 = vmatprep.mubr.f32.mxu0 %v5528
        %v5530 = vand.u32 %v4467, 4294901760
        %v5531 = vsub.f32 %v4467, %v5530
        %v5532 = vand.u32 %v5531, 4294901760
        %5533 = vmatmul.mubr.f32.gmra.mrb[0].mxu0 %v5532
        %v5534 = vpop.f32.mrb[0].mxu0
        %v5535 = vadd.f32 %v5346, %v5534
        %v5536 = vpop.f32.mrb[0].mxu0
        %v5537 = vadd.f32 %v5348, %v5536
        %5538 = vdwg.mxu0
        %v5539 = vand.u32 %v1168, 4294901760
        %v5540 = vsub.f32 %v1168, %v5539
        %v5541 = vand.u32 %v5540, 4294901760
        %5542 = vmatprep.subr.mxu0 %v5541
        %v5543 = vand.u32 %v1167, 4294901760
        %v5544 = vsub.f32 %v1167, %v5543
        %v5545 = vand.u32 %v5544, 4294901760
        %5546 = vmatpush1.msra.mxu0 %v5545
        %v5547 = vand.u32 %v1170, 4294901760
        %v5548 = vsub.f32 %v1170, %v5547
        %v5549 = vand.u32 %v5548, 4294901760
        %5550 = vmatprep.subr.mxu0 %v5549
        %v5551 = vand.u32 %v1169, 4294901760
        %v5552 = vsub.f32 %v1169, %v5551
        %v5553 = vand.u32 %v5552, 4294901760
        %5554 = vmatpush1.msra.mxu0 %v5553
        %v5555 = vand.u32 %v1172, 4294901760
        %v5556 = vsub.f32 %v1172, %v5555
        %v5557 = vand.u32 %v5556, 4294901760
        %5558 = vmatprep.subr.mxu0 %v5557
        %v5559 = vand.u32 %v1171, 4294901760
        %v5560 = vsub.f32 %v1171, %v5559
        %v5561 = vand.u32 %v5560, 4294901760
        %5562 = vmatpush1.msra.mxu0 %v5561
        %v5563 = vand.u32 %v1174, 4294901760
        %v5564 = vsub.f32 %v1174, %v5563
        %v5565 = vand.u32 %v5564, 4294901760
        %5566 = vmatprep.subr.mxu0 %v5565
        %v5567 = vand.u32 %v1173, 4294901760
        %v5568 = vsub.f32 %v1173, %v5567
        %v5569 = vand.u32 %v5568, 4294901760
        %5570 = vmatpush1.msra.mxu0 %v5569
        %v5571 = vand.u32 %v1176, 4294901760
        %v5572 = vsub.f32 %v1176, %v5571
        %v5573 = vand.u32 %v5572, 4294901760
        %5574 = vmatprep.subr.mxu0 %v5573
        %v5575 = vand.u32 %v1175, 4294901760
        %v5576 = vsub.f32 %v1175, %v5575
        %v5577 = vand.u32 %v5576, 4294901760
        %5578 = vmatpush1.msra.mxu0 %v5577
        %v5579 = vand.u32 %v1178, 4294901760
        %v5580 = vsub.f32 %v1178, %v5579
        %v5581 = vand.u32 %v5580, 4294901760
        %5582 = vmatprep.subr.mxu0 %v5581
        %v5583 = vand.u32 %v1177, 4294901760
        %v5584 = vsub.f32 %v1177, %v5583
        %v5585 = vand.u32 %v5584, 4294901760
        %5586 = vmatpush1.msra.mxu0 %v5585
        %v5587 = vand.u32 %v1180, 4294901760
        %v5588 = vsub.f32 %v1180, %v5587
        %v5589 = vand.u32 %v5588, 4294901760
        %5590 = vmatprep.subr.mxu0 %v5589
        %v5591 = vand.u32 %v1179, 4294901760
        %v5592 = vsub.f32 %v1179, %v5591
        %v5593 = vand.u32 %v5592, 4294901760
        %5594 = vmatpush1.msra.mxu0 %v5593
        %v5595 = vand.u32 %v1182, 4294901760
        %v5596 = vsub.f32 %v1182, %v5595
        %v5597 = vand.u32 %v5596, 4294901760
        %5598 = vmatprep.subr.mxu0 %v5597
        %v5599 = vand.u32 %v1181, 4294901760
        %v5600 = vsub.f32 %v1181, %v5599
        %v5601 = vand.u32 %v5600, 4294901760
        %5602 = vmatpush1.msra.mxu0 %v5601
        %v5603 = vand.u32 %v1184, 4294901760
        %v5604 = vsub.f32 %v1184, %v5603
        %v5605 = vand.u32 %v5604, 4294901760
        %5606 = vmatprep.subr.mxu0 %v5605
        %v5607 = vand.u32 %v1183, 4294901760
        %v5608 = vsub.f32 %v1183, %v5607
        %v5609 = vand.u32 %v5608, 4294901760
        %5610 = vmatpush1.msra.mxu0 %v5609
        %v5611 = vand.u32 %v1186, 4294901760
        %v5612 = vsub.f32 %v1186, %v5611
        %v5613 = vand.u32 %v5612, 4294901760
        %5614 = vmatprep.subr.mxu0 %v5613
        %v5615 = vand.u32 %v1185, 4294901760
        %v5616 = vsub.f32 %v1185, %v5615
        %v5617 = vand.u32 %v5616, 4294901760
        %5618 = vmatpush1.msra.mxu0 %v5617
        %v5619 = vand.u32 %v1188, 4294901760
        %v5620 = vsub.f32 %v1188, %v5619
        %v5621 = vand.u32 %v5620, 4294901760
        %5622 = vmatprep.subr.mxu0 %v5621
        %v5623 = vand.u32 %v1187, 4294901760
        %v5624 = vsub.f32 %v1187, %v5623
        %v5625 = vand.u32 %v5624, 4294901760
        %5626 = vmatpush1.msra.mxu0 %v5625
        %v5627 = vand.u32 %v1190, 4294901760
        %v5628 = vsub.f32 %v1190, %v5627
        %v5629 = vand.u32 %v5628, 4294901760
        %5630 = vmatprep.subr.mxu0 %v5629
        %v5631 = vand.u32 %v1189, 4294901760
        %v5632 = vsub.f32 %v1189, %v5631
        %v5633 = vand.u32 %v5632, 4294901760
        %5634 = vmatpush1.msra.mxu0 %v5633
        %v5635 = vand.u32 %v1192, 4294901760
        %v5636 = vsub.f32 %v1192, %v5635
        %v5637 = vand.u32 %v5636, 4294901760
        %5638 = vmatprep.subr.mxu0 %v5637
        %v5639 = vand.u32 %v1191, 4294901760
        %v5640 = vsub.f32 %v1191, %v5639
        %v5641 = vand.u32 %v5640, 4294901760
        %5642 = vmatpush1.msra.mxu0 %v5641
        %v5643 = vand.u32 %v1194, 4294901760
        %v5644 = vsub.f32 %v1194, %v5643
        %v5645 = vand.u32 %v5644, 4294901760
        %5646 = vmatprep.subr.mxu0 %v5645
        %v5647 = vand.u32 %v1193, 4294901760
        %v5648 = vsub.f32 %v1193, %v5647
        %v5649 = vand.u32 %v5648, 4294901760
        %5650 = vmatpush1.msra.mxu0 %v5649
        %v5651 = vand.u32 %v1196, 4294901760
        %v5652 = vsub.f32 %v1196, %v5651
        %v5653 = vand.u32 %v5652, 4294901760
        %5654 = vmatprep.subr.mxu0 %v5653
        %v5655 = vand.u32 %v1195, 4294901760
        %v5656 = vsub.f32 %v1195, %v5655
        %v5657 = vand.u32 %v5656, 4294901760
        %5658 = vmatpush1.msra.mxu0 %v5657
        %v5659 = vand.u32 %v1198, 4294901760
        %v5660 = vsub.f32 %v1198, %v5659
        %v5661 = vand.u32 %v5660, 4294901760
        %5662 = vmatprep.subr.mxu0 %v5661
        %v5663 = vand.u32 %v1197, 4294901760
        %v5664 = vsub.f32 %v1197, %v5663
        %v5665 = vand.u32 %v5664, 4294901760
        %5666 = vmatpush1.msra.mxu0 %v5665
        %v5667 = vand.u32 %v1200, 4294901760
        %v5668 = vsub.f32 %v1200, %v5667
        %v5669 = vand.u32 %v5668, 4294901760
        %5670 = vmatprep.subr.mxu0 %v5669
        %v5671 = vand.u32 %v1199, 4294901760
        %v5672 = vsub.f32 %v1199, %v5671
        %v5673 = vand.u32 %v5672, 4294901760
        %5674 = vmatpush1.msra.mxu0 %v5673
        %v5675 = vand.u32 %v1202, 4294901760
        %v5676 = vsub.f32 %v1202, %v5675
        %v5677 = vand.u32 %v5676, 4294901760
        %5678 = vmatprep.subr.mxu0 %v5677
        %v5679 = vand.u32 %v1201, 4294901760
        %v5680 = vsub.f32 %v1201, %v5679
        %v5681 = vand.u32 %v5680, 4294901760
        %5682 = vmatpush1.msra.mxu0 %v5681
        %v5683 = vand.u32 %v1204, 4294901760
        %v5684 = vsub.f32 %v1204, %v5683
        %v5685 = vand.u32 %v5684, 4294901760
        %5686 = vmatprep.subr.mxu0 %v5685
        %v5687 = vand.u32 %v1203, 4294901760
        %v5688 = vsub.f32 %v1203, %v5687
        %v5689 = vand.u32 %v5688, 4294901760
        %5690 = vmatpush1.msra.mxu0 %v5689
        %v5691 = vand.u32 %v1206, 4294901760
        %v5692 = vsub.f32 %v1206, %v5691
        %v5693 = vand.u32 %v5692, 4294901760
        %5694 = vmatprep.subr.mxu0 %v5693
        %v5695 = vand.u32 %v1205, 4294901760
        %v5696 = vsub.f32 %v1205, %v5695
        %v5697 = vand.u32 %v5696, 4294901760
        %5698 = vmatpush1.msra.mxu0 %v5697
        %v5699 = vand.u32 %v1208, 4294901760
        %v5700 = vsub.f32 %v1208, %v5699
        %v5701 = vand.u32 %v5700, 4294901760
        %5702 = vmatprep.subr.mxu0 %v5701
        %v5703 = vand.u32 %v1207, 4294901760
        %v5704 = vsub.f32 %v1207, %v5703
        %v5705 = vand.u32 %v5704, 4294901760
        %5706 = vmatpush1.msra.mxu0 %v5705
        %v5707 = vand.u32 %v1210, 4294901760
        %v5708 = vsub.f32 %v1210, %v5707
        %v5709 = vand.u32 %v5708, 4294901760
        %5710 = vmatprep.subr.mxu0 %v5709
        %v5711 = vand.u32 %v1209, 4294901760
        %v5712 = vsub.f32 %v1209, %v5711
        %v5713 = vand.u32 %v5712, 4294901760
        %5714 = vmatpush1.msra.mxu0 %v5713
        %v5715 = vand.u32 %v1212, 4294901760
        %v5716 = vsub.f32 %v1212, %v5715
        %v5717 = vand.u32 %v5716, 4294901760
        %5718 = vmatprep.subr.mxu0 %v5717
        %v5719 = vand.u32 %v1211, 4294901760
        %v5720 = vsub.f32 %v1211, %v5719
        %v5721 = vand.u32 %v5720, 4294901760
        %5722 = vmatpush1.msra.mxu0 %v5721
        %v5723 = vand.u32 %v1214, 4294901760
        %v5724 = vsub.f32 %v1214, %v5723
        %v5725 = vand.u32 %v5724, 4294901760
        %5726 = vmatprep.subr.mxu0 %v5725
        %v5727 = vand.u32 %v1213, 4294901760
        %v5728 = vsub.f32 %v1213, %v5727
        %v5729 = vand.u32 %v5728, 4294901760
        %5730 = vmatpush1.msra.mxu0 %v5729
        %v5731 = vand.u32 %v1216, 4294901760
        %v5732 = vsub.f32 %v1216, %v5731
        %v5733 = vand.u32 %v5732, 4294901760
        %5734 = vmatprep.subr.mxu0 %v5733
        %v5735 = vand.u32 %v1215, 4294901760
        %v5736 = vsub.f32 %v1215, %v5735
        %v5737 = vand.u32 %v5736, 4294901760
        %5738 = vmatpush1.msra.mxu0 %v5737
        %v5739 = vand.u32 %v1218, 4294901760
        %v5740 = vsub.f32 %v1218, %v5739
        %v5741 = vand.u32 %v5740, 4294901760
        %5742 = vmatprep.subr.mxu0 %v5741
        %v5743 = vand.u32 %v1217, 4294901760
        %v5744 = vsub.f32 %v1217, %v5743
        %v5745 = vand.u32 %v5744, 4294901760
        %5746 = vmatpush1.msra.mxu0 %v5745
        %v5747 = vand.u32 %v1220, 4294901760
        %v5748 = vsub.f32 %v1220, %v5747
        %v5749 = vand.u32 %v5748, 4294901760
        %5750 = vmatprep.subr.mxu0 %v5749
        %v5751 = vand.u32 %v1219, 4294901760
        %v5752 = vsub.f32 %v1219, %v5751
        %v5753 = vand.u32 %v5752, 4294901760
        %5754 = vmatpush1.msra.mxu0 %v5753
        %v5755 = vand.u32 %v1222, 4294901760
        %v5756 = vsub.f32 %v1222, %v5755
        %v5757 = vand.u32 %v5756, 4294901760
        %5758 = vmatprep.subr.mxu0 %v5757
        %v5759 = vand.u32 %v1221, 4294901760
        %v5760 = vsub.f32 %v1221, %v5759
        %v5761 = vand.u32 %v5760, 4294901760
        %5762 = vmatpush1.msra.mxu0 %v5761
        %v5763 = vand.u32 %v1224, 4294901760
        %v5764 = vsub.f32 %v1224, %v5763
        %v5765 = vand.u32 %v5764, 4294901760
        %5766 = vmatprep.subr.mxu0 %v5765
        %v5767 = vand.u32 %v1223, 4294901760
        %v5768 = vsub.f32 %v1223, %v5767
        %v5769 = vand.u32 %v5768, 4294901760
        %5770 = vmatpush1.msra.mxu0 %v5769
        %v5771 = vand.u32 %v1226, 4294901760
        %v5772 = vsub.f32 %v1226, %v5771
        %v5773 = vand.u32 %v5772, 4294901760
        %5774 = vmatprep.subr.mxu0 %v5773
        %v5775 = vand.u32 %v1225, 4294901760
        %v5776 = vsub.f32 %v1225, %v5775
        %v5777 = vand.u32 %v5776, 4294901760
        %5778 = vmatpush1.msra.mxu0 %v5777
        %v5779 = vand.u32 %v1228, 4294901760
        %v5780 = vsub.f32 %v1228, %v5779
        %v5781 = vand.u32 %v5780, 4294901760
        %5782 = vmatprep.subr.mxu0 %v5781
        %v5783 = vand.u32 %v1227, 4294901760
        %v5784 = vsub.f32 %v1227, %v5783
        %v5785 = vand.u32 %v5784, 4294901760
        %5786 = vmatpush1.msra.mxu0 %v5785
        %v5787 = vand.u32 %v1230, 4294901760
        %v5788 = vsub.f32 %v1230, %v5787
        %v5789 = vand.u32 %v5788, 4294901760
        %5790 = vmatprep.subr.mxu0 %v5789
        %v5791 = vand.u32 %v1229, 4294901760
        %v5792 = vsub.f32 %v1229, %v5791
        %v5793 = vand.u32 %v5792, 4294901760
        %5794 = vmatpush1.msra.mxu0 %v5793
        %v5795 = vand.u32 %v4444, 4294901760
        %5796 = vmatprep.mubr.f32.mxu0 %v5795
        %v5797 = vand.u32 %v4443, 4294901760
        %5798 = vmatmul.mubr.f32.gmra.mrb[0].mxu0 %v5797
        %v5799 = vpop.f32.mrb[0].mxu0
        %v5800 = vadd.f32 %v5487, %v5799
        %v5801 = vpop.f32.mrb[0].mxu0
        %v5802 = vadd.f32 %v5489, %v5801
        %v5803 = vand.u32 %v4450, 4294901760
        %5804 = vmatprep.mubr.f32.mxu0 %v5803
        %v5805 = vand.u32 %v4449, 4294901760
        %5806 = vmatmul.mubr.f32.gmra.mrb[0].mxu0 %v5805
        %v5807 = vpop.f32.mrb[0].mxu0
        %v5808 = vadd.f32 %v5499, %v5807
        %v5809 = vpop.f32.mrb[0].mxu0
        %v5810 = vadd.f32 %v5501, %v5809
        %v5811 = vand.u32 %v4456, 4294901760
        %5812 = vmatprep.mubr.f32.mxu0 %v5811
        %v5813 = vand.u32 %v4455, 4294901760
        %5814 = vmatmul.mubr.f32.gmra.mrb[0].mxu0 %v5813
        %v5815 = vpop.f32.mrb[0].mxu0
        %v5816 = vadd.f32 %v5511, %v5815
        %v5817 = vpop.f32.mrb[0].mxu0
        %v5818 = vadd.f32 %v5513, %v5817
        %v5819 = vand.u32 %v4462, 4294901760
        %5820 = vmatprep.mubr.f32.mxu0 %v5819
        %v5821 = vand.u32 %v4461, 4294901760
        %5822 = vmatmul.mubr.f32.gmra.mrb[0].mxu0 %v5821
        %v5823 = vpop.f32.mrb[0].mxu0
        %v5824 = vadd.f32 %v5523, %v5823
        %v5825 = vpop.f32.mrb[0].mxu0
        %v5826 = vadd.f32 %v5525, %v5825
        %v5827 = vand.u32 %v4468, 4294901760
        %5828 = vmatprep.mubr.f32.mxu0 %v5827
        %v5829 = vand.u32 %v4467, 4294901760
        %5830 = vmatmul.mubr.f32.gmra.mrb[0].mxu0 %v5829
        %v5831 = vpop.f32.mrb[0].mxu0
        %v5832 = vadd.f32 %v5535, %v5831
        %v5833 = vpop.f32.mrb[0].mxu0
        %v5834 = vadd.f32 %v5537, %v5833
        %5835 = vdwg.mxu0
        %v5836 = vand.u32 %v1168, 4294901760
        %5837 = vmatprep.subr.mxu0 %v5836
        %v5838 = vand.u32 %v1167, 4294901760
        %5839 = vmatpush1.msra.mxu0 %v5838
        %v5840 = vand.u32 %v1170, 4294901760
        %5841 = vmatprep.subr.mxu0 %v5840
        %v5842 = vand.u32 %v1169, 4294901760
        %5843 = vmatpush1.msra.mxu0 %v5842
        %v5844 = vand.u32 %v1172, 4294901760
        %5845 = vmatprep.subr.mxu0 %v5844
        %v5846 = vand.u32 %v1171, 4294901760
        %5847 = vmatpush1.msra.mxu0 %v5846
        %v5848 = vand.u32 %v1174, 4294901760
        %5849 = vmatprep.subr.mxu0 %v5848
        %v5850 = vand.u32 %v1173, 4294901760
        %5851 = vmatpush1.msra.mxu0 %v5850
        %v5852 = vand.u32 %v1176, 4294901760
        %5853 = vmatprep.subr.mxu0 %v5852
        %v5854 = vand.u32 %v1175, 4294901760
        %5855 = vmatpush1.msra.mxu0 %v5854
        %v5856 = vand.u32 %v1178, 4294901760
        %5857 = vmatprep.subr.mxu0 %v5856
        %v5858 = vand.u32 %v1177, 4294901760
        %5859 = vmatpush1.msra.mxu0 %v5858
        %v5860 = vand.u32 %v1180, 4294901760
        %5861 = vmatprep.subr.mxu0 %v5860
        %v5862 = vand.u32 %v1179, 4294901760
        %5863 = vmatpush1.msra.mxu0 %v5862
        %v5864 = vand.u32 %v1182, 4294901760
        %5865 = vmatprep.subr.mxu0 %v5864
        %v5866 = vand.u32 %v1181, 4294901760
        %5867 = vmatpush1.msra.mxu0 %v5866
        %v5868 = vand.u32 %v1184, 4294901760
        %5869 = vmatprep.subr.mxu0 %v5868
        %v5870 = vand.u32 %v1183, 4294901760
        %5871 = vmatpush1.msra.mxu0 %v5870
        %v5872 = vand.u32 %v1186, 4294901760
        %5873 = vmatprep.subr.mxu0 %v5872
        %v5874 = vand.u32 %v1185, 4294901760
        %5875 = vmatpush1.msra.mxu0 %v5874
        %v5876 = vand.u32 %v1188, 4294901760
        %5877 = vmatprep.subr.mxu0 %v5876
        %v5878 = vand.u32 %v1187, 4294901760
        %5879 = vmatpush1.msra.mxu0 %v5878
        %v5880 = vand.u32 %v1190, 4294901760
        %5881 = vmatprep.subr.mxu0 %v5880
        %v5882 = vand.u32 %v1189, 4294901760
        %5883 = vmatpush1.msra.mxu0 %v5882
        %v5884 = vand.u32 %v1192, 4294901760
        %5885 = vmatprep.subr.mxu0 %v5884
        %v5886 = vand.u32 %v1191, 4294901760
        %5887 = vmatpush1.msra.mxu0 %v5886
        %v5888 = vand.u32 %v1194, 4294901760
        %5889 = vmatprep.subr.mxu0 %v5888
        %v5890 = vand.u32 %v1193, 4294901760
        %5891 = vmatpush1.msra.mxu0 %v5890
        %v5892 = vand.u32 %v1196, 4294901760
        %5893 = vmatprep.subr.mxu0 %v5892
        %v5894 = vand.u32 %v1195, 4294901760
        %5895 = vmatpush1.msra.mxu0 %v5894
        %v5896 = vand.u32 %v1198, 4294901760
        %5897 = vmatprep.subr.mxu0 %v5896
        %v5898 = vand.u32 %v1197, 4294901760
        %5899 = vmatpush1.msra.mxu0 %v5898
        %v5900 = vand.u32 %v1200, 4294901760
        %5901 = vmatprep.subr.mxu0 %v5900
        %v5902 = vand.u32 %v1199, 4294901760
        %5903 = vmatpush1.msra.mxu0 %v5902
        %v5904 = vand.u32 %v1202, 4294901760
        %5905 = vmatprep.subr.mxu0 %v5904
        %v5906 = vand.u32 %v1201, 4294901760
        %5907 = vmatpush1.msra.mxu0 %v5906
        %v5908 = vand.u32 %v1204, 4294901760
        %5909 = vmatprep.subr.mxu0 %v5908
        %v5910 = vand.u32 %v1203, 4294901760
        %5911 = vmatpush1.msra.mxu0 %v5910
        %v5912 = vand.u32 %v1206, 4294901760
        %5913 = vmatprep.subr.mxu0 %v5912
        %v5914 = vand.u32 %v1205, 4294901760
        %5915 = vmatpush1.msra.mxu0 %v5914
        %v5916 = vand.u32 %v1208, 4294901760
        %5917 = vmatprep.subr.mxu0 %v5916
        %v5918 = vand.u32 %v1207, 4294901760
        %5919 = vmatpush1.msra.mxu0 %v5918
        %v5920 = vand.u32 %v1210, 4294901760
        %5921 = vmatprep.subr.mxu0 %v5920
        %v5922 = vand.u32 %v1209, 4294901760
        %5923 = vmatpush1.msra.mxu0 %v5922
        %v5924 = vand.u32 %v1212, 4294901760
        %5925 = vmatprep.subr.mxu0 %v5924
        %v5926 = vand.u32 %v1211, 4294901760
        %5927 = vmatpush1.msra.mxu0 %v5926
        %v5928 = vand.u32 %v1214, 4294901760
        %5929 = vmatprep.subr.mxu0 %v5928
        %v5930 = vand.u32 %v1213, 4294901760
        %5931 = vmatpush1.msra.mxu0 %v5930
        %v5932 = vand.u32 %v1216, 4294901760
        %5933 = vmatprep.subr.mxu0 %v5932
        %v5934 = vand.u32 %v1215, 4294901760
        %5935 = vmatpush1.msra.mxu0 %v5934
        %v5936 = vand.u32 %v1218, 4294901760
        %5937 = vmatprep.subr.mxu0 %v5936
        %v5938 = vand.u32 %v1217, 4294901760
        %5939 = vmatpush1.msra.mxu0 %v5938
        %v5940 = vand.u32 %v1220, 4294901760
        %5941 = vmatprep.subr.mxu0 %v5940
        %v5942 = vand.u32 %v1219, 4294901760
        %5943 = vmatpush1.msra.mxu0 %v5942
        %v5944 = vand.u32 %v1222, 4294901760
        %5945 = vmatprep.subr.mxu0 %v5944
        %v5946 = vand.u32 %v1221, 4294901760
        %5947 = vmatpush1.msra.mxu0 %v5946
        %v5948 = vand.u32 %v1224, 4294901760
        %5949 = vmatprep.subr.mxu0 %v5948
        %v5950 = vand.u32 %v1223, 4294901760
        %5951 = vmatpush1.msra.mxu0 %v5950
        %v5952 = vand.u32 %v1226, 4294901760
        %5953 = vmatprep.subr.mxu0 %v5952
        %v5954 = vand.u32 %v1225, 4294901760
        %5955 = vmatpush1.msra.mxu0 %v5954
        %v5956 = vand.u32 %v1228, 4294901760
        %5957 = vmatprep.subr.mxu0 %v5956
        %v5958 = vand.u32 %v1227, 4294901760
        %5959 = vmatpush1.msra.mxu0 %v5958
        %v5960 = vand.u32 %v1230, 4294901760
        %5961 = vmatprep.subr.mxu0 %v5960
        %v5962 = vand.u32 %v1229, 4294901760
        %5963 = vmatpush1.msra.mxu0 %v5962
        %v5964 = vand.u32 %v4444, 4294901760
        %5965 = vmatprep.mubr.f32.mxu0 %v5964
        %v5966 = vand.u32 %v4443, 4294901760
        %5967 = vmatmul.mubr.f32.gmra.mrb[0].mxu0 %v5966
        %v5968 = vpop.f32.mrb[0].mxu0
        %v5969 = vadd.f32 %v5800, %v5968
        %v5970 = vpop.f32.mrb[0].mxu0
        %v5971 = vadd.f32 %v5802, %v5970
        %v5972 = vand.u32 %v4450, 4294901760
        %5973 = vmatprep.mubr.f32.mxu0 %v5972
        %v5974 = vand.u32 %v4449, 4294901760
        %5975 = vmatmul.mubr.f32.gmra.mrb[0].mxu0 %v5974
        %v5976 = vpop.f32.mrb[0].mxu0
        %v5977 = vadd.f32 %v5808, %v5976
        %v5978 = vpop.f32.mrb[0].mxu0
        %v5979 = vadd.f32 %v5810, %v5978
        %v5980 = vand.u32 %v4456, 4294901760
        %5981 = vmatprep.mubr.f32.mxu0 %v5980
        %v5982 = vand.u32 %v4455, 4294901760
        %5983 = vmatmul.mubr.f32.gmra.mrb[0].mxu0 %v5982
        %v5984 = vpop.f32.mrb[0].mxu0
        %v5985 = vadd.f32 %v5816, %v5984
        %v5986 = vpop.f32.mrb[0].mxu0
        %v5987 = vadd.f32 %v5818, %v5986
        %v5988 = vand.u32 %v4462, 4294901760
        %5989 = vmatprep.mubr.f32.mxu0 %v5988
        %v5990 = vand.u32 %v4461, 4294901760
        %5991 = vmatmul.mubr.f32.gmra.mrb[0].mxu0 %v5990
        %v5992 = vpop.f32.mrb[0].mxu0
        %v5993 = vadd.f32 %v5824, %v5992
        %v5994 = vpop.f32.mrb[0].mxu0
        %v5995 = vadd.f32 %v5826, %v5994
        %v5996 = vand.u32 %v4468, 4294901760
        %5997 = vmatprep.mubr.f32.mxu0 %v5996
        %v5998 = vand.u32 %v4467, 4294901760
        %5999 = vmatmul.mubr.f32.gmra.mrb[0].mxu0 %v5998
        %v6000 = vpop.f32.mrb[0].mxu0
        %v6001 = vadd.f32 %v5832, %v6000
        %v6002 = vpop.f32.mrb[0].mxu0
        %v6003 = vadd.f32 %v5834, %v6002
        %6004 = vdwg.mxu0
        %v6005 = vand.u32 %v1232, 4294901760
        %6006 = vmatprep.subr.mxu0 %v6005
        %v6007 = vand.u32 %v1231, 4294901760
        %6008 = vmatpush1.msra.mxu0 %v6007
        %v6009 = vand.u32 %v1234, 4294901760
        %6010 = vmatprep.subr.mxu0 %v6009
        %v6011 = vand.u32 %v1233, 4294901760
        %6012 = vmatpush1.msra.mxu0 %v6011
        %v6013 = vand.u32 %v1236, 4294901760
        %6014 = vmatprep.subr.mxu0 %v6013
        %v6015 = vand.u32 %v1235, 4294901760
        %6016 = vmatpush1.msra.mxu0 %v6015
        %v6017 = vand.u32 %v1238, 4294901760
        %6018 = vmatprep.subr.mxu0 %v6017
        %v6019 = vand.u32 %v1237, 4294901760
        %6020 = vmatpush1.msra.mxu0 %v6019
        %v6021 = vand.u32 %v1240, 4294901760
        %6022 = vmatprep.subr.mxu0 %v6021
        %v6023 = vand.u32 %v1239, 4294901760
        %6024 = vmatpush1.msra.mxu0 %v6023
        %v6025 = vand.u32 %v1242, 4294901760
        %6026 = vmatprep.subr.mxu0 %v6025
        %v6027 = vand.u32 %v1241, 4294901760
        %6028 = vmatpush1.msra.mxu0 %v6027
        %v6029 = vand.u32 %v1244, 4294901760
        %6030 = vmatprep.subr.mxu0 %v6029
        %v6031 = vand.u32 %v1243, 4294901760
        %6032 = vmatpush1.msra.mxu0 %v6031
        %v6033 = vand.u32 %v1246, 4294901760
        %6034 = vmatprep.subr.mxu0 %v6033
        %v6035 = vand.u32 %v1245, 4294901760
        %6036 = vmatpush1.msra.mxu0 %v6035
        %v6037 = vand.u32 %v1248, 4294901760
        %6038 = vmatprep.subr.mxu0 %v6037
        %v6039 = vand.u32 %v1247, 4294901760
        %6040 = vmatpush1.msra.mxu0 %v6039
        %v6041 = vand.u32 %v1250, 4294901760
        %6042 = vmatprep.subr.mxu0 %v6041
        %v6043 = vand.u32 %v1249, 4294901760
        %6044 = vmatpush1.msra.mxu0 %v6043
        %v6045 = vand.u32 %v1252, 4294901760
        %6046 = vmatprep.subr.mxu0 %v6045
        %v6047 = vand.u32 %v1251, 4294901760
        %6048 = vmatpush1.msra.mxu0 %v6047
        %v6049 = vand.u32 %v1254, 4294901760
        %6050 = vmatprep.subr.mxu0 %v6049
        %v6051 = vand.u32 %v1253, 4294901760
        %6052 = vmatpush1.msra.mxu0 %v6051
        %v6053 = vand.u32 %v1256, 4294901760
        %6054 = vmatprep.subr.mxu0 %v6053
        %v6055 = vand.u32 %v1255, 4294901760
        %6056 = vmatpush1.msra.mxu0 %v6055
        %v6057 = vand.u32 %v1258, 4294901760
        %6058 = vmatprep.subr.mxu0 %v6057
        %v6059 = vand.u32 %v1257, 4294901760
        %6060 = vmatpush1.msra.mxu0 %v6059
        %v6061 = vand.u32 %v1260, 4294901760
        %6062 = vmatprep.subr.mxu0 %v6061
        %v6063 = vand.u32 %v1259, 4294901760
        %6064 = vmatpush1.msra.mxu0 %v6063
        %v6065 = vand.u32 %v1262, 4294901760
        %6066 = vmatprep.subr.mxu0 %v6065
        %v6067 = vand.u32 %v1261, 4294901760
        %6068 = vmatpush1.msra.mxu0 %v6067
        %v6069 = vand.u32 %v1264, 4294901760
        %6070 = vmatprep.subr.mxu0 %v6069
        %v6071 = vand.u32 %v1263, 4294901760
        %6072 = vmatpush1.msra.mxu0 %v6071
        %v6073 = vand.u32 %v1266, 4294901760
        %6074 = vmatprep.subr.mxu0 %v6073
        %v6075 = vand.u32 %v1265, 4294901760
        %6076 = vmatpush1.msra.mxu0 %v6075
        %v6077 = vand.u32 %v1268, 4294901760
        %6078 = vmatprep.subr.mxu0 %v6077
        %v6079 = vand.u32 %v1267, 4294901760
        %6080 = vmatpush1.msra.mxu0 %v6079
        %v6081 = vand.u32 %v1270, 4294901760
        %6082 = vmatprep.subr.mxu0 %v6081
        %v6083 = vand.u32 %v1269, 4294901760
        %6084 = vmatpush1.msra.mxu0 %v6083
        %v6085 = vand.u32 %v1272, 4294901760
        %6086 = vmatprep.subr.mxu0 %v6085
        %v6087 = vand.u32 %v1271, 4294901760
        %6088 = vmatpush1.msra.mxu0 %v6087
        %v6089 = vand.u32 %v1274, 4294901760
        %6090 = vmatprep.subr.mxu0 %v6089
        %v6091 = vand.u32 %v1273, 4294901760
        %6092 = vmatpush1.msra.mxu0 %v6091
        %v6093 = vand.u32 %v1276, 4294901760
        %6094 = vmatprep.subr.mxu0 %v6093
        %v6095 = vand.u32 %v1275, 4294901760
        %6096 = vmatpush1.msra.mxu0 %v6095
        %v6097 = vand.u32 %v1278, 4294901760
        %6098 = vmatprep.subr.mxu0 %v6097
        %v6099 = vand.u32 %v1277, 4294901760
        %6100 = vmatpush1.msra.mxu0 %v6099
        %v6101 = vand.u32 %v1280, 4294901760
        %6102 = vmatprep.subr.mxu0 %v6101
        %v6103 = vand.u32 %v1279, 4294901760
        %6104 = vmatpush1.msra.mxu0 %v6103
        %v6105 = vand.u32 %v1282, 4294901760
        %6106 = vmatprep.subr.mxu0 %v6105
        %v6107 = vand.u32 %v1281, 4294901760
        %6108 = vmatpush1.msra.mxu0 %v6107
        %v6109 = vand.u32 %v1284, 4294901760
        %6110 = vmatprep.subr.mxu0 %v6109
        %v6111 = vand.u32 %v1283, 4294901760
        %6112 = vmatpush1.msra.mxu0 %v6111
        %v6113 = vand.u32 %v1286, 4294901760
        %6114 = vmatprep.subr.mxu0 %v6113
        %v6115 = vand.u32 %v1285, 4294901760
        %6116 = vmatpush1.msra.mxu0 %v6115
        %v6117 = vand.u32 %v1288, 4294901760
        %6118 = vmatprep.subr.mxu0 %v6117
        %v6119 = vand.u32 %v1287, 4294901760
        %6120 = vmatpush1.msra.mxu0 %v6119
        %v6121 = vand.u32 %v1290, 4294901760
        %6122 = vmatprep.subr.mxu0 %v6121
        %v6123 = vand.u32 %v1289, 4294901760
        %6124 = vmatpush1.msra.mxu0 %v6123
        %v6125 = vand.u32 %v1292, 4294901760
        %6126 = vmatprep.subr.mxu0 %v6125
        %v6127 = vand.u32 %v1291, 4294901760
        %6128 = vmatpush1.msra.mxu0 %v6127
        %v6129 = vand.u32 %v1294, 4294901760
        %6130 = vmatprep.subr.mxu0 %v6129
        %v6131 = vand.u32 %v1293, 4294901760
        %6132 = vmatpush1.msra.mxu0 %v6131
        %v6133 = vand.u32 %v4446, 4294901760
        %v6134 = vsub.f32 %v4446, %v6133
        %v6135 = vand.u32 %v6134, 4294901760
        %v6136 = vsub.f32 %v6134, %v6135
        %v6137 = vand.u32 %v6136, 4294901760
        %6138 = vmatprep.mubr.f32.mxu0 %v6137
        %v6139 = vand.u32 %v4445, 4294901760
        %v6140 = vsub.f32 %v4445, %v6139
        %v6141 = vand.u32 %v6140, 4294901760
        %v6142 = vsub.f32 %v6140, %v6141
        %v6143 = vand.u32 %v6142, 4294901760
        %6144 = vmatmul.mubr.f32.gmra.mrb[0].mxu0 %v6143
        %v6145 = vpop.f32.mrb[0].mxu0
        %v6146 = vadd.f32 %v5969, %v6145
        %v6147 = vpop.f32.mrb[0].mxu0
        %v6148 = vadd.f32 %v5971, %v6147
        %v6149 = vand.u32 %v4452, 4294901760
        %v6150 = vsub.f32 %v4452, %v6149
        %v6151 = vand.u32 %v6150, 4294901760
        %v6152 = vsub.f32 %v6150, %v6151
        %v6153 = vand.u32 %v6152, 4294901760
        %6154 = vmatprep.mubr.f32.mxu0 %v6153
        %v6155 = vand.u32 %v4451, 4294901760
        %v6156 = vsub.f32 %v4451, %v6155
        %v6157 = vand.u32 %v6156, 4294901760
        %v6158 = vsub.f32 %v6156, %v6157
        %v6159 = vand.u32 %v6158, 4294901760
        %6160 = vmatmul.mubr.f32.gmra.mrb[0].mxu0 %v6159
        %v6161 = vpop.f32.mrb[0].mxu0
        %v6162 = vadd.f32 %v5977, %v6161
        %v6163 = vpop.f32.mrb[0].mxu0
        %v6164 = vadd.f32 %v5979, %v6163
        %v6165 = vand.u32 %v4458, 4294901760
        %v6166 = vsub.f32 %v4458, %v6165
        %v6167 = vand.u32 %v6166, 4294901760
        %v6168 = vsub.f32 %v6166, %v6167
        %v6169 = vand.u32 %v6168, 4294901760
        %6170 = vmatprep.mubr.f32.mxu0 %v6169
        %v6171 = vand.u32 %v4457, 4294901760
        %v6172 = vsub.f32 %v4457, %v6171
        %v6173 = vand.u32 %v6172, 4294901760
        %v6174 = vsub.f32 %v6172, %v6173
        %v6175 = vand.u32 %v6174, 4294901760
        %6176 = vmatmul.mubr.f32.gmra.mrb[0].mxu0 %v6175
        %v6177 = vpop.f32.mrb[0].mxu0
        %v6178 = vadd.f32 %v5985, %v6177
        %v6179 = vpop.f32.mrb[0].mxu0
        %v6180 = vadd.f32 %v5987, %v6179
        %v6181 = vand.u32 %v4464, 4294901760
        %v6182 = vsub.f32 %v4464, %v6181
        %v6183 = vand.u32 %v6182, 4294901760
        %v6184 = vsub.f32 %v6182, %v6183
        %v6185 = vand.u32 %v6184, 4294901760
        %6186 = vmatprep.mubr.f32.mxu0 %v6185
        %v6187 = vand.u32 %v4463, 4294901760
        %v6188 = vsub.f32 %v4463, %v6187
        %v6189 = vand.u32 %v6188, 4294901760
        %v6190 = vsub.f32 %v6188, %v6189
        %v6191 = vand.u32 %v6190, 4294901760
        %6192 = vmatmul.mubr.f32.gmra.mrb[0].mxu0 %v6191
        %v6193 = vpop.f32.mrb[0].mxu0
        %v6194 = vadd.f32 %v5993, %v6193
        %v6195 = vpop.f32.mrb[0].mxu0
        %v6196 = vadd.f32 %v5995, %v6195
        %v6197 = vand.u32 %v4470, 4294901760
        %v6198 = vsub.f32 %v4470, %v6197
        %v6199 = vand.u32 %v6198, 4294901760
        %v6200 = vsub.f32 %v6198, %v6199
        %v6201 = vand.u32 %v6200, 4294901760
        %6202 = vmatprep.mubr.f32.mxu0 %v6201
        %v6203 = vand.u32 %v4469, 4294901760
        %v6204 = vsub.f32 %v4469, %v6203
        %v6205 = vand.u32 %v6204, 4294901760
        %v6206 = vsub.f32 %v6204, %v6205
        %v6207 = vand.u32 %v6206, 4294901760
        %6208 = vmatmul.mubr.f32.gmra.mrb[0].mxu0 %v6207
        %v6209 = vpop.f32.mrb[0].mxu0
        %v6210 = vadd.f32 %v6001, %v6209
        %v6211 = vpop.f32.mrb[0].mxu0
        %v6212 = vadd.f32 %v6003, %v6211
        %6213 = vdwg.mxu0
        %v6214 = vand.u32 %v1232, 4294901760
        %v6215 = vsub.f32 %v1232, %v6214
        %v6216 = vand.u32 %v6215, 4294901760
        %v6217 = vsub.f32 %v6215, %v6216
        %v6218 = vand.u32 %v6217, 4294901760
        %6219 = vmatprep.subr.mxu0 %v6218
        %v6220 = vand.u32 %v1231, 4294901760
        %v6221 = vsub.f32 %v1231, %v6220
        %v6222 = vand.u32 %v6221, 4294901760
        %v6223 = vsub.f32 %v6221, %v6222
        %v6224 = vand.u32 %v6223, 4294901760
        %6225 = vmatpush1.msra.mxu0 %v6224
        %v6226 = vand.u32 %v1234, 4294901760
        %v6227 = vsub.f32 %v1234, %v6226
        %v6228 = vand.u32 %v6227, 4294901760
        %v6229 = vsub.f32 %v6227, %v6228
        %v6230 = vand.u32 %v6229, 4294901760
        %6231 = vmatprep.subr.mxu0 %v6230
        %v6232 = vand.u32 %v1233, 4294901760
        %v6233 = vsub.f32 %v1233, %v6232
        %v6234 = vand.u32 %v6233, 4294901760
        %v6235 = vsub.f32 %v6233, %v6234
        %v6236 = vand.u32 %v6235, 4294901760
        %6237 = vmatpush1.msra.mxu0 %v6236
        %v6238 = vand.u32 %v1236, 4294901760
        %v6239 = vsub.f32 %v1236, %v6238
        %v6240 = vand.u32 %v6239, 4294901760
        %v6241 = vsub.f32 %v6239, %v6240
        %v6242 = vand.u32 %v6241, 4294901760
        %6243 = vmatprep.subr.mxu0 %v6242
        %v6244 = vand.u32 %v1235, 4294901760
        %v6245 = vsub.f32 %v1235, %v6244
        %v6246 = vand.u32 %v6245, 4294901760
        %v6247 = vsub.f32 %v6245, %v6246
        %v6248 = vand.u32 %v6247, 4294901760
        %6249 = vmatpush1.msra.mxu0 %v6248
        %v6250 = vand.u32 %v1238, 4294901760
        %v6251 = vsub.f32 %v1238, %v6250
        %v6252 = vand.u32 %v6251, 4294901760
        %v6253 = vsub.f32 %v6251, %v6252
        %v6254 = vand.u32 %v6253, 4294901760
        %6255 = vmatprep.subr.mxu0 %v6254
        %v6256 = vand.u32 %v1237, 4294901760
        %v6257 = vsub.f32 %v1237, %v6256
        %v6258 = vand.u32 %v6257, 4294901760
        %v6259 = vsub.f32 %v6257, %v6258
        %v6260 = vand.u32 %v6259, 4294901760
        %6261 = vmatpush1.msra.mxu0 %v6260
        %v6262 = vand.u32 %v1240, 4294901760
        %v6263 = vsub.f32 %v1240, %v6262
        %v6264 = vand.u32 %v6263, 4294901760
        %v6265 = vsub.f32 %v6263, %v6264
        %v6266 = vand.u32 %v6265, 4294901760
        %6267 = vmatprep.subr.mxu0 %v6266
        %v6268 = vand.u32 %v1239, 4294901760
        %v6269 = vsub.f32 %v1239, %v6268
        %v6270 = vand.u32 %v6269, 4294901760
        %v6271 = vsub.f32 %v6269, %v6270
        %v6272 = vand.u32 %v6271, 4294901760
        %6273 = vmatpush1.msra.mxu0 %v6272
        %v6274 = vand.u32 %v1242, 4294901760
        %v6275 = vsub.f32 %v1242, %v6274
        %v6276 = vand.u32 %v6275, 4294901760
        %v6277 = vsub.f32 %v6275, %v6276
        %v6278 = vand.u32 %v6277, 4294901760
        %6279 = vmatprep.subr.mxu0 %v6278
        %v6280 = vand.u32 %v1241, 4294901760
        %v6281 = vsub.f32 %v1241, %v6280
        %v6282 = vand.u32 %v6281, 4294901760
        %v6283 = vsub.f32 %v6281, %v6282
        %v6284 = vand.u32 %v6283, 4294901760
        %6285 = vmatpush1.msra.mxu0 %v6284
        %v6286 = vand.u32 %v1244, 4294901760
        %v6287 = vsub.f32 %v1244, %v6286
        %v6288 = vand.u32 %v6287, 4294901760
        %v6289 = vsub.f32 %v6287, %v6288
        %v6290 = vand.u32 %v6289, 4294901760
        %6291 = vmatprep.subr.mxu0 %v6290
        %v6292 = vand.u32 %v1243, 4294901760
        %v6293 = vsub.f32 %v1243, %v6292
        %v6294 = vand.u32 %v6293, 4294901760
        %v6295 = vsub.f32 %v6293, %v6294
        %v6296 = vand.u32 %v6295, 4294901760
        %6297 = vmatpush1.msra.mxu0 %v6296
        %v6298 = vand.u32 %v1246, 4294901760
        %v6299 = vsub.f32 %v1246, %v6298
        %v6300 = vand.u32 %v6299, 4294901760
        %v6301 = vsub.f32 %v6299, %v6300
        %v6302 = vand.u32 %v6301, 4294901760
        %6303 = vmatprep.subr.mxu0 %v6302
        %v6304 = vand.u32 %v1245, 4294901760
        %v6305 = vsub.f32 %v1245, %v6304
        %v6306 = vand.u32 %v6305, 4294901760
        %v6307 = vsub.f32 %v6305, %v6306
        %v6308 = vand.u32 %v6307, 4294901760
        %6309 = vmatpush1.msra.mxu0 %v6308
        %v6310 = vand.u32 %v1248, 4294901760
        %v6311 = vsub.f32 %v1248, %v6310
        %v6312 = vand.u32 %v6311, 4294901760
        %v6313 = vsub.f32 %v6311, %v6312
        %v6314 = vand.u32 %v6313, 4294901760
        %6315 = vmatprep.subr.mxu0 %v6314
        %v6316 = vand.u32 %v1247, 4294901760
        %v6317 = vsub.f32 %v1247, %v6316
        %v6318 = vand.u32 %v6317, 4294901760
        %v6319 = vsub.f32 %v6317, %v6318
        %v6320 = vand.u32 %v6319, 4294901760
        %6321 = vmatpush1.msra.mxu0 %v6320
        %v6322 = vand.u32 %v1250, 4294901760
        %v6323 = vsub.f32 %v1250, %v6322
        %v6324 = vand.u32 %v6323, 4294901760
        %v6325 = vsub.f32 %v6323, %v6324
        %v6326 = vand.u32 %v6325, 4294901760
        %6327 = vmatprep.subr.mxu0 %v6326
        %v6328 = vand.u32 %v1249, 4294901760
        %v6329 = vsub.f32 %v1249, %v6328
        %v6330 = vand.u32 %v6329, 4294901760
        %v6331 = vsub.f32 %v6329, %v6330
        %v6332 = vand.u32 %v6331, 4294901760
        %6333 = vmatpush1.msra.mxu0 %v6332
        %v6334 = vand.u32 %v1252, 4294901760
        %v6335 = vsub.f32 %v1252, %v6334
        %v6336 = vand.u32 %v6335, 4294901760
        %v6337 = vsub.f32 %v6335, %v6336
        %v6338 = vand.u32 %v6337, 4294901760
        %6339 = vmatprep.subr.mxu0 %v6338
        %v6340 = vand.u32 %v1251, 4294901760
        %v6341 = vsub.f32 %v1251, %v6340
        %v6342 = vand.u32 %v6341, 4294901760
        %v6343 = vsub.f32 %v6341, %v6342
        %v6344 = vand.u32 %v6343, 4294901760
        %6345 = vmatpush1.msra.mxu0 %v6344
        %v6346 = vand.u32 %v1254, 4294901760
        %v6347 = vsub.f32 %v1254, %v6346
        %v6348 = vand.u32 %v6347, 4294901760
        %v6349 = vsub.f32 %v6347, %v6348
        %v6350 = vand.u32 %v6349, 4294901760
        %6351 = vmatprep.subr.mxu0 %v6350
        %v6352 = vand.u32 %v1253, 4294901760
        %v6353 = vsub.f32 %v1253, %v6352
        %v6354 = vand.u32 %v6353, 4294901760
        %v6355 = vsub.f32 %v6353, %v6354
        %v6356 = vand.u32 %v6355, 4294901760
        %6357 = vmatpush1.msra.mxu0 %v6356
        %v6358 = vand.u32 %v1256, 4294901760
        %v6359 = vsub.f32 %v1256, %v6358
        %v6360 = vand.u32 %v6359, 4294901760
        %v6361 = vsub.f32 %v6359, %v6360
        %v6362 = vand.u32 %v6361, 4294901760
        %6363 = vmatprep.subr.mxu0 %v6362
        %v6364 = vand.u32 %v1255, 4294901760
        %v6365 = vsub.f32 %v1255, %v6364
        %v6366 = vand.u32 %v6365, 4294901760
        %v6367 = vsub.f32 %v6365, %v6366
        %v6368 = vand.u32 %v6367, 4294901760
        %6369 = vmatpush1.msra.mxu0 %v6368
        %v6370 = vand.u32 %v1258, 4294901760
        %v6371 = vsub.f32 %v1258, %v6370
        %v6372 = vand.u32 %v6371, 4294901760
        %v6373 = vsub.f32 %v6371, %v6372
        %v6374 = vand.u32 %v6373, 4294901760
        %6375 = vmatprep.subr.mxu0 %v6374
        %v6376 = vand.u32 %v1257, 4294901760
        %v6377 = vsub.f32 %v1257, %v6376
        %v6378 = vand.u32 %v6377, 4294901760
        %v6379 = vsub.f32 %v6377, %v6378
        %v6380 = vand.u32 %v6379, 4294901760
        %6381 = vmatpush1.msra.mxu0 %v6380
        %v6382 = vand.u32 %v1260, 4294901760
        %v6383 = vsub.f32 %v1260, %v6382
        %v6384 = vand.u32 %v6383, 4294901760
        %v6385 = vsub.f32 %v6383, %v6384
        %v6386 = vand.u32 %v6385, 4294901760
        %6387 = vmatprep.subr.mxu0 %v6386
        %v6388 = vand.u32 %v1259, 4294901760
        %v6389 = vsub.f32 %v1259, %v6388
        %v6390 = vand.u32 %v6389, 4294901760
        %v6391 = vsub.f32 %v6389, %v6390
        %v6392 = vand.u32 %v6391, 4294901760
        %6393 = vmatpush1.msra.mxu0 %v6392
        %v6394 = vand.u32 %v1262, 4294901760
        %v6395 = vsub.f32 %v1262, %v6394
        %v6396 = vand.u32 %v6395, 4294901760
        %v6397 = vsub.f32 %v6395, %v6396
        %v6398 = vand.u32 %v6397, 4294901760
        %6399 = vmatprep.subr.mxu0 %v6398
        %v6400 = vand.u32 %v1261, 4294901760
        %v6401 = vsub.f32 %v1261, %v6400
        %v6402 = vand.u32 %v6401, 4294901760
        %v6403 = vsub.f32 %v6401, %v6402
        %v6404 = vand.u32 %v6403, 4294901760
        %6405 = vmatpush1.msra.mxu0 %v6404
        %v6406 = vand.u32 %v1264, 4294901760
        %v6407 = vsub.f32 %v1264, %v6406
        %v6408 = vand.u32 %v6407, 4294901760
        %v6409 = vsub.f32 %v6407, %v6408
        %v6410 = vand.u32 %v6409, 4294901760
        %6411 = vmatprep.subr.mxu0 %v6410
        %v6412 = vand.u32 %v1263, 4294901760
        %v6413 = vsub.f32 %v1263, %v6412
        %v6414 = vand.u32 %v6413, 4294901760
        %v6415 = vsub.f32 %v6413, %v6414
        %v6416 = vand.u32 %v6415, 4294901760
        %6417 = vmatpush1.msra.mxu0 %v6416
        %v6418 = vand.u32 %v1266, 4294901760
        %v6419 = vsub.f32 %v1266, %v6418
        %v6420 = vand.u32 %v6419, 4294901760
        %v6421 = vsub.f32 %v6419, %v6420
        %v6422 = vand.u32 %v6421, 4294901760
        %6423 = vmatprep.subr.mxu0 %v6422
        %v6424 = vand.u32 %v1265, 4294901760
        %v6425 = vsub.f32 %v1265, %v6424
        %v6426 = vand.u32 %v6425, 4294901760
        %v6427 = vsub.f32 %v6425, %v6426
        %v6428 = vand.u32 %v6427, 4294901760
        %6429 = vmatpush1.msra.mxu0 %v6428
        %v6430 = vand.u32 %v1268, 4294901760
        %v6431 = vsub.f32 %v1268, %v6430
        %v6432 = vand.u32 %v6431, 4294901760
        %v6433 = vsub.f32 %v6431, %v6432
        %v6434 = vand.u32 %v6433, 4294901760
        %6435 = vmatprep.subr.mxu0 %v6434
        %v6436 = vand.u32 %v1267, 4294901760
        %v6437 = vsub.f32 %v1267, %v6436
        %v6438 = vand.u32 %v6437, 4294901760
        %v6439 = vsub.f32 %v6437, %v6438
        %v6440 = vand.u32 %v6439, 4294901760
        %6441 = vmatpush1.msra.mxu0 %v6440
        %v6442 = vand.u32 %v1270, 4294901760
        %v6443 = vsub.f32 %v1270, %v6442
        %v6444 = vand.u32 %v6443, 4294901760
        %v6445 = vsub.f32 %v6443, %v6444
        %v6446 = vand.u32 %v6445, 4294901760
        %6447 = vmatprep.subr.mxu0 %v6446
        %v6448 = vand.u32 %v1269, 4294901760
        %v6449 = vsub.f32 %v1269, %v6448
        %v6450 = vand.u32 %v6449, 4294901760
        %v6451 = vsub.f32 %v6449, %v6450
        %v6452 = vand.u32 %v6451, 4294901760
        %6453 = vmatpush1.msra.mxu0 %v6452
        %v6454 = vand.u32 %v1272, 4294901760
        %v6455 = vsub.f32 %v1272, %v6454
        %v6456 = vand.u32 %v6455, 4294901760
        %v6457 = vsub.f32 %v6455, %v6456
        %v6458 = vand.u32 %v6457, 4294901760
        %6459 = vmatprep.subr.mxu0 %v6458
        %v6460 = vand.u32 %v1271, 4294901760
        %v6461 = vsub.f32 %v1271, %v6460
        %v6462 = vand.u32 %v6461, 4294901760
        %v6463 = vsub.f32 %v6461, %v6462
        %v6464 = vand.u32 %v6463, 4294901760
        %6465 = vmatpush1.msra.mxu0 %v6464
        %v6466 = vand.u32 %v1274, 4294901760
        %v6467 = vsub.f32 %v1274, %v6466
        %v6468 = vand.u32 %v6467, 4294901760
        %v6469 = vsub.f32 %v6467, %v6468
        %v6470 = vand.u32 %v6469, 4294901760
        %6471 = vmatprep.subr.mxu0 %v6470
        %v6472 = vand.u32 %v1273, 4294901760
        %v6473 = vsub.f32 %v1273, %v6472
        %v6474 = vand.u32 %v6473, 4294901760
        %v6475 = vsub.f32 %v6473, %v6474
        %v6476 = vand.u32 %v6475, 4294901760
        %6477 = vmatpush1.msra.mxu0 %v6476
        %v6478 = vand.u32 %v1276, 4294901760
        %v6479 = vsub.f32 %v1276, %v6478
        %v6480 = vand.u32 %v6479, 4294901760
        %v6481 = vsub.f32 %v6479, %v6480
        %v6482 = vand.u32 %v6481, 4294901760
        %6483 = vmatprep.subr.mxu0 %v6482
        %v6484 = vand.u32 %v1275, 4294901760
        %v6485 = vsub.f32 %v1275, %v6484
        %v6486 = vand.u32 %v6485, 4294901760
        %v6487 = vsub.f32 %v6485, %v6486
        %v6488 = vand.u32 %v6487, 4294901760
        %6489 = vmatpush1.msra.mxu0 %v6488
        %v6490 = vand.u32 %v1278, 4294901760
        %v6491 = vsub.f32 %v1278, %v6490
        %v6492 = vand.u32 %v6491, 4294901760
        %v6493 = vsub.f32 %v6491, %v6492
        %v6494 = vand.u32 %v6493, 4294901760
        %6495 = vmatprep.subr.mxu0 %v6494
        %v6496 = vand.u32 %v1277, 4294901760
        %v6497 = vsub.f32 %v1277, %v6496
        %v6498 = vand.u32 %v6497, 4294901760
        %v6499 = vsub.f32 %v6497, %v6498
        %v6500 = vand.u32 %v6499, 4294901760
        %6501 = vmatpush1.msra.mxu0 %v6500
        %v6502 = vand.u32 %v1280, 4294901760
        %v6503 = vsub.f32 %v1280, %v6502
        %v6504 = vand.u32 %v6503, 4294901760
        %v6505 = vsub.f32 %v6503, %v6504
        %v6506 = vand.u32 %v6505, 4294901760
        %6507 = vmatprep.subr.mxu0 %v6506
        %v6508 = vand.u32 %v1279, 4294901760
        %v6509 = vsub.f32 %v1279, %v6508
        %v6510 = vand.u32 %v6509, 4294901760
        %v6511 = vsub.f32 %v6509, %v6510
        %v6512 = vand.u32 %v6511, 4294901760
        %6513 = vmatpush1.msra.mxu0 %v6512
        %v6514 = vand.u32 %v1282, 4294901760
        %v6515 = vsub.f32 %v1282, %v6514
        %v6516 = vand.u32 %v6515, 4294901760
        %v6517 = vsub.f32 %v6515, %v6516
        %v6518 = vand.u32 %v6517, 4294901760
        %6519 = vmatprep.subr.mxu0 %v6518
        %v6520 = vand.u32 %v1281, 4294901760
        %v6521 = vsub.f32 %v1281, %v6520
        %v6522 = vand.u32 %v6521, 4294901760
        %v6523 = vsub.f32 %v6521, %v6522
        %v6524 = vand.u32 %v6523, 4294901760
        %6525 = vmatpush1.msra.mxu0 %v6524
        %v6526 = vand.u32 %v1284, 4294901760
        %v6527 = vsub.f32 %v1284, %v6526
        %v6528 = vand.u32 %v6527, 4294901760
        %v6529 = vsub.f32 %v6527, %v6528
        %v6530 = vand.u32 %v6529, 4294901760
        %6531 = vmatprep.subr.mxu0 %v6530
        %v6532 = vand.u32 %v1283, 4294901760
        %v6533 = vsub.f32 %v1283, %v6532
        %v6534 = vand.u32 %v6533, 4294901760
        %v6535 = vsub.f32 %v6533, %v6534
        %v6536 = vand.u32 %v6535, 4294901760
        %6537 = vmatpush1.msra.mxu0 %v6536
        %v6538 = vand.u32 %v1286, 4294901760
        %v6539 = vsub.f32 %v1286, %v6538
        %v6540 = vand.u32 %v6539, 4294901760
        %v6541 = vsub.f32 %v6539, %v6540
        %v6542 = vand.u32 %v6541, 4294901760
        %6543 = vmatprep.subr.mxu0 %v6542
        %v6544 = vand.u32 %v1285, 4294901760
        %v6545 = vsub.f32 %v1285, %v6544
        %v6546 = vand.u32 %v6545, 4294901760
        %v6547 = vsub.f32 %v6545, %v6546
        %v6548 = vand.u32 %v6547, 4294901760
        %6549 = vmatpush1.msra.mxu0 %v6548
        %v6550 = vand.u32 %v1288, 4294901760
        %v6551 = vsub.f32 %v1288, %v6550
        %v6552 = vand.u32 %v6551, 4294901760
        %v6553 = vsub.f32 %v6551, %v6552
        %v6554 = vand.u32 %v6553, 4294901760
        %6555 = vmatprep.subr.mxu0 %v6554
        %v6556 = vand.u32 %v1287, 4294901760
        %v6557 = vsub.f32 %v1287, %v6556
        %v6558 = vand.u32 %v6557, 4294901760
        %v6559 = vsub.f32 %v6557, %v6558
        %v6560 = vand.u32 %v6559, 4294901760
        %6561 = vmatpush1.msra.mxu0 %v6560
        %v6562 = vand.u32 %v1290, 4294901760
        %v6563 = vsub.f32 %v1290, %v6562
        %v6564 = vand.u32 %v6563, 4294901760
        %v6565 = vsub.f32 %v6563, %v6564
        %v6566 = vand.u32 %v6565, 4294901760
        %6567 = vmatprep.subr.mxu0 %v6566
        %v6568 = vand.u32 %v1289, 4294901760
        %v6569 = vsub.f32 %v1289, %v6568
        %v6570 = vand.u32 %v6569, 4294901760
        %v6571 = vsub.f32 %v6569, %v6570
        %v6572 = vand.u32 %v6571, 4294901760
        %6573 = vmatpush1.msra.mxu0 %v6572
        %v6574 = vand.u32 %v1292, 4294901760
        %v6575 = vsub.f32 %v1292, %v6574
        %v6576 = vand.u32 %v6575, 4294901760
        %v6577 = vsub.f32 %v6575, %v6576
        %v6578 = vand.u32 %v6577, 4294901760
        %6579 = vmatprep.subr.mxu0 %v6578
        %v6580 = vand.u32 %v1291, 4294901760
        %v6581 = vsub.f32 %v1291, %v6580
        %v6582 = vand.u32 %v6581, 4294901760
        %v6583 = vsub.f32 %v6581, %v6582
        %v6584 = vand.u32 %v6583, 4294901760
        %6585 = vmatpush1.msra.mxu0 %v6584
        %v6586 = vand.u32 %v1294, 4294901760
        %v6587 = vsub.f32 %v1294, %v6586
        %v6588 = vand.u32 %v6587, 4294901760
        %v6589 = vsub.f32 %v6587, %v6588
        %v6590 = vand.u32 %v6589, 4294901760
        %6591 = vmatprep.subr.mxu0 %v6590
        %v6592 = vand.u32 %v1293, 4294901760
        %v6593 = vsub.f32 %v1293, %v6592
        %v6594 = vand.u32 %v6593, 4294901760
        %v6595 = vsub.f32 %v6593, %v6594
        %v6596 = vand.u32 %v6595, 4294901760
        %6597 = vmatpush1.msra.mxu0 %v6596
        %v6598 = vand.u32 %v4446, 4294901760
        %6599 = vmatprep.mubr.f32.mxu0 %v6598
        %v6600 = vand.u32 %v4445, 4294901760
        %6601 = vmatmul.mubr.f32.gmra.mrb[0].mxu0 %v6600
        %v6602 = vpop.f32.mrb[0].mxu0
        %v6603 = vadd.f32 %v6146, %v6602
        %v6604 = vpop.f32.mrb[0].mxu0
        %v6605 = vadd.f32 %v6148, %v6604
        %v6606 = vand.u32 %v4452, 4294901760
        %6607 = vmatprep.mubr.f32.mxu0 %v6606
        %v6608 = vand.u32 %v4451, 4294901760
        %6609 = vmatmul.mubr.f32.gmra.mrb[0].mxu0 %v6608
        %v6610 = vpop.f32.mrb[0].mxu0
        %v6611 = vadd.f32 %v6162, %v6610
        %v6612 = vpop.f32.mrb[0].mxu0
        %v6613 = vadd.f32 %v6164, %v6612
        %v6614 = vand.u32 %v4458, 4294901760
        %6615 = vmatprep.mubr.f32.mxu0 %v6614
        %v6616 = vand.u32 %v4457, 4294901760
        %6617 = vmatmul.mubr.f32.gmra.mrb[0].mxu0 %v6616
        %v6618 = vpop.f32.mrb[0].mxu0
        %v6619 = vadd.f32 %v6178, %v6618
        %v6620 = vpop.f32.mrb[0].mxu0
        %v6621 = vadd.f32 %v6180, %v6620
        %v6622 = vand.u32 %v4464, 4294901760
        %6623 = vmatprep.mubr.f32.mxu0 %v6622
        %v6624 = vand.u32 %v4463, 4294901760
        %6625 = vmatmul.mubr.f32.gmra.mrb[0].mxu0 %v6624
        %v6626 = vpop.f32.mrb[0].mxu0
        %v6627 = vadd.f32 %v6194, %v6626
        %v6628 = vpop.f32.mrb[0].mxu0
        %v6629 = vadd.f32 %v6196, %v6628
        %v6630 = vand.u32 %v4470, 4294901760
        %6631 = vmatprep.mubr.f32.mxu0 %v6630
        %v6632 = vand.u32 %v4469, 4294901760
        %6633 = vmatmul.mubr.f32.gmra.mrb[0].mxu0 %v6632
        %v6634 = vpop.f32.mrb[0].mxu0
        %v6635 = vadd.f32 %v6210, %v6634
        %v6636 = vpop.f32.mrb[0].mxu0
        %v6637 = vadd.f32 %v6212, %v6636
        %6638 = vdwg.mxu0
        %v6639 = vand.u32 %v1232, 4294901760
        %v6640 = vsub.f32 %v1232, %v6639
        %6641 = vmatprep.subr.mxu0 %v6640
        %v6642 = vand.u32 %v1231, 4294901760
        %v6643 = vsub.f32 %v1231, %v6642
        %6644 = vmatpush1.msra.mxu0 %v6643
        %v6645 = vand.u32 %v1234, 4294901760
        %v6646 = vsub.f32 %v1234, %v6645
        %6647 = vmatprep.subr.mxu0 %v6646
        %v6648 = vand.u32 %v1233, 4294901760
        %v6649 = vsub.f32 %v1233, %v6648
        %6650 = vmatpush1.msra.mxu0 %v6649
        %v6651 = vand.u32 %v1236, 4294901760
        %v6652 = vsub.f32 %v1236, %v6651
        %6653 = vmatprep.subr.mxu0 %v6652
        %v6654 = vand.u32 %v1235, 4294901760
        %v6655 = vsub.f32 %v1235, %v6654
        %6656 = vmatpush1.msra.mxu0 %v6655
        %v6657 = vand.u32 %v1238, 4294901760
        %v6658 = vsub.f32 %v1238, %v6657
        %6659 = vmatprep.subr.mxu0 %v6658
        %v6660 = vand.u32 %v1237, 4294901760
        %v6661 = vsub.f32 %v1237, %v6660
        %6662 = vmatpush1.msra.mxu0 %v6661
        %v6663 = vand.u32 %v1240, 4294901760
        %v6664 = vsub.f32 %v1240, %v6663
        %6665 = vmatprep.subr.mxu0 %v6664
        %v6666 = vand.u32 %v1239, 4294901760
        %v6667 = vsub.f32 %v1239, %v6666
        %6668 = vmatpush1.msra.mxu0 %v6667
        %v6669 = vand.u32 %v1242, 4294901760
        %v6670 = vsub.f32 %v1242, %v6669
        %6671 = vmatprep.subr.mxu0 %v6670
        %v6672 = vand.u32 %v1241, 4294901760
        %v6673 = vsub.f32 %v1241, %v6672
        %6674 = vmatpush1.msra.mxu0 %v6673
        %v6675 = vand.u32 %v1244, 4294901760
        %v6676 = vsub.f32 %v1244, %v6675
        %6677 = vmatprep.subr.mxu0 %v6676
        %v6678 = vand.u32 %v1243, 4294901760
        %v6679 = vsub.f32 %v1243, %v6678
        %6680 = vmatpush1.msra.mxu0 %v6679
        %v6681 = vand.u32 %v1246, 4294901760
        %v6682 = vsub.f32 %v1246, %v6681
        %6683 = vmatprep.subr.mxu0 %v6682
        %v6684 = vand.u32 %v1245, 4294901760
        %v6685 = vsub.f32 %v1245, %v6684
        %6686 = vmatpush1.msra.mxu0 %v6685
        %v6687 = vand.u32 %v1248, 4294901760
        %v6688 = vsub.f32 %v1248, %v6687
        %6689 = vmatprep.subr.mxu0 %v6688
        %v6690 = vand.u32 %v1247, 4294901760
        %v6691 = vsub.f32 %v1247, %v6690
        %6692 = vmatpush1.msra.mxu0 %v6691
        %v6693 = vand.u32 %v1250, 4294901760
        %v6694 = vsub.f32 %v1250, %v6693
        %6695 = vmatprep.subr.mxu0 %v6694
        %v6696 = vand.u32 %v1249, 4294901760
        %v6697 = vsub.f32 %v1249, %v6696
        %6698 = vmatpush1.msra.mxu0 %v6697
        %v6699 = vand.u32 %v1252, 4294901760
        %v6700 = vsub.f32 %v1252, %v6699
        %6701 = vmatprep.subr.mxu0 %v6700
        %v6702 = vand.u32 %v1251, 4294901760
        %v6703 = vsub.f32 %v1251, %v6702
        %6704 = vmatpush1.msra.mxu0 %v6703
        %v6705 = vand.u32 %v1254, 4294901760
        %v6706 = vsub.f32 %v1254, %v6705
        %6707 = vmatprep.subr.mxu0 %v6706
        %v6708 = vand.u32 %v1253, 4294901760
        %v6709 = vsub.f32 %v1253, %v6708
        %6710 = vmatpush1.msra.mxu0 %v6709
        %v6711 = vand.u32 %v1256, 4294901760
        %v6712 = vsub.f32 %v1256, %v6711
        %6713 = vmatprep.subr.mxu0 %v6712
        %v6714 = vand.u32 %v1255, 4294901760
        %v6715 = vsub.f32 %v1255, %v6714
        %6716 = vmatpush1.msra.mxu0 %v6715
        %v6717 = vand.u32 %v1258, 4294901760
        %v6718 = vsub.f32 %v1258, %v6717
        %6719 = vmatprep.subr.mxu0 %v6718
        %v6720 = vand.u32 %v1257, 4294901760
        %v6721 = vsub.f32 %v1257, %v6720
        %6722 = vmatpush1.msra.mxu0 %v6721
        %v6723 = vand.u32 %v1260, 4294901760
        %v6724 = vsub.f32 %v1260, %v6723
        %6725 = vmatprep.subr.mxu0 %v6724
        %v6726 = vand.u32 %v1259, 4294901760
        %v6727 = vsub.f32 %v1259, %v6726
        %6728 = vmatpush1.msra.mxu0 %v6727
        %v6729 = vand.u32 %v1262, 4294901760
        %v6730 = vsub.f32 %v1262, %v6729
        %6731 = vmatprep.subr.mxu0 %v6730
        %v6732 = vand.u32 %v1261, 4294901760
        %v6733 = vsub.f32 %v1261, %v6732
        %6734 = vmatpush1.msra.mxu0 %v6733
        %v6735 = vand.u32 %v1264, 4294901760
        %v6736 = vsub.f32 %v1264, %v6735
        %6737 = vmatprep.subr.mxu0 %v6736
        %v6738 = vand.u32 %v1263, 4294901760
        %v6739 = vsub.f32 %v1263, %v6738
        %6740 = vmatpush1.msra.mxu0 %v6739
        %v6741 = vand.u32 %v1266, 4294901760
        %v6742 = vsub.f32 %v1266, %v6741
        %6743 = vmatprep.subr.mxu0 %v6742
        %v6744 = vand.u32 %v1265, 4294901760
        %v6745 = vsub.f32 %v1265, %v6744
        %6746 = vmatpush1.msra.mxu0 %v6745
        %v6747 = vand.u32 %v1268, 4294901760
        %v6748 = vsub.f32 %v1268, %v6747
        %6749 = vmatprep.subr.mxu0 %v6748
        %v6750 = vand.u32 %v1267, 4294901760
        %v6751 = vsub.f32 %v1267, %v6750
        %6752 = vmatpush1.msra.mxu0 %v6751
        %v6753 = vand.u32 %v1270, 4294901760
        %v6754 = vsub.f32 %v1270, %v6753
        %6755 = vmatprep.subr.mxu0 %v6754
        %v6756 = vand.u32 %v1269, 4294901760
        %v6757 = vsub.f32 %v1269, %v6756
        %6758 = vmatpush1.msra.mxu0 %v6757
        %v6759 = vand.u32 %v1272, 4294901760
        %v6760 = vsub.f32 %v1272, %v6759
        %6761 = vmatprep.subr.mxu0 %v6760
        %v6762 = vand.u32 %v1271, 4294901760
        %v6763 = vsub.f32 %v1271, %v6762
        %6764 = vmatpush1.msra.mxu0 %v6763
        %v6765 = vand.u32 %v1274, 4294901760
        %v6766 = vsub.f32 %v1274, %v6765
        %6767 = vmatprep.subr.mxu0 %v6766
        %v6768 = vand.u32 %v1273, 4294901760
        %v6769 = vsub.f32 %v1273, %v6768
        %6770 = vmatpush1.msra.mxu0 %v6769
        %v6771 = vand.u32 %v1276, 4294901760
        %v6772 = vsub.f32 %v1276, %v6771
        %6773 = vmatprep.subr.mxu0 %v6772
        %v6774 = vand.u32 %v1275, 4294901760
        %v6775 = vsub.f32 %v1275, %v6774
        %6776 = vmatpush1.msra.mxu0 %v6775
        %v6777 = vand.u32 %v1278, 4294901760
        %v6778 = vsub.f32 %v1278, %v6777
        %6779 = vmatprep.subr.mxu0 %v6778
        %v6780 = vand.u32 %v1277, 4294901760
        %v6781 = vsub.f32 %v1277, %v6780
        %6782 = vmatpush1.msra.mxu0 %v6781
        %v6783 = vand.u32 %v1280, 4294901760
        %v6784 = vsub.f32 %v1280, %v6783
        %6785 = vmatprep.subr.mxu0 %v6784
        %v6786 = vand.u32 %v1279, 4294901760
        %v6787 = vsub.f32 %v1279, %v6786
        %6788 = vmatpush1.msra.mxu0 %v6787
        %v6789 = vand.u32 %v1282, 4294901760
        %v6790 = vsub.f32 %v1282, %v6789
        %6791 = vmatprep.subr.mxu0 %v6790
        %v6792 = vand.u32 %v1281, 4294901760
        %v6793 = vsub.f32 %v1281, %v6792
        %6794 = vmatpush1.msra.mxu0 %v6793
        %v6795 = vand.u32 %v1284, 4294901760
        %v6796 = vsub.f32 %v1284, %v6795
        %6797 = vmatprep.subr.mxu0 %v6796
        %v6798 = vand.u32 %v1283, 4294901760
        %v6799 = vsub.f32 %v1283, %v6798
        %6800 = vmatpush1.msra.mxu0 %v6799
        %v6801 = vand.u32 %v1286, 4294901760
        %v6802 = vsub.f32 %v1286, %v6801
        %6803 = vmatprep.subr.mxu0 %v6802
        %v6804 = vand.u32 %v1285, 4294901760
        %v6805 = vsub.f32 %v1285, %v6804
        %6806 = vmatpush1.msra.mxu0 %v6805
        %v6807 = vand.u32 %v1288, 4294901760
        %v6808 = vsub.f32 %v1288, %v6807
        %6809 = vmatprep.subr.mxu0 %v6808
        %v6810 = vand.u32 %v1287, 4294901760
        %v6811 = vsub.f32 %v1287, %v6810
        %6812 = vmatpush1.msra.mxu0 %v6811
        %v6813 = vand.u32 %v1290, 4294901760
        %v6814 = vsub.f32 %v1290, %v6813
        %6815 = vmatprep.subr.mxu0 %v6814
        %v6816 = vand.u32 %v1289, 4294901760
        %v6817 = vsub.f32 %v1289, %v6816
        %6818 = vmatpush1.msra.mxu0 %v6817
        %v6819 = vand.u32 %v1292, 4294901760
        %v6820 = vsub.f32 %v1292, %v6819
        %6821 = vmatprep.subr.mxu0 %v6820
        %v6822 = vand.u32 %v1291, 4294901760
        %v6823 = vsub.f32 %v1291, %v6822
        %6824 = vmatpush1.msra.mxu0 %v6823
        %v6825 = vand.u32 %v1294, 4294901760
        %v6826 = vsub.f32 %v1294, %v6825
        %6827 = vmatprep.subr.mxu0 %v6826
        %v6828 = vand.u32 %v1293, 4294901760
        %v6829 = vsub.f32 %v1293, %v6828
        %6830 = vmatpush1.msra.mxu0 %v6829
        %v6831 = vand.u32 %v4446, 4294901760
        %v6832 = vsub.f32 %v4446, %v6831
        %6833 = vmatprep.mubr.f32.mxu0 %v6832
        %v6834 = vand.u32 %v4445, 4294901760
        %v6835 = vsub.f32 %v4445, %v6834
        %6836 = vmatmul.mubr.f32.gmra.mrb[0].mxu0 %v6835
        %v6837 = vpop.f32.mrb[0].mxu0
        %v6838 = vadd.f32 %v6603, %v6837
        %v6839 = vpop.f32.mrb[0].mxu0
        %v6840 = vadd.f32 %v6605, %v6839
        %v6841 = vand.u32 %v4452, 4294901760
        %v6842 = vsub.f32 %v4452, %v6841
        %6843 = vmatprep.mubr.f32.mxu0 %v6842
        %v6844 = vand.u32 %v4451, 4294901760
        %v6845 = vsub.f32 %v4451, %v6844
        %6846 = vmatmul.mubr.f32.gmra.mrb[0].mxu0 %v6845
        %v6847 = vpop.f32.mrb[0].mxu0
        %v6848 = vadd.f32 %v6611, %v6847
        %v6849 = vpop.f32.mrb[0].mxu0
        %v6850 = vadd.f32 %v6613, %v6849
        %v6851 = vand.u32 %v4458, 4294901760
        %v6852 = vsub.f32 %v4458, %v6851
        %6853 = vmatprep.mubr.f32.mxu0 %v6852
        %v6854 = vand.u32 %v4457, 4294901760
        %v6855 = vsub.f32 %v4457, %v6854
        %6856 = vmatmul.mubr.f32.gmra.mrb[0].mxu0 %v6855
        %v6857 = vpop.f32.mrb[0].mxu0
        %v6858 = vadd.f32 %v6619, %v6857
        %v6859 = vpop.f32.mrb[0].mxu0
        %v6860 = vadd.f32 %v6621, %v6859
        %v6861 = vand.u32 %v4464, 4294901760
        %v6862 = vsub.f32 %v4464, %v6861
        %6863 = vmatprep.mubr.f32.mxu0 %v6862
        %v6864 = vand.u32 %v4463, 4294901760
        %v6865 = vsub.f32 %v4463, %v6864
        %6866 = vmatmul.mubr.f32.gmra.mrb[0].mxu0 %v6865
        %v6867 = vpop.f32.mrb[0].mxu0
        %v6868 = vadd.f32 %v6627, %v6867
        %v6869 = vpop.f32.mrb[0].mxu0
        %v6870 = vadd.f32 %v6629, %v6869
        %v6871 = vand.u32 %v4470, 4294901760
        %v6872 = vsub.f32 %v4470, %v6871
        %6873 = vmatprep.mubr.f32.mxu0 %v6872
        %v6874 = vand.u32 %v4469, 4294901760
        %v6875 = vsub.f32 %v4469, %v6874
        %6876 = vmatmul.mubr.f32.gmra.mrb[0].mxu0 %v6875
        %v6877 = vpop.f32.mrb[0].mxu0
        %v6878 = vadd.f32 %v6635, %v6877
        %v6879 = vpop.f32.mrb[0].mxu0
        %v6880 = vadd.f32 %v6637, %v6879
        %6881 = vdwg.mxu0
        %v6882 = vand.u32 %v1232, 4294901760
        %6883 = vmatprep.subr.mxu0 %v6882
        %v6884 = vand.u32 %v1231, 4294901760
        %6885 = vmatpush1.msra.mxu0 %v6884
        %v6886 = vand.u32 %v1234, 4294901760
        %6887 = vmatprep.subr.mxu0 %v6886
        %v6888 = vand.u32 %v1233, 4294901760
        %6889 = vmatpush1.msra.mxu0 %v6888
        %v6890 = vand.u32 %v1236, 4294901760
        %6891 = vmatprep.subr.mxu0 %v6890
        %v6892 = vand.u32 %v1235, 4294901760
        %6893 = vmatpush1.msra.mxu0 %v6892
        %v6894 = vand.u32 %v1238, 4294901760
        %6895 = vmatprep.subr.mxu0 %v6894
        %v6896 = vand.u32 %v1237, 4294901760
        %6897 = vmatpush1.msra.mxu0 %v6896
        %v6898 = vand.u32 %v1240, 4294901760
        %6899 = vmatprep.subr.mxu0 %v6898
        %v6900 = vand.u32 %v1239, 4294901760
        %6901 = vmatpush1.msra.mxu0 %v6900
        %v6902 = vand.u32 %v1242, 4294901760
        %6903 = vmatprep.subr.mxu0 %v6902
        %v6904 = vand.u32 %v1241, 4294901760
        %6905 = vmatpush1.msra.mxu0 %v6904
        %v6906 = vand.u32 %v1244, 4294901760
        %6907 = vmatprep.subr.mxu0 %v6906
        %v6908 = vand.u32 %v1243, 4294901760
        %6909 = vmatpush1.msra.mxu0 %v6908
        %v6910 = vand.u32 %v1246, 4294901760
        %6911 = vmatprep.subr.mxu0 %v6910
        %v6912 = vand.u32 %v1245, 4294901760
        %6913 = vmatpush1.msra.mxu0 %v6912
        %v6914 = vand.u32 %v1248, 4294901760
        %6915 = vmatprep.subr.mxu0 %v6914
        %v6916 = vand.u32 %v1247, 4294901760
        %6917 = vmatpush1.msra.mxu0 %v6916
        %v6918 = vand.u32 %v1250, 4294901760
        %6919 = vmatprep.subr.mxu0 %v6918
        %v6920 = vand.u32 %v1249, 4294901760
        %6921 = vmatpush1.msra.mxu0 %v6920
        %v6922 = vand.u32 %v1252, 4294901760
        %6923 = vmatprep.subr.mxu0 %v6922
        %v6924 = vand.u32 %v1251, 4294901760
        %6925 = vmatpush1.msra.mxu0 %v6924
        %v6926 = vand.u32 %v1254, 4294901760
        %6927 = vmatprep.subr.mxu0 %v6926
        %v6928 = vand.u32 %v1253, 4294901760
        %6929 = vmatpush1.msra.mxu0 %v6928
        %v6930 = vand.u32 %v1256, 4294901760
        %6931 = vmatprep.subr.mxu0 %v6930
        %v6932 = vand.u32 %v1255, 4294901760
        %6933 = vmatpush1.msra.mxu0 %v6932
        %v6934 = vand.u32 %v1258, 4294901760
        %6935 = vmatprep.subr.mxu0 %v6934
        %v6936 = vand.u32 %v1257, 4294901760
        %6937 = vmatpush1.msra.mxu0 %v6936
        %v6938 = vand.u32 %v1260, 4294901760
        %6939 = vmatprep.subr.mxu0 %v6938
        %v6940 = vand.u32 %v1259, 4294901760
        %6941 = vmatpush1.msra.mxu0 %v6940
        %v6942 = vand.u32 %v1262, 4294901760
        %6943 = vmatprep.subr.mxu0 %v6942
        %v6944 = vand.u32 %v1261, 4294901760
        %6945 = vmatpush1.msra.mxu0 %v6944
        %v6946 = vand.u32 %v1264, 4294901760
        %6947 = vmatprep.subr.mxu0 %v6946
        %v6948 = vand.u32 %v1263, 4294901760
        %6949 = vmatpush1.msra.mxu0 %v6948
        %v6950 = vand.u32 %v1266, 4294901760
        %6951 = vmatprep.subr.mxu0 %v6950
        %v6952 = vand.u32 %v1265, 4294901760
        %6953 = vmatpush1.msra.mxu0 %v6952
        %v6954 = vand.u32 %v1268, 4294901760
        %6955 = vmatprep.subr.mxu0 %v6954
        %v6956 = vand.u32 %v1267, 4294901760
        %6957 = vmatpush1.msra.mxu0 %v6956
        %v6958 = vand.u32 %v1270, 4294901760
        %6959 = vmatprep.subr.mxu0 %v6958
        %v6960 = vand.u32 %v1269, 4294901760
        %6961 = vmatpush1.msra.mxu0 %v6960
        %v6962 = vand.u32 %v1272, 4294901760
        %6963 = vmatprep.subr.mxu0 %v6962
        %v6964 = vand.u32 %v1271, 4294901760
        %6965 = vmatpush1.msra.mxu0 %v6964
        %v6966 = vand.u32 %v1274, 4294901760
        %6967 = vmatprep.subr.mxu0 %v6966
        %v6968 = vand.u32 %v1273, 4294901760
        %6969 = vmatpush1.msra.mxu0 %v6968
        %v6970 = vand.u32 %v1276, 4294901760
        %6971 = vmatprep.subr.mxu0 %v6970
        %v6972 = vand.u32 %v1275, 4294901760
        %6973 = vmatpush1.msra.mxu0 %v6972
        %v6974 = vand.u32 %v1278, 4294901760
        %6975 = vmatprep.subr.mxu0 %v6974
        %v6976 = vand.u32 %v1277, 4294901760
        %6977 = vmatpush1.msra.mxu0 %v6976
        %v6978 = vand.u32 %v1280, 4294901760
        %6979 = vmatprep.subr.mxu0 %v6978
        %v6980 = vand.u32 %v1279, 4294901760
        %6981 = vmatpush1.msra.mxu0 %v6980
        %v6982 = vand.u32 %v1282, 4294901760
        %6983 = vmatprep.subr.mxu0 %v6982
        %v6984 = vand.u32 %v1281, 4294901760
        %6985 = vmatpush1.msra.mxu0 %v6984
        %v6986 = vand.u32 %v1284, 4294901760
        %6987 = vmatprep.subr.mxu0 %v6986
        %v6988 = vand.u32 %v1283, 4294901760
        %6989 = vmatpush1.msra.mxu0 %v6988
        %v6990 = vand.u32 %v1286, 4294901760
        %6991 = vmatprep.subr.mxu0 %v6990
        %v6992 = vand.u32 %v1285, 4294901760
        %6993 = vmatpush1.msra.mxu0 %v6992
        %v6994 = vand.u32 %v1288, 4294901760
        %6995 = vmatprep.subr.mxu0 %v6994
        %v6996 = vand.u32 %v1287, 4294901760
        %6997 = vmatpush1.msra.mxu0 %v6996
        %v6998 = vand.u32 %v1290, 4294901760
        %6999 = vmatprep.subr.mxu0 %v6998
        %v7000 = vand.u32 %v1289, 4294901760
        %7001 = vmatpush1.msra.mxu0 %v7000
        %v7002 = vand.u32 %v1292, 4294901760
        %7003 = vmatprep.subr.mxu0 %v7002
        %v7004 = vand.u32 %v1291, 4294901760
        %7005 = vmatpush1.msra.mxu0 %v7004
        %v7006 = vand.u32 %v1294, 4294901760
        %7007 = vmatprep.subr.mxu0 %v7006
        %v7008 = vand.u32 %v1293, 4294901760
        %7009 = vmatpush1.msra.mxu0 %v7008
        %v7010 = vand.u32 %v4446, 4294901760
        %v7011 = vsub.f32 %v4446, %v7010
        %v7012 = vand.u32 %v7011, 4294901760
        %7013 = vmatprep.mubr.f32.mxu0 %v7012
        %v7014 = vand.u32 %v4445, 4294901760
        %v7015 = vsub.f32 %v4445, %v7014
        %v7016 = vand.u32 %v7015, 4294901760
        %7017 = vmatmul.mubr.f32.gmra.mrb[0].mxu0 %v7016
        %v7018 = vpop.f32.mrb[0].mxu0
        %v7019 = vadd.f32 %v6838, %v7018
        %v7020 = vpop.f32.mrb[0].mxu0
        %v7021 = vadd.f32 %v6840, %v7020
        %v7022 = vand.u32 %v4452, 4294901760
        %v7023 = vsub.f32 %v4452, %v7022
        %v7024 = vand.u32 %v7023, 4294901760
        %7025 = vmatprep.mubr.f32.mxu0 %v7024
        %v7026 = vand.u32 %v4451, 4294901760
        %v7027 = vsub.f32 %v4451, %v7026
        %v7028 = vand.u32 %v7027, 4294901760
        %7029 = vmatmul.mubr.f32.gmra.mrb[0].mxu0 %v7028
        %v7030 = vpop.f32.mrb[0].mxu0
        %v7031 = vadd.f32 %v6848, %v7030
        %v7032 = vpop.f32.mrb[0].mxu0
        %v7033 = vadd.f32 %v6850, %v7032
        %v7034 = vand.u32 %v4458, 4294901760
        %v7035 = vsub.f32 %v4458, %v7034
        %v7036 = vand.u32 %v7035, 4294901760
        %7037 = vmatprep.mubr.f32.mxu0 %v7036
        %v7038 = vand.u32 %v4457, 4294901760
        %v7039 = vsub.f32 %v4457, %v7038
        %v7040 = vand.u32 %v7039, 4294901760
        %7041 = vmatmul.mubr.f32.gmra.mrb[0].mxu0 %v7040
        %v7042 = vpop.f32.mrb[0].mxu0
        %v7043 = vadd.f32 %v6858, %v7042
        %v7044 = vpop.f32.mrb[0].mxu0
        %v7045 = vadd.f32 %v6860, %v7044
        %v7046 = vand.u32 %v4464, 4294901760
        %v7047 = vsub.f32 %v4464, %v7046
        %v7048 = vand.u32 %v7047, 4294901760
        %7049 = vmatprep.mubr.f32.mxu0 %v7048
        %v7050 = vand.u32 %v4463, 4294901760
        %v7051 = vsub.f32 %v4463, %v7050
        %v7052 = vand.u32 %v7051, 4294901760
        %7053 = vmatmul.mubr.f32.gmra.mrb[0].mxu0 %v7052
        %v7054 = vpop.f32.mrb[0].mxu0
        %v7055 = vadd.f32 %v6868, %v7054
        %v7056 = vpop.f32.mrb[0].mxu0
        %v7057 = vadd.f32 %v6870, %v7056
        %v7058 = vand.u32 %v4470, 4294901760
        %v7059 = vsub.f32 %v4470, %v7058
        %v7060 = vand.u32 %v7059, 4294901760
        %7061 = vmatprep.mubr.f32.mxu0 %v7060
        %v7062 = vand.u32 %v4469, 4294901760
        %v7063 = vsub.f32 %v4469, %v7062
        %v7064 = vand.u32 %v7063, 4294901760
        %7065 = vmatmul.mubr.f32.gmra.mrb[0].mxu0 %v7064
        %v7066 = vpop.f32.mrb[0].mxu0
        %v7067 = vadd.f32 %v6878, %v7066
        %v7068 = vpop.f32.mrb[0].mxu0
        %v7069 = vadd.f32 %v6880, %v7068
        %7070 = vdwg.mxu0
        %v7071 = vand.u32 %v1232, 4294901760
        %v7072 = vsub.f32 %v1232, %v7071
        %v7073 = vand.u32 %v7072, 4294901760
        %7074 = vmatprep.subr.mxu0 %v7073
        %v7075 = vand.u32 %v1231, 4294901760
        %v7076 = vsub.f32 %v1231, %v7075
        %v7077 = vand.u32 %v7076, 4294901760
        %7078 = vmatpush1.msra.mxu0 %v7077
        %v7079 = vand.u32 %v1234, 4294901760
        %v7080 = vsub.f32 %v1234, %v7079
        %v7081 = vand.u32 %v7080, 4294901760
        %7082 = vmatprep.subr.mxu0 %v7081
        %v7083 = vand.u32 %v1233, 4294901760
        %v7084 = vsub.f32 %v1233, %v7083
        %v7085 = vand.u32 %v7084, 4294901760
        %7086 = vmatpush1.msra.mxu0 %v7085
        %v7087 = vand.u32 %v1236, 4294901760
        %v7088 = vsub.f32 %v1236, %v7087
        %v7089 = vand.u32 %v7088, 4294901760
        %7090 = vmatprep.subr.mxu0 %v7089
        %v7091 = vand.u32 %v1235, 4294901760
        %v7092 = vsub.f32 %v1235, %v7091
        %v7093 = vand.u32 %v7092, 4294901760
        %7094 = vmatpush1.msra.mxu0 %v7093
        %v7095 = vand.u32 %v1238, 4294901760
        %v7096 = vsub.f32 %v1238, %v7095
        %v7097 = vand.u32 %v7096, 4294901760
        %7098 = vmatprep.subr.mxu0 %v7097
        %v7099 = vand.u32 %v1237, 4294901760
        %v7100 = vsub.f32 %v1237, %v7099
        %v7101 = vand.u32 %v7100, 4294901760
        %7102 = vmatpush1.msra.mxu0 %v7101
        %v7103 = vand.u32 %v1240, 4294901760
        %v7104 = vsub.f32 %v1240, %v7103
        %v7105 = vand.u32 %v7104, 4294901760
        %7106 = vmatprep.subr.mxu0 %v7105
        %v7107 = vand.u32 %v1239, 4294901760
        %v7108 = vsub.f32 %v1239, %v7107
        %v7109 = vand.u32 %v7108, 4294901760
        %7110 = vmatpush1.msra.mxu0 %v7109
        %v7111 = vand.u32 %v1242, 4294901760
        %v7112 = vsub.f32 %v1242, %v7111
        %v7113 = vand.u32 %v7112, 4294901760
        %7114 = vmatprep.subr.mxu0 %v7113
        %v7115 = vand.u32 %v1241, 4294901760
        %v7116 = vsub.f32 %v1241, %v7115
        %v7117 = vand.u32 %v7116, 4294901760
        %7118 = vmatpush1.msra.mxu0 %v7117
        %v7119 = vand.u32 %v1244, 4294901760
        %v7120 = vsub.f32 %v1244, %v7119
        %v7121 = vand.u32 %v7120, 4294901760
        %7122 = vmatprep.subr.mxu0 %v7121
        %v7123 = vand.u32 %v1243, 4294901760
        %v7124 = vsub.f32 %v1243, %v7123
        %v7125 = vand.u32 %v7124, 4294901760
        %7126 = vmatpush1.msra.mxu0 %v7125
        %v7127 = vand.u32 %v1246, 4294901760
        %v7128 = vsub.f32 %v1246, %v7127
        %v7129 = vand.u32 %v7128, 4294901760
        %7130 = vmatprep.subr.mxu0 %v7129
        %v7131 = vand.u32 %v1245, 4294901760
        %v7132 = vsub.f32 %v1245, %v7131
        %v7133 = vand.u32 %v7132, 4294901760
        %7134 = vmatpush1.msra.mxu0 %v7133
        %v7135 = vand.u32 %v1248, 4294901760
        %v7136 = vsub.f32 %v1248, %v7135
        %v7137 = vand.u32 %v7136, 4294901760
        %7138 = vmatprep.subr.mxu0 %v7137
        %v7139 = vand.u32 %v1247, 4294901760
        %v7140 = vsub.f32 %v1247, %v7139
        %v7141 = vand.u32 %v7140, 4294901760
        %7142 = vmatpush1.msra.mxu0 %v7141
        %v7143 = vand.u32 %v1250, 4294901760
        %v7144 = vsub.f32 %v1250, %v7143
        %v7145 = vand.u32 %v7144, 4294901760
        %7146 = vmatprep.subr.mxu0 %v7145
        %v7147 = vand.u32 %v1249, 4294901760
        %v7148 = vsub.f32 %v1249, %v7147
        %v7149 = vand.u32 %v7148, 4294901760
        %7150 = vmatpush1.msra.mxu0 %v7149
        %v7151 = vand.u32 %v1252, 4294901760
        %v7152 = vsub.f32 %v1252, %v7151
        %v7153 = vand.u32 %v7152, 4294901760
        %7154 = vmatprep.subr.mxu0 %v7153
        %v7155 = vand.u32 %v1251, 4294901760
        %v7156 = vsub.f32 %v1251, %v7155
        %v7157 = vand.u32 %v7156, 4294901760
        %7158 = vmatpush1.msra.mxu0 %v7157
        %v7159 = vand.u32 %v1254, 4294901760
        %v7160 = vsub.f32 %v1254, %v7159
        %v7161 = vand.u32 %v7160, 4294901760
        %7162 = vmatprep.subr.mxu0 %v7161
        %v7163 = vand.u32 %v1253, 4294901760
        %v7164 = vsub.f32 %v1253, %v7163
        %v7165 = vand.u32 %v7164, 4294901760
        %7166 = vmatpush1.msra.mxu0 %v7165
        %v7167 = vand.u32 %v1256, 4294901760
        %v7168 = vsub.f32 %v1256, %v7167
        %v7169 = vand.u32 %v7168, 4294901760
        %7170 = vmatprep.subr.mxu0 %v7169
        %v7171 = vand.u32 %v1255, 4294901760
        %v7172 = vsub.f32 %v1255, %v7171
        %v7173 = vand.u32 %v7172, 4294901760
        %7174 = vmatpush1.msra.mxu0 %v7173
        %v7175 = vand.u32 %v1258, 4294901760
        %v7176 = vsub.f32 %v1258, %v7175
        %v7177 = vand.u32 %v7176, 4294901760
        %7178 = vmatprep.subr.mxu0 %v7177
        %v7179 = vand.u32 %v1257, 4294901760
        %v7180 = vsub.f32 %v1257, %v7179
        %v7181 = vand.u32 %v7180, 4294901760
        %7182 = vmatpush1.msra.mxu0 %v7181
        %v7183 = vand.u32 %v1260, 4294901760
        %v7184 = vsub.f32 %v1260, %v7183
        %v7185 = vand.u32 %v7184, 4294901760
        %7186 = vmatprep.subr.mxu0 %v7185
        %v7187 = vand.u32 %v1259, 4294901760
        %v7188 = vsub.f32 %v1259, %v7187
        %v7189 = vand.u32 %v7188, 4294901760
        %7190 = vmatpush1.msra.mxu0 %v7189
        %v7191 = vand.u32 %v1262, 4294901760
        %v7192 = vsub.f32 %v1262, %v7191
        %v7193 = vand.u32 %v7192, 4294901760
        %7194 = vmatprep.subr.mxu0 %v7193
        %v7195 = vand.u32 %v1261, 4294901760
        %v7196 = vsub.f32 %v1261, %v7195
        %v7197 = vand.u32 %v7196, 4294901760
        %7198 = vmatpush1.msra.mxu0 %v7197
        %v7199 = vand.u32 %v1264, 4294901760
        %v7200 = vsub.f32 %v1264, %v7199
        %v7201 = vand.u32 %v7200, 4294901760
        %7202 = vmatprep.subr.mxu0 %v7201
        %v7203 = vand.u32 %v1263, 4294901760
        %v7204 = vsub.f32 %v1263, %v7203
        %v7205 = vand.u32 %v7204, 4294901760
        %7206 = vmatpush1.msra.mxu0 %v7205
        %v7207 = vand.u32 %v1266, 4294901760
        %v7208 = vsub.f32 %v1266, %v7207
        %v7209 = vand.u32 %v7208, 4294901760
        %7210 = vmatprep.subr.mxu0 %v7209
        %v7211 = vand.u32 %v1265, 4294901760
        %v7212 = vsub.f32 %v1265, %v7211
        %v7213 = vand.u32 %v7212, 4294901760
        %7214 = vmatpush1.msra.mxu0 %v7213
        %v7215 = vand.u32 %v1268, 4294901760
        %v7216 = vsub.f32 %v1268, %v7215
        %v7217 = vand.u32 %v7216, 4294901760
        %7218 = vmatprep.subr.mxu0 %v7217
        %v7219 = vand.u32 %v1267, 4294901760
        %v7220 = vsub.f32 %v1267, %v7219
        %v7221 = vand.u32 %v7220, 4294901760
        %7222 = vmatpush1.msra.mxu0 %v7221
        %v7223 = vand.u32 %v1270, 4294901760
        %v7224 = vsub.f32 %v1270, %v7223
        %v7225 = vand.u32 %v7224, 4294901760
        %7226 = vmatprep.subr.mxu0 %v7225
        %v7227 = vand.u32 %v1269, 4294901760
        %v7228 = vsub.f32 %v1269, %v7227
        %v7229 = vand.u32 %v7228, 4294901760
        %7230 = vmatpush1.msra.mxu0 %v7229
        %v7231 = vand.u32 %v1272, 4294901760
        %v7232 = vsub.f32 %v1272, %v7231
        %v7233 = vand.u32 %v7232, 4294901760
        %7234 = vmatprep.subr.mxu0 %v7233
        %v7235 = vand.u32 %v1271, 4294901760
        %v7236 = vsub.f32 %v1271, %v7235
        %v7237 = vand.u32 %v7236, 4294901760
        %7238 = vmatpush1.msra.mxu0 %v7237
        %v7239 = vand.u32 %v1274, 4294901760
        %v7240 = vsub.f32 %v1274, %v7239
        %v7241 = vand.u32 %v7240, 4294901760
        %7242 = vmatprep.subr.mxu0 %v7241
        %v7243 = vand.u32 %v1273, 4294901760
        %v7244 = vsub.f32 %v1273, %v7243
        %v7245 = vand.u32 %v7244, 4294901760
        %7246 = vmatpush1.msra.mxu0 %v7245
        %v7247 = vand.u32 %v1276, 4294901760
        %v7248 = vsub.f32 %v1276, %v7247
        %v7249 = vand.u32 %v7248, 4294901760
        %7250 = vmatprep.subr.mxu0 %v7249
        %v7251 = vand.u32 %v1275, 4294901760
        %v7252 = vsub.f32 %v1275, %v7251
        %v7253 = vand.u32 %v7252, 4294901760
        %7254 = vmatpush1.msra.mxu0 %v7253
        %v7255 = vand.u32 %v1278, 4294901760
        %v7256 = vsub.f32 %v1278, %v7255
        %v7257 = vand.u32 %v7256, 4294901760
        %7258 = vmatprep.subr.mxu0 %v7257
        %v7259 = vand.u32 %v1277, 4294901760
        %v7260 = vsub.f32 %v1277, %v7259
        %v7261 = vand.u32 %v7260, 4294901760
        %7262 = vmatpush1.msra.mxu0 %v7261
        %v7263 = vand.u32 %v1280, 4294901760
        %v7264 = vsub.f32 %v1280, %v7263
        %v7265 = vand.u32 %v7264, 4294901760
        %7266 = vmatprep.subr.mxu0 %v7265
        %v7267 = vand.u32 %v1279, 4294901760
        %v7268 = vsub.f32 %v1279, %v7267
        %v7269 = vand.u32 %v7268, 4294901760
        %7270 = vmatpush1.msra.mxu0 %v7269
        %v7271 = vand.u32 %v1282, 4294901760
        %v7272 = vsub.f32 %v1282, %v7271
        %v7273 = vand.u32 %v7272, 4294901760
        %7274 = vmatprep.subr.mxu0 %v7273
        %v7275 = vand.u32 %v1281, 4294901760
        %v7276 = vsub.f32 %v1281, %v7275
        %v7277 = vand.u32 %v7276, 4294901760
        %7278 = vmatpush1.msra.mxu0 %v7277
        %v7279 = vand.u32 %v1284, 4294901760
        %v7280 = vsub.f32 %v1284, %v7279
        %v7281 = vand.u32 %v7280, 4294901760
        %7282 = vmatprep.subr.mxu0 %v7281
        %v7283 = vand.u32 %v1283, 4294901760
        %v7284 = vsub.f32 %v1283, %v7283
        %v7285 = vand.u32 %v7284, 4294901760
        %7286 = vmatpush1.msra.mxu0 %v7285
        %v7287 = vand.u32 %v1286, 4294901760
        %v7288 = vsub.f32 %v1286, %v7287
        %v7289 = vand.u32 %v7288, 4294901760
        %7290 = vmatprep.subr.mxu0 %v7289
        %v7291 = vand.u32 %v1285, 4294901760
        %v7292 = vsub.f32 %v1285, %v7291
        %v7293 = vand.u32 %v7292, 4294901760
        %7294 = vmatpush1.msra.mxu0 %v7293
        %v7295 = vand.u32 %v1288, 4294901760
        %v7296 = vsub.f32 %v1288, %v7295
        %v7297 = vand.u32 %v7296, 4294901760
        %7298 = vmatprep.subr.mxu0 %v7297
        %v7299 = vand.u32 %v1287, 4294901760
        %v7300 = vsub.f32 %v1287, %v7299
        %v7301 = vand.u32 %v7300, 4294901760
        %7302 = vmatpush1.msra.mxu0 %v7301
        %v7303 = vand.u32 %v1290, 4294901760
        %v7304 = vsub.f32 %v1290, %v7303
        %v7305 = vand.u32 %v7304, 4294901760
        %7306 = vmatprep.subr.mxu0 %v7305
        %v7307 = vand.u32 %v1289, 4294901760
        %v7308 = vsub.f32 %v1289, %v7307
        %v7309 = vand.u32 %v7308, 4294901760
        %7310 = vmatpush1.msra.mxu0 %v7309
        %v7311 = vand.u32 %v1292, 4294901760
        %v7312 = vsub.f32 %v1292, %v7311
        %v7313 = vand.u32 %v7312, 4294901760
        %7314 = vmatprep.subr.mxu0 %v7313
        %v7315 = vand.u32 %v1291, 4294901760
        %v7316 = vsub.f32 %v1291, %v7315
        %v7317 = vand.u32 %v7316, 4294901760
        %7318 = vmatpush1.msra.mxu0 %v7317
        %v7319 = vand.u32 %v1294, 4294901760
        %v7320 = vsub.f32 %v1294, %v7319
        %v7321 = vand.u32 %v7320, 4294901760
        %7322 = vmatprep.subr.mxu0 %v7321
        %v7323 = vand.u32 %v1293, 4294901760
        %v7324 = vsub.f32 %v1293, %v7323
        %v7325 = vand.u32 %v7324, 4294901760
        %7326 = vmatpush1.msra.mxu0 %v7325
        %v7327 = vand.u32 %v4446, 4294901760
        %7328 = vmatprep.mubr.f32.mxu0 %v7327
        %v7329 = vand.u32 %v4445, 4294901760
        %7330 = vmatmul.mubr.f32.gmra.mrb[0].mxu0 %v7329
        %v7331 = vpop.f32.mrb[0].mxu0
        %v7332 = vadd.f32 %v7019, %v7331
        %v7333 = vpop.f32.mrb[0].mxu0
        %v7334 = vadd.f32 %v7021, %v7333
        %v7335 = vand.u32 %v4452, 4294901760
        %7336 = vmatprep.mubr.f32.mxu0 %v7335
        %v7337 = vand.u32 %v4451, 4294901760
        %7338 = vmatmul.mubr.f32.gmra.mrb[0].mxu0 %v7337
        %v7339 = vpop.f32.mrb[0].mxu0
        %v7340 = vadd.f32 %v7031, %v7339
        %v7341 = vpop.f32.mrb[0].mxu0
        %v7342 = vadd.f32 %v7033, %v7341
        %v7343 = vand.u32 %v4458, 4294901760
        %7344 = vmatprep.mubr.f32.mxu0 %v7343
        %v7345 = vand.u32 %v4457, 4294901760
        %7346 = vmatmul.mubr.f32.gmra.mrb[0].mxu0 %v7345
        %v7347 = vpop.f32.mrb[0].mxu0
        %v7348 = vadd.f32 %v7043, %v7347
        %v7349 = vpop.f32.mrb[0].mxu0
        %v7350 = vadd.f32 %v7045, %v7349
        %v7351 = vand.u32 %v4464, 4294901760
        %7352 = vmatprep.mubr.f32.mxu0 %v7351
        %v7353 = vand.u32 %v4463, 4294901760
        %7354 = vmatmul.mubr.f32.gmra.mrb[0].mxu0 %v7353
        %v7355 = vpop.f32.mrb[0].mxu0
        %v7356 = vadd.f32 %v7055, %v7355
        %v7357 = vpop.f32.mrb[0].mxu0
        %v7358 = vadd.f32 %v7057, %v7357
        %v7359 = vand.u32 %v4470, 4294901760
        %7360 = vmatprep.mubr.f32.mxu0 %v7359
        %v7361 = vand.u32 %v4469, 4294901760
        %7362 = vmatmul.mubr.f32.gmra.mrb[0].mxu0 %v7361
        %v7363 = vpop.f32.mrb[0].mxu0
        %v7364 = vadd.f32 %v7067, %v7363
        %v7365 = vpop.f32.mrb[0].mxu0
        %v7366 = vadd.f32 %v7069, %v7365
        %7367 = vdwg.mxu0
        %v7368 = vand.u32 %v1232, 4294901760
        %7369 = vmatprep.subr.mxu0 %v7368
        %v7370 = vand.u32 %v1231, 4294901760
        %7371 = vmatpush1.msra.mxu0 %v7370
        %v7372 = vand.u32 %v1234, 4294901760
        %7373 = vmatprep.subr.mxu0 %v7372
        %v7374 = vand.u32 %v1233, 4294901760
        %7375 = vmatpush1.msra.mxu0 %v7374
        %v7376 = vand.u32 %v1236, 4294901760
        %7377 = vmatprep.subr.mxu0 %v7376
        %v7378 = vand.u32 %v1235, 4294901760
        %7379 = vmatpush1.msra.mxu0 %v7378
        %v7380 = vand.u32 %v1238, 4294901760
        %7381 = vmatprep.subr.mxu0 %v7380
        %v7382 = vand.u32 %v1237, 4294901760
        %7383 = vmatpush1.msra.mxu0 %v7382
        %v7384 = vand.u32 %v1240, 4294901760
        %7385 = vmatprep.subr.mxu0 %v7384
        %v7386 = vand.u32 %v1239, 4294901760
        %7387 = vmatpush1.msra.mxu0 %v7386
        %v7388 = vand.u32 %v1242, 4294901760
        %7389 = vmatprep.subr.mxu0 %v7388
        %v7390 = vand.u32 %v1241, 4294901760
        %7391 = vmatpush1.msra.mxu0 %v7390
        %v7392 = vand.u32 %v1244, 4294901760
        %7393 = vmatprep.subr.mxu0 %v7392
        %v7394 = vand.u32 %v1243, 4294901760
        %7395 = vmatpush1.msra.mxu0 %v7394
        %v7396 = vand.u32 %v1246, 4294901760
        %7397 = vmatprep.subr.mxu0 %v7396
        %v7398 = vand.u32 %v1245, 4294901760
        %7399 = vmatpush1.msra.mxu0 %v7398
        %v7400 = vand.u32 %v1248, 4294901760
        %7401 = vmatprep.subr.mxu0 %v7400
        %v7402 = vand.u32 %v1247, 4294901760
        %7403 = vmatpush1.msra.mxu0 %v7402
        %v7404 = vand.u32 %v1250, 4294901760
        %7405 = vmatprep.subr.mxu0 %v7404
        %v7406 = vand.u32 %v1249, 4294901760
        %7407 = vmatpush1.msra.mxu0 %v7406
        %v7408 = vand.u32 %v1252, 4294901760
        %7409 = vmatprep.subr.mxu0 %v7408
        %v7410 = vand.u32 %v1251, 4294901760
        %7411 = vmatpush1.msra.mxu0 %v7410
        %v7412 = vand.u32 %v1254, 4294901760
        %7413 = vmatprep.subr.mxu0 %v7412
        %v7414 = vand.u32 %v1253, 4294901760
        %7415 = vmatpush1.msra.mxu0 %v7414
        %v7416 = vand.u32 %v1256, 4294901760
        %7417 = vmatprep.subr.mxu0 %v7416
        %v7418 = vand.u32 %v1255, 4294901760
        %7419 = vmatpush1.msra.mxu0 %v7418
        %v7420 = vand.u32 %v1258, 4294901760
        %7421 = vmatprep.subr.mxu0 %v7420
        %v7422 = vand.u32 %v1257, 4294901760
        %7423 = vmatpush1.msra.mxu0 %v7422
        %v7424 = vand.u32 %v1260, 4294901760
        %7425 = vmatprep.subr.mxu0 %v7424
        %v7426 = vand.u32 %v1259, 4294901760
        %7427 = vmatpush1.msra.mxu0 %v7426
        %v7428 = vand.u32 %v1262, 4294901760
        %7429 = vmatprep.subr.mxu0 %v7428
        %v7430 = vand.u32 %v1261, 4294901760
        %7431 = vmatpush1.msra.mxu0 %v7430
        %v7432 = vand.u32 %v1264, 4294901760
        %7433 = vmatprep.subr.mxu0 %v7432
        %v7434 = vand.u32 %v1263, 4294901760
        %7435 = vmatpush1.msra.mxu0 %v7434
        %v7436 = vand.u32 %v1266, 4294901760
        %7437 = vmatprep.subr.mxu0 %v7436
        %v7438 = vand.u32 %v1265, 4294901760
        %7439 = vmatpush1.msra.mxu0 %v7438
        %v7440 = vand.u32 %v1268, 4294901760
        %7441 = vmatprep.subr.mxu0 %v7440
        %v7442 = vand.u32 %v1267, 4294901760
        %7443 = vmatpush1.msra.mxu0 %v7442
        %v7444 = vand.u32 %v1270, 4294901760
        %7445 = vmatprep.subr.mxu0 %v7444
        %v7446 = vand.u32 %v1269, 4294901760
        %7447 = vmatpush1.msra.mxu0 %v7446
        %v7448 = vand.u32 %v1272, 4294901760
        %7449 = vmatprep.subr.mxu0 %v7448
        %v7450 = vand.u32 %v1271, 4294901760
        %7451 = vmatpush1.msra.mxu0 %v7450
        %v7452 = vand.u32 %v1274, 4294901760
        %7453 = vmatprep.subr.mxu0 %v7452
        %v7454 = vand.u32 %v1273, 4294901760
        %7455 = vmatpush1.msra.mxu0 %v7454
        %v7456 = vand.u32 %v1276, 4294901760
        %7457 = vmatprep.subr.mxu0 %v7456
        %v7458 = vand.u32 %v1275, 4294901760
        %7459 = vmatpush1.msra.mxu0 %v7458
        %v7460 = vand.u32 %v1278, 4294901760
        %7461 = vmatprep.subr.mxu0 %v7460
        %v7462 = vand.u32 %v1277, 4294901760
        %7463 = vmatpush1.msra.mxu0 %v7462
        %v7464 = vand.u32 %v1280, 4294901760
        %7465 = vmatprep.subr.mxu0 %v7464
        %v7466 = vand.u32 %v1279, 4294901760
        %7467 = vmatpush1.msra.mxu0 %v7466
        %v7468 = vand.u32 %v1282, 4294901760
        %7469 = vmatprep.subr.mxu0 %v7468
        %v7470 = vand.u32 %v1281, 4294901760
        %7471 = vmatpush1.msra.mxu0 %v7470
        %v7472 = vand.u32 %v1284, 4294901760
        %7473 = vmatprep.subr.mxu0 %v7472
        %v7474 = vand.u32 %v1283, 4294901760
        %7475 = vmatpush1.msra.mxu0 %v7474
        %v7476 = vand.u32 %v1286, 4294901760
        %7477 = vmatprep.subr.mxu0 %v7476
        %v7478 = vand.u32 %v1285, 4294901760
        %7479 = vmatpush1.msra.mxu0 %v7478
        %v7480 = vand.u32 %v1288, 4294901760
        %7481 = vmatprep.subr.mxu0 %v7480
        %v7482 = vand.u32 %v1287, 4294901760
        %7483 = vmatpush1.msra.mxu0 %v7482
        %v7484 = vand.u32 %v1290, 4294901760
        %7485 = vmatprep.subr.mxu0 %v7484
        %v7486 = vand.u32 %v1289, 4294901760
        %7487 = vmatpush1.msra.mxu0 %v7486
        %v7488 = vand.u32 %v1292, 4294901760
        %7489 = vmatprep.subr.mxu0 %v7488
        %v7490 = vand.u32 %v1291, 4294901760
        %7491 = vmatpush1.msra.mxu0 %v7490
        %v7492 = vand.u32 %v1294, 4294901760
        %7493 = vmatprep.subr.mxu0 %v7492
        %v7494 = vand.u32 %v1293, 4294901760
        %7495 = vmatpush1.msra.mxu0 %v7494
        %v7496 = vand.u32 %v4446, 4294901760
        %7497 = vmatprep.mubr.f32.mxu0 %v7496
        %v7498 = vand.u32 %v4445, 4294901760
        %7499 = vmatmul.mubr.f32.gmra.mrb[0].mxu0 %v7498
        %v7500 = vpop.f32.mrb[0].mxu0
        %v7501 = vadd.f32 %v7332, %v7500
        %v7502 = vpop.f32.mrb[0].mxu0
        %v7503 = vadd.f32 %v7334, %v7502
        %v7504 = vand.u32 %v4452, 4294901760
        %7505 = vmatprep.mubr.f32.mxu0 %v7504
        %v7506 = vand.u32 %v4451, 4294901760
        %7507 = vmatmul.mubr.f32.gmra.mrb[0].mxu0 %v7506
        %v7508 = vpop.f32.mrb[0].mxu0
        %v7509 = vadd.f32 %v7340, %v7508
        %v7510 = vpop.f32.mrb[0].mxu0
        %v7511 = vadd.f32 %v7342, %v7510
        %v7512 = vand.u32 %v4458, 4294901760
        %7513 = vmatprep.mubr.f32.mxu0 %v7512
        %v7514 = vand.u32 %v4457, 4294901760
        %7515 = vmatmul.mubr.f32.gmra.mrb[0].mxu0 %v7514
        %v7516 = vpop.f32.mrb[0].mxu0
        %v7517 = vadd.f32 %v7348, %v7516
        %v7518 = vpop.f32.mrb[0].mxu0
        %v7519 = vadd.f32 %v7350, %v7518
        %v7520 = vand.u32 %v4464, 4294901760
        %7521 = vmatprep.mubr.f32.mxu0 %v7520
        %v7522 = vand.u32 %v4463, 4294901760
        %7523 = vmatmul.mubr.f32.gmra.mrb[0].mxu0 %v7522
        %v7524 = vpop.f32.mrb[0].mxu0
        %v7525 = vadd.f32 %v7356, %v7524
        %v7526 = vpop.f32.mrb[0].mxu0
        %v7527 = vadd.f32 %v7358, %v7526
        %v7528 = vand.u32 %v4470, 4294901760
        %7529 = vmatprep.mubr.f32.mxu0 %v7528
        %v7530 = vand.u32 %v4469, 4294901760
        %7531 = vmatmul.mubr.f32.gmra.mrb[0].mxu0 %v7530
        %v7532 = vpop.f32.mrb[0].mxu0
        %v7533 = vadd.f32 %v7364, %v7532
        %v7534 = vpop.f32.mrb[0].mxu0
        %v7535 = vadd.f32 %v7366, %v7534
        %7536 = vdwg.mxu0
        %v7537 = vand.u32 %v1296, 4294901760
        %7538 = vmatprep.subr.mxu0 %v7537
        %v7539 = vand.u32 %v1295, 4294901760
        %7540 = vmatpush1.msra.mxu0 %v7539
        %v7541 = vand.u32 %v1298, 4294901760
        %7542 = vmatprep.subr.mxu0 %v7541
        %v7543 = vand.u32 %v1297, 4294901760
        %7544 = vmatpush1.msra.mxu0 %v7543
        %v7545 = vand.u32 %v1300, 4294901760
        %7546 = vmatprep.subr.mxu0 %v7545
        %v7547 = vand.u32 %v1299, 4294901760
        %7548 = vmatpush1.msra.mxu0 %v7547
        %v7549 = vand.u32 %v1302, 4294901760
        %7550 = vmatprep.subr.mxu0 %v7549
        %v7551 = vand.u32 %v1301, 4294901760
        %7552 = vmatpush1.msra.mxu0 %v7551
        %v7553 = vand.u32 %v1304, 4294901760
        %7554 = vmatprep.subr.mxu0 %v7553
        %v7555 = vand.u32 %v1303, 4294901760
        %7556 = vmatpush1.msra.mxu0 %v7555
        %v7557 = vand.u32 %v1306, 4294901760
        %7558 = vmatprep.subr.mxu0 %v7557
        %v7559 = vand.u32 %v1305, 4294901760
        %7560 = vmatpush1.msra.mxu0 %v7559
        %v7561 = vand.u32 %v1308, 4294901760
        %7562 = vmatprep.subr.mxu0 %v7561
        %v7563 = vand.u32 %v1307, 4294901760
        %7564 = vmatpush1.msra.mxu0 %v7563
        %v7565 = vand.u32 %v1310, 4294901760
        %7566 = vmatprep.subr.mxu0 %v7565
        %v7567 = vand.u32 %v1309, 4294901760
        %7568 = vmatpush1.msra.mxu0 %v7567
        %v7569 = vand.u32 %v1312, 4294901760
        %7570 = vmatprep.subr.mxu0 %v7569
        %v7571 = vand.u32 %v1311, 4294901760
        %7572 = vmatpush1.msra.mxu0 %v7571
        %v7573 = vand.u32 %v1314, 4294901760
        %7574 = vmatprep.subr.mxu0 %v7573
        %v7575 = vand.u32 %v1313, 4294901760
        %7576 = vmatpush1.msra.mxu0 %v7575
        %v7577 = vand.u32 %v1316, 4294901760
        %7578 = vmatprep.subr.mxu0 %v7577
        %v7579 = vand.u32 %v1315, 4294901760
        %7580 = vmatpush1.msra.mxu0 %v7579
        %v7581 = vand.u32 %v1318, 4294901760
        %7582 = vmatprep.subr.mxu0 %v7581
        %v7583 = vand.u32 %v1317, 4294901760
        %7584 = vmatpush1.msra.mxu0 %v7583
        %v7585 = vand.u32 %v1320, 4294901760
        %7586 = vmatprep.subr.mxu0 %v7585
        %v7587 = vand.u32 %v1319, 4294901760
        %7588 = vmatpush1.msra.mxu0 %v7587
        %v7589 = vand.u32 %v1322, 4294901760
        %7590 = vmatprep.subr.mxu0 %v7589
        %v7591 = vand.u32 %v1321, 4294901760
        %7592 = vmatpush1.msra.mxu0 %v7591
        %v7593 = vand.u32 %v1324, 4294901760
        %7594 = vmatprep.subr.mxu0 %v7593
        %v7595 = vand.u32 %v1323, 4294901760
        %7596 = vmatpush1.msra.mxu0 %v7595
        %v7597 = vand.u32 %v1326, 4294901760
        %7598 = vmatprep.subr.mxu0 %v7597
        %v7599 = vand.u32 %v1325, 4294901760
        %7600 = vmatpush1.msra.mxu0 %v7599
        %v7601 = vand.u32 %v1328, 4294901760
        %7602 = vmatprep.subr.mxu0 %v7601
        %v7603 = vand.u32 %v1327, 4294901760
        %7604 = vmatpush1.msra.mxu0 %v7603
        %v7605 = vand.u32 %v1330, 4294901760
        %7606 = vmatprep.subr.mxu0 %v7605
        %v7607 = vand.u32 %v1329, 4294901760
        %7608 = vmatpush1.msra.mxu0 %v7607
        %v7609 = vand.u32 %v1332, 4294901760
        %7610 = vmatprep.subr.mxu0 %v7609
        %v7611 = vand.u32 %v1331, 4294901760
        %7612 = vmatpush1.msra.mxu0 %v7611
        %v7613 = vand.u32 %v1334, 4294901760
        %7614 = vmatprep.subr.mxu0 %v7613
        %v7615 = vand.u32 %v1333, 4294901760
        %7616 = vmatpush1.msra.mxu0 %v7615
        %v7617 = vand.u32 %v1336, 4294901760
        %7618 = vmatprep.subr.mxu0 %v7617
        %v7619 = vand.u32 %v1335, 4294901760
        %7620 = vmatpush1.msra.mxu0 %v7619
        %v7621 = vand.u32 %v1338, 4294901760
        %7622 = vmatprep.subr.mxu0 %v7621
        %v7623 = vand.u32 %v1337, 4294901760
        %7624 = vmatpush1.msra.mxu0 %v7623
        %v7625 = vand.u32 %v1340, 4294901760
        %7626 = vmatprep.subr.mxu0 %v7625
        %v7627 = vand.u32 %v1339, 4294901760
        %7628 = vmatpush1.msra.mxu0 %v7627
        %v7629 = vand.u32 %v1342, 4294901760
        %7630 = vmatprep.subr.mxu0 %v7629
        %v7631 = vand.u32 %v1341, 4294901760
        %7632 = vmatpush1.msra.mxu0 %v7631
        %v7633 = vand.u32 %v1344, 4294901760
        %7634 = vmatprep.subr.mxu0 %v7633
        %v7635 = vand.u32 %v1343, 4294901760
        %7636 = vmatpush1.msra.mxu0 %v7635
        %v7637 = vand.u32 %v1346, 4294901760
        %7638 = vmatprep.subr.mxu0 %v7637
        %v7639 = vand.u32 %v1345, 4294901760
        %7640 = vmatpush1.msra.mxu0 %v7639
        %v7641 = vand.u32 %v1348, 4294901760
        %7642 = vmatprep.subr.mxu0 %v7641
        %v7643 = vand.u32 %v1347, 4294901760
        %7644 = vmatpush1.msra.mxu0 %v7643
        %v7645 = vand.u32 %v1350, 4294901760
        %7646 = vmatprep.subr.mxu0 %v7645
        %v7647 = vand.u32 %v1349, 4294901760
        %7648 = vmatpush1.msra.mxu0 %v7647
        %v7649 = vand.u32 %v1352, 4294901760
        %7650 = vmatprep.subr.mxu0 %v7649
        %v7651 = vand.u32 %v1351, 4294901760
        %7652 = vmatpush1.msra.mxu0 %v7651
        %v7653 = vand.u32 %v1354, 4294901760
        %7654 = vmatprep.subr.mxu0 %v7653
        %v7655 = vand.u32 %v1353, 4294901760
        %7656 = vmatpush1.msra.mxu0 %v7655
        %v7657 = vand.u32 %v1356, 4294901760
        %7658 = vmatprep.subr.mxu0 %v7657
        %v7659 = vand.u32 %v1355, 4294901760
        %7660 = vmatpush1.msra.mxu0 %v7659
        %v7661 = vand.u32 %v1358, 4294901760
        %7662 = vmatprep.subr.mxu0 %v7661
        %v7663 = vand.u32 %v1357, 4294901760
        %7664 = vmatpush1.msra.mxu0 %v7663
        %v7665 = vand.u32 %v4448, 4294901760
        %v7666 = vsub.f32 %v4448, %v7665
        %v7667 = vand.u32 %v7666, 4294901760
        %v7668 = vsub.f32 %v7666, %v7667
        %v7669 = vand.u32 %v7668, 4294901760
        %7670 = vmatprep.mubr.f32.mxu0 %v7669
        %v7671 = vand.u32 %v4447, 4294901760
        %v7672 = vsub.f32 %v4447, %v7671
        %v7673 = vand.u32 %v7672, 4294901760
        %v7674 = vsub.f32 %v7672, %v7673
        %v7675 = vand.u32 %v7674, 4294901760
        %7676 = vmatmul.mubr.f32.gmra.mrb[0].mxu0 %v7675
        %v7677 = vpop.f32.mrb[0].mxu0
        %v7678 = vadd.f32 %v7501, %v7677
        %v7679 = vpop.f32.mrb[0].mxu0
        %v7680 = vadd.f32 %v7503, %v7679
        %v7681 = vand.u32 %v4454, 4294901760
        %v7682 = vsub.f32 %v4454, %v7681
        %v7683 = vand.u32 %v7682, 4294901760
        %v7684 = vsub.f32 %v7682, %v7683
        %v7685 = vand.u32 %v7684, 4294901760
        %7686 = vmatprep.mubr.f32.mxu0 %v7685
        %v7687 = vand.u32 %v4453, 4294901760
        %v7688 = vsub.f32 %v4453, %v7687
        %v7689 = vand.u32 %v7688, 4294901760
        %v7690 = vsub.f32 %v7688, %v7689
        %v7691 = vand.u32 %v7690, 4294901760
        %7692 = vmatmul.mubr.f32.gmra.mrb[0].mxu0 %v7691
        %v7693 = vpop.f32.mrb[0].mxu0
        %v7694 = vadd.f32 %v7509, %v7693
        %v7695 = vpop.f32.mrb[0].mxu0
        %v7696 = vadd.f32 %v7511, %v7695
        %v7697 = vand.u32 %v4460, 4294901760
        %v7698 = vsub.f32 %v4460, %v7697
        %v7699 = vand.u32 %v7698, 4294901760
        %v7700 = vsub.f32 %v7698, %v7699
        %v7701 = vand.u32 %v7700, 4294901760
        %7702 = vmatprep.mubr.f32.mxu0 %v7701
        %v7703 = vand.u32 %v4459, 4294901760
        %v7704 = vsub.f32 %v4459, %v7703
        %v7705 = vand.u32 %v7704, 4294901760
        %v7706 = vsub.f32 %v7704, %v7705
        %v7707 = vand.u32 %v7706, 4294901760
        %7708 = vmatmul.mubr.f32.gmra.mrb[0].mxu0 %v7707
        %v7709 = vpop.f32.mrb[0].mxu0
        %v7710 = vadd.f32 %v7517, %v7709
        %v7711 = vpop.f32.mrb[0].mxu0
        %v7712 = vadd.f32 %v7519, %v7711
        %v7713 = vand.u32 %v4466, 4294901760
        %v7714 = vsub.f32 %v4466, %v7713
        %v7715 = vand.u32 %v7714, 4294901760
        %v7716 = vsub.f32 %v7714, %v7715
        %v7717 = vand.u32 %v7716, 4294901760
        %7718 = vmatprep.mubr.f32.mxu0 %v7717
        %v7719 = vand.u32 %v4465, 4294901760
        %v7720 = vsub.f32 %v4465, %v7719
        %v7721 = vand.u32 %v7720, 4294901760
        %v7722 = vsub.f32 %v7720, %v7721
        %v7723 = vand.u32 %v7722, 4294901760
        %7724 = vmatmul.mubr.f32.gmra.mrb[0].mxu0 %v7723
        %v7725 = vpop.f32.mrb[0].mxu0
        %v7726 = vadd.f32 %v7525, %v7725
        %v7727 = vpop.f32.mrb[0].mxu0
        %v7728 = vadd.f32 %v7527, %v7727
        %v7729 = vand.u32 %v4472, 4294901760
        %v7730 = vsub.f32 %v4472, %v7729
        %v7731 = vand.u32 %v7730, 4294901760
        %v7732 = vsub.f32 %v7730, %v7731
        %v7733 = vand.u32 %v7732, 4294901760
        %7734 = vmatprep.mubr.f32.mxu0 %v7733
        %v7735 = vand.u32 %v4471, 4294901760
        %v7736 = vsub.f32 %v4471, %v7735
        %v7737 = vand.u32 %v7736, 4294901760
        %v7738 = vsub.f32 %v7736, %v7737
        %v7739 = vand.u32 %v7738, 4294901760
        %7740 = vmatmul.mubr.f32.gmra.mrb[0].mxu0 %v7739
        %v7741 = vpop.f32.mrb[0].mxu0
        %v7742 = vadd.f32 %v7533, %v7741
        %v7743 = vpop.f32.mrb[0].mxu0
        %v7744 = vadd.f32 %v7535, %v7743
        %7745 = vdwg.mxu0
        %v7746 = vand.u32 %v1296, 4294901760
        %v7747 = vsub.f32 %v1296, %v7746
        %v7748 = vand.u32 %v7747, 4294901760
        %v7749 = vsub.f32 %v7747, %v7748
        %v7750 = vand.u32 %v7749, 4294901760
        %7751 = vmatprep.subr.mxu0 %v7750
        %v7752 = vand.u32 %v1295, 4294901760
        %v7753 = vsub.f32 %v1295, %v7752
        %v7754 = vand.u32 %v7753, 4294901760
        %v7755 = vsub.f32 %v7753, %v7754
        %v7756 = vand.u32 %v7755, 4294901760
        %7757 = vmatpush1.msra.mxu0 %v7756
        %v7758 = vand.u32 %v1298, 4294901760
        %v7759 = vsub.f32 %v1298, %v7758
        %v7760 = vand.u32 %v7759, 4294901760
        %v7761 = vsub.f32 %v7759, %v7760
        %v7762 = vand.u32 %v7761, 4294901760
        %7763 = vmatprep.subr.mxu0 %v7762
        %v7764 = vand.u32 %v1297, 4294901760
        %v7765 = vsub.f32 %v1297, %v7764
        %v7766 = vand.u32 %v7765, 4294901760
        %v7767 = vsub.f32 %v7765, %v7766
        %v7768 = vand.u32 %v7767, 4294901760
        %7769 = vmatpush1.msra.mxu0 %v7768
        %v7770 = vand.u32 %v1300, 4294901760
        %v7771 = vsub.f32 %v1300, %v7770
        %v7772 = vand.u32 %v7771, 4294901760
        %v7773 = vsub.f32 %v7771, %v7772
        %v7774 = vand.u32 %v7773, 4294901760
        %7775 = vmatprep.subr.mxu0 %v7774
        %v7776 = vand.u32 %v1299, 4294901760
        %v7777 = vsub.f32 %v1299, %v7776
        %v7778 = vand.u32 %v7777, 4294901760
        %v7779 = vsub.f32 %v7777, %v7778
        %v7780 = vand.u32 %v7779, 4294901760
        %7781 = vmatpush1.msra.mxu0 %v7780
        %v7782 = vand.u32 %v1302, 4294901760
        %v7783 = vsub.f32 %v1302, %v7782
        %v7784 = vand.u32 %v7783, 4294901760
        %v7785 = vsub.f32 %v7783, %v7784
        %v7786 = vand.u32 %v7785, 4294901760
        %7787 = vmatprep.subr.mxu0 %v7786
        %v7788 = vand.u32 %v1301, 4294901760
        %v7789 = vsub.f32 %v1301, %v7788
        %v7790 = vand.u32 %v7789, 4294901760
        %v7791 = vsub.f32 %v7789, %v7790
        %v7792 = vand.u32 %v7791, 4294901760
        %7793 = vmatpush1.msra.mxu0 %v7792
        %v7794 = vand.u32 %v1304, 4294901760
        %v7795 = vsub.f32 %v1304, %v7794
        %v7796 = vand.u32 %v7795, 4294901760
        %v7797 = vsub.f32 %v7795, %v7796
        %v7798 = vand.u32 %v7797, 4294901760
        %7799 = vmatprep.subr.mxu0 %v7798
        %v7800 = vand.u32 %v1303, 4294901760
        %v7801 = vsub.f32 %v1303, %v7800
        %v7802 = vand.u32 %v7801, 4294901760
        %v7803 = vsub.f32 %v7801, %v7802
        %v7804 = vand.u32 %v7803, 4294901760
        %7805 = vmatpush1.msra.mxu0 %v7804
        %v7806 = vand.u32 %v1306, 4294901760
        %v7807 = vsub.f32 %v1306, %v7806
        %v7808 = vand.u32 %v7807, 4294901760
        %v7809 = vsub.f32 %v7807, %v7808
        %v7810 = vand.u32 %v7809, 4294901760
        %7811 = vmatprep.subr.mxu0 %v7810
        %v7812 = vand.u32 %v1305, 4294901760
        %v7813 = vsub.f32 %v1305, %v7812
        %v7814 = vand.u32 %v7813, 4294901760
        %v7815 = vsub.f32 %v7813, %v7814
        %v7816 = vand.u32 %v7815, 4294901760
        %7817 = vmatpush1.msra.mxu0 %v7816
        %v7818 = vand.u32 %v1308, 4294901760
        %v7819 = vsub.f32 %v1308, %v7818
        %v7820 = vand.u32 %v7819, 4294901760
        %v7821 = vsub.f32 %v7819, %v7820
        %v7822 = vand.u32 %v7821, 4294901760
        %7823 = vmatprep.subr.mxu0 %v7822
        %v7824 = vand.u32 %v1307, 4294901760
        %v7825 = vsub.f32 %v1307, %v7824
        %v7826 = vand.u32 %v7825, 4294901760
        %v7827 = vsub.f32 %v7825, %v7826
        %v7828 = vand.u32 %v7827, 4294901760
        %7829 = vmatpush1.msra.mxu0 %v7828
        %v7830 = vand.u32 %v1310, 4294901760
        %v7831 = vsub.f32 %v1310, %v7830
        %v7832 = vand.u32 %v7831, 4294901760
        %v7833 = vsub.f32 %v7831, %v7832
        %v7834 = vand.u32 %v7833, 4294901760
        %7835 = vmatprep.subr.mxu0 %v7834
        %v7836 = vand.u32 %v1309, 4294901760
        %v7837 = vsub.f32 %v1309, %v7836
        %v7838 = vand.u32 %v7837, 4294901760
        %v7839 = vsub.f32 %v7837, %v7838
        %v7840 = vand.u32 %v7839, 4294901760
        %7841 = vmatpush1.msra.mxu0 %v7840
        %v7842 = vand.u32 %v1312, 4294901760
        %v7843 = vsub.f32 %v1312, %v7842
        %v7844 = vand.u32 %v7843, 4294901760
        %v7845 = vsub.f32 %v7843, %v7844
        %v7846 = vand.u32 %v7845, 4294901760
        %7847 = vmatprep.subr.mxu0 %v7846
        %v7848 = vand.u32 %v1311, 4294901760
        %v7849 = vsub.f32 %v1311, %v7848
        %v7850 = vand.u32 %v7849, 4294901760
        %v7851 = vsub.f32 %v7849, %v7850
        %v7852 = vand.u32 %v7851, 4294901760
        %7853 = vmatpush1.msra.mxu0 %v7852
        %v7854 = vand.u32 %v1314, 4294901760
        %v7855 = vsub.f32 %v1314, %v7854
        %v7856 = vand.u32 %v7855, 4294901760
        %v7857 = vsub.f32 %v7855, %v7856
        %v7858 = vand.u32 %v7857, 4294901760
        %7859 = vmatprep.subr.mxu0 %v7858
        %v7860 = vand.u32 %v1313, 4294901760
        %v7861 = vsub.f32 %v1313, %v7860
        %v7862 = vand.u32 %v7861, 4294901760
        %v7863 = vsub.f32 %v7861, %v7862
        %v7864 = vand.u32 %v7863, 4294901760
        %7865 = vmatpush1.msra.mxu0 %v7864
        %v7866 = vand.u32 %v1316, 4294901760
        %v7867 = vsub.f32 %v1316, %v7866
        %v7868 = vand.u32 %v7867, 4294901760
        %v7869 = vsub.f32 %v7867, %v7868
        %v7870 = vand.u32 %v7869, 4294901760
        %7871 = vmatprep.subr.mxu0 %v7870
        %v7872 = vand.u32 %v1315, 4294901760
        %v7873 = vsub.f32 %v1315, %v7872
        %v7874 = vand.u32 %v7873, 4294901760
        %v7875 = vsub.f32 %v7873, %v7874
        %v7876 = vand.u32 %v7875, 4294901760
        %7877 = vmatpush1.msra.mxu0 %v7876
        %v7878 = vand.u32 %v1318, 4294901760
        %v7879 = vsub.f32 %v1318, %v7878
        %v7880 = vand.u32 %v7879, 4294901760
        %v7881 = vsub.f32 %v7879, %v7880
        %v7882 = vand.u32 %v7881, 4294901760
        %7883 = vmatprep.subr.mxu0 %v7882
        %v7884 = vand.u32 %v1317, 4294901760
        %v7885 = vsub.f32 %v1317, %v7884
        %v7886 = vand.u32 %v7885, 4294901760
        %v7887 = vsub.f32 %v7885, %v7886
        %v7888 = vand.u32 %v7887, 4294901760
        %7889 = vmatpush1.msra.mxu0 %v7888
        %v7890 = vand.u32 %v1320, 4294901760
        %v7891 = vsub.f32 %v1320, %v7890
        %v7892 = vand.u32 %v7891, 4294901760
        %v7893 = vsub.f32 %v7891, %v7892
        %v7894 = vand.u32 %v7893, 4294901760
        %7895 = vmatprep.subr.mxu0 %v7894
        %v7896 = vand.u32 %v1319, 4294901760
        %v7897 = vsub.f32 %v1319, %v7896
        %v7898 = vand.u32 %v7897, 4294901760
        %v7899 = vsub.f32 %v7897, %v7898
        %v7900 = vand.u32 %v7899, 4294901760
        %7901 = vmatpush1.msra.mxu0 %v7900
        %v7902 = vand.u32 %v1322, 4294901760
        %v7903 = vsub.f32 %v1322, %v7902
        %v7904 = vand.u32 %v7903, 4294901760
        %v7905 = vsub.f32 %v7903, %v7904
        %v7906 = vand.u32 %v7905, 4294901760
        %7907 = vmatprep.subr.mxu0 %v7906
        %v7908 = vand.u32 %v1321, 4294901760
        %v7909 = vsub.f32 %v1321, %v7908
        %v7910 = vand.u32 %v7909, 4294901760
        %v7911 = vsub.f32 %v7909, %v7910
        %v7912 = vand.u32 %v7911, 4294901760
        %7913 = vmatpush1.msra.mxu0 %v7912
        %v7914 = vand.u32 %v1324, 4294901760
        %v7915 = vsub.f32 %v1324, %v7914
        %v7916 = vand.u32 %v7915, 4294901760
        %v7917 = vsub.f32 %v7915, %v7916
        %v7918 = vand.u32 %v7917, 4294901760
        %7919 = vmatprep.subr.mxu0 %v7918
        %v7920 = vand.u32 %v1323, 4294901760
        %v7921 = vsub.f32 %v1323, %v7920
        %v7922 = vand.u32 %v7921, 4294901760
        %v7923 = vsub.f32 %v7921, %v7922
        %v7924 = vand.u32 %v7923, 4294901760
        %7925 = vmatpush1.msra.mxu0 %v7924
        %v7926 = vand.u32 %v1326, 4294901760
        %v7927 = vsub.f32 %v1326, %v7926
        %v7928 = vand.u32 %v7927, 4294901760
        %v7929 = vsub.f32 %v7927, %v7928
        %v7930 = vand.u32 %v7929, 4294901760
        %7931 = vmatprep.subr.mxu0 %v7930
        %v7932 = vand.u32 %v1325, 4294901760
        %v7933 = vsub.f32 %v1325, %v7932
        %v7934 = vand.u32 %v7933, 4294901760
        %v7935 = vsub.f32 %v7933, %v7934
        %v7936 = vand.u32 %v7935, 4294901760
        %7937 = vmatpush1.msra.mxu0 %v7936
        %v7938 = vand.u32 %v1328, 4294901760
        %v7939 = vsub.f32 %v1328, %v7938
        %v7940 = vand.u32 %v7939, 4294901760
        %v7941 = vsub.f32 %v7939, %v7940
        %v7942 = vand.u32 %v7941, 4294901760
        %7943 = vmatprep.subr.mxu0 %v7942
        %v7944 = vand.u32 %v1327, 4294901760
        %v7945 = vsub.f32 %v1327, %v7944
        %v7946 = vand.u32 %v7945, 4294901760
        %v7947 = vsub.f32 %v7945, %v7946
        %v7948 = vand.u32 %v7947, 4294901760
        %7949 = vmatpush1.msra.mxu0 %v7948
        %v7950 = vand.u32 %v1330, 4294901760
        %v7951 = vsub.f32 %v1330, %v7950
        %v7952 = vand.u32 %v7951, 4294901760
        %v7953 = vsub.f32 %v7951, %v7952
        %v7954 = vand.u32 %v7953, 4294901760
        %7955 = vmatprep.subr.mxu0 %v7954
        %v7956 = vand.u32 %v1329, 4294901760
        %v7957 = vsub.f32 %v1329, %v7956
        %v7958 = vand.u32 %v7957, 4294901760
        %v7959 = vsub.f32 %v7957, %v7958
        %v7960 = vand.u32 %v7959, 4294901760
        %7961 = vmatpush1.msra.mxu0 %v7960
        %v7962 = vand.u32 %v1332, 4294901760
        %v7963 = vsub.f32 %v1332, %v7962
        %v7964 = vand.u32 %v7963, 4294901760
        %v7965 = vsub.f32 %v7963, %v7964
        %v7966 = vand.u32 %v7965, 4294901760
        %7967 = vmatprep.subr.mxu0 %v7966
        %v7968 = vand.u32 %v1331, 4294901760
        %v7969 = vsub.f32 %v1331, %v7968
        %v7970 = vand.u32 %v7969, 4294901760
        %v7971 = vsub.f32 %v7969, %v7970
        %v7972 = vand.u32 %v7971, 4294901760
        %7973 = vmatpush1.msra.mxu0 %v7972
        %v7974 = vand.u32 %v1334, 4294901760
        %v7975 = vsub.f32 %v1334, %v7974
        %v7976 = vand.u32 %v7975, 4294901760
        %v7977 = vsub.f32 %v7975, %v7976
        %v7978 = vand.u32 %v7977, 4294901760
        %7979 = vmatprep.subr.mxu0 %v7978
        %v7980 = vand.u32 %v1333, 4294901760
        %v7981 = vsub.f32 %v1333, %v7980
        %v7982 = vand.u32 %v7981, 4294901760
        %v7983 = vsub.f32 %v7981, %v7982
        %v7984 = vand.u32 %v7983, 4294901760
        %7985 = vmatpush1.msra.mxu0 %v7984
        %v7986 = vand.u32 %v1336, 4294901760
        %v7987 = vsub.f32 %v1336, %v7986
        %v7988 = vand.u32 %v7987, 4294901760
        %v7989 = vsub.f32 %v7987, %v7988
        %v7990 = vand.u32 %v7989, 4294901760
        %7991 = vmatprep.subr.mxu0 %v7990
        %v7992 = vand.u32 %v1335, 4294901760
        %v7993 = vsub.f32 %v1335, %v7992
        %v7994 = vand.u32 %v7993, 4294901760
        %v7995 = vsub.f32 %v7993, %v7994
        %v7996 = vand.u32 %v7995, 4294901760
        %7997 = vmatpush1.msra.mxu0 %v7996
        %v7998 = vand.u32 %v1338, 4294901760
        %v7999 = vsub.f32 %v1338, %v7998
        %v8000 = vand.u32 %v7999, 4294901760
        %v8001 = vsub.f32 %v7999, %v8000
        %v8002 = vand.u32 %v8001, 4294901760
        %8003 = vmatprep.subr.mxu0 %v8002
        %v8004 = vand.u32 %v1337, 4294901760
        %v8005 = vsub.f32 %v1337, %v8004
        %v8006 = vand.u32 %v8005, 4294901760
        %v8007 = vsub.f32 %v8005, %v8006
        %v8008 = vand.u32 %v8007, 4294901760
        %8009 = vmatpush1.msra.mxu0 %v8008
        %v8010 = vand.u32 %v1340, 4294901760
        %v8011 = vsub.f32 %v1340, %v8010
        %v8012 = vand.u32 %v8011, 4294901760
        %v8013 = vsub.f32 %v8011, %v8012
        %v8014 = vand.u32 %v8013, 4294901760
        %8015 = vmatprep.subr.mxu0 %v8014
        %v8016 = vand.u32 %v1339, 4294901760
        %v8017 = vsub.f32 %v1339, %v8016
        %v8018 = vand.u32 %v8017, 4294901760
        %v8019 = vsub.f32 %v8017, %v8018
        %v8020 = vand.u32 %v8019, 4294901760
        %8021 = vmatpush1.msra.mxu0 %v8020
        %v8022 = vand.u32 %v1342, 4294901760
        %v8023 = vsub.f32 %v1342, %v8022
        %v8024 = vand.u32 %v8023, 4294901760
        %v8025 = vsub.f32 %v8023, %v8024
        %v8026 = vand.u32 %v8025, 4294901760
        %8027 = vmatprep.subr.mxu0 %v8026
        %v8028 = vand.u32 %v1341, 4294901760
        %v8029 = vsub.f32 %v1341, %v8028
        %v8030 = vand.u32 %v8029, 4294901760
        %v8031 = vsub.f32 %v8029, %v8030
        %v8032 = vand.u32 %v8031, 4294901760
        %8033 = vmatpush1.msra.mxu0 %v8032
        %v8034 = vand.u32 %v1344, 4294901760
        %v8035 = vsub.f32 %v1344, %v8034
        %v8036 = vand.u32 %v8035, 4294901760
        %v8037 = vsub.f32 %v8035, %v8036
        %v8038 = vand.u32 %v8037, 4294901760
        %8039 = vmatprep.subr.mxu0 %v8038
        %v8040 = vand.u32 %v1343, 4294901760
        %v8041 = vsub.f32 %v1343, %v8040
        %v8042 = vand.u32 %v8041, 4294901760
        %v8043 = vsub.f32 %v8041, %v8042
        %v8044 = vand.u32 %v8043, 4294901760
        %8045 = vmatpush1.msra.mxu0 %v8044
        %v8046 = vand.u32 %v1346, 4294901760
        %v8047 = vsub.f32 %v1346, %v8046
        %v8048 = vand.u32 %v8047, 4294901760
        %v8049 = vsub.f32 %v8047, %v8048
        %v8050 = vand.u32 %v8049, 4294901760
        %8051 = vmatprep.subr.mxu0 %v8050
        %v8052 = vand.u32 %v1345, 4294901760
        %v8053 = vsub.f32 %v1345, %v8052
        %v8054 = vand.u32 %v8053, 4294901760
        %v8055 = vsub.f32 %v8053, %v8054
        %v8056 = vand.u32 %v8055, 4294901760
        %8057 = vmatpush1.msra.mxu0 %v8056
        %v8058 = vand.u32 %v1348, 4294901760
        %v8059 = vsub.f32 %v1348, %v8058
        %v8060 = vand.u32 %v8059, 4294901760
        %v8061 = vsub.f32 %v8059, %v8060
        %v8062 = vand.u32 %v8061, 4294901760
        %8063 = vmatprep.subr.mxu0 %v8062
        %v8064 = vand.u32 %v1347, 4294901760
        %v8065 = vsub.f32 %v1347, %v8064
        %v8066 = vand.u32 %v8065, 4294901760
        %v8067 = vsub.f32 %v8065, %v8066
        %v8068 = vand.u32 %v8067, 4294901760
        %8069 = vmatpush1.msra.mxu0 %v8068
        %v8070 = vand.u32 %v1350, 4294901760
        %v8071 = vsub.f32 %v1350, %v8070
        %v8072 = vand.u32 %v8071, 4294901760
        %v8073 = vsub.f32 %v8071, %v8072
        %v8074 = vand.u32 %v8073, 4294901760
        %8075 = vmatprep.subr.mxu0 %v8074
        %v8076 = vand.u32 %v1349, 4294901760
        %v8077 = vsub.f32 %v1349, %v8076
        %v8078 = vand.u32 %v8077, 4294901760
        %v8079 = vsub.f32 %v8077, %v8078
        %v8080 = vand.u32 %v8079, 4294901760
        %8081 = vmatpush1.msra.mxu0 %v8080
        %v8082 = vand.u32 %v1352, 4294901760
        %v8083 = vsub.f32 %v1352, %v8082
        %v8084 = vand.u32 %v8083, 4294901760
        %v8085 = vsub.f32 %v8083, %v8084
        %v8086 = vand.u32 %v8085, 4294901760
        %8087 = vmatprep.subr.mxu0 %v8086
        %v8088 = vand.u32 %v1351, 4294901760
        %v8089 = vsub.f32 %v1351, %v8088
        %v8090 = vand.u32 %v8089, 4294901760
        %v8091 = vsub.f32 %v8089, %v8090
        %v8092 = vand.u32 %v8091, 4294901760
        %8093 = vmatpush1.msra.mxu0 %v8092
        %v8094 = vand.u32 %v1354, 4294901760
        %v8095 = vsub.f32 %v1354, %v8094
        %v8096 = vand.u32 %v8095, 4294901760
        %v8097 = vsub.f32 %v8095, %v8096
        %v8098 = vand.u32 %v8097, 4294901760
        %8099 = vmatprep.subr.mxu0 %v8098
        %v8100 = vand.u32 %v1353, 4294901760
        %v8101 = vsub.f32 %v1353, %v8100
        %v8102 = vand.u32 %v8101, 4294901760
        %v8103 = vsub.f32 %v8101, %v8102
        %v8104 = vand.u32 %v8103, 4294901760
        %8105 = vmatpush1.msra.mxu0 %v8104
        %v8106 = vand.u32 %v1356, 4294901760
        %v8107 = vsub.f32 %v1356, %v8106
        %v8108 = vand.u32 %v8107, 4294901760
        %v8109 = vsub.f32 %v8107, %v8108
        %v8110 = vand.u32 %v8109, 4294901760
        %8111 = vmatprep.subr.mxu0 %v8110
        %v8112 = vand.u32 %v1355, 4294901760
        %v8113 = vsub.f32 %v1355, %v8112
        %v8114 = vand.u32 %v8113, 4294901760
        %v8115 = vsub.f32 %v8113, %v8114
        %v8116 = vand.u32 %v8115, 4294901760
        %8117 = vmatpush1.msra.mxu0 %v8116
        %v8118 = vand.u32 %v1358, 4294901760
        %v8119 = vsub.f32 %v1358, %v8118
        %v8120 = vand.u32 %v8119, 4294901760
        %v8121 = vsub.f32 %v8119, %v8120
        %v8122 = vand.u32 %v8121, 4294901760
        %8123 = vmatprep.subr.mxu0 %v8122
        %v8124 = vand.u32 %v1357, 4294901760
        %v8125 = vsub.f32 %v1357, %v8124
        %v8126 = vand.u32 %v8125, 4294901760
        %v8127 = vsub.f32 %v8125, %v8126
        %v8128 = vand.u32 %v8127, 4294901760
        %8129 = vmatpush1.msra.mxu0 %v8128
        %v8130 = vand.u32 %v4448, 4294901760
        %8131 = vmatprep.mubr.f32.mxu0 %v8130
        %v8132 = vand.u32 %v4447, 4294901760
        %8133 = vmatmul.mubr.f32.gmra.mrb[0].mxu0 %v8132
        %v8134 = vpop.f32.mrb[0].mxu0
        %v8135 = vadd.f32 %v7678, %v8134
        %v8136 = vpop.f32.mrb[0].mxu0
        %v8137 = vadd.f32 %v7680, %v8136
        %v8138 = vand.u32 %v4454, 4294901760
        %8139 = vmatprep.mubr.f32.mxu0 %v8138
        %v8140 = vand.u32 %v4453, 4294901760
        %8141 = vmatmul.mubr.f32.gmra.mrb[0].mxu0 %v8140
        %v8142 = vpop.f32.mrb[0].mxu0
        %v8143 = vadd.f32 %v7694, %v8142
        %v8144 = vpop.f32.mrb[0].mxu0
        %v8145 = vadd.f32 %v7696, %v8144
        %v8146 = vand.u32 %v4460, 4294901760
        %8147 = vmatprep.mubr.f32.mxu0 %v8146
        %v8148 = vand.u32 %v4459, 4294901760
        %8149 = vmatmul.mubr.f32.gmra.mrb[0].mxu0 %v8148
        %v8150 = vpop.f32.mrb[0].mxu0
        %v8151 = vadd.f32 %v7710, %v8150
        %v8152 = vpop.f32.mrb[0].mxu0
        %v8153 = vadd.f32 %v7712, %v8152
        %v8154 = vand.u32 %v4466, 4294901760
        %8155 = vmatprep.mubr.f32.mxu0 %v8154
        %v8156 = vand.u32 %v4465, 4294901760
        %8157 = vmatmul.mubr.f32.gmra.mrb[0].mxu0 %v8156
        %v8158 = vpop.f32.mrb[0].mxu0
        %v8159 = vadd.f32 %v7726, %v8158
        %v8160 = vpop.f32.mrb[0].mxu0
        %v8161 = vadd.f32 %v7728, %v8160
        %v8162 = vand.u32 %v4472, 4294901760
        %8163 = vmatprep.mubr.f32.mxu0 %v8162
        %v8164 = vand.u32 %v4471, 4294901760
        %8165 = vmatmul.mubr.f32.gmra.mrb[0].mxu0 %v8164
        %v8166 = vpop.f32.mrb[0].mxu0
        %v8167 = vadd.f32 %v7742, %v8166
        %v8168 = vpop.f32.mrb[0].mxu0
        %v8169 = vadd.f32 %v7744, %v8168
        %8170 = vdwg.mxu0
        %v8171 = vand.u32 %v1296, 4294901760
        %v8172 = vsub.f32 %v1296, %v8171
        %8173 = vmatprep.subr.mxu0 %v8172
        %v8174 = vand.u32 %v1295, 4294901760
        %v8175 = vsub.f32 %v1295, %v8174
        %8176 = vmatpush1.msra.mxu0 %v8175
        %v8177 = vand.u32 %v1298, 4294901760
        %v8178 = vsub.f32 %v1298, %v8177
        %8179 = vmatprep.subr.mxu0 %v8178
        %v8180 = vand.u32 %v1297, 4294901760
        %v8181 = vsub.f32 %v1297, %v8180
        %8182 = vmatpush1.msra.mxu0 %v8181
        %v8183 = vand.u32 %v1300, 4294901760
        %v8184 = vsub.f32 %v1300, %v8183
        %8185 = vmatprep.subr.mxu0 %v8184
        %v8186 = vand.u32 %v1299, 4294901760
        %v8187 = vsub.f32 %v1299, %v8186
        %8188 = vmatpush1.msra.mxu0 %v8187
        %v8189 = vand.u32 %v1302, 4294901760
        %v8190 = vsub.f32 %v1302, %v8189
        %8191 = vmatprep.subr.mxu0 %v8190
        %v8192 = vand.u32 %v1301, 4294901760
        %v8193 = vsub.f32 %v1301, %v8192
        %8194 = vmatpush1.msra.mxu0 %v8193
        %v8195 = vand.u32 %v1304, 4294901760
        %v8196 = vsub.f32 %v1304, %v8195
        %8197 = vmatprep.subr.mxu0 %v8196
        %v8198 = vand.u32 %v1303, 4294901760
        %v8199 = vsub.f32 %v1303, %v8198
        %8200 = vmatpush1.msra.mxu0 %v8199
        %v8201 = vand.u32 %v1306, 4294901760
        %v8202 = vsub.f32 %v1306, %v8201
        %8203 = vmatprep.subr.mxu0 %v8202
        %v8204 = vand.u32 %v1305, 4294901760
        %v8205 = vsub.f32 %v1305, %v8204
        %8206 = vmatpush1.msra.mxu0 %v8205
        %v8207 = vand.u32 %v1308, 4294901760
        %v8208 = vsub.f32 %v1308, %v8207
        %8209 = vmatprep.subr.mxu0 %v8208
        %v8210 = vand.u32 %v1307, 4294901760
        %v8211 = vsub.f32 %v1307, %v8210
        %8212 = vmatpush1.msra.mxu0 %v8211
        %v8213 = vand.u32 %v1310, 4294901760
        %v8214 = vsub.f32 %v1310, %v8213
        %8215 = vmatprep.subr.mxu0 %v8214
        %v8216 = vand.u32 %v1309, 4294901760
        %v8217 = vsub.f32 %v1309, %v8216
        %8218 = vmatpush1.msra.mxu0 %v8217
        %v8219 = vand.u32 %v1312, 4294901760
        %v8220 = vsub.f32 %v1312, %v8219
        %8221 = vmatprep.subr.mxu0 %v8220
        %v8222 = vand.u32 %v1311, 4294901760
        %v8223 = vsub.f32 %v1311, %v8222
        %8224 = vmatpush1.msra.mxu0 %v8223
        %v8225 = vand.u32 %v1314, 4294901760
        %v8226 = vsub.f32 %v1314, %v8225
        %8227 = vmatprep.subr.mxu0 %v8226
        %v8228 = vand.u32 %v1313, 4294901760
        %v8229 = vsub.f32 %v1313, %v8228
        %8230 = vmatpush1.msra.mxu0 %v8229
        %v8231 = vand.u32 %v1316, 4294901760
        %v8232 = vsub.f32 %v1316, %v8231
        %8233 = vmatprep.subr.mxu0 %v8232
        %v8234 = vand.u32 %v1315, 4294901760
        %v8235 = vsub.f32 %v1315, %v8234
        %8236 = vmatpush1.msra.mxu0 %v8235
        %v8237 = vand.u32 %v1318, 4294901760
        %v8238 = vsub.f32 %v1318, %v8237
        %8239 = vmatprep.subr.mxu0 %v8238
        %v8240 = vand.u32 %v1317, 4294901760
        %v8241 = vsub.f32 %v1317, %v8240
        %8242 = vmatpush1.msra.mxu0 %v8241
        %v8243 = vand.u32 %v1320, 4294901760
        %v8244 = vsub.f32 %v1320, %v8243
        %8245 = vmatprep.subr.mxu0 %v8244
        %v8246 = vand.u32 %v1319, 4294901760
        %v8247 = vsub.f32 %v1319, %v8246
        %8248 = vmatpush1.msra.mxu0 %v8247
        %v8249 = vand.u32 %v1322, 4294901760
        %v8250 = vsub.f32 %v1322, %v8249
        %8251 = vmatprep.subr.mxu0 %v8250
        %v8252 = vand.u32 %v1321, 4294901760
        %v8253 = vsub.f32 %v1321, %v8252
        %8254 = vmatpush1.msra.mxu0 %v8253
        %v8255 = vand.u32 %v1324, 4294901760
        %v8256 = vsub.f32 %v1324, %v8255
        %8257 = vmatprep.subr.mxu0 %v8256
        %v8258 = vand.u32 %v1323, 4294901760
        %v8259 = vsub.f32 %v1323, %v8258
        %8260 = vmatpush1.msra.mxu0 %v8259
        %v8261 = vand.u32 %v1326, 4294901760
        %v8262 = vsub.f32 %v1326, %v8261
        %8263 = vmatprep.subr.mxu0 %v8262
        %v8264 = vand.u32 %v1325, 4294901760
        %v8265 = vsub.f32 %v1325, %v8264
        %8266 = vmatpush1.msra.mxu0 %v8265
        %v8267 = vand.u32 %v1328, 4294901760
        %v8268 = vsub.f32 %v1328, %v8267
        %8269 = vmatprep.subr.mxu0 %v8268
        %v8270 = vand.u32 %v1327, 4294901760
        %v8271 = vsub.f32 %v1327, %v8270
        %8272 = vmatpush1.msra.mxu0 %v8271
        %v8273 = vand.u32 %v1330, 4294901760
        %v8274 = vsub.f32 %v1330, %v8273
        %8275 = vmatprep.subr.mxu0 %v8274
        %v8276 = vand.u32 %v1329, 4294901760
        %v8277 = vsub.f32 %v1329, %v8276
        %8278 = vmatpush1.msra.mxu0 %v8277
        %v8279 = vand.u32 %v1332, 4294901760
        %v8280 = vsub.f32 %v1332, %v8279
        %8281 = vmatprep.subr.mxu0 %v8280
        %v8282 = vand.u32 %v1331, 4294901760
        %v8283 = vsub.f32 %v1331, %v8282
        %8284 = vmatpush1.msra.mxu0 %v8283
        %v8285 = vand.u32 %v1334, 4294901760
        %v8286 = vsub.f32 %v1334, %v8285
        %8287 = vmatprep.subr.mxu0 %v8286
        %v8288 = vand.u32 %v1333, 4294901760
        %v8289 = vsub.f32 %v1333, %v8288
        %8290 = vmatpush1.msra.mxu0 %v8289
        %v8291 = vand.u32 %v1336, 4294901760
        %v8292 = vsub.f32 %v1336, %v8291
        %8293 = vmatprep.subr.mxu0 %v8292
        %v8294 = vand.u32 %v1335, 4294901760
        %v8295 = vsub.f32 %v1335, %v8294
        %8296 = vmatpush1.msra.mxu0 %v8295
        %v8297 = vand.u32 %v1338, 4294901760
        %v8298 = vsub.f32 %v1338, %v8297
        %8299 = vmatprep.subr.mxu0 %v8298
        %v8300 = vand.u32 %v1337, 4294901760
        %v8301 = vsub.f32 %v1337, %v8300
        %8302 = vmatpush1.msra.mxu0 %v8301
        %v8303 = vand.u32 %v1340, 4294901760
        %v8304 = vsub.f32 %v1340, %v8303
        %8305 = vmatprep.subr.mxu0 %v8304
        %v8306 = vand.u32 %v1339, 4294901760
        %v8307 = vsub.f32 %v1339, %v8306
        %8308 = vmatpush1.msra.mxu0 %v8307
        %v8309 = vand.u32 %v1342, 4294901760
        %v8310 = vsub.f32 %v1342, %v8309
        %8311 = vmatprep.subr.mxu0 %v8310
        %v8312 = vand.u32 %v1341, 4294901760
        %v8313 = vsub.f32 %v1341, %v8312
        %8314 = vmatpush1.msra.mxu0 %v8313
        %v8315 = vand.u32 %v1344, 4294901760
        %v8316 = vsub.f32 %v1344, %v8315
        %8317 = vmatprep.subr.mxu0 %v8316
        %v8318 = vand.u32 %v1343, 4294901760
        %v8319 = vsub.f32 %v1343, %v8318
        %8320 = vmatpush1.msra.mxu0 %v8319
        %v8321 = vand.u32 %v1346, 4294901760
        %v8322 = vsub.f32 %v1346, %v8321
        %8323 = vmatprep.subr.mxu0 %v8322
        %v8324 = vand.u32 %v1345, 4294901760
        %v8325 = vsub.f32 %v1345, %v8324
        %8326 = vmatpush1.msra.mxu0 %v8325
        %v8327 = vand.u32 %v1348, 4294901760
        %v8328 = vsub.f32 %v1348, %v8327
        %8329 = vmatprep.subr.mxu0 %v8328
        %v8330 = vand.u32 %v1347, 4294901760
        %v8331 = vsub.f32 %v1347, %v8330
        %8332 = vmatpush1.msra.mxu0 %v8331
        %v8333 = vand.u32 %v1350, 4294901760
        %v8334 = vsub.f32 %v1350, %v8333
        %8335 = vmatprep.subr.mxu0 %v8334
        %v8336 = vand.u32 %v1349, 4294901760
        %v8337 = vsub.f32 %v1349, %v8336
        %8338 = vmatpush1.msra.mxu0 %v8337
        %v8339 = vand.u32 %v1352, 4294901760
        %v8340 = vsub.f32 %v1352, %v8339
        %8341 = vmatprep.subr.mxu0 %v8340
        %v8342 = vand.u32 %v1351, 4294901760
        %v8343 = vsub.f32 %v1351, %v8342
        %8344 = vmatpush1.msra.mxu0 %v8343
        %v8345 = vand.u32 %v1354, 4294901760
        %v8346 = vsub.f32 %v1354, %v8345
        %8347 = vmatprep.subr.mxu0 %v8346
        %v8348 = vand.u32 %v1353, 4294901760
        %v8349 = vsub.f32 %v1353, %v8348
        %8350 = vmatpush1.msra.mxu0 %v8349
        %v8351 = vand.u32 %v1356, 4294901760
        %v8352 = vsub.f32 %v1356, %v8351
        %8353 = vmatprep.subr.mxu0 %v8352
        %v8354 = vand.u32 %v1355, 4294901760
        %v8355 = vsub.f32 %v1355, %v8354
        %8356 = vmatpush1.msra.mxu0 %v8355
        %v8357 = vand.u32 %v1358, 4294901760
        %v8358 = vsub.f32 %v1358, %v8357
        %8359 = vmatprep.subr.mxu0 %v8358
        %v8360 = vand.u32 %v1357, 4294901760
        %v8361 = vsub.f32 %v1357, %v8360
        %8362 = vmatpush1.msra.mxu0 %v8361
        %v8363 = vand.u32 %v4448, 4294901760
        %v8364 = vsub.f32 %v4448, %v8363
        %8365 = vmatprep.mubr.f32.mxu0 %v8364
        %v8366 = vand.u32 %v4447, 4294901760
        %v8367 = vsub.f32 %v4447, %v8366
        %8368 = vmatmul.mubr.f32.gmra.mrb[0].mxu0 %v8367
        %v8369 = vpop.f32.mrb[0].mxu0
        %v8370 = vadd.f32 %v8135, %v8369
        %v8371 = vpop.f32.mrb[0].mxu0
        %v8372 = vadd.f32 %v8137, %v8371
        %v8373 = vand.u32 %v4454, 4294901760
        %v8374 = vsub.f32 %v4454, %v8373
        %8375 = vmatprep.mubr.f32.mxu0 %v8374
        %v8376 = vand.u32 %v4453, 4294901760
        %v8377 = vsub.f32 %v4453, %v8376
        %8378 = vmatmul.mubr.f32.gmra.mrb[0].mxu0 %v8377
        %v8379 = vpop.f32.mrb[0].mxu0
        %v8380 = vadd.f32 %v8143, %v8379
        %v8381 = vpop.f32.mrb[0].mxu0
        %v8382 = vadd.f32 %v8145, %v8381
        %v8383 = vand.u32 %v4460, 4294901760
        %v8384 = vsub.f32 %v4460, %v8383
        %8385 = vmatprep.mubr.f32.mxu0 %v8384
        %v8386 = vand.u32 %v4459, 4294901760
        %v8387 = vsub.f32 %v4459, %v8386
        %8388 = vmatmul.mubr.f32.gmra.mrb[0].mxu0 %v8387
        %v8389 = vpop.f32.mrb[0].mxu0
        %v8390 = vadd.f32 %v8151, %v8389
        %v8391 = vpop.f32.mrb[0].mxu0
        %v8392 = vadd.f32 %v8153, %v8391
        %v8393 = vand.u32 %v4466, 4294901760
        %v8394 = vsub.f32 %v4466, %v8393
        %8395 = vmatprep.mubr.f32.mxu0 %v8394
        %v8396 = vand.u32 %v4465, 4294901760
        %v8397 = vsub.f32 %v4465, %v8396
        %8398 = vmatmul.mubr.f32.gmra.mrb[0].mxu0 %v8397
        %v8399 = vpop.f32.mrb[0].mxu0
        %v8400 = vadd.f32 %v8159, %v8399
        %v8401 = vpop.f32.mrb[0].mxu0
        %v8402 = vadd.f32 %v8161, %v8401
        %v8403 = vand.u32 %v4472, 4294901760
        %v8404 = vsub.f32 %v4472, %v8403
        %8405 = vmatprep.mubr.f32.mxu0 %v8404
        %v8406 = vand.u32 %v4471, 4294901760
        %v8407 = vsub.f32 %v4471, %v8406
        %8408 = vmatmul.mubr.f32.gmra.mrb[0].mxu0 %v8407
        %v8409 = vpop.f32.mrb[0].mxu0
        %v8410 = vadd.f32 %v8167, %v8409
        %v8411 = vpop.f32.mrb[0].mxu0
        %v8412 = vadd.f32 %v8169, %v8411
        %8413 = vdwg.mxu0
        %v8414 = vand.u32 %v1296, 4294901760
        %8415 = vmatprep.subr.mxu0 %v8414
        %v8416 = vand.u32 %v1295, 4294901760
        %8417 = vmatpush1.msra.mxu0 %v8416
        %v8418 = vand.u32 %v1298, 4294901760
        %8419 = vmatprep.subr.mxu0 %v8418
        %v8420 = vand.u32 %v1297, 4294901760
        %8421 = vmatpush1.msra.mxu0 %v8420
        %v8422 = vand.u32 %v1300, 4294901760
        %8423 = vmatprep.subr.mxu0 %v8422
        %v8424 = vand.u32 %v1299, 4294901760
        %8425 = vmatpush1.msra.mxu0 %v8424
        %v8426 = vand.u32 %v1302, 4294901760
        %8427 = vmatprep.subr.mxu0 %v8426
        %v8428 = vand.u32 %v1301, 4294901760
        %8429 = vmatpush1.msra.mxu0 %v8428
        %v8430 = vand.u32 %v1304, 4294901760
        %8431 = vmatprep.subr.mxu0 %v8430
        %v8432 = vand.u32 %v1303, 4294901760
        %8433 = vmatpush1.msra.mxu0 %v8432
        %v8434 = vand.u32 %v1306, 4294901760
        %8435 = vmatprep.subr.mxu0 %v8434
        %v8436 = vand.u32 %v1305, 4294901760
        %8437 = vmatpush1.msra.mxu0 %v8436
        %v8438 = vand.u32 %v1308, 4294901760
        %8439 = vmatprep.subr.mxu0 %v8438
        %v8440 = vand.u32 %v1307, 4294901760
        %8441 = vmatpush1.msra.mxu0 %v8440
        %v8442 = vand.u32 %v1310, 4294901760
        %8443 = vmatprep.subr.mxu0 %v8442
        %v8444 = vand.u32 %v1309, 4294901760
        %8445 = vmatpush1.msra.mxu0 %v8444
        %v8446 = vand.u32 %v1312, 4294901760
        %8447 = vmatprep.subr.mxu0 %v8446
        %v8448 = vand.u32 %v1311, 4294901760
        %8449 = vmatpush1.msra.mxu0 %v8448
        %v8450 = vand.u32 %v1314, 4294901760
        %8451 = vmatprep.subr.mxu0 %v8450
        %v8452 = vand.u32 %v1313, 4294901760
        %8453 = vmatpush1.msra.mxu0 %v8452
        %v8454 = vand.u32 %v1316, 4294901760
        %8455 = vmatprep.subr.mxu0 %v8454
        %v8456 = vand.u32 %v1315, 4294901760
        %8457 = vmatpush1.msra.mxu0 %v8456
        %v8458 = vand.u32 %v1318, 4294901760
        %8459 = vmatprep.subr.mxu0 %v8458
        %v8460 = vand.u32 %v1317, 4294901760
        %8461 = vmatpush1.msra.mxu0 %v8460
        %v8462 = vand.u32 %v1320, 4294901760
        %8463 = vmatprep.subr.mxu0 %v8462
        %v8464 = vand.u32 %v1319, 4294901760
        %8465 = vmatpush1.msra.mxu0 %v8464
        %v8466 = vand.u32 %v1322, 4294901760
        %8467 = vmatprep.subr.mxu0 %v8466
        %v8468 = vand.u32 %v1321, 4294901760
        %8469 = vmatpush1.msra.mxu0 %v8468
        %v8470 = vand.u32 %v1324, 4294901760
        %8471 = vmatprep.subr.mxu0 %v8470
        %v8472 = vand.u32 %v1323, 4294901760
        %8473 = vmatpush1.msra.mxu0 %v8472
        %v8474 = vand.u32 %v1326, 4294901760
        %8475 = vmatprep.subr.mxu0 %v8474
        %v8476 = vand.u32 %v1325, 4294901760
        %8477 = vmatpush1.msra.mxu0 %v8476
        %v8478 = vand.u32 %v1328, 4294901760
        %8479 = vmatprep.subr.mxu0 %v8478
        %v8480 = vand.u32 %v1327, 4294901760
        %8481 = vmatpush1.msra.mxu0 %v8480
        %v8482 = vand.u32 %v1330, 4294901760
        %8483 = vmatprep.subr.mxu0 %v8482
        %v8484 = vand.u32 %v1329, 4294901760
        %8485 = vmatpush1.msra.mxu0 %v8484
        %v8486 = vand.u32 %v1332, 4294901760
        %8487 = vmatprep.subr.mxu0 %v8486
        %v8488 = vand.u32 %v1331, 4294901760
        %8489 = vmatpush1.msra.mxu0 %v8488
        %v8490 = vand.u32 %v1334, 4294901760
        %8491 = vmatprep.subr.mxu0 %v8490
        %v8492 = vand.u32 %v1333, 4294901760
        %8493 = vmatpush1.msra.mxu0 %v8492
        %v8494 = vand.u32 %v1336, 4294901760
        %8495 = vmatprep.subr.mxu0 %v8494
        %v8496 = vand.u32 %v1335, 4294901760
        %8497 = vmatpush1.msra.mxu0 %v8496
        %v8498 = vand.u32 %v1338, 4294901760
        %8499 = vmatprep.subr.mxu0 %v8498
        %v8500 = vand.u32 %v1337, 4294901760
        %8501 = vmatpush1.msra.mxu0 %v8500
        %v8502 = vand.u32 %v1340, 4294901760
        %8503 = vmatprep.subr.mxu0 %v8502
        %v8504 = vand.u32 %v1339, 4294901760
        %8505 = vmatpush1.msra.mxu0 %v8504
        %v8506 = vand.u32 %v1342, 4294901760
        %8507 = vmatprep.subr.mxu0 %v8506
        %v8508 = vand.u32 %v1341, 4294901760
        %8509 = vmatpush1.msra.mxu0 %v8508
        %v8510 = vand.u32 %v1344, 4294901760
        %8511 = vmatprep.subr.mxu0 %v8510
        %v8512 = vand.u32 %v1343, 4294901760
        %8513 = vmatpush1.msra.mxu0 %v8512
        %v8514 = vand.u32 %v1346, 4294901760
        %8515 = vmatprep.subr.mxu0 %v8514
        %v8516 = vand.u32 %v1345, 4294901760
        %8517 = vmatpush1.msra.mxu0 %v8516
        %v8518 = vand.u32 %v1348, 4294901760
        %8519 = vmatprep.subr.mxu0 %v8518
        %v8520 = vand.u32 %v1347, 4294901760
        %8521 = vmatpush1.msra.mxu0 %v8520
        %v8522 = vand.u32 %v1350, 4294901760
        %8523 = vmatprep.subr.mxu0 %v8522
        %v8524 = vand.u32 %v1349, 4294901760
        %8525 = vmatpush1.msra.mxu0 %v8524
        %v8526 = vand.u32 %v1352, 4294901760
        %8527 = vmatprep.subr.mxu0 %v8526
        %v8528 = vand.u32 %v1351, 4294901760
        %8529 = vmatpush1.msra.mxu0 %v8528
        %v8530 = vand.u32 %v1354, 4294901760
        %8531 = vmatprep.subr.mxu0 %v8530
        %v8532 = vand.u32 %v1353, 4294901760
        %8533 = vmatpush1.msra.mxu0 %v8532
        %v8534 = vand.u32 %v1356, 4294901760
        %8535 = vmatprep.subr.mxu0 %v8534
        %v8536 = vand.u32 %v1355, 4294901760
        %8537 = vmatpush1.msra.mxu0 %v8536
        %v8538 = vand.u32 %v1358, 4294901760
        %8539 = vmatprep.subr.mxu0 %v8538
        %v8540 = vand.u32 %v1357, 4294901760
        %8541 = vmatpush1.msra.mxu0 %v8540
        %v8542 = vand.u32 %v4448, 4294901760
        %v8543 = vsub.f32 %v4448, %v8542
        %v8544 = vand.u32 %v8543, 4294901760
        %8545 = vmatprep.mubr.f32.mxu0 %v8544
        %v8546 = vand.u32 %v4447, 4294901760
        %v8547 = vsub.f32 %v4447, %v8546
        %v8548 = vand.u32 %v8547, 4294901760
        %8549 = vmatmul.mubr.f32.gmra.mrb[0].mxu0 %v8548
        %v8550 = vpop.f32.mrb[0].mxu0
        %v8551 = vadd.f32 %v8370, %v8550
        %v8552 = vpop.f32.mrb[0].mxu0
        %v8553 = vadd.f32 %v8372, %v8552
        %v8554 = vand.u32 %v4454, 4294901760
        %v8555 = vsub.f32 %v4454, %v8554
        %v8556 = vand.u32 %v8555, 4294901760
        %8557 = vmatprep.mubr.f32.mxu0 %v8556
        %v8558 = vand.u32 %v4453, 4294901760
        %v8559 = vsub.f32 %v4453, %v8558
        %v8560 = vand.u32 %v8559, 4294901760
        %8561 = vmatmul.mubr.f32.gmra.mrb[0].mxu0 %v8560
        %v8562 = vpop.f32.mrb[0].mxu0
        %v8563 = vadd.f32 %v8380, %v8562
        %v8564 = vpop.f32.mrb[0].mxu0
        %v8565 = vadd.f32 %v8382, %v8564
        %v8566 = vand.u32 %v4460, 4294901760
        %v8567 = vsub.f32 %v4460, %v8566
        %v8568 = vand.u32 %v8567, 4294901760
        %8569 = vmatprep.mubr.f32.mxu0 %v8568
        %v8570 = vand.u32 %v4459, 4294901760
        %v8571 = vsub.f32 %v4459, %v8570
        %v8572 = vand.u32 %v8571, 4294901760
        %8573 = vmatmul.mubr.f32.gmra.mrb[0].mxu0 %v8572
        %v8574 = vpop.f32.mrb[0].mxu0
        %v8575 = vadd.f32 %v8390, %v8574
        %v8576 = vpop.f32.mrb[0].mxu0
        %v8577 = vadd.f32 %v8392, %v8576
        %v8578 = vand.u32 %v4466, 4294901760
        %v8579 = vsub.f32 %v4466, %v8578
        %v8580 = vand.u32 %v8579, 4294901760
        %8581 = vmatprep.mubr.f32.mxu0 %v8580
        %v8582 = vand.u32 %v4465, 4294901760
        %v8583 = vsub.f32 %v4465, %v8582
        %v8584 = vand.u32 %v8583, 4294901760
        %8585 = vmatmul.mubr.f32.gmra.mrb[0].mxu0 %v8584
        %v8586 = vpop.f32.mrb[0].mxu0
        %v8587 = vadd.f32 %v8400, %v8586
        %v8588 = vpop.f32.mrb[0].mxu0
        %v8589 = vadd.f32 %v8402, %v8588
        %v8590 = vand.u32 %v4472, 4294901760
        %v8591 = vsub.f32 %v4472, %v8590
        %v8592 = vand.u32 %v8591, 4294901760
        %8593 = vmatprep.mubr.f32.mxu0 %v8592
        %v8594 = vand.u32 %v4471, 4294901760
        %v8595 = vsub.f32 %v4471, %v8594
        %v8596 = vand.u32 %v8595, 4294901760
        %8597 = vmatmul.mubr.f32.gmra.mrb[0].mxu0 %v8596
        %v8598 = vpop.f32.mrb[0].mxu0
        %v8599 = vadd.f32 %v8410, %v8598
        %v8600 = vpop.f32.mrb[0].mxu0
        %v8601 = vadd.f32 %v8412, %v8600
        %8602 = vdwg.mxu0
        %v8603 = vand.u32 %v1296, 4294901760
        %v8604 = vsub.f32 %v1296, %v8603
        %v8605 = vand.u32 %v8604, 4294901760
        %8606 = vmatprep.subr.mxu0 %v8605
        %v8607 = vand.u32 %v1295, 4294901760
        %v8608 = vsub.f32 %v1295, %v8607
        %v8609 = vand.u32 %v8608, 4294901760
        %8610 = vmatpush1.msra.mxu0 %v8609
        %v8611 = vand.u32 %v1298, 4294901760
        %v8612 = vsub.f32 %v1298, %v8611
        %v8613 = vand.u32 %v8612, 4294901760
        %8614 = vmatprep.subr.mxu0 %v8613
        %v8615 = vand.u32 %v1297, 4294901760
        %v8616 = vsub.f32 %v1297, %v8615
        %v8617 = vand.u32 %v8616, 4294901760
        %8618 = vmatpush1.msra.mxu0 %v8617
        %v8619 = vand.u32 %v1300, 4294901760
        %v8620 = vsub.f32 %v1300, %v8619
        %v8621 = vand.u32 %v8620, 4294901760
        %8622 = vmatprep.subr.mxu0 %v8621
        %v8623 = vand.u32 %v1299, 4294901760
        %v8624 = vsub.f32 %v1299, %v8623
        %v8625 = vand.u32 %v8624, 4294901760
        %8626 = vmatpush1.msra.mxu0 %v8625
        %v8627 = vand.u32 %v1302, 4294901760
        %v8628 = vsub.f32 %v1302, %v8627
        %v8629 = vand.u32 %v8628, 4294901760
        %8630 = vmatprep.subr.mxu0 %v8629
        %v8631 = vand.u32 %v1301, 4294901760
        %v8632 = vsub.f32 %v1301, %v8631
        %v8633 = vand.u32 %v8632, 4294901760
        %8634 = vmatpush1.msra.mxu0 %v8633
        %v8635 = vand.u32 %v1304, 4294901760
        %v8636 = vsub.f32 %v1304, %v8635
        %v8637 = vand.u32 %v8636, 4294901760
        %8638 = vmatprep.subr.mxu0 %v8637
        %v8639 = vand.u32 %v1303, 4294901760
        %v8640 = vsub.f32 %v1303, %v8639
        %v8641 = vand.u32 %v8640, 4294901760
        %8642 = vmatpush1.msra.mxu0 %v8641
        %v8643 = vand.u32 %v1306, 4294901760
        %v8644 = vsub.f32 %v1306, %v8643
        %v8645 = vand.u32 %v8644, 4294901760
        %8646 = vmatprep.subr.mxu0 %v8645
        %v8647 = vand.u32 %v1305, 4294901760
        %v8648 = vsub.f32 %v1305, %v8647
        %v8649 = vand.u32 %v8648, 4294901760
        %8650 = vmatpush1.msra.mxu0 %v8649
        %v8651 = vand.u32 %v1308, 4294901760
        %v8652 = vsub.f32 %v1308, %v8651
        %v8653 = vand.u32 %v8652, 4294901760
        %8654 = vmatprep.subr.mxu0 %v8653
        %v8655 = vand.u32 %v1307, 4294901760
        %v8656 = vsub.f32 %v1307, %v8655
        %v8657 = vand.u32 %v8656, 4294901760
        %8658 = vmatpush1.msra.mxu0 %v8657
        %v8659 = vand.u32 %v1310, 4294901760
        %v8660 = vsub.f32 %v1310, %v8659
        %v8661 = vand.u32 %v8660, 4294901760
        %8662 = vmatprep.subr.mxu0 %v8661
        %v8663 = vand.u32 %v1309, 4294901760
        %v8664 = vsub.f32 %v1309, %v8663
        %v8665 = vand.u32 %v8664, 4294901760
        %8666 = vmatpush1.msra.mxu0 %v8665
        %v8667 = vand.u32 %v1312, 4294901760
        %v8668 = vsub.f32 %v1312, %v8667
        %v8669 = vand.u32 %v8668, 4294901760
        %8670 = vmatprep.subr.mxu0 %v8669
        %v8671 = vand.u32 %v1311, 4294901760
        %v8672 = vsub.f32 %v1311, %v8671
        %v8673 = vand.u32 %v8672, 4294901760
        %8674 = vmatpush1.msra.mxu0 %v8673
        %v8675 = vand.u32 %v1314, 4294901760
        %v8676 = vsub.f32 %v1314, %v8675
        %v8677 = vand.u32 %v8676, 4294901760
        %8678 = vmatprep.subr.mxu0 %v8677
        %v8679 = vand.u32 %v1313, 4294901760
        %v8680 = vsub.f32 %v1313, %v8679
        %v8681 = vand.u32 %v8680, 4294901760
        %8682 = vmatpush1.msra.mxu0 %v8681
        %v8683 = vand.u32 %v1316, 4294901760
        %v8684 = vsub.f32 %v1316, %v8683
        %v8685 = vand.u32 %v8684, 4294901760
        %8686 = vmatprep.subr.mxu0 %v8685
        %v8687 = vand.u32 %v1315, 4294901760
        %v8688 = vsub.f32 %v1315, %v8687
        %v8689 = vand.u32 %v8688, 4294901760
        %8690 = vmatpush1.msra.mxu0 %v8689
        %v8691 = vand.u32 %v1318, 4294901760
        %v8692 = vsub.f32 %v1318, %v8691
        %v8693 = vand.u32 %v8692, 4294901760
        %8694 = vmatprep.subr.mxu0 %v8693
        %v8695 = vand.u32 %v1317, 4294901760
        %v8696 = vsub.f32 %v1317, %v8695
        %v8697 = vand.u32 %v8696, 4294901760
        %8698 = vmatpush1.msra.mxu0 %v8697
        %v8699 = vand.u32 %v1320, 4294901760
        %v8700 = vsub.f32 %v1320, %v8699
        %v8701 = vand.u32 %v8700, 4294901760
        %8702 = vmatprep.subr.mxu0 %v8701
        %v8703 = vand.u32 %v1319, 4294901760
        %v8704 = vsub.f32 %v1319, %v8703
        %v8705 = vand.u32 %v8704, 4294901760
        %8706 = vmatpush1.msra.mxu0 %v8705
        %v8707 = vand.u32 %v1322, 4294901760
        %v8708 = vsub.f32 %v1322, %v8707
        %v8709 = vand.u32 %v8708, 4294901760
        %8710 = vmatprep.subr.mxu0 %v8709
        %v8711 = vand.u32 %v1321, 4294901760
        %v8712 = vsub.f32 %v1321, %v8711
        %v8713 = vand.u32 %v8712, 4294901760
        %8714 = vmatpush1.msra.mxu0 %v8713
        %v8715 = vand.u32 %v1324, 4294901760
        %v8716 = vsub.f32 %v1324, %v8715
        %v8717 = vand.u32 %v8716, 4294901760
        %8718 = vmatprep.subr.mxu0 %v8717
        %v8719 = vand.u32 %v1323, 4294901760
        %v8720 = vsub.f32 %v1323, %v8719
        %v8721 = vand.u32 %v8720, 4294901760
        %8722 = vmatpush1.msra.mxu0 %v8721
        %v8723 = vand.u32 %v1326, 4294901760
        %v8724 = vsub.f32 %v1326, %v8723
        %v8725 = vand.u32 %v8724, 4294901760
        %8726 = vmatprep.subr.mxu0 %v8725
        %v8727 = vand.u32 %v1325, 4294901760
        %v8728 = vsub.f32 %v1325, %v8727
        %v8729 = vand.u32 %v8728, 4294901760
        %8730 = vmatpush1.msra.mxu0 %v8729
        %v8731 = vand.u32 %v1328, 4294901760
        %v8732 = vsub.f32 %v1328, %v8731
        %v8733 = vand.u32 %v8732, 4294901760
        %8734 = vmatprep.subr.mxu0 %v8733
        %v8735 = vand.u32 %v1327, 4294901760
        %v8736 = vsub.f32 %v1327, %v8735
        %v8737 = vand.u32 %v8736, 4294901760
        %8738 = vmatpush1.msra.mxu0 %v8737
        %v8739 = vand.u32 %v1330, 4294901760
        %v8740 = vsub.f32 %v1330, %v8739
        %v8741 = vand.u32 %v8740, 4294901760
        %8742 = vmatprep.subr.mxu0 %v8741
        %v8743 = vand.u32 %v1329, 4294901760
        %v8744 = vsub.f32 %v1329, %v8743
        %v8745 = vand.u32 %v8744, 4294901760
        %8746 = vmatpush1.msra.mxu0 %v8745
        %v8747 = vand.u32 %v1332, 4294901760
        %v8748 = vsub.f32 %v1332, %v8747
        %v8749 = vand.u32 %v8748, 4294901760
        %8750 = vmatprep.subr.mxu0 %v8749
        %v8751 = vand.u32 %v1331, 4294901760
        %v8752 = vsub.f32 %v1331, %v8751
        %v8753 = vand.u32 %v8752, 4294901760
        %8754 = vmatpush1.msra.mxu0 %v8753
        %v8755 = vand.u32 %v1334, 4294901760
        %v8756 = vsub.f32 %v1334, %v8755
        %v8757 = vand.u32 %v8756, 4294901760
        %8758 = vmatprep.subr.mxu0 %v8757
        %v8759 = vand.u32 %v1333, 4294901760
        %v8760 = vsub.f32 %v1333, %v8759
        %v8761 = vand.u32 %v8760, 4294901760
        %8762 = vmatpush1.msra.mxu0 %v8761
        %v8763 = vand.u32 %v1336, 4294901760
        %v8764 = vsub.f32 %v1336, %v8763
        %v8765 = vand.u32 %v8764, 4294901760
        %8766 = vmatprep.subr.mxu0 %v8765
        %v8767 = vand.u32 %v1335, 4294901760
        %v8768 = vsub.f32 %v1335, %v8767
        %v8769 = vand.u32 %v8768, 4294901760
        %8770 = vmatpush1.msra.mxu0 %v8769
        %v8771 = vand.u32 %v1338, 4294901760
        %v8772 = vsub.f32 %v1338, %v8771
        %v8773 = vand.u32 %v8772, 4294901760
        %8774 = vmatprep.subr.mxu0 %v8773
        %v8775 = vand.u32 %v1337, 4294901760
        %v8776 = vsub.f32 %v1337, %v8775
        %v8777 = vand.u32 %v8776, 4294901760
        %8778 = vmatpush1.msra.mxu0 %v8777
        %v8779 = vand.u32 %v1340, 4294901760
        %v8780 = vsub.f32 %v1340, %v8779
        %v8781 = vand.u32 %v8780, 4294901760
        %8782 = vmatprep.subr.mxu0 %v8781
        %v8783 = vand.u32 %v1339, 4294901760
        %v8784 = vsub.f32 %v1339, %v8783
        %v8785 = vand.u32 %v8784, 4294901760
        %8786 = vmatpush1.msra.mxu0 %v8785
        %v8787 = vand.u32 %v1342, 4294901760
        %v8788 = vsub.f32 %v1342, %v8787
        %v8789 = vand.u32 %v8788, 4294901760
        %8790 = vmatprep.subr.mxu0 %v8789
        %v8791 = vand.u32 %v1341, 4294901760
        %v8792 = vsub.f32 %v1341, %v8791
        %v8793 = vand.u32 %v8792, 4294901760
        %8794 = vmatpush1.msra.mxu0 %v8793
        %v8795 = vand.u32 %v1344, 4294901760
        %v8796 = vsub.f32 %v1344, %v8795
        %v8797 = vand.u32 %v8796, 4294901760
        %8798 = vmatprep.subr.mxu0 %v8797
        %v8799 = vand.u32 %v1343, 4294901760
        %v8800 = vsub.f32 %v1343, %v8799
        %v8801 = vand.u32 %v8800, 4294901760
        %8802 = vmatpush1.msra.mxu0 %v8801
        %v8803 = vand.u32 %v1346, 4294901760
        %v8804 = vsub.f32 %v1346, %v8803
        %v8805 = vand.u32 %v8804, 4294901760
        %8806 = vmatprep.subr.mxu0 %v8805
        %v8807 = vand.u32 %v1345, 4294901760
        %v8808 = vsub.f32 %v1345, %v8807
        %v8809 = vand.u32 %v8808, 4294901760
        %8810 = vmatpush1.msra.mxu0 %v8809
        %v8811 = vand.u32 %v1348, 4294901760
        %v8812 = vsub.f32 %v1348, %v8811
        %v8813 = vand.u32 %v8812, 4294901760
        %8814 = vmatprep.subr.mxu0 %v8813
        %v8815 = vand.u32 %v1347, 4294901760
        %v8816 = vsub.f32 %v1347, %v8815
        %v8817 = vand.u32 %v8816, 4294901760
        %8818 = vmatpush1.msra.mxu0 %v8817
        %v8819 = vand.u32 %v1350, 4294901760
        %v8820 = vsub.f32 %v1350, %v8819
        %v8821 = vand.u32 %v8820, 4294901760
        %8822 = vmatprep.subr.mxu0 %v8821
        %v8823 = vand.u32 %v1349, 4294901760
        %v8824 = vsub.f32 %v1349, %v8823
        %v8825 = vand.u32 %v8824, 4294901760
        %8826 = vmatpush1.msra.mxu0 %v8825
        %v8827 = vand.u32 %v1352, 4294901760
        %v8828 = vsub.f32 %v1352, %v8827
        %v8829 = vand.u32 %v8828, 4294901760
        %8830 = vmatprep.subr.mxu0 %v8829
        %v8831 = vand.u32 %v1351, 4294901760
        %v8832 = vsub.f32 %v1351, %v8831
        %v8833 = vand.u32 %v8832, 4294901760
        %8834 = vmatpush1.msra.mxu0 %v8833
        %v8835 = vand.u32 %v1354, 4294901760
        %v8836 = vsub.f32 %v1354, %v8835
        %v8837 = vand.u32 %v8836, 4294901760
        %8838 = vmatprep.subr.mxu0 %v8837
        %v8839 = vand.u32 %v1353, 4294901760
        %v8840 = vsub.f32 %v1353, %v8839
        %v8841 = vand.u32 %v8840, 4294901760
        %8842 = vmatpush1.msra.mxu0 %v8841
        %v8843 = vand.u32 %v1356, 4294901760
        %v8844 = vsub.f32 %v1356, %v8843
        %v8845 = vand.u32 %v8844, 4294901760
        %8846 = vmatprep.subr.mxu0 %v8845
        %v8847 = vand.u32 %v1355, 4294901760
        %v8848 = vsub.f32 %v1355, %v8847
        %v8849 = vand.u32 %v8848, 4294901760
        %8850 = vmatpush1.msra.mxu0 %v8849
        %v8851 = vand.u32 %v1358, 4294901760
        %v8852 = vsub.f32 %v1358, %v8851
        %v8853 = vand.u32 %v8852, 4294901760
        %8854 = vmatprep.subr.mxu0 %v8853
        %v8855 = vand.u32 %v1357, 4294901760
        %v8856 = vsub.f32 %v1357, %v8855
        %v8857 = vand.u32 %v8856, 4294901760
        %8858 = vmatpush1.msra.mxu0 %v8857
        %v8859 = vand.u32 %v4448, 4294901760
        %8860 = vmatprep.mubr.f32.mxu0 %v8859
        %v8861 = vand.u32 %v4447, 4294901760
        %8862 = vmatmul.mubr.f32.gmra.mrb[0].mxu0 %v8861
        %v8863 = vpop.f32.mrb[0].mxu0
        %v8864 = vadd.f32 %v8551, %v8863
        %v8865 = vpop.f32.mrb[0].mxu0
        %v8866 = vadd.f32 %v8553, %v8865
        %v8867 = vand.u32 %v4454, 4294901760
        %8868 = vmatprep.mubr.f32.mxu0 %v8867
        %v8869 = vand.u32 %v4453, 4294901760
        %8870 = vmatmul.mubr.f32.gmra.mrb[0].mxu0 %v8869
        %v8871 = vpop.f32.mrb[0].mxu0
        %v8872 = vadd.f32 %v8563, %v8871
        %v8873 = vpop.f32.mrb[0].mxu0
        %v8874 = vadd.f32 %v8565, %v8873
        %v8875 = vand.u32 %v4460, 4294901760
        %8876 = vmatprep.mubr.f32.mxu0 %v8875
        %v8877 = vand.u32 %v4459, 4294901760
        %8878 = vmatmul.mubr.f32.gmra.mrb[0].mxu0 %v8877
        %v8879 = vpop.f32.mrb[0].mxu0
        %v8880 = vadd.f32 %v8575, %v8879
        %v8881 = vpop.f32.mrb[0].mxu0
        %v8882 = vadd.f32 %v8577, %v8881
        %v8883 = vand.u32 %v4466, 4294901760
        %8884 = vmatprep.mubr.f32.mxu0 %v8883
        %v8885 = vand.u32 %v4465, 4294901760
        %8886 = vmatmul.mubr.f32.gmra.mrb[0].mxu0 %v8885
        %v8887 = vpop.f32.mrb[0].mxu0
        %v8888 = vadd.f32 %v8587, %v8887
        %v8889 = vpop.f32.mrb[0].mxu0
        %v8890 = vadd.f32 %v8589, %v8889
        %v8891 = vand.u32 %v4472, 4294901760
        %8892 = vmatprep.mubr.f32.mxu0 %v8891
        %v8893 = vand.u32 %v4471, 4294901760
        %8894 = vmatmul.mubr.f32.gmra.mrb[0].mxu0 %v8893
        %v8895 = vpop.f32.mrb[0].mxu0
        %v8896 = vadd.f32 %v8599, %v8895
        %v8897 = vpop.f32.mrb[0].mxu0
        %v8898 = vadd.f32 %v8601, %v8897
        %8899 = vdwg.mxu0
        %v8900 = vand.u32 %v1296, 4294901760
        %8901 = vmatprep.subr.mxu0 %v8900
        %v8902 = vand.u32 %v1295, 4294901760
        %8903 = vmatpush1.msra.mxu0 %v8902
        %v8904 = vand.u32 %v1298, 4294901760
        %8905 = vmatprep.subr.mxu0 %v8904
        %v8906 = vand.u32 %v1297, 4294901760
        %8907 = vmatpush1.msra.mxu0 %v8906
        %v8908 = vand.u32 %v1300, 4294901760
        %8909 = vmatprep.subr.mxu0 %v8908
        %v8910 = vand.u32 %v1299, 4294901760
        %8911 = vmatpush1.msra.mxu0 %v8910
        %v8912 = vand.u32 %v1302, 4294901760
        %8913 = vmatprep.subr.mxu0 %v8912
        %v8914 = vand.u32 %v1301, 4294901760
        %8915 = vmatpush1.msra.mxu0 %v8914
        %v8916 = vand.u32 %v1304, 4294901760
        %8917 = vmatprep.subr.mxu0 %v8916
        %v8918 = vand.u32 %v1303, 4294901760
        %8919 = vmatpush1.msra.mxu0 %v8918
        %v8920 = vand.u32 %v1306, 4294901760
        %8921 = vmatprep.subr.mxu0 %v8920
        %v8922 = vand.u32 %v1305, 4294901760
        %8923 = vmatpush1.msra.mxu0 %v8922
        %v8924 = vand.u32 %v1308, 4294901760
        %8925 = vmatprep.subr.mxu0 %v8924
        %v8926 = vand.u32 %v1307, 4294901760
        %8927 = vmatpush1.msra.mxu0 %v8926
        %v8928 = vand.u32 %v1310, 4294901760
        %8929 = vmatprep.subr.mxu0 %v8928
        %v8930 = vand.u32 %v1309, 4294901760
        %8931 = vmatpush1.msra.mxu0 %v8930
        %v8932 = vand.u32 %v1312, 4294901760
        %8933 = vmatprep.subr.mxu0 %v8932
        %v8934 = vand.u32 %v1311, 4294901760
        %8935 = vmatpush1.msra.mxu0 %v8934
        %v8936 = vand.u32 %v1314, 4294901760
        %8937 = vmatprep.subr.mxu0 %v8936
        %v8938 = vand.u32 %v1313, 4294901760
        %8939 = vmatpush1.msra.mxu0 %v8938
        %v8940 = vand.u32 %v1316, 4294901760
        %8941 = vmatprep.subr.mxu0 %v8940
        %v8942 = vand.u32 %v1315, 4294901760
        %8943 = vmatpush1.msra.mxu0 %v8942
        %v8944 = vand.u32 %v1318, 4294901760
        %8945 = vmatprep.subr.mxu0 %v8944
        %v8946 = vand.u32 %v1317, 4294901760
        %8947 = vmatpush1.msra.mxu0 %v8946
        %v8948 = vand.u32 %v1320, 4294901760
        %8949 = vmatprep.subr.mxu0 %v8948
        %v8950 = vand.u32 %v1319, 4294901760
        %8951 = vmatpush1.msra.mxu0 %v8950
        %v8952 = vand.u32 %v1322, 4294901760
        %8953 = vmatprep.subr.mxu0 %v8952
        %v8954 = vand.u32 %v1321, 4294901760
        %8955 = vmatpush1.msra.mxu0 %v8954
        %v8956 = vand.u32 %v1324, 4294901760
        %8957 = vmatprep.subr.mxu0 %v8956
        %v8958 = vand.u32 %v1323, 4294901760
        %8959 = vmatpush1.msra.mxu0 %v8958
        %v8960 = vand.u32 %v1326, 4294901760
        %8961 = vmatprep.subr.mxu0 %v8960
        %v8962 = vand.u32 %v1325, 4294901760
        %8963 = vmatpush1.msra.mxu0 %v8962
        %v8964 = vand.u32 %v1328, 4294901760
        %8965 = vmatprep.subr.mxu0 %v8964
        %v8966 = vand.u32 %v1327, 4294901760
        %8967 = vmatpush1.msra.mxu0 %v8966
        %v8968 = vand.u32 %v1330, 4294901760
        %8969 = vmatprep.subr.mxu0 %v8968
        %v8970 = vand.u32 %v1329, 4294901760
        %8971 = vmatpush1.msra.mxu0 %v8970
        %v8972 = vand.u32 %v1332, 4294901760
        %8973 = vmatprep.subr.mxu0 %v8972
        %v8974 = vand.u32 %v1331, 4294901760
        %8975 = vmatpush1.msra.mxu0 %v8974
        %v8976 = vand.u32 %v1334, 4294901760
        %8977 = vmatprep.subr.mxu0 %v8976
        %v8978 = vand.u32 %v1333, 4294901760
        %8979 = vmatpush1.msra.mxu0 %v8978
        %v8980 = vand.u32 %v1336, 4294901760
        %8981 = vmatprep.subr.mxu0 %v8980
        %v8982 = vand.u32 %v1335, 4294901760
        %8983 = vmatpush1.msra.mxu0 %v8982
        %v8984 = vand.u32 %v1338, 4294901760
        %8985 = vmatprep.subr.mxu0 %v8984
        %v8986 = vand.u32 %v1337, 4294901760
        %8987 = vmatpush1.msra.mxu0 %v8986
        %v8988 = vand.u32 %v1340, 4294901760
        %8989 = vmatprep.subr.mxu0 %v8988
        %v8990 = vand.u32 %v1339, 4294901760
        %8991 = vmatpush1.msra.mxu0 %v8990
        %v8992 = vand.u32 %v1342, 4294901760
        %8993 = vmatprep.subr.mxu0 %v8992
        %v8994 = vand.u32 %v1341, 4294901760
        %8995 = vmatpush1.msra.mxu0 %v8994
        %v8996 = vand.u32 %v1344, 4294901760
        %8997 = vmatprep.subr.mxu0 %v8996
        %v8998 = vand.u32 %v1343, 4294901760
        %8999 = vmatpush1.msra.mxu0 %v8998
        %v9000 = vand.u32 %v1346, 4294901760
        %9001 = vmatprep.subr.mxu0 %v9000
        %v9002 = vand.u32 %v1345, 4294901760
        %9003 = vmatpush1.msra.mxu0 %v9002
        %v9004 = vand.u32 %v1348, 4294901760
        %9005 = vmatprep.subr.mxu0 %v9004
        %v9006 = vand.u32 %v1347, 4294901760
        %9007 = vmatpush1.msra.mxu0 %v9006
        %v9008 = vand.u32 %v1350, 4294901760
        %9009 = vmatprep.subr.mxu0 %v9008
        %v9010 = vand.u32 %v1349, 4294901760
        %9011 = vmatpush1.msra.mxu0 %v9010
        %v9012 = vand.u32 %v1352, 4294901760
        %9013 = vmatprep.subr.mxu0 %v9012
        %v9014 = vand.u32 %v1351, 4294901760
        %9015 = vmatpush1.msra.mxu0 %v9014
        %v9016 = vand.u32 %v1354, 4294901760
        %9017 = vmatprep.subr.mxu0 %v9016
        %v9018 = vand.u32 %v1353, 4294901760
        %9019 = vmatpush1.msra.mxu0 %v9018
        %v9020 = vand.u32 %v1356, 4294901760
        %9021 = vmatprep.subr.mxu0 %v9020
        %v9022 = vand.u32 %v1355, 4294901760
        %9023 = vmatpush1.msra.mxu0 %v9022
        %v9024 = vand.u32 %v1358, 4294901760
        %9025 = vmatprep.subr.mxu0 %v9024
        %v9026 = vand.u32 %v1357, 4294901760
        %9027 = vmatpush1.msra.mxu0 %v9026
        %v9028 = vand.u32 %v4448, 4294901760
        %9029 = vmatprep.mubr.f32.mxu0 %v9028
        %v9030 = vand.u32 %v4447, 4294901760
        %9031 = vmatmul.mubr.f32.gmra.mrb[0].mxu0 %v9030
        %v9032 = vpop.f32.mrb[0].mxu0
        %v9033 = vadd.f32 %v8864, %v9032
        %v9034 = vpop.f32.mrb[0].mxu0
        %v9035 = vadd.f32 %v8866, %v9034
        %v9036 = vand.u32 %v4454, 4294901760
        %9037 = vmatprep.mubr.f32.mxu0 %v9036
        %v9038 = vand.u32 %v4453, 4294901760
        %9039 = vmatmul.mubr.f32.gmra.mrb[0].mxu0 %v9038
        %v9040 = vpop.f32.mrb[0].mxu0
        %v9041 = vadd.f32 %v8872, %v9040
        %v9042 = vpop.f32.mrb[0].mxu0
        %v9043 = vadd.f32 %v8874, %v9042
        %v9044 = vand.u32 %v4460, 4294901760
        %9045 = vmatprep.mubr.f32.mxu0 %v9044
        %v9046 = vand.u32 %v4459, 4294901760
        %9047 = vmatmul.mubr.f32.gmra.mrb[0].mxu0 %v9046
        %v9048 = vpop.f32.mrb[0].mxu0
        %v9049 = vadd.f32 %v8880, %v9048
        %v9050 = vpop.f32.mrb[0].mxu0
        %v9051 = vadd.f32 %v8882, %v9050
        %v9052 = vand.u32 %v4466, 4294901760
        %9053 = vmatprep.mubr.f32.mxu0 %v9052
        %v9054 = vand.u32 %v4465, 4294901760
        %9055 = vmatmul.mubr.f32.gmra.mrb[0].mxu0 %v9054
        %v9056 = vpop.f32.mrb[0].mxu0
        %v9057 = vadd.f32 %v8888, %v9056
        %v9058 = vpop.f32.mrb[0].mxu0
        %v9059 = vadd.f32 %v8890, %v9058
        %v9060 = vand.u32 %v4472, 4294901760
        %9061 = vmatprep.mubr.f32.mxu0 %v9060
        %v9062 = vand.u32 %v4471, 4294901760
        %9063 = vmatmul.mubr.f32.gmra.mrb[0].mxu0 %v9062
        %v9064 = vpop.f32.mrb[0].mxu0
        %v9065 = vadd.f32 %v8896, %v9064
        %v9066 = vpop.f32.mrb[0].mxu0
        %v9067 = vadd.f32 %v8898, %v9066
        %9068 = vdwg.mxu0
        %v9069 = vmul.f32 %v4407, %v9033
        %v9070 = vmul.f32 %v4409, %v9035
        %v9071 = vmul.f32 %v4415, %v9041
        %v9072 = vmul.f32 %v4417, %v9043
        %v9073 = vmul.f32 %v4423, %v9049
        %v9074 = vmul.f32 %v4425, %v9051
        %v9075 = vmul.f32 %v4431, %v9057
        %v9076 = vmul.f32 %v4433, %v9059
        %v9077 = vmul.f32 %v4439, %v9065
        %v9078 = vmul.f32 %v4441, %v9067
        %v9079 = vadd.f32 %v9069, %v9071
        %v9080 = vadd.f32 %v9079, %v9073
        %v9081 = vadd.f32 %v9080, %v9075
        %v9082 = vadd.f32 %v9081, %v9077
        %v9083 = vrot.slane %v9082, 4
        %v9084 = vadd.f32 %v9082, %v9083
        %v9085 = vrot.slane %v9084, 2
        %v9086 = vadd.f32 %v9084, %v9085
        %v9087 = vrot.slane %v9086, 1
        %v9088 = vadd.f32 %v9086, %v9087
        %v9089 = vadd.f32 %v9070, %v9072
        %v9090 = vadd.f32 %v9089, %v9074
        %v9091 = vadd.f32 %v9090, %v9076
        %v9092 = vadd.f32 %v9091, %v9078
        %v9093 = vrot.slane %v9092, 4
        %v9094 = vadd.f32 %v9092, %v9093
        %v9095 = vrot.slane %v9094, 2
        %v9096 = vadd.f32 %v9094, %v9095
        %v9097 = vrot.slane %v9096, 1
        %v9098 = vadd.f32 %v9096, %v9097
        %v9101 = vcombine.low %v9088, %v9098
        %v9103 = vunpack.c.l.s4 1966171168
        %v9104 = vunpack.c.0.s8 %v9103
        %v9105 = vlaneseq
        %v9106 = vshrl.u32 %v9105, 7
        %v9107 = vsub.s32 %v9104, %v9106
        %v9108 = vrot.slane %v9101, %v9107
        %v9110 = vunpack.c.l.s4 1966171168
        %v9111 = vunpack.c.0.s8 %v9110
        %v9112 = vlaneseq
        %v9113 = vshrl.u32 %v9112, 7
        %v9114 = vsub.s32 %v9111, %v9113
        %v9115 = vrot.slane %v9108, %v9114
        %v9117 = vlaneseq
        %vm9118 = vcmp.ge.s32.totalorder %v9117, 0
        %vm9119 = vcmp.lt.s32.totalorder %v9117, 256
        %vm9120 = vmand %vm9118, %vm9119
        %9121 = vst.msk [vmem:[%s280] sm:$0x3] %vm9120, %v9115
        %s9122 = sand.u32 %s127, 1
        %s9123 = scalar_lea.sflag [#allocation4], %s9122
        %s9124 = sand.u32 %s127, 1
        %s9125 = smul.addr %s9124, 2
        %s9126 = scalar_lea.vmem [#allocation10], %s9125
        // Predicated region
        $region53: #{tpu_custom_call.1} parent=35 // pred_check
          %p9127 = pneg %p137
        $region54: #{tpu_custom_call.1} parent=35 // pred_check_branch
          %9129 = sbr.rel (%p9127) target = $region56
        $region55: #{tpu_custom_call.1} parent=35 // pred_region
          %s9130 = smul.u32 2, %s25
          %s9132 = ssub.s32 32, 32
          %9133 = vsyncadd %s9123, %s9132
          %s9134 = smul.addr %s9130, 16
          %s9135 = scalar_lea.hbm %s4, %s9134
          %s9137 = sshll.u32 %s9126, 4
          %s9138 = int_to_ptr.vmem [resolvable:$true] %s9137
          %9140 = dma.vmem_to_hbm [thread:$0]  %s9138, 32, %s9135, %s9123
        $region56: #{tpu_custom_call.1} parent=35 // pred_fallthru
          _
      $region36: #{tpu_custom_call.1} parent=5 // pred_fallthru
        _
      %p9141 = scmp.le.s32.totalorder 2, %s20
      // Predicated region
      $region57: #{tpu_custom_call.1} parent=5 // pred_check
        %p9142 = pneg %p9141
      $region58: #{tpu_custom_call.1} parent=5 // pred_check_branch
        %9144 = sbr.rel (%p9142) target = $region60
      $region59: #{tpu_custom_call.1} parent=5 // pred_region
        %s9145 = ssub.s32 %s20, 2
        // Predicated region
        $region61: #{tpu_custom_call.1} parent=59 // pred_check
          %p9146 = pneg %p143
        $region62: #{tpu_custom_call.1} parent=59 // pred_check_branch
          %9148 = sbr.rel (%p9146) target = $region64
        $region63: #{tpu_custom_call.1} parent=59 // pred_region
          %s9149 = sand.u32 %s128, 1
          %s9150 = scalar_lea.sflag [#allocation4], %s9149
          %s9151 = sand.u32 %s128, 1
          %s9152 = smul.addr %s9151, 2
          %s9153 = scalar_lea.vmem [#allocation10], %s9152
          %9154 = dma.done %s9150, 32
        $region64: #{tpu_custom_call.1} parent=59 // pred_fallthru
          _
      $region60: #{tpu_custom_call.1} parent=5 // pred_fallthru
        _
    $region6: #{tpu_custom_call.1} parent=1 // loop_footer
      %s24 = sadd.s32 1, %s20
    $region7: #{tpu_custom_call.1} parent=1 // loop_footer_branch
      %19 = sbr.rel target = $region3
    $region8: #{tpu_custom_call.1} parent=1 // loop_exit
      _
    %9155 = vsyncpa [#allocation3], 1
    %s9156 = scalar_lea.sflag [#allocation3], 1
    %9157 = vsyncpa %s9156, 1
    %9158 = vsyncpa [#allocation6], 1
    %s9159 = scalar_lea.sflag [#allocation6], 1
    %9160 = vsyncpa %s9159, 1
    %9161 = vsyncpa [#allocation9], 1
    %9162 = vsyncpa [#allocation4], 1
    %s9163 = scalar_lea.sflag [#allocation4], 1
    %9164 = vsyncpa %s9163, 1

</llo_original>
